<compile_context>
chip_gen: v6e
topology: v6e:2x2x1
jax: 0.10.0
libtpu: 0.0.40
codegen_flags: <defaults>
</compile_context>

<pallas_src>
import functools
import math

import jax
import jax.numpy as jnp
from jax.experimental import pallas as pl
from jax.experimental.pallas import tpu as pltpu

_TM = 256  # row tile for the matmul kernels


def _round_up(n, m):
    return ((n + m - 1) // m) * m


# --------------------------------------------------------------------------- kernels
def _mm_kernel(x_ref, w_ref, b_ref, o_ref, *, act):
    # x:(TM,K) bf16/f32, w:(K,C), b:(1,C) f32, o:(TM,C) f32
    y = jnp.dot(x_ref[...], w_ref[...], preferred_element_type=jnp.float32)
    y = y + b_ref[...]
    if act == "relu":
        y = jnp.maximum(y, 0.0)
    elif act == "leaky":                      # LeakyReLU(negative_slope=0.2)
        y = jnp.where(y >= 0.0, y, 0.2 * y)
    elif act == "sigmoid_clip":               # Sigmoid + torch.clamp(., 1e-4, 1)
        y = jnp.clip(jax.nn.sigmoid(y), 0.0001, 1.0)
    o_ref[...] = y.astype(o_ref.dtype)


def _den23_kernel(x_ref, w2_ref, b2_ref, w3_ref, b3_ref, o_ref):
    # Denoise conv2 (3x3, leaky) + conv3 (1x1) fused: the 48-ch tile never leaves vregs.
    y = jnp.dot(x_ref[...], w2_ref[...], preferred_element_type=jnp.float32) + b2_ref[...]
    y = jnp.where(y >= 0.0, y, 0.2 * y)
    z = jnp.dot(y.astype(jnp.bfloat16), w3_ref[...],
                preferred_element_type=jnp.float32) + b3_ref[...]
    o_ref[...] = z.astype(o_ref.dtype)


def _enh_block_kernel(x_ref, w_ref, b_ref, g_ref, bt_ref, fea_ref, o_ref):
    # Enhancer block: conv(3x3) + BatchNorm2d(train) + ReLU + residual add, fused.
    # Single grid step -> batch statistics cover the whole (N*H*W, C) conv output.
    y = jnp.dot(x_ref[...], w_ref[...], preferred_element_type=jnp.float32) + b_ref[...]
    mean = jnp.mean(y, axis=0, keepdims=True)
    d = y - mean
    var = jnp.mean(d * d, axis=0, keepdims=True)          # biased var (PyTorch BN norm)
    yn = d * jax.lax.rsqrt(var + 1e-5) * g_ref[...] + bt_ref[...]
    o_ref[...] = fea_ref[...] + jnp.maximum(yn, 0.0)


def _blur_kernel(x_ref, th_ref, tvT_ref, o_ref):
    # Separable 21x21 gaussian, both passes fused.  x:(bp,Hp,Wp) f32 padded planes,
    # th:(Wp,W) horizontal band matrix, tvT:(H,Hp) transposed vertical band matrix.
    th = th_ref[...]
    tvT = tvT_ref[...]
    for p in range(x_ref.shape[0]):                       # static unrolled plane loop
        h = jnp.dot(x_ref[p], th, preferred_element_type=jnp.float32)   # (Hp, W)
        o_ref[p] = jnp.dot(tvT, h, preferred_element_type=jnp.float32)  # (H, W)


def _texture_kernel(t1_ref, t2_ref, o_ref):
    # t*: (25, rows, W) tap-major stacks of 5x5 patches of the gray images (both
    # TextureDifference calls batched along rows); output (rows, W) binary mask.
    def local_std(t):
        m = jnp.sum(t, axis=0) * (1.0 / 25.0)
        d = t - m
        var = jnp.sum(d * d, axis=0) * (1.0 / 25.0)
        return jnp.sqrt(var + 1e-9)

    s1 = local_std(t1_ref[...])
    s2 = local_std(t2_ref[...])
    diff = (2.0 * s1 * s2) / (s1 * s1 + s2 * s2 + 1e-5)
    o_ref[...] = jnp.where(diff > 0.975, 1.0, 0.0)


# ------------------------------------------------------------------------ pallas wrappers
def _mm(x, w, b, act, tm=_TM):
    # Row-tiled fused matmul + bias + activation.  x:(M,K), w:(K,C), b:(C,)
    M, K = x.shape
    C = w.shape[1]
    b2 = b.reshape(1, C).astype(jnp.float32)
    if M >= 2 * tm:                           # >=2 grid steps -> both TCs on v7x
        Mp = _round_up(M, tm)
        if Mp != M:
            x = jnp.pad(x, ((0, Mp - M), (0, 0)))
        bm = tm
    else:                                     # single full-array block
        Mp, bm = M, M
    out = pl.pallas_call(
        functools.partial(_mm_kernel, act=act),
        out_shape=jax.ShapeDtypeStruct((Mp, C), jnp.float32),
        grid_spec=pltpu.PrefetchScalarGridSpec(
            num_scalar_prefetch=0,
            grid=(Mp // bm,),
            in_specs=[
                pl.BlockSpec((bm, K), lambda i: (i, 0)),
                pl.BlockSpec((K, C), lambda i: (0, 0)),
                pl.BlockSpec((1, C), lambda i: (0, 0)),
            ],
            out_specs=pl.BlockSpec((bm, C), lambda i: (i, 0)),
        ),
        compiler_params=pltpu.CompilerParams(dimension_semantics=("parallel",)),
    )(x, w, b2)
    return out[:M]


def _den23(x, w2, b2, w3, b3, tm=_TM):
    # conv2(3x3, leaky) + conv3(1x1) fused, row-tiled.
    M, K = x.shape
    C2, C3 = w2.shape[1], w3.shape[1]
    b2m = b2.reshape(1, C2).astype(jnp.float32)
    b3m = b3.reshape(1, C3).astype(jnp.float32)
    if M >= 2 * tm:
        Mp = _round_up(M, tm)
        if Mp != M:
            x = jnp.pad(x, ((0, Mp - M), (0, 0)))
        bm = tm
    else:
        Mp, bm = M, M
    out = pl.pallas_call(
        _den23_kernel,
        out_shape=jax.ShapeDtypeStruct((Mp, C3), jnp.float32),
        grid_spec=pltpu.PrefetchScalarGridSpec(
            num_scalar_prefetch=0,
            grid=(Mp // bm,),
            in_specs=[
                pl.BlockSpec((bm, K), lambda i: (i, 0)),
                pl.BlockSpec((K, C2), lambda i: (0, 0)),
                pl.BlockSpec((1, C2), lambda i: (0, 0)),
                pl.BlockSpec((C2, C3), lambda i: (0, 0)),
                pl.BlockSpec((1, C3), lambda i: (0, 0)),
            ],
            out_specs=pl.BlockSpec((bm, C3), lambda i: (i, 0)),
        ),
        compiler_params=pltpu.CompilerParams(dimension_semantics=("parallel",)),
    )(x, w2, b2m, w3, b3m)
    return out[:M]


def _enh_block(cols, w, b, gamma, beta, fea_flat):
    # One fused conv+BN+ReLU+residual call.  Single grid step (needed for BN batch stats).
    M, K = cols.shape
    C = w.shape[1]
    return pl.pallas_call(
        _enh_block_kernel,
        out_shape=jax.ShapeDtypeStruct((M, C), jnp.float32),
        grid_spec=pltpu.PrefetchScalarGridSpec(
            num_scalar_prefetch=0,
            grid=(1,),
            in_specs=[
                pl.BlockSpec((M, K), lambda i: (0, 0)),
                pl.BlockSpec((K, C), lambda i: (0, 0)),
                pl.BlockSpec((1, C), lambda i: (0, 0)),
                pl.BlockSpec((1, C), lambda i: (0, 0)),
                pl.BlockSpec((1, C), lambda i: (0, 0)),
                pl.BlockSpec((M, C), lambda i: (0, 0)),
            ],
            out_specs=pl.BlockSpec((M, C), lambda i: (0, 0)),
        ),
        compiler_params=pltpu.CompilerParams(dimension_semantics=("arbitrary",)),
    )(cols, w, b.reshape(1, C).astype(jnp.float32),
      gamma.reshape(1, C).astype(jnp.float32),
      beta.reshape(1, C).astype(jnp.float32), fea_flat)


# ------------------------------------------------------------------------ JAX glue ops
def _im2col(x, kh, kw, pad):
    # x: (N,H,W,C) -> (N*H*W, kh*kw*C); tap-major, channel-minor (matches weight reshape).
    N, H, W, C = x.shape
    if pad > 0:
        x = jnp.pad(x, ((0, 0), (pad, pad), (pad, pad), (0, 0)))
    cols = [x[:, i:i + H, j:j + W, :] for i in range(kh) for j in range(kw)]
    return jnp.concatenate(cols, axis=-1).reshape(N * H * W, kh * kw * C)


def _wmat(w, dtype=jnp.bfloat16):
    kh, kw, cin, cout = w.shape
    return w.reshape(kh * kw * cin, cout).astype(dtype)


def pair_downsampler(x):
    # TODO(synk): pair_downsampler was not provided; reconstructed from Zero-IG
    # (2x2 stride-2 depthwise convs with filters [[0,.5],[.5,0]] and [[.5,0],[0,.5]]).
    a = x[:, 0::2, 0::2, :]
    b = x[:, 0::2, 1::2, :]
    c = x[:, 1::2, 0::2, :]
    d = x[:, 1::2, 1::2, :]
    return 0.5 * (b + c), 0.5 * (a + d)


def _gauss_taps_1d(kernlen=21, nsig=1):
    # 1-D separable factor of the Zero-IG gauss kernel: sqrt(outer(k1,k1))/sum == outer(t,t)
    interval = (2.0 * nsig + 1.0) / kernlen
    lo, hi = -nsig - interval / 2.0, nsig + interval / 2.0
    xs = [lo + i * (hi - lo) / kernlen for i in range(kernlen + 1)]
    cdf = [0.5 * (1.0 + math.erf(v / math.sqrt(2.0))) for v in xs]
    k1 = [cdf[i + 1] - cdf[i] for i in range(kernlen)]
    s = [math.sqrt(v) for v in k1]
    tot = sum(s)
    return tuple(v / tot for v in s)


def _band_matrix(taps, size_out, size_in):
    # T[q, w] = taps[q - w]  (so xp @ T applies the 1-D filter along the padded axis)
    nt = len(taps)
    rows = [[taps[q - w] if 0 <= q - w < nt else 0.0 for w in range(size_out)]
            for q in range(size_in)]
    return jnp.array(rows, jnp.float32)


def blur_pair(x1, x2):
    # TODO(synk): blur()/gauss_kernel() not provided; reconstructed from Zero-IG
    # (21x21 gaussian, nsig=1, reflect pad, depthwise).  Implemented separably; both
    # blur() calls are batched and the two 1-D passes are fused in a single kernel.
    N, H, W, C = x1.shape
    taps = _gauss_taps_1d(21, 1)
    pad = 10
    x = jnp.concatenate([x1, x2], axis=0)                               # (2N,H,W,C)
    xp = jnp.transpose(x, (0, 3, 1, 2)).reshape(2 * N * C, H, W)        # planar
    xp = jnp.pad(xp, ((0, 0), (pad, pad), (pad, pad)), mode="reflect")  # (B,Hp,Wp)
    B, Hp, Wp = xp.shape
    t_h = _band_matrix(taps, W, Wp)                                     # (Wp, W)
    t_vT = _band_matrix(taps, H, Hp).T                                  # (H, Hp)
    bp = B // 2 if (B % 2 == 0 and B >= 2) else B                       # 2 grid steps
    out = pl.pallas_call(
        _blur_kernel,
        out_shape=jax.ShapeDtypeStruct((B, H, W), jnp.float32),
        grid_spec=pltpu.PrefetchScalarGridSpec(
            num_scalar_prefetch=0,
            grid=(B // bp,),
            in_specs=[
                pl.BlockSpec((bp, Hp, Wp), lambda i: (i, 0, 0)),
                pl.BlockSpec((Wp, W), lambda i: (0, 0)),
                pl.BlockSpec((H, Hp), lambda i: (0, 0)),
            ],
            out_specs=pl.BlockSpec((bp, H, W), lambda i: (i, 0, 0)),
        ),
        compiler_params=pltpu.CompilerParams(dimension_semantics=("parallel",)),
    )(xp, t_h, t_vT)
    out = out.reshape(2 * N, C, H, W)
    out = jnp.transpose(out, (0, 2, 3, 1))                              # back to NHWC
    return out[:N], out[N:]


def texture_difference_pair(a1, a2, b1, b2):
    # TODO(synk): TextureDifference was not provided; reconstructed from the Zero-IG
    # reference (BGR-weighted gray, 5x5 local stddev w/ reflect pad, contrast term,
    # hard threshold 0.975).  Both calls are fused into one Pallas kernel.
    N, H, W, _ = a1.shape

    def gray(im):
        return 0.144 * im[..., 0] + 0.587 * im[..., 1] + 0.299 * im[..., 2]

    g1 = jnp.concatenate([gray(a1), gray(b1)], axis=0)                  # (2N,H,W)
    g2 = jnp.concatenate([gray(a2), gray(b2)], axis=0)
    g1p = jnp.pad(g1, ((0, 0), (2, 2), (2, 2)), mode="reflect")
    g2p = jnp.pad(g2, ((0, 0), (2, 2), (2, 2)), mode="reflect")

    def stack(gp):  # tap-major stack of the 25 patch elements, (25, 2N*H, W)
        sl = [gp[:, i:i + H, j:j + W] for i in range(5) for j in range(5)]
        return jnp.stack(sl, axis=0).reshape(25, 2 * N * H, W)

    t1, t2 = stack(g1p), stack(g2p)
    rows = 2 * N * H
    out = pl.pallas_call(
        _texture_kernel,
        out_shape=jax.ShapeDtypeStruct((rows, W), jnp.float32),
        grid_spec=pltpu.PrefetchScalarGridSpec(
            num_scalar_prefetch=0,
            grid=(1,),
            in_specs=[
                pl.BlockSpec((25, rows, W), lambda i: (0, 0, 0)),
                pl.BlockSpec((25, rows, W), lambda i: (0, 0, 0)),
            ],
            out_specs=pl.BlockSpec((rows, W), lambda i: (0, 0)),
        ),
        compiler_params=pltpu.CompilerParams(dimension_semantics=("arbitrary",)),
    )(t1, t2)
    out = out.reshape(2 * N, H, W, 1)
    return out[:N], out[N:]


# --------------------------------------------------------------------------- modules
def denoise_batched(p, xs):
    # Denoise_1 applied to several inputs that share weights: batched along M so each
    # conv layer is ONE pallas_call for all inputs.  conv2+conv3 are fused in one kernel.
    w1 = _wmat(p["c1_w"])
    w2 = _wmat(p["c2_w"])
    w3 = p["c3_w"].reshape(p["c3_w"].shape[2], p["c3_w"].shape[3]).astype(jnp.bfloat16)
    shapes = [x.shape for x in xs]

    cols1 = jnp.concatenate(
        [_im2col(x.astype(jnp.bfloat16), 3, 3, 1) for x in xs], axis=0)
    y1 = _mm(cols1, w1, p["c1_b"], "leaky")                            # (Mtot, 48)

    feats, off = [], 0
    for (N, H, W, _) in shapes:
        m = N * H * W
        feats.append(y1[off:off + m].reshape(N, H, W, 48).astype(jnp.bfloat16))
        off += m
    cols2 = jnp.concatenate([_im2col(f, 3, 3, 1) for f in feats], axis=0)
    y3 = _den23(cols2, w2, p["c2_b"], w3, p["c3_b"])                   # (Mtot, 3)

    outs, off = [], 0
    for (N, H, W, _) in shapes:
        m = N * H * W
        outs.append(y3[off:off + m].reshape(N, H, W, 3))
        off += m
    return outs


def enhancer(p, x, layers=3):
    N, H, W, _ = x.shape
    M = N * H * W
    cols = _im2col(x.astype(jnp.bfloat16), 3, 3, 1)
    fea = _mm(cols, _wmat(p["in_w"]), p["in_b"], "relu").reshape(N, H, W, 64)
    w_blk = _wmat(p["blk_w"])
    for _ in range(layers):  # the SAME conv+BN module is appended `layers` times
        cols = _im2col(fea.astype(jnp.bfloat16), 3, 3, 1)
        fea = _enh_block(cols, w_blk, p["blk_b"], p["bn_g"], p["bn_b"],
                         fea.reshape(M, 64)).reshape(N, H, W, 64)
    cols = _im2col(fea.astype(jnp.bfloat16), 3, 3, 1)
    out = _mm(cols, _wmat(p["out_w"]), p["out_b"], "sigmoid_clip")     # sigmoid+clamp fused
    return out.reshape(N, H, W, 3)


def network_forward(params, inp):
    eps = 1e-4
    inp = inp + eps
    L11, L12 = pair_downsampler(inp)

    d11, d12, dfull = denoise_batched(params["den"], [L11, L12, inp])
    L_pred1 = L11 - d11
    L_pred2 = L12 - d12
    L2 = jnp.clip(inp - dfull, eps, 1.0)

    s2 = enhancer(params["enh"], jax.lax.stop_gradient(L2))
    s21, s22 = pair_downsampler(s2)
    H2 = jnp.clip(inp / s2, eps, 1.0)
    H11 = jnp.clip(L11 / s21, eps, 1.0)
    H12 = jnp.clip(L12 / s22, eps, 1.0)
    H3, s3, H13, s13, H14, s14 = H2, s2, H11, s21, H12, s22
    H3_pred = jnp.concatenate([H11, s21], axis=-1)   # channel concat (NHWC -> last axis)
    H4_pred = jnp.concatenate([H12, s22], axis=-1)

    H3_d1, H3_d2 = pair_downsampler(H3)
    L_pred1_L_pred2_diff, H3_denoised_diff = texture_difference_pair(
        L_pred1, L_pred2, H3_d1, H3_d2)

    H1 = jnp.clip(L2 / s2, 0.0, 1.0)
    H2_blur, H3_blur = blur_pair(H1, H3)

    return (L_pred1, L_pred2, L2, s2, s21, s22, H2, H11, H12, H13, s13, H14,
            s14, H3, s3, H3_pred, H4_pred, L_pred1_L_pred2_diff,
            H3_denoised_diff, H2_blur, H3_blur)


# ------------------------------------------------------------------------ param init
def init_params(key):
    ks = jax.random.split(key, 6)

    def conv_w(k, kh, kw, cin, cout):
        return 0.02 * jax.random.normal(k, (kh, kw, cin, cout), jnp.float32)

    den = {
        "c1_w": conv_w(ks[0], 3, 3, 3, 48),  "c1_b": jnp.zeros((48,), jnp.float32),
        "c2_w": conv_w(ks[1], 3, 3, 48, 48), "c2_b": jnp.zeros((48,), jnp.float32),
        "c3_w": conv_w(ks[2], 1, 1, 48, 3),  "c3_b": jnp.zeros((3,), jnp.float32),
    }
    enh = {
        "in_w": conv_w(ks[3], 3, 3, 3, 64),   "in_b": jnp.zeros((64,), jnp.float32),
        "blk_w": conv_w(ks[4], 3, 3, 64, 64), "blk_b": jnp.zeros((64,), jnp.float32),
        "bn_g": jnp.ones((64,), jnp.float32), "bn_b": jnp.zeros((64,), jnp.float32),
        "out_w": conv_w(ks[5], 3, 3, 64, 3),  "out_b": jnp.zeros((3,), jnp.float32),
    }
    return {"den": den, "enh": enh}


if __name__ == "__main__":
    key = jax.random.PRNGKey(0)
    pkey, xkey = jax.random.split(key)
    params = init_params(pkey)
    # NHWC input; equivalent PyTorch NCHW input shape is (2, 3, 16, 16).
    x = jax.random.uniform(xkey, (2, 16, 16, 3), jnp.float32)
    outs = jax.jit(network_forward)(params, x)
    jax.block_until_ready(outs)
    print("KERNEL_OK")
</pallas_src>

<mosaic_0001>
module attributes {stable_mosaic.version = 11 : i64} {
  func.func @_mm_kernel(%arg0: i32, %arg1: memref<256x27xbf16, #tpu.memory_space<vmem>>, %arg2: memref<27x48xbf16, #tpu.memory_space<vmem>>, %arg3: memref<1x48xf32, #tpu.memory_space<vmem>>, %arg4: memref<256x48xf32, #tpu.memory_space<vmem>>) attributes {dimension_semantics = [#tpu.dimension_semantics<parallel>], iteration_bounds = array<i64: 3>, scalar_prefetch = 0 : i64, scratch_operands = 0 : i64, tpu.core_type = #tpu.core_type<tc>, window_params = [{transform_indices = @transform_0, window_bounds = array<i64: 256, 27>}, {pipeline_mode = #tpu.pipeline_mode<synchronous>, transform_indices = @transform_1, window_bounds = array<i64: 27, 48>}, {pipeline_mode = #tpu.pipeline_mode<synchronous>, transform_indices = @transform_2, window_bounds = array<i64: 1, 48>}, {transform_indices = @transform_3, window_bounds = array<i64: 256, 48>}]} {
    %c0 = arith.constant 0 : index
    %c0_0 = arith.constant 0 : index
    %0 = vector.load %arg1[%c0, %c0_0] : memref<256x27xbf16, #tpu.memory_space<vmem>>, vector<256x27xbf16>
    %c0_1 = arith.constant 0 : index
    %c0_2 = arith.constant 0 : index
    %1 = vector.load %arg2[%c0_1, %c0_2] : memref<27x48xbf16, #tpu.memory_space<vmem>>, vector<27x48xbf16>
    %cst = arith.constant dense<0.000000e+00> : vector<256x48xf32>
    %2 = tpu.matmul %0, %1, %cst {dimension_numbers = #tpu.dot_dimension_numbers<[1], [0], [0], [1], [0, 0, 1, 1], [], []>} : vector<256x27xbf16>, vector<27x48xbf16>, vector<256x48xf32> -> vector<256x48xf32>
    %c0_3 = arith.constant 0 : index
    %c0_4 = arith.constant 0 : index
    %3 = vector.load %arg3[%c0_3, %c0_4] : memref<1x48xf32, #tpu.memory_space<vmem>>, vector<1x48xf32>
    %4 = vector.broadcast %3 : vector<1x48xf32> to vector<256x48xf32>
    %5 = arith.addf %2, %4 : vector<256x48xf32>
    %cst_5 = arith.constant 0.000000e+00 : f32
    %6 = vector.broadcast %cst_5 : f32 to vector<256x48xf32>
    %7 = arith.cmpf oge, %5, %6 : vector<256x48xf32>
    %cst_6 = arith.constant 2.000000e-01 : f32
    %8 = vector.broadcast %cst_6 : f32 to vector<256x48xf32>
    %9 = arith.mulf %8, %5 : vector<256x48xf32>
    %10 = arith.select %7, %5, %9 : vector<256x48xi1>, vector<256x48xf32>
    %c0_7 = arith.constant 0 : index
    %c0_8 = arith.constant 0 : index
    %11 = vector.load %arg4[%c0_7, %c0_8] : memref<256x48xf32, #tpu.memory_space<vmem>>, vector<256x48xf32>
    tpu.vector_store %arg4[%c0_7, %c0_8], %10 {strides = array<i32>} : memref<256x48xf32, #tpu.memory_space<vmem>>, vector<256x48xf32>,
    return
  }
  func.func @transform_0(%arg0: i32) -> (i32, i32) {
    %c0_i32 = arith.constant 0 : i32
    %c0_i32_0 = arith.constant 0 : i32
    return %arg0, %c0_i32 : i32, i32
  }
  func.func @transform_1(%arg0: i32) -> (i32, i32) {
    %c0_i32 = arith.constant 0 : i32
    %c0_i32_0 = arith.constant 0 : i32
    %c0_i32_1 = arith.constant 0 : i32
    return %c0_i32, %c0_i32_0 : i32, i32
  }
  func.func @transform_2(%arg0: i32) -> (i32, i32) {
    %c0_i32 = arith.constant 0 : i32
    %c0_i32_0 = arith.constant 0 : i32
    %c0_i32_1 = arith.constant 0 : i32
    return %c0_i32, %c0_i32_0 : i32, i32
  }
  func.func @transform_3(%arg0: i32) -> (i32, i32) {
    %c0_i32 = arith.constant 0 : i32
    %c0_i32_0 = arith.constant 0 : i32
    return %arg0, %c0_i32 : i32, i32
  }
}

module attributes {stable_mosaic.version = 11 : i64} {
  func.func @_den23_kernel(%arg0: i32, %arg1: memref<256x432xbf16, #tpu.memory_space<vmem>>, %arg2: memref<432x48xbf16, #tpu.memory_space<vmem>>, %arg3: memref<1x48xf32, #tpu.memory_space<vmem>>, %arg4: memref<48x3xbf16, #tpu.memory_space<vmem>>, %arg5: memref<1x3xf32, #tpu.memory_space<vmem>>, %arg6: memref<256x3xf32, #tpu.memory_space<vmem>>) attributes {dimension_semantics = [#tpu.dimension_semantics<parallel>], iteration_bounds = array<i64: 3>, scalar_prefetch = 0 : i64, scratch_operands = 0 : i64, tpu.core_type = #tpu.core_type<tc>, window_params = [{transform_indices = @transform_0, window_bounds = array<i64: 256, 432>}, {pipeline_mode = #tpu.pipeline_mode<synchronous>, transform_indices = @transform_1, window_bounds = array<i64: 432, 48>}, {pipeline_mode = #tpu.pipeline_mode<synchronous>, transform_indices = @transform_2, window_bounds = array<i64: 1, 48>}, {pipeline_mode = #tpu.pipeline_mode<synchronous>, transform_indices = @transform_3, window_bounds = array<i64: 48, 3>}, {pipeline_mode = #tpu.pipeline_mode<synchronous>, transform_indices = @transform_4, window_bounds = array<i64: 1, 3>}, {transform_indices = @transform_5, window_bounds = array<i64: 256, 3>}]} {
    %c0 = arith.constant 0 : index
    %c0_0 = arith.constant 0 : index
    %0 = vector.load %arg1[%c0, %c0_0] : memref<256x432xbf16, #tpu.memory_space<vmem>>, vector<256x432xbf16>
    %c0_1 = arith.constant 0 : index
    %c0_2 = arith.constant 0 : index
    %1 = vector.load %arg2[%c0_1, %c0_2] : memref<432x48xbf16, #tpu.memory_space<vmem>>, vector<432x48xbf16>
    %cst = arith.constant dense<0.000000e+00> : vector<256x48xf32>
    %2 = tpu.matmul %0, %1, %cst {dimension_numbers = #tpu.dot_dimension_numbers<[1], [0], [0], [1], [0, 0, 1, 1], [], []>} : vector<256x432xbf16>, vector<432x48xbf16>, vector<256x48xf32> -> vector<256x48xf32>
    %c0_3 = arith.constant 0 : index
    %c0_4 = arith.constant 0 : index
    %3 = vector.load %arg3[%c0_3, %c0_4] : memref<1x48xf32, #tpu.memory_space<vmem>>, vector<1x48xf32>
    %4 = vector.broadcast %3 : vector<1x48xf32> to vector<256x48xf32>
    %5 = arith.addf %2, %4 : vector<256x48xf32>
    %cst_5 = arith.constant 0.000000e+00 : f32
    %6 = vector.broadcast %cst_5 : f32 to vector<256x48xf32>
    %7 = arith.cmpf oge, %5, %6 : vector<256x48xf32>
    %cst_6 = arith.constant 2.000000e-01 : f32
    %8 = vector.broadcast %cst_6 : f32 to vector<256x48xf32>
    %9 = arith.mulf %8, %5 : vector<256x48xf32>
    %10 = arith.select %7, %5, %9 : vector<256x48xi1>, vector<256x48xf32>
    %11 = arith.truncf %10 : vector<256x48xf32> to vector<256x48xbf16>
    %c0_7 = arith.constant 0 : index
    %c0_8 = arith.constant 0 : index
    %12 = vector.load %arg4[%c0_7, %c0_8] : memref<48x3xbf16, #tpu.memory_space<vmem>>, vector<48x3xbf16>
    %cst_9 = arith.constant dense<0.000000e+00> : vector<256x3xf32>
    %13 = tpu.matmul %11, %12, %cst_9 {dimension_numbers = #tpu.dot_dimension_numbers<[1], [0], [0], [1], [0, 0, 1, 1], [], []>} : vector<256x48xbf16>, vector<48x3xbf16>, vector<256x3xf32> -> vector<256x3xf32>
    %c0_10 = arith.constant 0 : index
    %c0_11 = arith.constant 0 : index
    %14 = vector.load %arg5[%c0_10, %c0_11] : memref<1x3xf32, #tpu.memory_space<vmem>>, vector<1x3xf32>
    %15 = vector.broadcast %14 : vector<1x3xf32> to vector<256x3xf32>
    %16 = arith.addf %13, %15 : vector<256x3xf32>
    %c0_12 = arith.constant 0 : index
    %c0_13 = arith.constant 0 : index
    %17 = vector.load %arg6[%c0_12, %c0_13] : memref<256x3xf32, #tpu.memory_space<vmem>>, vector<256x3xf32>
    tpu.vector_store %arg6[%c0_12, %c0_13], %16 {strides = array<i32>} : memref<256x3xf32, #tpu.memory_space<vmem>>, vector<256x3xf32>,
    return
  }
  func.func @transform_0(%arg0: i32) -> (i32, i32) {
    %c0_i32 = arith.constant 0 : i32
    %c0_i32_0 = arith.constant 0 : i32
    return %arg0, %c0_i32 : i32, i32
  }
  func.func @transform_1(%arg0: i32) -> (i32, i32) {
    %c0_i32 = arith.constant 0 : i32
    %c0_i32_0 = arith.constant 0 : i32
    %c0_i32_1 = arith.constant 0 : i32
    return %c0_i32, %c0_i32_0 : i32, i32
  }
  func.func @transform_2(%arg0: i32) -> (i32, i32) {
    %c0_i32 = arith.constant 0 : i32
    %c0_i32_0 = arith.constant 0 : i32
    %c0_i32_1 = arith.constant 0 : i32
    return %c0_i32, %c0_i32_0 : i32, i32
  }
  func.func @transform_3(%arg0: i32) -> (i32, i32) {
    %c0_i32 = arith.constant 0 : i32
    %c0_i32_0 = arith.constant 0 : i32
    %c0_i32_1 = arith.constant 0 : i32
    return %c0_i32, %c0_i32_0 : i32, i32
  }
  func.func @transform_4(%arg0: i32) -> (i32, i32) {
    %c0_i32 = arith.constant 0 : i32
    %c0_i32_0 = arith.constant 0 : i32
    %c0_i32_1 = arith.constant 0 : i32
    return %c0_i32, %c0_i32_0 : i32, i32
  }
  func.func @transform_5(%arg0: i32) -> (i32, i32) {
    %c0_i32 = arith.constant 0 : i32
    %c0_i32_0 = arith.constant 0 : i32
    return %arg0, %c0_i32 : i32, i32
  }
}

module attributes {stable_mosaic.version = 11 : i64} {
  func.func @_mm_kernel(%arg0: i32, %arg1: memref<256x27xbf16, #tpu.memory_space<vmem>>, %arg2: memref<27x64xbf16, #tpu.memory_space<vmem>>, %arg3: memref<1x64xf32, #tpu.memory_space<vmem>>, %arg4: memref<256x64xf32, #tpu.memory_space<vmem>>) attributes {dimension_semantics = [#tpu.dimension_semantics<parallel>], iteration_bounds = array<i64: 2>, scalar_prefetch = 0 : i64, scratch_operands = 0 : i64, tpu.core_type = #tpu.core_type<tc>, window_params = [{transform_indices = @transform_0, window_bounds = array<i64: 256, 27>}, {pipeline_mode = #tpu.pipeline_mode<synchronous>, transform_indices = @transform_1, window_bounds = array<i64: 27, 64>}, {pipeline_mode = #tpu.pipeline_mode<synchronous>, transform_indices = @transform_2, window_bounds = array<i64: 1, 64>}, {transform_indices = @transform_3, window_bounds = array<i64: 256, 64>}]} {
    %c0 = arith.constant 0 : index
    %c0_0 = arith.constant 0 : index
    %0 = vector.load %arg1[%c0, %c0_0] : memref<256x27xbf16, #tpu.memory_space<vmem>>, vector<256x27xbf16>
    %c0_1 = arith.constant 0 : index
    %c0_2 = arith.constant 0 : index
    %1 = vector.load %arg2[%c0_1, %c0_2] : memref<27x64xbf16, #tpu.memory_space<vmem>>, vector<27x64xbf16>
    %cst = arith.constant dense<0.000000e+00> : vector<256x64xf32>
    %2 = tpu.matmul %0, %1, %cst {dimension_numbers = #tpu.dot_dimension_numbers<[1], [0], [0], [1], [0, 0, 1, 1], [], []>} : vector<256x27xbf16>, vector<27x64xbf16>, vector<256x64xf32> -> vector<256x64xf32>
    %c0_3 = arith.constant 0 : index
    %c0_4 = arith.constant 0 : index
    %3 = vector.load %arg3[%c0_3, %c0_4] : memref<1x64xf32, #tpu.memory_space<vmem>>, vector<1x64xf32>
    %4 = vector.broadcast %3 : vector<1x64xf32> to vector<256x64xf32>
    %5 = arith.addf %2, %4 : vector<256x64xf32>
    %cst_5 = arith.constant 0.000000e+00 : f32
    %6 = vector.broadcast %cst_5 : f32 to vector<256x64xf32>
    %7 = arith.maximumf %5, %6 : vector<256x64xf32>
    %c0_6 = arith.constant 0 : index
    %c0_7 = arith.constant 0 : index
    %8 = vector.load %arg4[%c0_6, %c0_7] : memref<256x64xf32, #tpu.memory_space<vmem>>, vector<256x64xf32>
    tpu.vector_store %arg4[%c0_6, %c0_7], %7 {strides = array<i32>} : memref<256x64xf32, #tpu.memory_space<vmem>>, vector<256x64xf32>,
    return
  }
  func.func @transform_0(%arg0: i32) -> (i32, i32) {
    %c0_i32 = arith.constant 0 : i32
    %c0_i32_0 = arith.constant 0 : i32
    return %arg0, %c0_i32 : i32, i32
  }
  func.func @transform_1(%arg0: i32) -> (i32, i32) {
    %c0_i32 = arith.constant 0 : i32
    %c0_i32_0 = arith.constant 0 : i32
    %c0_i32_1 = arith.constant 0 : i32
    return %c0_i32, %c0_i32_0 : i32, i32
  }
  func.func @transform_2(%arg0: i32) -> (i32, i32) {
    %c0_i32 = arith.constant 0 : i32
    %c0_i32_0 = arith.constant 0 : i32
    %c0_i32_1 = arith.constant 0 : i32
    return %c0_i32, %c0_i32_0 : i32, i32
  }
  func.func @transform_3(%arg0: i32) -> (i32, i32) {
    %c0_i32 = arith.constant 0 : i32
    %c0_i32_0 = arith.constant 0 : i32
    return %arg0, %c0_i32 : i32, i32
  }
}

module attributes {stable_mosaic.version = 11 : i64} {
  func.func @_enh_block_kernel(%arg0: i32, %arg1: memref<512x576xbf16, #tpu.memory_space<vmem>>, %arg2: memref<576x64xbf16, #tpu.memory_space<vmem>>, %arg3: memref<1x64xf32, #tpu.memory_space<vmem>>, %arg4: memref<1x64xf32, #tpu.memory_space<vmem>>, %arg5: memref<1x64xf32, #tpu.memory_space<vmem>>, %arg6: memref<512x64xf32, #tpu.memory_space<vmem>>, %arg7: memref<512x64xf32, #tpu.memory_space<vmem>>) attributes {dimension_semantics = [#tpu.dimension_semantics<arbitrary>], iteration_bounds = array<i64: 1>, scalar_prefetch = 0 : i64, scratch_operands = 0 : i64, tpu.core_type = #tpu.core_type<tc>, window_params = [{pipeline_mode = #tpu.pipeline_mode<synchronous>, transform_indices = @transform_0, window_bounds = array<i64: 512, 576>}, {pipeline_mode = #tpu.pipeline_mode<synchronous>, transform_indices = @transform_1, window_bounds = array<i64: 576, 64>}, {pipeline_mode = #tpu.pipeline_mode<synchronous>, transform_indices = @transform_2, window_bounds = array<i64: 1, 64>}, {pipeline_mode = #tpu.pipeline_mode<synchronous>, transform_indices = @transform_3, window_bounds = array<i64: 1, 64>}, {pipeline_mode = #tpu.pipeline_mode<synchronous>, transform_indices = @transform_4, window_bounds = array<i64: 1, 64>}, {pipeline_mode = #tpu.pipeline_mode<synchronous>, transform_indices = @transform_5, window_bounds = array<i64: 512, 64>}, {pipeline_mode = #tpu.pipeline_mode<synchronous>, transform_indices = @transform_6, window_bounds = array<i64: 512, 64>}]} {
    %c0 = arith.constant 0 : index
    %c0_0 = arith.constant 0 : index
    %0 = vector.load %arg1[%c0, %c0_0] : memref<512x576xbf16, #tpu.memory_space<vmem>>, vector<512x576xbf16>
    %c0_1 = arith.constant 0 : index
    %c0_2 = arith.constant 0 : index
    %1 = vector.load %arg2[%c0_1, %c0_2] : memref<576x64xbf16, #tpu.memory_space<vmem>>, vector<576x64xbf16>
    %cst = arith.constant dense<0.000000e+00> : vector<512x64xf32>
    %2 = tpu.matmul %0, %1, %cst {dimension_numbers = #tpu.dot_dimension_numbers<[1], [0], [0], [1], [0, 0, 1, 1], [], []>} : vector<512x576xbf16>, vector<576x64xbf16>, vector<512x64xf32> -> vector<512x64xf32>
    %c0_3 = arith.constant 0 : index
    %c0_4 = arith.constant 0 : index
    %3 = vector.load %arg3[%c0_3, %c0_4] : memref<1x64xf32, #tpu.memory_space<vmem>>, vector<1x64xf32>
    %4 = vector.broadcast %3 : vector<1x64xf32> to vector<512x64xf32>
    %5 = arith.addf %2, %4 : vector<512x64xf32>
    %cst_5 = arith.constant dense<0.000000e+00> : vector<64xf32>
    %6 = vector.multi_reduction <add>, %5, %cst_5 [0] : vector<512x64xf32> to vector<64xf32>
    %7 = vector.shape_cast %6 : vector<64xf32> to vector<1x64xf32>
    %cst_6 = arith.constant 5.120000e+02 : f32
    %8 = vector.broadcast %cst_6 : f32 to vector<1x64xf32>
    %9 = arith.divf %7, %8 : vector<1x64xf32>
    %10 = vector.broadcast %9 : vector<1x64xf32> to vector<512x64xf32>
    %11 = arith.subf %5, %10 : vector<512x64xf32>
    %12 = arith.mulf %11, %11 : vector<512x64xf32>
    %cst_7 = arith.constant dense<0.000000e+00> : vector<64xf32>
    %13 = vector.multi_reduction <add>, %12, %cst_7 [0] : vector<512x64xf32> to vector<64xf32>
    %14 = vector.shape_cast %13 : vector<64xf32> to vector<1x64xf32>
    %cst_8 = arith.constant 5.120000e+02 : f32
    %15 = vector.broadcast %cst_8 : f32 to vector<1x64xf32>
    %16 = arith.divf %14, %15 : vector<1x64xf32>
    %cst_9 = arith.constant 9.99999974E-6 : f32
    %17 = vector.broadcast %cst_9 : f32 to vector<1x64xf32>
    %18 = arith.addf %16, %17 : vector<1x64xf32>
    %19 = math.rsqrt %18 : vector<1x64xf32>
    %20 = vector.broadcast %19 : vector<1x64xf32> to vector<512x64xf32>
    %21 = arith.mulf %11, %20 : vector<512x64xf32>
    %c0_10 = arith.constant 0 : index
    %c0_11 = arith.constant 0 : index
    %22 = vector.load %arg4[%c0_10, %c0_11] : memref<1x64xf32, #tpu.memory_space<vmem>>, vector<1x64xf32>
    %23 = vector.broadcast %22 : vector<1x64xf32> to vector<512x64xf32>
    %24 = arith.mulf %21, %23 : vector<512x64xf32>
    %c0_12 = arith.constant 0 : index
    %c0_13 = arith.constant 0 : index
    %25 = vector.load %arg5[%c0_12, %c0_13] : memref<1x64xf32, #tpu.memory_space<vmem>>, vector<1x64xf32>
    %26 = vector.broadcast %25 : vector<1x64xf32> to vector<512x64xf32>
    %27 = arith.addf %24, %26 : vector<512x64xf32>
    %c0_14 = arith.constant 0 : index
    %c0_15 = arith.constant 0 : index
    %28 = vector.load %arg6[%c0_14, %c0_15] : memref<512x64xf32, #tpu.memory_space<vmem>>, vector<512x64xf32>
    %cst_16 = arith.constant 0.000000e+00 : f32
    %29 = vector.broadcast %cst_16 : f32 to vector<512x64xf32>
    %30 = arith.maximumf %27, %29 : vector<512x64xf32>
    %31 = arith.addf %28, %30 : vector<512x64xf32>
    %c0_17 = arith.constant 0 : index
    %c0_18 = arith.constant 0 : index
    %32 = vector.load %arg7[%c0_17, %c0_18] : memref<512x64xf32, #tpu.memory_space<vmem>>, vector<512x64xf32>
    tpu.vector_store %arg7[%c0_17, %c0_18], %31 {strides = array<i32>} : memref<512x64xf32, #tpu.memory_space<vmem>>, vector<512x64xf32>,
    return
  }
  func.func @transform_0(%arg0: i32) -> (i32, i32) {
    %c0_i32 = arith.constant 0 : i32
    %c0_i32_0 = arith.constant 0 : i32
    %c0_i32_1 = arith.constant 0 : i32
    return %c0_i32, %c0_i32_0 : i32, i32
  }
  func.func @transform_1(%arg0: i32) -> (i32, i32) {
    %c0_i32 = arith.constant 0 : i32
    %c0_i32_0 = arith.constant 0 : i32
    %c0_i32_1 = arith.constant 0 : i32
    return %c0_i32, %c0_i32_0 : i32, i32
  }
  func.func @transform_2(%arg0: i32) -> (i32, i32) {
    %c0_i32 = arith.constant 0 : i32
    %c0_i32_0 = arith.constant 0 : i32
    %c0_i32_1 = arith.constant 0 : i32
    return %c0_i32, %c0_i32_0 : i32, i32
  }
  func.func @transform_3(%arg0: i32) -> (i32, i32) {
    %c0_i32 = arith.constant 0 : i32
    %c0_i32_0 = arith.constant 0 : i32
    %c0_i32_1 = arith.constant 0 : i32
    return %c0_i32, %c0_i32_0 : i32, i32
  }
  func.func @transform_4(%arg0: i32) -> (i32, i32) {
    %c0_i32 = arith.constant 0 : i32
    %c0_i32_0 = arith.constant 0 : i32
    %c0_i32_1 = arith.constant 0 : i32
    return %c0_i32, %c0_i32_0 : i32, i32
  }
  func.func @transform_5(%arg0: i32) -> (i32, i32) {
    %c0_i32 = arith.constant 0 : i32
    %c0_i32_0 = arith.constant 0 : i32
    %c0_i32_1 = arith.constant 0 : i32
    return %c0_i32, %c0_i32_0 : i32, i32
  }
  func.func @transform_6(%arg0: i32) -> (i32, i32) {
    %c0_i32 = arith.constant 0 : i32
    %c0_i32_0 = arith.constant 0 : i32
    %c0_i32_1 = arith.constant 0 : i32
    return %c0_i32, %c0_i32_0 : i32, i32
  }
}

module attributes {stable_mosaic.version = 11 : i64} {
  func.func @_mm_kernel(%arg0: i32, %arg1: memref<256x576xbf16, #tpu.memory_space<vmem>>, %arg2: memref<576x3xbf16, #tpu.memory_space<vmem>>, %arg3: memref<1x3xf32, #tpu.memory_space<vmem>>, %arg4: memref<256x3xf32, #tpu.memory_space<vmem>>) attributes {dimension_semantics = [#tpu.dimension_semantics<parallel>], iteration_bounds = array<i64: 2>, scalar_prefetch = 0 : i64, scratch_operands = 0 : i64, tpu.core_type = #tpu.core_type<tc>, window_params = [{transform_indices = @transform_0, window_bounds = array<i64: 256, 576>}, {pipeline_mode = #tpu.pipeline_mode<synchronous>, transform_indices = @transform_1, window_bounds = array<i64: 576, 3>}, {pipeline_mode = #tpu.pipeline_mode<synchronous>, transform_indices = @transform_2, window_bounds = array<i64: 1, 3>}, {transform_indices = @transform_3, window_bounds = array<i64: 256, 3>}]} {
    %c0 = arith.constant 0 : index
    %c0_0 = arith.constant 0 : index
    %0 = vector.load %arg1[%c0, %c0_0] : memref<256x576xbf16, #tpu.memory_space<vmem>>, vector<256x576xbf16>
    %c0_1 = arith.constant 0 : index
    %c0_2 = arith.constant 0 : index
    %1 = vector.load %arg2[%c0_1, %c0_2] : memref<576x3xbf16, #tpu.memory_space<vmem>>, vector<576x3xbf16>
    %cst = arith.constant dense<0.000000e+00> : vector<256x3xf32>
    %2 = tpu.matmul %0, %1, %cst {dimension_numbers = #tpu.dot_dimension_numbers<[1], [0], [0], [1], [0, 0, 1, 1], [], []>} : vector<256x576xbf16>, vector<576x3xbf16>, vector<256x3xf32> -> vector<256x3xf32>
    %c0_3 = arith.constant 0 : index
    %c0_4 = arith.constant 0 : index
    %3 = vector.load %arg3[%c0_3, %c0_4] : memref<1x3xf32, #tpu.memory_space<vmem>>, vector<1x3xf32>
    %4 = vector.broadcast %3 : vector<1x3xf32> to vector<256x3xf32>
    %5 = arith.addf %2, %4 : vector<256x3xf32>
    %6 = arith.negf %5 : vector<256x3xf32>
    %7 = math.exp %6 : vector<256x3xf32>
    %cst_5 = arith.constant 1.000000e+00 : f32
    %8 = vector.broadcast %cst_5 : f32 to vector<256x3xf32>
    %9 = arith.addf %8, %7 : vector<256x3xf32>
    %10 = arith.divf %8, %9 : vector<256x3xf32>
    %cst_6 = arith.constant 9.99999974E-5 : f32
    %cst_7 = arith.constant 1.000000e+00 : f32
    %11 = vector.broadcast %cst_6 : f32 to vector<256x3xf32>
    %12 = arith.maximumf %11, %10 : vector<256x3xf32>
    %13 = vector.broadcast %cst_7 : f32 to vector<256x3xf32>
    %14 = arith.minimumf %13, %12 : vector<256x3xf32>
    %c0_8 = arith.constant 0 : index
    %c0_9 = arith.constant 0 : index
    %15 = vector.load %arg4[%c0_8, %c0_9] : memref<256x3xf32, #tpu.memory_space<vmem>>, vector<256x3xf32>
    tpu.vector_store %arg4[%c0_8, %c0_9], %14 {strides = array<i32>} : memref<256x3xf32, #tpu.memory_space<vmem>>, vector<256x3xf32>,
    return
  }
  func.func @transform_0(%arg0: i32) -> (i32, i32) {
    %c0_i32 = arith.constant 0 : i32
    %c0_i32_0 = arith.constant 0 : i32
    return %arg0, %c0_i32 : i32, i32
  }
  func.func @transform_1(%arg0: i32) -> (i32, i32) {
    %c0_i32 = arith.constant 0 : i32
    %c0_i32_0 = arith.constant 0 : i32
    %c0_i32_1 = arith.constant 0 : i32
    return %c0_i32, %c0_i32_0 : i32, i32
  }
  func.func @transform_2(%arg0: i32) -> (i32, i32) {
    %c0_i32 = arith.constant 0 : i32
    %c0_i32_0 = arith.constant 0 : i32
    %c0_i32_1 = arith.constant 0 : i32
    return %c0_i32, %c0_i32_0 : i32, i32
  }
  func.func @transform_3(%arg0: i32) -> (i32, i32) {
    %c0_i32 = arith.constant 0 : i32
    %c0_i32_0 = arith.constant 0 : i32
    return %arg0, %c0_i32 : i32, i32
  }
}

module attributes {stable_mosaic.version = 11 : i64} {
  func.func @_blur_kernel(%arg0: i32, %arg1: memref<6x36x36xf32, #tpu.memory_space<vmem>>, %arg2: memref<36x16xf32, #tpu.memory_space<vmem>>, %arg3: memref<16x36xf32, #tpu.memory_space<vmem>>, %arg4: memref<6x16x16xf32, #tpu.memory_space<vmem>>) attributes {dimension_semantics = [#tpu.dimension_semantics<parallel>], iteration_bounds = array<i64: 2>, scalar_prefetch = 0 : i64, scratch_operands = 0 : i64, tpu.core_type = #tpu.core_type<tc>, window_params = [{transform_indices = @transform_0, window_bounds = array<i64: 6, 36, 36>}, {pipeline_mode = #tpu.pipeline_mode<synchronous>, transform_indices = @transform_1, window_bounds = array<i64: 36, 16>}, {pipeline_mode = #tpu.pipeline_mode<synchronous>, transform_indices = @transform_2, window_bounds = array<i64: 16, 36>}, {transform_indices = @transform_3, window_bounds = array<i64: 6, 16, 16>}]} {
    %c0 = arith.constant 0 : index
    %c0_0 = arith.constant 0 : index
    %0 = vector.load %arg2[%c0, %c0_0] : memref<36x16xf32, #tpu.memory_space<vmem>>, vector<36x16xf32>
    %c0_1 = arith.constant 0 : index
    %c0_2 = arith.constant 0 : index
    %1 = vector.load %arg3[%c0_1, %c0_2] : memref<16x36xf32, #tpu.memory_space<vmem>>, vector<16x36xf32>
    %c0_3 = arith.constant 0 : index
    %c0_4 = arith.constant 0 : index
    %c0_5 = arith.constant 0 : index
    %2 = vector.load %arg1[%c0_3, %c0_4, %c0_5] : memref<6x36x36xf32, #tpu.memory_space<vmem>>, vector<1x36x36xf32>
    %3 = vector.shape_cast %2 : vector<1x36x36xf32> to vector<36x36xf32>
    %cst = arith.constant dense<0.000000e+00> : vector<36x16xf32>
    %4 = tpu.matmul %3, %0, %cst {dimension_numbers = #tpu.dot_dimension_numbers<[1], [0], [0], [1], [0, 0, 1, 1], [], []>} : vector<36x36xf32>, vector<36x16xf32>, vector<36x16xf32> -> vector<36x16xf32>
    %cst_6 = arith.constant dense<0.000000e+00> : vector<16x16xf32>
    %5 = tpu.matmul %1, %4, %cst_6 {dimension_numbers = #tpu.dot_dimension_numbers<[1], [0], [0], [1], [0, 0, 1, 1], [], []>} : vector<16x36xf32>, vector<36x16xf32>, vector<16x16xf32> -> vector<16x16xf32>
    %c0_7 = arith.constant 0 : index
    %c0_8 = arith.constant 0 : index
    %c0_9 = arith.constant 0 : index
    %6 = vector.load %arg4[%c0_7, %c0_8, %c0_9] : memref<6x16x16xf32, #tpu.memory_space<vmem>>, vector<1x16x16xf32>
    %7 = vector.shape_cast %6 : vector<1x16x16xf32> to vector<16x16xf32>
    %8 = vector.shape_cast %5 : vector<16x16xf32> to vector<1x16x16xf32>
    tpu.vector_store %arg4[%c0_7, %c0_8, %c0_9], %8 {strides = array<i32>} : memref<6x16x16xf32, #tpu.memory_space<vmem>>, vector<1x16x16xf32>,
    %c1 = arith.constant 1 : index
    %c0_10 = arith.constant 0 : index
    %c0_11 = arith.constant 0 : index
    %9 = vector.load %arg1[%c1, %c0_10, %c0_11] : memref<6x36x36xf32, #tpu.memory_space<vmem>>, vector<1x36x36xf32>
    %10 = vector.shape_cast %9 : vector<1x36x36xf32> to vector<36x36xf32>
    %cst_12 = arith.constant dense<0.000000e+00> : vector<36x16xf32>
    %11 = tpu.matmul %10, %0, %cst_12 {dimension_numbers = #tpu.dot_dimension_numbers<[1], [0], [0], [1], [0, 0, 1, 1], [], []>} : vector<36x36xf32>, vector<36x16xf32>, vector<36x16xf32> -> vector<36x16xf32>
    %cst_13 = arith.constant dense<0.000000e+00> : vector<16x16xf32>
    %12 = tpu.matmul %1, %11, %cst_13 {dimension_numbers = #tpu.dot_dimension_numbers<[1], [0], [0], [1], [0, 0, 1, 1], [], []>} : vector<16x36xf32>, vector<36x16xf32>, vector<16x16xf32> -> vector<16x16xf32>
    %c1_14 = arith.constant 1 : index
    %c0_15 = arith.constant 0 : index
    %c0_16 = arith.constant 0 : index
    %13 = vector.load %arg4[%c1_14, %c0_15, %c0_16] : memref<6x16x16xf32, #tpu.memory_space<vmem>>, vector<1x16x16xf32>
    %14 = vector.shape_cast %13 : vector<1x16x16xf32> to vector<16x16xf32>
    %15 = vector.shape_cast %12 : vector<16x16xf32> to vector<1x16x16xf32>
    tpu.vector_store %arg4[%c1_14, %c0_15, %c0_16], %15 {strides = array<i32>} : memref<6x16x16xf32, #tpu.memory_space<vmem>>, vector<1x16x16xf32>,
    %c2 = arith.constant 2 : index
    %c0_17 = arith.constant 0 : index
    %c0_18 = arith.constant 0 : index
    %16 = vector.load %arg1[%c2, %c0_17, %c0_18] : memref<6x36x36xf32, #tpu.memory_space<vmem>>, vector<1x36x36xf32>
    %17 = vector.shape_cast %16 : vector<1x36x36xf32> to vector<36x36xf32>
    %cst_19 = arith.constant dense<0.000000e+00> : vector<36x16xf32>
    %18 = tpu.matmul %17, %0, %cst_19 {dimension_numbers = #tpu.dot_dimension_numbers<[1], [0], [0], [1], [0, 0, 1, 1], [], []>} : vector<36x36xf32>, vector<36x16xf32>, vector<36x16xf32> -> vector<36x16xf32>
    %cst_20 = arith.constant dense<0.000000e+00> : vector<16x16xf32>
    %19 = tpu.matmul %1, %18, %cst_20 {dimension_numbers = #tpu.dot_dimension_numbers<[1], [0], [0], [1], [0, 0, 1, 1], [], []>} : vector<16x36xf32>, vector<36x16xf32>, vector<16x16xf32> -> vector<16x16xf32>
    %c2_21 = arith.constant 2 : index
    %c0_22 = arith.constant 0 : index
    %c0_23 = arith.constant 0 : index
    %20 = vector.load %arg4[%c2_21, %c0_22, %c0_23] : memref<6x16x16xf32, #tpu.memory_space<vmem>>, vector<1x16x16xf32>
    %21 = vector.shape_cast %20 : vector<1x16x16xf32> to vector<16x16xf32>
    %22 = vector.shape_cast %19 : vector<16x16xf32> to vector<1x16x16xf32>
    tpu.vector_store %arg4[%c2_21, %c0_22, %c0_23], %22 {strides = array<i32>} : memref<6x16x16xf32, #tpu.memory_space<vmem>>, vector<1x16x16xf32>,
    %c3 = arith.constant 3 : index
    %c0_24 = arith.constant 0 : index
    %c0_25 = arith.constant 0 : index
    %23 = vector.load %arg1[%c3, %c0_24, %c0_25] : memref<6x36x36xf32, #tpu.memory_space<vmem>>, vector<1x36x36xf32>
    %24 = vector.shape_cast %23 : vector<1x36x36xf32> to vector<36x36xf32>
    %cst_26 = arith.constant dense<0.000000e+00> : vector<36x16xf32>
    %25 = tpu.matmul %24, %0, %cst_26 {dimension_numbers = #tpu.dot_dimension_numbers<[1], [0], [0], [1], [0, 0, 1, 1], [], []>} : vector<36x36xf32>, vector<36x16xf32>, vector<36x16xf32> -> vector<36x16xf32>
    %cst_27 = arith.constant dense<0.000000e+00> : vector<16x16xf32>
    %26 = tpu.matmul %1, %25, %cst_27 {dimension_numbers = #tpu.dot_dimension_numbers<[1], [0], [0], [1], [0, 0, 1, 1], [], []>} : vector<16x36xf32>, vector<36x16xf32>, vector<16x16xf32> -> vector<16x16xf32>
    %c3_28 = arith.constant 3 : index
    %c0_29 = arith.constant 0 : index
    %c0_30 = arith.constant 0 : index
    %27 = vector.load %arg4[%c3_28, %c0_29, %c0_30] : memref<6x16x16xf32, #tpu.memory_space<vmem>>, vector<1x16x16xf32>
    %28 = vector.shape_cast %27 : vector<1x16x16xf32> to vector<16x16xf32>
    %29 = vector.shape_cast %26 : vector<16x16xf32> to vector<1x16x16xf32>
    tpu.vector_store %arg4[%c3_28, %c0_29, %c0_30], %29 {strides = array<i32>} : memref<6x16x16xf32, #tpu.memory_space<vmem>>, vector<1x16x16xf32>,
    %c4 = arith.constant 4 : index
    %c0_31 = arith.constant 0 : index
    %c0_32 = arith.constant 0 : index
    %30 = vector.load %arg1[%c4, %c0_31, %c0_32] : memref<6x36x36xf32, #tpu.memory_space<vmem>>, vector<1x36x36xf32>
    %31 = vector.shape_cast %30 : vector<1x36x36xf32> to vector<36x36xf32>
    %cst_33 = arith.constant dense<0.000000e+00> : vector<36x16xf32>
    %32 = tpu.matmul %31, %0, %cst_33 {dimension_numbers = #tpu.dot_dimension_numbers<[1], [0], [0], [1], [0, 0, 1, 1], [], []>} : vector<36x36xf32>, vector<36x16xf32>, vector<36x16xf32> -> vector<36x16xf32>
    %cst_34 = arith.constant dense<0.000000e+00> : vector<16x16xf32>
    %33 = tpu.matmul %1, %32, %cst_34 {dimension_numbers = #tpu.dot_dimension_numbers<[1], [0], [0], [1], [0, 0, 1, 1], [], []>} : vector<16x36xf32>, vector<36x16xf32>, vector<16x16xf32> -> vector<16x16xf32>
    %c4_35 = arith.constant 4 : index
    %c0_36 = arith.constant 0 : index
    %c0_37 = arith.constant 0 : index
    %34 = vector.load %arg4[%c4_35, %c0_36, %c0_37] : memref<6x16x16xf32, #tpu.memory_space<vmem>>, vector<1x16x16xf32>
    %35 = vector.shape_cast %34 : vector<1x16x16xf32> to vector<16x16xf32>
    %36 = vector.shape_cast %33 : vector<16x16xf32> to vector<1x16x16xf32>
    tpu.vector_store %arg4[%c4_35, %c0_36, %c0_37], %36 {strides = array<i32>} : memref<6x16x16xf32, #tpu.memory_space<vmem>>, vector<1x16x16xf32>,
    %c5 = arith.constant 5 : index
    %c0_38 = arith.constant 0 : index
    %c0_39 = arith.constant 0 : index
    %37 = vector.load %arg1[%c5, %c0_38, %c0_39] : memref<6x36x36xf32, #tpu.memory_space<vmem>>, vector<1x36x36xf32>
    %38 = vector.shape_cast %37 : vector<1x36x36xf32> to vector<36x36xf32>
    %cst_40 = arith.constant dense<0.000000e+00> : vector<36x16xf32>
    %39 = tpu.matmul %38, %0, %cst_40 {dimension_numbers = #tpu.dot_dimension_numbers<[1], [0], [0], [1], [0, 0, 1, 1], [], []>} : vector<36x36xf32>, vector<36x16xf32>, vector<36x16xf32> -> vector<36x16xf32>
    %cst_41 = arith.constant dense<0.000000e+00> : vector<16x16xf32>
    %40 = tpu.matmul %1, %39, %cst_41 {dimension_numbers = #tpu.dot_dimension_numbers<[1], [0], [0], [1], [0, 0, 1, 1], [], []>} : vector<16x36xf32>, vector<36x16xf32>, vector<16x16xf32> -> vector<16x16xf32>
    %c5_42 = arith.constant 5 : index
    %c0_43 = arith.constant 0 : index
    %c0_44 = arith.constant 0 : index
    %41 = vector.load %arg4[%c5_42, %c0_43, %c0_44] : memref<6x16x16xf32, #tpu.memory_space<vmem>>, vector<1x16x16xf32>
    %42 = vector.shape_cast %41 : vector<1x16x16xf32> to vector<16x16xf32>
    %43 = vector.shape_cast %40 : vector<16x16xf32> to vector<1x16x16xf32>
    tpu.vector_store %arg4[%c5_42, %c0_43, %c0_44], %43 {strides = array<i32>} : memref<6x16x16xf32, #tpu.memory_space<vmem>>, vector<1x16x16xf32>,
    return
  }
  func.func @transform_0(%arg0: i32) -> (i32, i32, i32) {
    %c0_i32 = arith.constant 0 : i32
    %c0_i32_0 = arith.constant 0 : i32
    %c0_i32_1 = arith.constant 0 : i32
    return %arg0, %c0_i32, %c0_i32_0 : i32, i32, i32
  }
  func.func @transform_1(%arg0: i32) -> (i32, i32) {
    %c0_i32 = arith.constant 0 : i32
    %c0_i32_0 = arith.constant 0 : i32
    %c0_i32_1 = arith.constant 0 : i32
    return %c0_i32, %c0_i32_0 : i32, i32
  }
  func.func @transform_2(%arg0: i32) -> (i32, i32) {
    %c0_i32 = arith.constant 0 : i32
    %c0_i32_0 = arith.constant 0 : i32
    %c0_i32_1 = arith.constant 0 : i32
    return %c0_i32, %c0_i32_0 : i32, i32
  }
  func.func @transform_3(%arg0: i32) -> (i32, i32, i32) {
    %c0_i32 = arith.constant 0 : i32
    %c0_i32_0 = arith.constant 0 : i32
    %c0_i32_1 = arith.constant 0 : i32
    return %arg0, %c0_i32, %c0_i32_0 : i32, i32, i32
  }
}

module attributes {stable_mosaic.version = 11 : i64} {
  func.func @_texture_kernel(%arg0: i32, %arg1: memref<25x32x8xf32, #tpu.memory_space<vmem>>, %arg2: memref<25x32x8xf32, #tpu.memory_space<vmem>>, %arg3: memref<32x8xf32, #tpu.memory_space<vmem>>) attributes {dimension_semantics = [#tpu.dimension_semantics<arbitrary>], iteration_bounds = array<i64: 1>, scalar_prefetch = 0 : i64, scratch_operands = 0 : i64, tpu.core_type = #tpu.core_type<tc>, window_params = [{pipeline_mode = #tpu.pipeline_mode<synchronous>, transform_indices = @transform_0, window_bounds = array<i64: 25, 32, 8>}, {pipeline_mode = #tpu.pipeline_mode<synchronous>, transform_indices = @transform_1, window_bounds = array<i64: 25, 32, 8>}, {pipeline_mode = #tpu.pipeline_mode<synchronous>, transform_indices = @transform_2, window_bounds = array<i64: 32, 8>}]} {
    %c0 = arith.constant 0 : index
    %c0_0 = arith.constant 0 : index
    %c0_1 = arith.constant 0 : index
    %0 = vector.load %arg1[%c0, %c0_0, %c0_1] : memref<25x32x8xf32, #tpu.memory_space<vmem>>, vector<25x32x8xf32>
    %cst = arith.constant dense<0.000000e+00> : vector<32x8xf32>
    %1 = vector.multi_reduction <add>, %0, %cst [0] : vector<25x32x8xf32> to vector<32x8xf32>
    %cst_2 = arith.constant 4.000000e-02 : f32
    %2 = vector.broadcast %cst_2 : f32 to vector<32x8xf32>
    %3 = arith.mulf %1, %2 : vector<32x8xf32>
    %4 = vector.shape_cast %3 : vector<32x8xf32> to vector<1x32x8xf32>
    %5 = vector.broadcast %4 : vector<1x32x8xf32> to vector<25x32x8xf32>
    %6 = arith.subf %0, %5 : vector<25x32x8xf32>
    %7 = arith.mulf %6, %6 : vector<25x32x8xf32>
    %cst_3 = arith.constant dense<0.000000e+00> : vector<32x8xf32>
    %8 = vector.multi_reduction <add>, %7, %cst_3 [0] : vector<25x32x8xf32> to vector<32x8xf32>
    %cst_4 = arith.constant 4.000000e-02 : f32
    %9 = vector.broadcast %cst_4 : f32 to vector<32x8xf32>
    %10 = arith.mulf %8, %9 : vector<32x8xf32>
    %cst_5 = arith.constant 9.99999971E-10 : f32
    %11 = vector.broadcast %cst_5 : f32 to vector<32x8xf32>
    %12 = arith.addf %10, %11 : vector<32x8xf32>
    %13 = math.sqrt %12 : vector<32x8xf32>
    %c0_6 = arith.constant 0 : index
    %c0_7 = arith.constant 0 : index
    %c0_8 = arith.constant 0 : index
    %14 = vector.load %arg2[%c0_6, %c0_7, %c0_8] : memref<25x32x8xf32, #tpu.memory_space<vmem>>, vector<25x32x8xf32>
    %cst_9 = arith.constant dense<0.000000e+00> : vector<32x8xf32>
    %15 = vector.multi_reduction <add>, %14, %cst_9 [0] : vector<25x32x8xf32> to vector<32x8xf32>
    %cst_10 = arith.constant 4.000000e-02 : f32
    %16 = vector.broadcast %cst_10 : f32 to vector<32x8xf32>
    %17 = arith.mulf %15, %16 : vector<32x8xf32>
    %18 = vector.shape_cast %17 : vector<32x8xf32> to vector<1x32x8xf32>
    %19 = vector.broadcast %18 : vector<1x32x8xf32> to vector<25x32x8xf32>
    %20 = arith.subf %14, %19 : vector<25x32x8xf32>
    %21 = arith.mulf %20, %20 : vector<25x32x8xf32>
    %cst_11 = arith.constant dense<0.000000e+00> : vector<32x8xf32>
    %22 = vector.multi_reduction <add>, %21, %cst_11 [0] : vector<25x32x8xf32> to vector<32x8xf32>
    %cst_12 = arith.constant 4.000000e-02 : f32
    %23 = vector.broadcast %cst_12 : f32 to vector<32x8xf32>
    %24 = arith.mulf %22, %23 : vector<32x8xf32>
    %cst_13 = arith.constant 9.99999971E-10 : f32
    %25 = vector.broadcast %cst_13 : f32 to vector<32x8xf32>
    %26 = arith.addf %24, %25 : vector<32x8xf32>
    %27 = math.sqrt %26 : vector<32x8xf32>
    %cst_14 = arith.constant 2.000000e+00 : f32
    %28 = vector.broadcast %cst_14 : f32 to vector<32x8xf32>
    %29 = arith.mulf %28, %13 : vector<32x8xf32>
    %30 = arith.mulf %29, %27 : vector<32x8xf32>
    %31 = arith.mulf %13, %13 : vector<32x8xf32>
    %32 = arith.mulf %27, %27 : vector<32x8xf32>
    %33 = arith.addf %31, %32 : vector<32x8xf32>
    %cst_15 = arith.constant 9.99999974E-6 : f32
    %34 = vector.broadcast %cst_15 : f32 to vector<32x8xf32>
    %35 = arith.addf %33, %34 : vector<32x8xf32>
    %36 = arith.divf %30, %35 : vector<32x8xf32>
    %cst_16 = arith.constant 9.750000e-01 : f32
    %37 = vector.broadcast %cst_16 : f32 to vector<32x8xf32>
    %38 = arith.cmpf ogt, %36, %37 : vector<32x8xf32>
    %cst_17 = arith.constant 1.000000e+00 : f32
    %cst_18 = arith.constant 0.000000e+00 : f32
    %39 = vector.broadcast %cst_17 : f32 to vector<32x8xf32>
    %40 = vector.broadcast %cst_18 : f32 to vector<32x8xf32>
    %41 = arith.select %38, %39, %40 : vector<32x8xi1>, vector<32x8xf32>
    %c0_19 = arith.constant 0 : index
    %c0_20 = arith.constant 0 : index
    %42 = vector.load %arg3[%c0_19, %c0_20] : memref<32x8xf32, #tpu.memory_space<vmem>>, vector<32x8xf32>
    tpu.vector_store %arg3[%c0_19, %c0_20], %41 {strides = array<i32>} : memref<32x8xf32, #tpu.memory_space<vmem>>, vector<32x8xf32>,
    return
  }
  func.func @transform_0(%arg0: i32) -> (i32, i32, i32) {
    %c0_i32 = arith.constant 0 : i32
    %c0_i32_0 = arith.constant 0 : i32
    %c0_i32_1 = arith.constant 0 : i32
    %c0_i32_2 = arith.constant 0 : i32
    return %c0_i32, %c0_i32_0, %c0_i32_1 : i32, i32, i32
  }
  func.func @transform_1(%arg0: i32) -> (i32, i32, i32) {
    %c0_i32 = arith.constant 0 : i32
    %c0_i32_0 = arith.constant 0 : i32
    %c0_i32_1 = arith.constant 0 : i32
    %c0_i32_2 = arith.constant 0 : i32
    return %c0_i32, %c0_i32_0, %c0_i32_1 : i32, i32, i32
  }
  func.func @transform_2(%arg0: i32) -> (i32, i32) {
    %c0_i32 = arith.constant 0 : i32
    %c0_i32_0 = arith.constant 0 : i32
    %c0_i32_1 = arith.constant 0 : i32
    return %c0_i32, %c0_i32_0 : i32, i32
  }
}

</mosaic_0001>

<llo_original>
// kernel: network_forward.9
$region0: #{network_forward.9}
  #allocation0 [shape = 'u32[]', space=smem, size = 0x4, offset = 0x4, fixed_abs, tag = 'smem constant byte address 0x4 - core index']
  #allocation1 [shape = 'u32[144,128]{1,0:T(1,128)}', space=vmem, size = 0x12000, scoped, tag = 'internal scratch']
  %s0 = inlined_call_operand.vmem [shape: bf16[768,27], index: 0, kind: input, shape index: {}]
  %s1 = inlined_call_operand.vmem [shape: bf16[27,48], index: 1, kind: input, shape index: {}]
  %s2 = inlined_call_operand.vmem [shape: f32[1,48], index: 2, kind: input, shape index: {}]
  %s3 = inlined_call_operand.vmem [shape: f32[768,48], index: 3, kind: output, shape index: {}]
  %s4 = sld [smem:[#allocation0]]
  $region45: #{network_forward.9} parent=0
    _
  %s6 = ssub.s32 1, %s4
  %s7 = scalar_select 0, %s6, %s4
  loop: start=0, step=1, limit=5
  $region2: #{network_forward.9} parent=0 // loop_pre_header
    _
  $region3: #{network_forward.9} parent=0 // loop_header
    %s9 = sphi 0, %s13
    %p10 = scmp.ge.s32.totalorder %s9, 5
    %s19 = sphi 0, %s21
    %s22 = sphi 0, %s19
    %s23 = sphi 0, %s22
    %s39 = sphi 0, %s23
    %s43 = sphi 0, %s43
    %s45 = sphi 0, %s43
    %s46 = sphi 0, %s45
    %s60 = sphi 0, %s46
    %s64 = sphi 0, %s64
    %s66 = sphi 0, %s64
    %s67 = sphi 0, %s66
    %s81 = sphi 0, %s67
    %s87 = sphi 0, %s89
    %s90 = sphi 0, %s87
    %s91 = sphi 0, %s90
    %s107 = sphi 0, %s91
  $region4: #{network_forward.9} parent=0 // loop_header_branch
    %12 = sbr.rel (%p10) target = $region8
  $region5: #{network_forward.9} parent=0 // loop_body
    %s14 = ssub.s32 %s9, 1
    %s15 = ssub.s32 %s9, 2
    %s16 = sadd.s32 %s9, 1
    %s17 = ssub.s32 %s9, %s16
    %p18 = scmp.eq.s32.totalorder %s17, 0
    %s20 = sadd.s32 %s19, 1
    %s21 = scalar_select %p18, %s19, %s20
    %p24 = pneg %p18
    %p25 = scmp.eq.s32.totalorder %s9, 2
    %p26 = por %p24, %p25
    %p27 = scmp.ne.s32.totalorder %s19, %s22
    %p28 = scmp.eq.s32.totalorder %s9, 0
    %p29 = por %p27, %p28
    %p30 = scmp.ne.s32.totalorder %s19, %s22
    %p31 = scmp.eq.s32.totalorder %s14, 2
    %p32 = por %p30, %p31
    %p33 = scmp.ne.s32.totalorder %s22, %s23
    %p34 = scmp.eq.s32.totalorder %s14, 0
    %p35 = por %p33, %p34
    %p36 = scmp.ne.s32.totalorder %s22, %s23
    %p37 = scmp.eq.s32.totalorder %s15, 2
    %p38 = por %p36, %p37
    %p40 = scmp.ne.s32.totalorder %s23, %s39
    %p41 = scmp.eq.s32.totalorder %s15, 0
    %p42 = por %p40, %p41
    %s44 = sadd.s32 %s43, 1
    %p47 = scmp.eq.s32.totalorder %s9, 2
    %p48 = scmp.ne.s32.totalorder %s43, %s45
    %p49 = scmp.eq.s32.totalorder %s9, 0
    %p50 = por %p48, %p49
    %p51 = scmp.ne.s32.totalorder %s43, %s45
    %p52 = scmp.eq.s32.totalorder %s14, 2
    %p53 = por %p51, %p52
    %p54 = scmp.ne.s32.totalorder %s45, %s46
    %p55 = scmp.eq.s32.totalorder %s14, 0
    %p56 = por %p54, %p55
    %p57 = scmp.ne.s32.totalorder %s45, %s46
    %p58 = scmp.eq.s32.totalorder %s15, 2
    %p59 = por %p57, %p58
    %p61 = scmp.ne.s32.totalorder %s46, %s60
    %p62 = scmp.eq.s32.totalorder %s15, 0
    %p63 = por %p61, %p62
    %s65 = sadd.s32 %s64, 1
    %p68 = scmp.eq.s32.totalorder %s9, 2
    %p69 = scmp.ne.s32.totalorder %s64, %s66
    %p70 = scmp.eq.s32.totalorder %s9, 0
    %p71 = por %p69, %p70
    %p72 = scmp.ne.s32.totalorder %s64, %s66
    %p73 = scmp.eq.s32.totalorder %s14, 2
    %p74 = por %p72, %p73
    %p75 = scmp.ne.s32.totalorder %s66, %s67
    %p76 = scmp.eq.s32.totalorder %s14, 0
    %p77 = por %p75, %p76
    %p78 = scmp.ne.s32.totalorder %s66, %s67
    %p79 = scmp.eq.s32.totalorder %s15, 2
    %p80 = por %p78, %p79
    %p82 = scmp.ne.s32.totalorder %s67, %s81
    %p83 = scmp.eq.s32.totalorder %s15, 0
    %p84 = por %p82, %p83
    %s85 = ssub.s32 %s9, %s16
    %p86 = scmp.eq.s32.totalorder %s85, 0
    %s88 = sadd.s32 %s87, 1
    %s89 = scalar_select %p86, %s87, %s88
    %p92 = pneg %p86
    %p93 = scmp.eq.s32.totalorder %s9, 2
    %p94 = por %p92, %p93
    %p95 = scmp.ne.s32.totalorder %s87, %s90
    %p96 = scmp.eq.s32.totalorder %s9, 0
    %p97 = por %p95, %p96
    %p98 = scmp.ne.s32.totalorder %s87, %s90
    %p99 = scmp.eq.s32.totalorder %s14, 2
    %p100 = por %p98, %p99
    %p101 = scmp.ne.s32.totalorder %s90, %s91
    %p102 = scmp.eq.s32.totalorder %s14, 0
    %p103 = por %p101, %p102
    %p104 = scmp.ne.s32.totalorder %s90, %s91
    %p105 = scmp.eq.s32.totalorder %s15, 2
    %p106 = por %p104, %p105
    %p108 = scmp.ne.s32.totalorder %s91, %s107
    %p109 = scmp.eq.s32.totalorder %s15, 0
    %p110 = por %p108, %p109
    %p111 = scmp.le.s32.totalorder 1, %s9
    %p112 = scmp.lt.s32.totalorder %s9, 4
    %p113 = pnand %p111, %p112
    %p114 = pneg %p113
    // Predicated region
    $region9: #{network_forward.9} parent=5 // pred_check
      _
    $region10: #{network_forward.9} parent=5 // pred_check_branch
      %116 = sbr.rel (%p113) target = $region12
    $region11: #{network_forward.9} parent=5 // pred_region
      %s117 = ssub.s32 %s9, 1
      // Predicated region
      $region13: #{network_forward.9} parent=11 // pred_check
        %p118 = pneg %p56
      $region14: #{network_forward.9} parent=11 // pred_check_branch
        %120 = sbr.rel (%p118) target = $region16
      $region15: #{network_forward.9} parent=11 // pred_region
        _
      $region16: #{network_forward.9} parent=11 // pred_fallthru
        _
      // Predicated region
      $region17: #{network_forward.9} parent=11 // pred_check
        %p121 = pneg %p77
      $region18: #{network_forward.9} parent=11 // pred_check_branch
        %123 = sbr.rel (%p121) target = $region20
      $region19: #{network_forward.9} parent=11 // pred_region
        _
      $region20: #{network_forward.9} parent=11 // pred_fallthru
        _
    $region12: #{network_forward.9} parent=5 // pred_fallthru
      _
    %p124 = scmp.lt.s32.totalorder %s9, 3
    // Predicated region
    $region21: #{network_forward.9} parent=5 // pred_check
      %p125 = pneg %p124
    $region22: #{network_forward.9} parent=5 // pred_check_branch
      %127 = sbr.rel (%p125) target = $region24
    $region23: #{network_forward.9} parent=5 // pred_region
      // Predicated region
      $region25: #{network_forward.9} parent=23 // pred_check
        %p128 = pneg %p29
      $region26: #{network_forward.9} parent=23 // pred_check_branch
        %130 = sbr.rel (%p128) target = $region28
      $region27: #{network_forward.9} parent=23 // pred_region
        %s131 = smul.u32 32, %s9
        %p132 = scmp.lt.s32.totalorder %s131, 95
        %s133 = scalar_select %p132, %s131, 95
        %s134 = smul.addr %s133, 4
        %s135 = scalar_lea.vmem %s0, %s134
        %s136 = smul.u32 32, %s9
      $region28: #{network_forward.9} parent=23 // pred_fallthru
        _
    $region24: #{network_forward.9} parent=5 // pred_fallthru
      _
    %p137 = scmp.le.s32.totalorder 1, %s9
    %p138 = scmp.lt.s32.totalorder %s9, 4
    %p139 = pnand %p137, %p138
    %p140 = pneg %p139
    // Predicated region
    $region29: #{network_forward.9} parent=5 // pred_check
      _
    $region30: #{network_forward.9} parent=5 // pred_check_branch
      %142 = sbr.rel (%p139) target = $region32
    $region31: #{network_forward.9} parent=5 // pred_region
      %s143 = ssub.s32 %s9, 1
      %s144 = smul.u32 32, %s14
      %p145 = scmp.lt.s32.totalorder %s144, 95
      %s146 = scalar_select %p145, %s144, 95
      %s147 = smul.addr %s146, 4
      %s148 = scalar_lea.vmem %s0, %s147
      %p149 = pneg %p35
      %p150 = pneg %p32
      %p151 = pneg %p56
      %p152 = pneg %p53
      %p153 = pneg %p77
      %p154 = pneg %p74
      %p155 = pneg %p103
      %p156 = pneg %p100
      %s157 = smul.u32 32, %s14
      %p158 = scmp.lt.s32.totalorder %s157, 95
      %s159 = scalar_select %p158, %s157, 95
      %s160 = smul.addr %s159, 8
      %s161 = scalar_lea.vmem %s3, %s160
      %s162 = smul.u32 32, %s14
      %p163 = scmp.lt.s32.totalorder %s162, 95
      %s164 = scalar_select %p163, %s162, 95
      %s165 = smul.addr %s164, 4
      %s166 = scalar_lea.vmem %s0, %s165
      %s167 = smul.u32 32, %s14
      %s168 = smul.u32 32, %s14
      %p169 = scmp.lt.s32.totalorder %s168, 95
      %s170 = scalar_select %p169, %s168, 95
      %s171 = smul.addr %s170, 8
      %s172 = scalar_lea.vmem %s3, %s171
      %s173 = smul.u32 32, %s14
      %v175 = vld [vmem:[%s166] sm:$0xf]
      %v176 = vld [vmem:[%s166 + $0x4] sm:$0xf]
      %v177 = vld [vmem:[%s166 + $0x8] sm:$0xf]
      %v178 = vld [vmem:[%s166 + $0xc] sm:$0xf]
      %v179 = vld [vmem:[%s166 + $0x10] sm:$0xf]
      %v180 = vld [vmem:[%s166 + $0x14] sm:$0xf]
      %v181 = vld [vmem:[%s166 + $0x18] sm:$0xf]
      %v182 = vld [vmem:[%s166 + $0x1c] sm:$0xf]
      %v183 = vld [vmem:[%s166 + $0x20] sm:$0xf]
      %v184 = vld [vmem:[%s166 + $0x24] sm:$0xf]
      %v185 = vld [vmem:[%s166 + $0x28] sm:$0xf]
      %v186 = vld [vmem:[%s166 + $0x2c] sm:$0xf]
      %v187 = vld [vmem:[%s166 + $0x30] sm:$0xf]
      %v188 = vld [vmem:[%s166 + $0x34] sm:$0xf]
      %v189 = vld [vmem:[%s166 + $0x38] sm:$0xf]
      %v190 = vld [vmem:[%s166 + $0x3c] sm:$0xf]
      %v191 = vld [vmem:[%s166 + $0x40] sm:$0xf]
      %v192 = vld [vmem:[%s166 + $0x44] sm:$0xf]
      %v193 = vld [vmem:[%s166 + $0x48] sm:$0xf]
      %v194 = vld [vmem:[%s166 + $0x4c] sm:$0xf]
      %v195 = vld [vmem:[%s166 + $0x50] sm:$0xf]
      %v196 = vld [vmem:[%s166 + $0x54] sm:$0xf]
      %v197 = vld [vmem:[%s166 + $0x58] sm:$0xf]
      %v198 = vld [vmem:[%s166 + $0x5c] sm:$0xf]
      %v199 = vld [vmem:[%s166 + $0x60] sm:$0xf]
      %v200 = vld [vmem:[%s166 + $0x64] sm:$0xf]
      %v201 = vld [vmem:[%s166 + $0x68] sm:$0xf]
      %v202 = vld [vmem:[%s166 + $0x6c] sm:$0xf]
      %v203 = vld [vmem:[%s166 + $0x70] sm:$0xf]
      %v204 = vld [vmem:[%s166 + $0x74] sm:$0xf]
      %v205 = vld [vmem:[%s166 + $0x78] sm:$0xf]
      %v206 = vld [vmem:[%s166 + $0x7c] sm:$0xf]
      %v207 = vld [vmem:[%s1] sm:$0xf]
      %v208 = vld [vmem:[%s1 + $0x4] sm:$0xf]
      %v209 = vld [vmem:[%s1 + $0x8] sm:$0xf]
      %v210 = vld [vmem:[%s1 + $0xc] sm:$0x3]
      %v211 = vld [vmem:[%s2] sm:$0x1]
      %v213 = vlaneseq
      %v214 = vshrl.u32 %v213, 7
      %v215 = vsub.s32 0, %v214
      %v216 = vrot.slane %v211, %v215
      %v250 = vunpack.c.l.b16 %v175
      %v251 = vunpack.c.l.b16 %v176
      %v252 = vunpack.c.l.b16 %v177
      %v253 = vunpack.c.l.b16 %v178
      %v254 = vunpack.c.l.b16 %v179
      %v255 = vunpack.c.l.b16 %v180
      %v256 = vunpack.c.l.b16 %v181
      %v257 = vunpack.c.l.b16 %v182
      %v258 = vunpack.c.l.b16 %v183
      %v259 = vunpack.c.l.b16 %v184
      %v260 = vunpack.c.l.b16 %v185
      %v261 = vunpack.c.l.b16 %v186
      %v262 = vunpack.c.l.b16 %v187
      %v263 = vunpack.c.l.b16 %v188
      %v264 = vunpack.c.l.b16 %v189
      %v265 = vunpack.c.l.b16 %v190
      %v266 = vunpack.c.l.b16 %v191
      %v267 = vunpack.c.l.b16 %v192
      %v268 = vunpack.c.l.b16 %v193
      %v269 = vunpack.c.l.b16 %v194
      %v270 = vunpack.c.l.b16 %v195
      %v271 = vunpack.c.l.b16 %v196
      %v272 = vunpack.c.l.b16 %v197
      %v273 = vunpack.c.l.b16 %v198
      %v274 = vunpack.c.l.b16 %v199
      %v275 = vunpack.c.l.b16 %v200
      %v276 = vunpack.c.l.b16 %v201
      %v277 = vunpack.c.l.b16 %v202
      %v278 = vunpack.c.l.b16 %v203
      %v279 = vunpack.c.l.b16 %v204
      %v280 = vunpack.c.l.b16 %v205
      %v281 = vunpack.c.l.b16 %v206
      %v282 = vpack.c.b16 %v251, %v250
      %v283 = vpack.c.b16 %v253, %v252
      %v284 = vpack.c.b16 %v255, %v254
      %v285 = vpack.c.b16 %v257, %v256
      %v286 = vpack.c.b16 %v259, %v258
      %v287 = vpack.c.b16 %v261, %v260
      %v288 = vpack.c.b16 %v263, %v262
      %v289 = vpack.c.b16 %v265, %v264
      %v290 = vpack.c.b16 %v267, %v266
      %v291 = vpack.c.b16 %v269, %v268
      %v292 = vpack.c.b16 %v271, %v270
      %v293 = vpack.c.b16 %v273, %v272
      %v294 = vpack.c.b16 %v275, %v274
      %v295 = vpack.c.b16 %v277, %v276
      %v296 = vpack.c.b16 %v279, %v278
      %v297 = vpack.c.b16 %v281, %v280
      %v302 = vunpack.c.l.b16 %v207
      %v303 = vunpack.c.l.b16 %v208
      %v304 = vunpack.c.l.b16 %v209
      %v305 = vunpack.c.l.b16 %v210
      %v306 = vpack.c.b16 %v303, %v302
      %v307 = vpack.c.b16 %v305, %v304
      %vm309 = vcmask 220160
      %v311 = vsel %vm309, %v282, 0
      %v314 = vsel %vm309, %v283, 0
      %v317 = vsel %vm309, %v284, 0
      %v320 = vsel %vm309, %v285, 0
      %v323 = vsel %vm309, %v286, 0
      %v326 = vsel %vm309, %v287, 0
      %v329 = vsel %vm309, %v288, 0
      %v332 = vsel %vm309, %v289, 0
      %v335 = vsel %vm309, %v290, 0
      %v338 = vsel %vm309, %v291, 0
      %v341 = vsel %vm309, %v292, 0
      %v344 = vsel %vm309, %v293, 0
      %v347 = vsel %vm309, %v294, 0
      %v350 = vsel %vm309, %v295, 0
      %v353 = vsel %vm309, %v296, 0
      %v356 = vsel %vm309, %v297, 0
      %vm358 = vcmask 1044480
      %vm359 = vcmask 1045504
      %v360 = vsel %vm358, 4294967295, 65535
      %v361 = vsel %vm359, %v360, 0
      %v363 = vand.u32 %v307, %v361
      %365 = vmatprep.subr.bf16.mxu0 0
      %366 = vmatpush1.bf16.msra.mxu0 0
      %367 = vmatprep.subr.bf16.mxu0 0
      %368 = vmatpush1.bf16.msra.mxu0 0
      %369 = vmatprep.subr.bf16.mxu0 0
      %370 = vmatpush1.bf16.msra.mxu0 0
      %371 = vmatprep.subr.bf16.mxu0 0
      %372 = vmatpush1.bf16.msra.mxu0 0
      %373 = vmatprep.subr.bf16.mxu0 0
      %374 = vmatpush1.bf16.msra.mxu0 0
      %375 = vmatprep.subr.bf16.mxu0 0
      %376 = vmatpush1.bf16.msra.mxu0 0
      %377 = vmatprep.subr.bf16.mxu0 0
      %378 = vmatpush1.bf16.msra.mxu0 %v363
      %379 = vmatprep.subr.bf16.mxu0 0
      %380 = vmatpush1.bf16.msra.mxu0 %v306
      %381 = vmatprep.subr.bf16.mxu0 0
      %382 = vmatpush2.bf16.msra.mxu0 0
      %383 = vmatprep.subr.bf16.mxu0 0
      %384 = vmatpush2.bf16.msra.mxu0 0
      %385 = vmatprep.subr.bf16.mxu0 0
      %386 = vmatpush2.bf16.msra.mxu0 0
      %387 = vmatprep.subr.bf16.mxu0 0
      %388 = vmatpush2.bf16.msra.mxu0 0
      %389 = vmatprep.subr.bf16.mxu0 0
      %390 = vmatpush2.bf16.msra.mxu0 0
      %391 = vmatprep.subr.bf16.mxu0 0
      %392 = vmatpush2.bf16.msra.mxu0 0
      %393 = vmatprep.subr.bf16.mxu0 0
      %394 = vmatpush2.bf16.msra.mxu0 0
      %395 = vmatprep.subr.bf16.mxu0 0
      %396 = vmatpush2.bf16.msra.mxu0 0
      %397 = vmatprep.mubr.bf16.mxu0 0
      %398 = vmatmul.mubr.bf16.gmra.mxu0 %v311
      %v399 = vpop.f32.mrf.mxu0
      %v400 = vadd.f32 %v216, %v399
      %v401 = vpop.f32.mrf.mxu0
      %v402 = vpop.f32.mrf.mxu0
      %v403 = vadd.f32 %v216, %v402
      %v404 = vpop.f32.mrf.mxu0
      %405 = vmatprep.mubr.bf16.mxu0 0
      %406 = vmatmul.mubr.bf16.gmra.mxu0 %v314
      %v407 = vpop.f32.mrf.mxu0
      %v408 = vadd.f32 %v216, %v407
      %v409 = vpop.f32.mrf.mxu0
      %v410 = vpop.f32.mrf.mxu0
      %v411 = vadd.f32 %v216, %v410
      %v412 = vpop.f32.mrf.mxu0
      %413 = vmatprep.mubr.bf16.mxu0 0
      %414 = vmatmul.mubr.bf16.gmra.mxu0 %v317
      %v415 = vpop.f32.mrf.mxu0
      %v416 = vadd.f32 %v216, %v415
      %v417 = vpop.f32.mrf.mxu0
      %v418 = vpop.f32.mrf.mxu0
      %v419 = vadd.f32 %v216, %v418
      %v420 = vpop.f32.mrf.mxu0
      %421 = vmatprep.mubr.bf16.mxu0 0
      %422 = vmatmul.mubr.bf16.gmra.mxu0 %v320
      %v423 = vpop.f32.mrf.mxu0
      %v424 = vadd.f32 %v216, %v423
      %v425 = vpop.f32.mrf.mxu0
      %v426 = vpop.f32.mrf.mxu0
      %v427 = vadd.f32 %v216, %v426
      %v428 = vpop.f32.mrf.mxu0
      %429 = vmatprep.mubr.bf16.mxu0 0
      %430 = vmatmul.mubr.bf16.gmra.mxu0 %v323
      %v431 = vpop.f32.mrf.mxu0
      %v432 = vadd.f32 %v216, %v431
      %v433 = vpop.f32.mrf.mxu0
      %v434 = vpop.f32.mrf.mxu0
      %v435 = vadd.f32 %v216, %v434
      %v436 = vpop.f32.mrf.mxu0
      %437 = vmatprep.mubr.bf16.mxu0 0
      %438 = vmatmul.mubr.bf16.gmra.mxu0 %v326
      %v439 = vpop.f32.mrf.mxu0
      %v440 = vadd.f32 %v216, %v439
      %v441 = vpop.f32.mrf.mxu0
      %v442 = vpop.f32.mrf.mxu0
      %v443 = vadd.f32 %v216, %v442
      %v444 = vpop.f32.mrf.mxu0
      %445 = vmatprep.mubr.bf16.mxu0 0
      %446 = vmatmul.mubr.bf16.gmra.mxu0 %v329
      %v447 = vpop.f32.mrf.mxu0
      %v448 = vadd.f32 %v216, %v447
      %v449 = vpop.f32.mrf.mxu0
      %v450 = vpop.f32.mrf.mxu0
      %v451 = vadd.f32 %v216, %v450
      %v452 = vpop.f32.mrf.mxu0
      %453 = vmatprep.mubr.bf16.mxu0 0
      %454 = vmatmul.mubr.bf16.gmra.mxu0 %v332
      %v455 = vpop.f32.mrf.mxu0
      %v456 = vadd.f32 %v216, %v455
      %v457 = vpop.f32.mrf.mxu0
      %v458 = vpop.f32.mrf.mxu0
      %v459 = vadd.f32 %v216, %v458
      %v460 = vpop.f32.mrf.mxu0
      %461 = vmatprep.mubr.bf16.mxu0 0
      %462 = vmatmul.mubr.bf16.gmra.mxu0 %v335
      %v463 = vpop.f32.mrf.mxu0
      %v464 = vadd.f32 %v216, %v463
      %v465 = vpop.f32.mrf.mxu0
      %v466 = vpop.f32.mrf.mxu0
      %v467 = vadd.f32 %v216, %v466
      %v468 = vpop.f32.mrf.mxu0
      %469 = vmatprep.mubr.bf16.mxu0 0
      %470 = vmatmul.mubr.bf16.gmra.mxu0 %v338
      %v471 = vpop.f32.mrf.mxu0
      %v472 = vadd.f32 %v216, %v471
      %v473 = vpop.f32.mrf.mxu0
      %v474 = vpop.f32.mrf.mxu0
      %v475 = vadd.f32 %v216, %v474
      %v476 = vpop.f32.mrf.mxu0
      %477 = vmatprep.mubr.bf16.mxu0 0
      %478 = vmatmul.mubr.bf16.gmra.mxu0 %v341
      %v479 = vpop.f32.mrf.mxu0
      %v480 = vadd.f32 %v216, %v479
      %v481 = vpop.f32.mrf.mxu0
      %v482 = vpop.f32.mrf.mxu0
      %v483 = vadd.f32 %v216, %v482
      %v484 = vpop.f32.mrf.mxu0
      %485 = vmatprep.mubr.bf16.mxu0 0
      %486 = vmatmul.mubr.bf16.gmra.mxu0 %v344
      %v487 = vpop.f32.mrf.mxu0
      %v488 = vadd.f32 %v216, %v487
      %v489 = vpop.f32.mrf.mxu0
      %v490 = vpop.f32.mrf.mxu0
      %v491 = vadd.f32 %v216, %v490
      %v492 = vpop.f32.mrf.mxu0
      %493 = vmatprep.mubr.bf16.mxu0 0
      %494 = vmatmul.mubr.bf16.gmra.mxu0 %v347
      %v495 = vpop.f32.mrf.mxu0
      %v496 = vadd.f32 %v216, %v495
      %v497 = vpop.f32.mrf.mxu0
      %v498 = vpop.f32.mrf.mxu0
      %v499 = vadd.f32 %v216, %v498
      %v500 = vpop.f32.mrf.mxu0
      %501 = vmatprep.mubr.bf16.mxu0 0
      %502 = vmatmul.mubr.bf16.gmra.mxu0 %v350
      %v503 = vpop.f32.mrf.mxu0
      %v504 = vadd.f32 %v216, %v503
      %v505 = vpop.f32.mrf.mxu0
      %v506 = vpop.f32.mrf.mxu0
      %v507 = vadd.f32 %v216, %v506
      %v508 = vpop.f32.mrf.mxu0
      %509 = vmatprep.mubr.bf16.mxu0 0
      %510 = vmatmul.mubr.bf16.gmra.mxu0 %v353
      %v511 = vpop.f32.mrf.mxu0
      %v512 = vadd.f32 %v216, %v511
      %v513 = vpop.f32.mrf.mxu0
      %v514 = vpop.f32.mrf.mxu0
      %v515 = vadd.f32 %v216, %v514
      %v516 = vpop.f32.mrf.mxu0
      %517 = vmatprep.mubr.bf16.mxu0 0
      %518 = vmatmul.mubr.bf16.gmra.mxu0 %v356
      %v519 = vpop.f32.mrf.mxu0
      %v520 = vadd.f32 %v216, %v519
      %v521 = vpop.f32.mrf.mxu0
      %v522 = vpop.f32.mrf.mxu0
      %v523 = vadd.f32 %v216, %v522
      %v524 = vpop.f32.mrf.mxu0
      %525 = vdwg.mxu0
      %vm526 = vcmp.ge.f32.partialorder %v400, 0.0
      %vm527 = vcmp.ge.f32.partialorder %v403, 0.0
      %vm528 = vcmp.ge.f32.partialorder %v408, 0.0
      %vm529 = vcmp.ge.f32.partialorder %v411, 0.0
      %vm530 = vcmp.ge.f32.partialorder %v416, 0.0
      %vm531 = vcmp.ge.f32.partialorder %v419, 0.0
      %vm532 = vcmp.ge.f32.partialorder %v424, 0.0
      %vm533 = vcmp.ge.f32.partialorder %v427, 0.0
      %vm534 = vcmp.ge.f32.partialorder %v432, 0.0
      %vm535 = vcmp.ge.f32.partialorder %v435, 0.0
      %vm536 = vcmp.ge.f32.partialorder %v440, 0.0
      %vm537 = vcmp.ge.f32.partialorder %v443, 0.0
      %vm538 = vcmp.ge.f32.partialorder %v448, 0.0
      %vm539 = vcmp.ge.f32.partialorder %v451, 0.0
      %vm540 = vcmp.ge.f32.partialorder %v456, 0.0
      %vm541 = vcmp.ge.f32.partialorder %v459, 0.0
      %vm542 = vcmp.ge.f32.partialorder %v464, 0.0
      %vm543 = vcmp.ge.f32.partialorder %v467, 0.0
      %vm544 = vcmp.ge.f32.partialorder %v472, 0.0
      %vm545 = vcmp.ge.f32.partialorder %v475, 0.0
      %vm546 = vcmp.ge.f32.partialorder %v480, 0.0
      %vm547 = vcmp.ge.f32.partialorder %v483, 0.0
      %vm548 = vcmp.ge.f32.partialorder %v488, 0.0
      %vm549 = vcmp.ge.f32.partialorder %v491, 0.0
      %vm550 = vcmp.ge.f32.partialorder %v496, 0.0
      %vm551 = vcmp.ge.f32.partialorder %v499, 0.0
      %vm552 = vcmp.ge.f32.partialorder %v504, 0.0
      %vm553 = vcmp.ge.f32.partialorder %v507, 0.0
      %vm554 = vcmp.ge.f32.partialorder %v512, 0.0
      %vm555 = vcmp.ge.f32.partialorder %v515, 0.0
      %vm556 = vcmp.ge.f32.partialorder %v520, 0.0
      %vm557 = vcmp.ge.f32.partialorder %v523, 0.0
      %v558 = vmul.f32 %v400, 0.2
      %v559 = vmul.f32 %v403, 0.2
      %v560 = vmul.f32 %v408, 0.2
      %v561 = vmul.f32 %v411, 0.2
      %v562 = vmul.f32 %v416, 0.2
      %v563 = vmul.f32 %v419, 0.2
      %v564 = vmul.f32 %v424, 0.2
      %v565 = vmul.f32 %v427, 0.2
      %v566 = vmul.f32 %v432, 0.2
      %v567 = vmul.f32 %v435, 0.2
      %v568 = vmul.f32 %v440, 0.2
      %v569 = vmul.f32 %v443, 0.2
      %v570 = vmul.f32 %v448, 0.2
      %v571 = vmul.f32 %v451, 0.2
      %v572 = vmul.f32 %v456, 0.2
      %v573 = vmul.f32 %v459, 0.2
      %v574 = vmul.f32 %v464, 0.2
      %v575 = vmul.f32 %v467, 0.2
      %v576 = vmul.f32 %v472, 0.2
      %v577 = vmul.f32 %v475, 0.2
      %v578 = vmul.f32 %v480, 0.2
      %v579 = vmul.f32 %v483, 0.2
      %v580 = vmul.f32 %v488, 0.2
      %v581 = vmul.f32 %v491, 0.2
      %v582 = vmul.f32 %v496, 0.2
      %v583 = vmul.f32 %v499, 0.2
      %v584 = vmul.f32 %v504, 0.2
      %v585 = vmul.f32 %v507, 0.2
      %v586 = vmul.f32 %v512, 0.2
      %v587 = vmul.f32 %v515, 0.2
      %v588 = vmul.f32 %v520, 0.2
      %v589 = vmul.f32 %v523, 0.2
      %v590 = vsel %vm526, %v400, %v558
      %v591 = vsel %vm527, %v403, %v559
      %v592 = vsel %vm528, %v408, %v560
      %v593 = vsel %vm529, %v411, %v561
      %v594 = vsel %vm530, %v416, %v562
      %v595 = vsel %vm531, %v419, %v563
      %v596 = vsel %vm532, %v424, %v564
      %v597 = vsel %vm533, %v427, %v565
      %v598 = vsel %vm534, %v432, %v566
      %v599 = vsel %vm535, %v435, %v567
      %v600 = vsel %vm536, %v440, %v568
      %v601 = vsel %vm537, %v443, %v569
      %v602 = vsel %vm538, %v448, %v570
      %v603 = vsel %vm539, %v451, %v571
      %v604 = vsel %vm540, %v456, %v572
      %v605 = vsel %vm541, %v459, %v573
      %v606 = vsel %vm542, %v464, %v574
      %v607 = vsel %vm543, %v467, %v575
      %v608 = vsel %vm544, %v472, %v576
      %v609 = vsel %vm545, %v475, %v577
      %v610 = vsel %vm546, %v480, %v578
      %v611 = vsel %vm547, %v483, %v579
      %v612 = vsel %vm548, %v488, %v580
      %v613 = vsel %vm549, %v491, %v581
      %v614 = vsel %vm550, %v496, %v582
      %v615 = vsel %vm551, %v499, %v583
      %v616 = vsel %vm552, %v504, %v584
      %v617 = vsel %vm553, %v507, %v585
      %v618 = vsel %vm554, %v512, %v586
      %v619 = vsel %vm555, %v515, %v587
      %v620 = vsel %vm556, %v520, %v588
      %v621 = vsel %vm557, %v523, %v589
      %vm622 = vcmask 392192
      %623 = vst.msk [vmem:[%s172] sm:$0xff] %vm622, %v590
      %624 = vst.msk [vmem:[%s172 + $0x8] sm:$0xff] %vm622, %v591
      %625 = vst.msk [vmem:[%s172 + $0x10] sm:$0xff] %vm622, %v592
      %626 = vst.msk [vmem:[%s172 + $0x18] sm:$0xff] %vm622, %v593
      %627 = vst.msk [vmem:[%s172 + $0x20] sm:$0xff] %vm622, %v594
      %628 = vst.msk [vmem:[%s172 + $0x28] sm:$0xff] %vm622, %v595
      %629 = vst.msk [vmem:[%s172 + $0x30] sm:$0xff] %vm622, %v596
      %630 = vst.msk [vmem:[%s172 + $0x38] sm:$0xff] %vm622, %v597
      %631 = vst.msk [vmem:[%s172 + $0x40] sm:$0xff] %vm622, %v598
      %632 = vst.msk [vmem:[%s172 + $0x48] sm:$0xff] %vm622, %v599
      %633 = vst.msk [vmem:[%s172 + $0x50] sm:$0xff] %vm622, %v600
      %634 = vst.msk [vmem:[%s172 + $0x58] sm:$0xff] %vm622, %v601
      %635 = vst.msk [vmem:[%s172 + $0x60] sm:$0xff] %vm622, %v602
      %636 = vst.msk [vmem:[%s172 + $0x68] sm:$0xff] %vm622, %v603
      %637 = vst.msk [vmem:[%s172 + $0x70] sm:$0xff] %vm622, %v604
      %638 = vst.msk [vmem:[%s172 + $0x78] sm:$0xff] %vm622, %v605
      %639 = vst.msk [vmem:[%s172 + $0x80] sm:$0xff] %vm622, %v606
      %640 = vst.msk [vmem:[%s172 + $0x88] sm:$0xff] %vm622, %v607
      %641 = vst.msk [vmem:[%s172 + $0x90] sm:$0xff] %vm622, %v608
      %642 = vst.msk [vmem:[%s172 + $0x98] sm:$0xff] %vm622, %v609
      %643 = vst.msk [vmem:[%s172 + $0xa0] sm:$0xff] %vm622, %v610
      %644 = vst.msk [vmem:[%s172 + $0xa8] sm:$0xff] %vm622, %v611
      %645 = vst.msk [vmem:[%s172 + $0xb0] sm:$0xff] %vm622, %v612
      %646 = vst.msk [vmem:[%s172 + $0xb8] sm:$0xff] %vm622, %v613
      %647 = vst.msk [vmem:[%s172 + $0xc0] sm:$0xff] %vm622, %v614
      %648 = vst.msk [vmem:[%s172 + $0xc8] sm:$0xff] %vm622, %v615
      %649 = vst.msk [vmem:[%s172 + $0xd0] sm:$0xff] %vm622, %v616
      %650 = vst.msk [vmem:[%s172 + $0xd8] sm:$0xff] %vm622, %v617
      %651 = vst.msk [vmem:[%s172 + $0xe0] sm:$0xff] %vm622, %v618
      %652 = vst.msk [vmem:[%s172 + $0xe8] sm:$0xff] %vm622, %v619
      %653 = vst.msk [vmem:[%s172 + $0xf0] sm:$0xff] %vm622, %v620
      %654 = vst.msk [vmem:[%s172 + $0xf8] sm:$0xff] %vm622, %v621
      %s655 = smul.u32 32, %s14
      %p656 = scmp.lt.s32.totalorder %s655, 95
      %s657 = scalar_select %p656, %s655, 95
      %s658 = smul.addr %s657, 8
      %s659 = scalar_lea.vmem %s3, %s658
      // Predicated region
      $region33: #{network_forward.9} parent=31 // pred_check
        %p660 = pneg %p100
      $region34: #{network_forward.9} parent=31 // pred_check_branch
        %662 = sbr.rel (%p660) target = $region36
      $region35: #{network_forward.9} parent=31 // pred_region
        %s663 = smul.u32 32, %s14
      $region36: #{network_forward.9} parent=31 // pred_fallthru
        _
    $region32: #{network_forward.9} parent=5 // pred_fallthru
      _
    %p664 = scmp.le.s32.totalorder 2, %s9
    // Predicated region
    $region37: #{network_forward.9} parent=5 // pred_check
      %p665 = pneg %p664
    $region38: #{network_forward.9} parent=5 // pred_check_branch
      %667 = sbr.rel (%p665) target = $region40
    $region39: #{network_forward.9} parent=5 // pred_region
      %s668 = ssub.s32 %s9, 2
      // Predicated region
      $region41: #{network_forward.9} parent=39 // pred_check
        %p669 = pneg %p106
      $region42: #{network_forward.9} parent=39 // pred_check_branch
        %671 = sbr.rel (%p669) target = $region44
      $region43: #{network_forward.9} parent=39 // pred_region
        %s672 = smul.u32 32, %s15
        %p673 = scmp.lt.s32.totalorder %s672, 95
        %s674 = scalar_select %p673, %s672, 95
        %s675 = smul.addr %s674, 8
        %s676 = scalar_lea.vmem %s3, %s675
      $region44: #{network_forward.9} parent=39 // pred_fallthru
        _
    $region40: #{network_forward.9} parent=5 // pred_fallthru
      _
  $region6: #{network_forward.9} parent=0 // loop_footer
    %s13 = sadd.s32 1, %s9
  $region7: #{network_forward.9} parent=0 // loop_footer_branch
    %8 = sbr.rel target = $region3
  $region8: #{network_forward.9} parent=0 // loop_exit
    _

// kernel: network_forward.10
$region0: #{network_forward.10}
  #allocation0 [shape = 'u32[]', space=smem, size = 0x4, offset = 0x4, fixed_abs, tag = 'smem constant byte address 0x4 - core index']
  #allocation1 [shape = 'u32[144,128]{1,0:T(1,128)}', space=vmem, size = 0x12000, scoped, tag = 'internal scratch']
  %s0 = inlined_call_operand.vmem [shape: bf16[768,432], index: 0, kind: input, shape index: {}]
  %s1 = inlined_call_operand.vmem [shape: bf16[432,48], index: 1, kind: input, shape index: {}]
  %s2 = inlined_call_operand.vmem [shape: f32[1,48], index: 2, kind: input, shape index: {}]
  %s3 = inlined_call_operand.vmem [shape: bf16[48,3], index: 3, kind: input, shape index: {}]
  %s4 = inlined_call_operand.vmem [shape: f32[1,3], index: 4, kind: input, shape index: {}]
  %s5 = inlined_call_operand.vmem [shape: f32[768,3], index: 5, kind: output, shape index: {}]
  %s6 = sld [smem:[#allocation0]]
  $region53: #{network_forward.10} parent=0
    _
  %s8 = ssub.s32 1, %s6
  %s9 = scalar_select 0, %s8, %s6
  loop: start=0, step=1, limit=5
  $region2: #{network_forward.10} parent=0 // loop_pre_header
    _
  $region3: #{network_forward.10} parent=0 // loop_header
    %s11 = sphi 0, %s15
    %p12 = scmp.ge.s32.totalorder %s11, 5
    %s21 = sphi 0, %s23
    %s24 = sphi 0, %s21
    %s25 = sphi 0, %s24
    %s41 = sphi 0, %s25
    %s45 = sphi 0, %s45
    %s47 = sphi 0, %s45
    %s48 = sphi 0, %s47
    %s62 = sphi 0, %s48
    %s66 = sphi 0, %s66
    %s68 = sphi 0, %s66
    %s69 = sphi 0, %s68
    %s83 = sphi 0, %s69
    %s87 = sphi 0, %s87
    %s89 = sphi 0, %s87
    %s90 = sphi 0, %s89
    %s104 = sphi 0, %s90
    %s108 = sphi 0, %s108
    %s110 = sphi 0, %s108
    %s111 = sphi 0, %s110
    %s125 = sphi 0, %s111
    %s131 = sphi 0, %s133
    %s134 = sphi 0, %s131
    %s135 = sphi 0, %s134
    %s151 = sphi 0, %s135
  $region4: #{network_forward.10} parent=0 // loop_header_branch
    %14 = sbr.rel (%p12) target = $region8
  $region5: #{network_forward.10} parent=0 // loop_body
    %s16 = ssub.s32 %s11, 1
    %s17 = ssub.s32 %s11, 2
    %s18 = sadd.s32 %s11, 1
    %s19 = ssub.s32 %s11, %s18
    %p20 = scmp.eq.s32.totalorder %s19, 0
    %s22 = sadd.s32 %s21, 1
    %s23 = scalar_select %p20, %s21, %s22
    %p26 = pneg %p20
    %p27 = scmp.eq.s32.totalorder %s11, 2
    %p28 = por %p26, %p27
    %p29 = scmp.ne.s32.totalorder %s21, %s24
    %p30 = scmp.eq.s32.totalorder %s11, 0
    %p31 = por %p29, %p30
    %p32 = scmp.ne.s32.totalorder %s21, %s24
    %p33 = scmp.eq.s32.totalorder %s16, 2
    %p34 = por %p32, %p33
    %p35 = scmp.ne.s32.totalorder %s24, %s25
    %p36 = scmp.eq.s32.totalorder %s16, 0
    %p37 = por %p35, %p36
    %p38 = scmp.ne.s32.totalorder %s24, %s25
    %p39 = scmp.eq.s32.totalorder %s17, 2
    %p40 = por %p38, %p39
    %p42 = scmp.ne.s32.totalorder %s25, %s41
    %p43 = scmp.eq.s32.totalorder %s17, 0
    %p44 = por %p42, %p43
    %s46 = sadd.s32 %s45, 1
    %p49 = scmp.eq.s32.totalorder %s11, 2
    %p50 = scmp.ne.s32.totalorder %s45, %s47
    %p51 = scmp.eq.s32.totalorder %s11, 0
    %p52 = por %p50, %p51
    %p53 = scmp.ne.s32.totalorder %s45, %s47
    %p54 = scmp.eq.s32.totalorder %s16, 2
    %p55 = por %p53, %p54
    %p56 = scmp.ne.s32.totalorder %s47, %s48
    %p57 = scmp.eq.s32.totalorder %s16, 0
    %p58 = por %p56, %p57
    %p59 = scmp.ne.s32.totalorder %s47, %s48
    %p60 = scmp.eq.s32.totalorder %s17, 2
    %p61 = por %p59, %p60
    %p63 = scmp.ne.s32.totalorder %s48, %s62
    %p64 = scmp.eq.s32.totalorder %s17, 0
    %p65 = por %p63, %p64
    %s67 = sadd.s32 %s66, 1
    %p70 = scmp.eq.s32.totalorder %s11, 2
    %p71 = scmp.ne.s32.totalorder %s66, %s68
    %p72 = scmp.eq.s32.totalorder %s11, 0
    %p73 = por %p71, %p72
    %p74 = scmp.ne.s32.totalorder %s66, %s68
    %p75 = scmp.eq.s32.totalorder %s16, 2
    %p76 = por %p74, %p75
    %p77 = scmp.ne.s32.totalorder %s68, %s69
    %p78 = scmp.eq.s32.totalorder %s16, 0
    %p79 = por %p77, %p78
    %p80 = scmp.ne.s32.totalorder %s68, %s69
    %p81 = scmp.eq.s32.totalorder %s17, 2
    %p82 = por %p80, %p81
    %p84 = scmp.ne.s32.totalorder %s69, %s83
    %p85 = scmp.eq.s32.totalorder %s17, 0
    %p86 = por %p84, %p85
    %s88 = sadd.s32 %s87, 1
    %p91 = scmp.eq.s32.totalorder %s11, 2
    %p92 = scmp.ne.s32.totalorder %s87, %s89
    %p93 = scmp.eq.s32.totalorder %s11, 0
    %p94 = por %p92, %p93
    %p95 = scmp.ne.s32.totalorder %s87, %s89
    %p96 = scmp.eq.s32.totalorder %s16, 2
    %p97 = por %p95, %p96
    %p98 = scmp.ne.s32.totalorder %s89, %s90
    %p99 = scmp.eq.s32.totalorder %s16, 0
    %p100 = por %p98, %p99
    %p101 = scmp.ne.s32.totalorder %s89, %s90
    %p102 = scmp.eq.s32.totalorder %s17, 2
    %p103 = por %p101, %p102
    %p105 = scmp.ne.s32.totalorder %s90, %s104
    %p106 = scmp.eq.s32.totalorder %s17, 0
    %p107 = por %p105, %p106
    %s109 = sadd.s32 %s108, 1
    %p112 = scmp.eq.s32.totalorder %s11, 2
    %p113 = scmp.ne.s32.totalorder %s108, %s110
    %p114 = scmp.eq.s32.totalorder %s11, 0
    %p115 = por %p113, %p114
    %p116 = scmp.ne.s32.totalorder %s108, %s110
    %p117 = scmp.eq.s32.totalorder %s16, 2
    %p118 = por %p116, %p117
    %p119 = scmp.ne.s32.totalorder %s110, %s111
    %p120 = scmp.eq.s32.totalorder %s16, 0
    %p121 = por %p119, %p120
    %p122 = scmp.ne.s32.totalorder %s110, %s111
    %p123 = scmp.eq.s32.totalorder %s17, 2
    %p124 = por %p122, %p123
    %p126 = scmp.ne.s32.totalorder %s111, %s125
    %p127 = scmp.eq.s32.totalorder %s17, 0
    %p128 = por %p126, %p127
    %s129 = ssub.s32 %s11, %s18
    %p130 = scmp.eq.s32.totalorder %s129, 0
    %s132 = sadd.s32 %s131, 1
    %s133 = scalar_select %p130, %s131, %s132
    %p136 = pneg %p130
    %p137 = scmp.eq.s32.totalorder %s11, 2
    %p138 = por %p136, %p137
    %p139 = scmp.ne.s32.totalorder %s131, %s134
    %p140 = scmp.eq.s32.totalorder %s11, 0
    %p141 = por %p139, %p140
    %p142 = scmp.ne.s32.totalorder %s131, %s134
    %p143 = scmp.eq.s32.totalorder %s16, 2
    %p144 = por %p142, %p143
    %p145 = scmp.ne.s32.totalorder %s134, %s135
    %p146 = scmp.eq.s32.totalorder %s16, 0
    %p147 = por %p145, %p146
    %p148 = scmp.ne.s32.totalorder %s134, %s135
    %p149 = scmp.eq.s32.totalorder %s17, 2
    %p150 = por %p148, %p149
    %p152 = scmp.ne.s32.totalorder %s135, %s151
    %p153 = scmp.eq.s32.totalorder %s17, 0
    %p154 = por %p152, %p153
    %p155 = scmp.le.s32.totalorder 1, %s11
    %p156 = scmp.lt.s32.totalorder %s11, 4
    %p157 = pnand %p155, %p156
    %p158 = pneg %p157
    // Predicated region
    $region9: #{network_forward.10} parent=5 // pred_check
      _
    $region10: #{network_forward.10} parent=5 // pred_check_branch
      %160 = sbr.rel (%p157) target = $region12
    $region11: #{network_forward.10} parent=5 // pred_region
      %s161 = ssub.s32 %s11, 1
      // Predicated region
      $region13: #{network_forward.10} parent=11 // pred_check
        %p162 = pneg %p58
      $region14: #{network_forward.10} parent=11 // pred_check_branch
        %164 = sbr.rel (%p162) target = $region16
      $region15: #{network_forward.10} parent=11 // pred_region
        _
      $region16: #{network_forward.10} parent=11 // pred_fallthru
        _
      // Predicated region
      $region17: #{network_forward.10} parent=11 // pred_check
        %p165 = pneg %p79
      $region18: #{network_forward.10} parent=11 // pred_check_branch
        %167 = sbr.rel (%p165) target = $region20
      $region19: #{network_forward.10} parent=11 // pred_region
        _
      $region20: #{network_forward.10} parent=11 // pred_fallthru
        _
      // Predicated region
      $region21: #{network_forward.10} parent=11 // pred_check
        %p168 = pneg %p100
      $region22: #{network_forward.10} parent=11 // pred_check_branch
        %170 = sbr.rel (%p168) target = $region24
      $region23: #{network_forward.10} parent=11 // pred_region
        _
      $region24: #{network_forward.10} parent=11 // pred_fallthru
        _
      // Predicated region
      $region25: #{network_forward.10} parent=11 // pred_check
        %p171 = pneg %p121
      $region26: #{network_forward.10} parent=11 // pred_check_branch
        %173 = sbr.rel (%p171) target = $region28
      $region27: #{network_forward.10} parent=11 // pred_region
        _
      $region28: #{network_forward.10} parent=11 // pred_fallthru
        _
    $region12: #{network_forward.10} parent=5 // pred_fallthru
      _
    %p174 = scmp.lt.s32.totalorder %s11, 3
    // Predicated region
    $region29: #{network_forward.10} parent=5 // pred_check
      %p175 = pneg %p174
    $region30: #{network_forward.10} parent=5 // pred_check_branch
      %177 = sbr.rel (%p175) target = $region32
    $region31: #{network_forward.10} parent=5 // pred_region
      // Predicated region
      $region33: #{network_forward.10} parent=31 // pred_check
        %p178 = pneg %p31
      $region34: #{network_forward.10} parent=31 // pred_check_branch
        %180 = sbr.rel (%p178) target = $region36
      $region35: #{network_forward.10} parent=31 // pred_region
        %s181 = smul.u32 32, %s11
        %p182 = scmp.lt.s32.totalorder %s181, 95
        %s183 = scalar_select %p182, %s181, 95
        %s184 = smul.addr %s183, 4
        %s185 = smul.addr %s184, 4
        %s186 = scalar_lea.vmem %s0, %s185
        %s187 = smul.u32 32, %s11
      $region36: #{network_forward.10} parent=31 // pred_fallthru
        _
    $region32: #{network_forward.10} parent=5 // pred_fallthru
      _
    %p188 = scmp.le.s32.totalorder 1, %s11
    %p189 = scmp.lt.s32.totalorder %s11, 4
    %p190 = pnand %p188, %p189
    %p191 = pneg %p190
    // Predicated region
    $region37: #{network_forward.10} parent=5 // pred_check
      _
    $region38: #{network_forward.10} parent=5 // pred_check_branch
      %193 = sbr.rel (%p190) target = $region40
    $region39: #{network_forward.10} parent=5 // pred_region
      %s194 = ssub.s32 %s11, 1
      %s195 = smul.u32 32, %s16
      %p196 = scmp.lt.s32.totalorder %s195, 95
      %s197 = scalar_select %p196, %s195, 95
      %s198 = smul.addr %s197, 4
      %s199 = smul.addr %s198, 4
      %s200 = scalar_lea.vmem %s0, %s199
      %p201 = pneg %p37
      %p202 = pneg %p34
      %p203 = pneg %p58
      %p204 = pneg %p55
      %p205 = pneg %p79
      %p206 = pneg %p76
      %p207 = pneg %p100
      %p208 = pneg %p97
      %p209 = pneg %p121
      %p210 = pneg %p118
      %p211 = pneg %p147
      %p212 = pneg %p144
      %s213 = smul.u32 32, %s16
      %p214 = scmp.lt.s32.totalorder %s213, 95
      %s215 = scalar_select %p214, %s213, 95
      %s216 = smul.addr %s215, 8
      %s217 = scalar_lea.vmem %s5, %s216
      %s218 = smul.u32 32, %s16
      %p219 = scmp.lt.s32.totalorder %s218, 95
      %s220 = scalar_select %p219, %s218, 95
      %s221 = smul.addr %s220, 4
      %s222 = smul.addr %s221, 4
      %s223 = scalar_lea.vmem %s0, %s222
      %s224 = smul.u32 32, %s16
      %s225 = smul.u32 32, %s16
      %p226 = scmp.lt.s32.totalorder %s225, 95
      %s227 = scalar_select %p226, %s225, 95
      %s228 = smul.addr %s227, 8
      %s229 = scalar_lea.vmem %s5, %s228
      %s230 = smul.u32 32, %s16
      %v232 = vld [vmem:[%s223] sm:$0xff]
      %v233 = vld [vmem:[%s223 + $0x8] sm:$0xff]
      %v234 = vld [vmem:[%s223 + $0x10] sm:$0xff]
      %v235 = vld [vmem:[%s223 + $0x18] sm:$0xff]
      %v236 = vld [vmem:[%s223 + $0x20] sm:$0xff]
      %v237 = vld [vmem:[%s223 + $0x28] sm:$0xff]
      %v238 = vld [vmem:[%s223 + $0x30] sm:$0xff]
      %v239 = vld [vmem:[%s223 + $0x38] sm:$0xff]
      %v240 = vld [vmem:[%s223 + $0x40] sm:$0xff]
      %v241 = vld [vmem:[%s223 + $0x48] sm:$0xff]
      %v242 = vld [vmem:[%s223 + $0x50] sm:$0xff]
      %v243 = vld [vmem:[%s223 + $0x58] sm:$0xff]
      %v244 = vld [vmem:[%s223 + $0x60] sm:$0xff]
      %v245 = vld [vmem:[%s223 + $0x68] sm:$0xff]
      %v246 = vld [vmem:[%s223 + $0x70] sm:$0xff]
      %v247 = vld [vmem:[%s223 + $0x78] sm:$0xff]
      %v248 = vld [vmem:[%s223 + $0x80] sm:$0xff]
      %v249 = vld [vmem:[%s223 + $0x88] sm:$0xff]
      %v250 = vld [vmem:[%s223 + $0x90] sm:$0xff]
      %v251 = vld [vmem:[%s223 + $0x98] sm:$0xff]
      %v252 = vld [vmem:[%s223 + $0xa0] sm:$0xff]
      %v253 = vld [vmem:[%s223 + $0xa8] sm:$0xff]
      %v254 = vld [vmem:[%s223 + $0xb0] sm:$0xff]
      %v255 = vld [vmem:[%s223 + $0xb8] sm:$0xff]
      %v256 = vld [vmem:[%s223 + $0xc0] sm:$0xff]
      %v257 = vld [vmem:[%s223 + $0xc8] sm:$0xff]
      %v258 = vld [vmem:[%s223 + $0xd0] sm:$0xff]
      %v259 = vld [vmem:[%s223 + $0xd8] sm:$0xff]
      %v260 = vld [vmem:[%s223 + $0xe0] sm:$0xff]
      %v261 = vld [vmem:[%s223 + $0xe8] sm:$0xff]
      %v262 = vld [vmem:[%s223 + $0xf0] sm:$0xff]
      %v263 = vld [vmem:[%s223 + $0xf8] sm:$0xff]
      %v264 = vld [vmem:[%s223 + $0x100] sm:$0xff]
      %v265 = vld [vmem:[%s223 + $0x108] sm:$0xff]
      %v266 = vld [vmem:[%s223 + $0x110] sm:$0xff]
      %v267 = vld [vmem:[%s223 + $0x118] sm:$0xff]
      %v268 = vld [vmem:[%s223 + $0x120] sm:$0xff]
      %v269 = vld [vmem:[%s223 + $0x128] sm:$0xff]
      %v270 = vld [vmem:[%s223 + $0x130] sm:$0xff]
      %v271 = vld [vmem:[%s223 + $0x138] sm:$0xff]
      %v272 = vld [vmem:[%s223 + $0x140] sm:$0xff]
      %v273 = vld [vmem:[%s223 + $0x148] sm:$0xff]
      %v274 = vld [vmem:[%s223 + $0x150] sm:$0xff]
      %v275 = vld [vmem:[%s223 + $0x158] sm:$0xff]
      %v276 = vld [vmem:[%s223 + $0x160] sm:$0xff]
      %v277 = vld [vmem:[%s223 + $0x168] sm:$0xff]
      %v278 = vld [vmem:[%s223 + $0x170] sm:$0xff]
      %v279 = vld [vmem:[%s223 + $0x178] sm:$0xff]
      %v280 = vld [vmem:[%s223 + $0x180] sm:$0xff]
      %v281 = vld [vmem:[%s223 + $0x188] sm:$0xff]
      %v282 = vld [vmem:[%s223 + $0x190] sm:$0xff]
      %v283 = vld [vmem:[%s223 + $0x198] sm:$0xff]
      %v284 = vld [vmem:[%s223 + $0x1a0] sm:$0xff]
      %v285 = vld [vmem:[%s223 + $0x1a8] sm:$0xff]
      %v286 = vld [vmem:[%s223 + $0x1b0] sm:$0xff]
      %v287 = vld [vmem:[%s223 + $0x1b8] sm:$0xff]
      %v288 = vld [vmem:[%s223 + $0x1c0] sm:$0xff]
      %v289 = vld [vmem:[%s223 + $0x1c8] sm:$0xff]
      %v290 = vld [vmem:[%s223 + $0x1d0] sm:$0xff]
      %v291 = vld [vmem:[%s223 + $0x1d8] sm:$0xff]
      %v292 = vld [vmem:[%s223 + $0x1e0] sm:$0xff]
      %v293 = vld [vmem:[%s223 + $0x1e8] sm:$0xff]
      %v294 = vld [vmem:[%s223 + $0x1f0] sm:$0xff]
      %v295 = vld [vmem:[%s223 + $0x1f8] sm:$0xff]
      %v296 = vld [vmem:[%s1] sm:$0xf]
      %v297 = vld [vmem:[%s1 + $0x4] sm:$0xf]
      %v298 = vld [vmem:[%s1 + $0x8] sm:$0xf]
      %v299 = vld [vmem:[%s1 + $0xc] sm:$0xf]
      %v300 = vld [vmem:[%s1 + $0x10] sm:$0xf]
      %v301 = vld [vmem:[%s1 + $0x14] sm:$0xf]
      %v302 = vld [vmem:[%s1 + $0x18] sm:$0xf]
      %v303 = vld [vmem:[%s1 + $0x1c] sm:$0xf]
      %v304 = vld [vmem:[%s1 + $0x20] sm:$0xf]
      %v305 = vld [vmem:[%s1 + $0x24] sm:$0xf]
      %v306 = vld [vmem:[%s1 + $0x28] sm:$0xf]
      %v307 = vld [vmem:[%s1 + $0x2c] sm:$0xf]
      %v308 = vld [vmem:[%s1 + $0x30] sm:$0xf]
      %v309 = vld [vmem:[%s1 + $0x34] sm:$0xf]
      %v310 = vld [vmem:[%s1 + $0x38] sm:$0xf]
      %v311 = vld [vmem:[%s1 + $0x3c] sm:$0xf]
      %v312 = vld [vmem:[%s1 + $0x40] sm:$0xf]
      %v313 = vld [vmem:[%s1 + $0x44] sm:$0xf]
      %v314 = vld [vmem:[%s1 + $0x48] sm:$0xf]
      %v315 = vld [vmem:[%s1 + $0x4c] sm:$0xf]
      %v316 = vld [vmem:[%s1 + $0x50] sm:$0xf]
      %v317 = vld [vmem:[%s1 + $0x54] sm:$0xf]
      %v318 = vld [vmem:[%s1 + $0x58] sm:$0xf]
      %v319 = vld [vmem:[%s1 + $0x5c] sm:$0xf]
      %v320 = vld [vmem:[%s1 + $0x60] sm:$0xf]
      %v321 = vld [vmem:[%s1 + $0x64] sm:$0xf]
      %v322 = vld [vmem:[%s1 + $0x68] sm:$0xf]
      %v323 = vld [vmem:[%s1 + $0x6c] sm:$0xf]
      %v324 = vld [vmem:[%s1 + $0x70] sm:$0xf]
      %v325 = vld [vmem:[%s1 + $0x74] sm:$0xf]
      %v326 = vld [vmem:[%s1 + $0x78] sm:$0xf]
      %v327 = vld [vmem:[%s1 + $0x7c] sm:$0xf]
      %v328 = vld [vmem:[%s1 + $0x80] sm:$0xf]
      %v329 = vld [vmem:[%s1 + $0x84] sm:$0xf]
      %v330 = vld [vmem:[%s1 + $0x88] sm:$0xf]
      %v331 = vld [vmem:[%s1 + $0x8c] sm:$0xf]
      %v332 = vld [vmem:[%s1 + $0x90] sm:$0xf]
      %v333 = vld [vmem:[%s1 + $0x94] sm:$0xf]
      %v334 = vld [vmem:[%s1 + $0x98] sm:$0xf]
      %v335 = vld [vmem:[%s1 + $0x9c] sm:$0xf]
      %v336 = vld [vmem:[%s1 + $0xa0] sm:$0xf]
      %v337 = vld [vmem:[%s1 + $0xa4] sm:$0xf]
      %v338 = vld [vmem:[%s1 + $0xa8] sm:$0xf]
      %v339 = vld [vmem:[%s1 + $0xac] sm:$0xf]
      %v340 = vld [vmem:[%s1 + $0xb0] sm:$0xf]
      %v341 = vld [vmem:[%s1 + $0xb4] sm:$0xf]
      %v342 = vld [vmem:[%s1 + $0xb8] sm:$0xf]
      %v343 = vld [vmem:[%s1 + $0xbc] sm:$0xf]
      %v344 = vld [vmem:[%s1 + $0xc0] sm:$0xf]
      %v345 = vld [vmem:[%s1 + $0xc4] sm:$0xf]
      %v346 = vld [vmem:[%s1 + $0xc8] sm:$0xf]
      %v347 = vld [vmem:[%s1 + $0xcc] sm:$0xf]
      %v348 = vld [vmem:[%s1 + $0xd0] sm:$0xf]
      %v349 = vld [vmem:[%s1 + $0xd4] sm:$0xf]
      %v350 = vld [vmem:[%s2] sm:$0x1]
      %v352 = vlaneseq
      %v353 = vshrl.u32 %v352, 7
      %v354 = vsub.s32 0, %v353
      %v355 = vrot.slane %v350, %v354
      %v421 = vunpack.c.l.b16 %v232
      %v422 = vunpack.c.h.b16 %v232
      %v423 = vunpack.c.l.b16 %v233
      %v424 = vunpack.c.h.b16 %v233
      %v425 = vunpack.c.l.b16 %v234
      %v426 = vunpack.c.h.b16 %v234
      %v427 = vunpack.c.l.b16 %v235
      %v428 = vunpack.c.h.b16 %v235
      %v429 = vunpack.c.l.b16 %v236
      %v430 = vunpack.c.h.b16 %v236
      %v431 = vunpack.c.l.b16 %v237
      %v432 = vunpack.c.h.b16 %v237
      %v433 = vunpack.c.l.b16 %v238
      %v434 = vunpack.c.h.b16 %v238
      %v435 = vunpack.c.l.b16 %v239
      %v436 = vunpack.c.h.b16 %v239
      %v437 = vunpack.c.l.b16 %v240
      %v438 = vunpack.c.h.b16 %v240
      %v439 = vunpack.c.l.b16 %v241
      %v440 = vunpack.c.h.b16 %v241
      %v441 = vunpack.c.l.b16 %v242
      %v442 = vunpack.c.h.b16 %v242
      %v443 = vunpack.c.l.b16 %v243
      %v444 = vunpack.c.h.b16 %v243
      %v445 = vunpack.c.l.b16 %v244
      %v446 = vunpack.c.h.b16 %v244
      %v447 = vunpack.c.l.b16 %v245
      %v448 = vunpack.c.h.b16 %v245
      %v449 = vunpack.c.l.b16 %v246
      %v450 = vunpack.c.h.b16 %v246
      %v451 = vunpack.c.l.b16 %v247
      %v452 = vunpack.c.h.b16 %v247
      %v453 = vunpack.c.l.b16 %v248
      %v454 = vunpack.c.h.b16 %v248
      %v455 = vunpack.c.l.b16 %v249
      %v456 = vunpack.c.h.b16 %v249
      %v457 = vunpack.c.l.b16 %v250
      %v458 = vunpack.c.h.b16 %v250
      %v459 = vunpack.c.l.b16 %v251
      %v460 = vunpack.c.h.b16 %v251
      %v461 = vunpack.c.l.b16 %v252
      %v462 = vunpack.c.h.b16 %v252
      %v463 = vunpack.c.l.b16 %v253
      %v464 = vunpack.c.h.b16 %v253
      %v465 = vunpack.c.l.b16 %v254
      %v466 = vunpack.c.h.b16 %v254
      %v467 = vunpack.c.l.b16 %v255
      %v468 = vunpack.c.h.b16 %v255
      %v469 = vunpack.c.l.b16 %v256
      %v470 = vunpack.c.h.b16 %v256
      %v471 = vunpack.c.l.b16 %v257
      %v472 = vunpack.c.h.b16 %v257
      %v473 = vunpack.c.l.b16 %v258
      %v474 = vunpack.c.h.b16 %v258
      %v475 = vunpack.c.l.b16 %v259
      %v476 = vunpack.c.h.b16 %v259
      %v477 = vunpack.c.l.b16 %v260
      %v478 = vunpack.c.h.b16 %v260
      %v479 = vunpack.c.l.b16 %v261
      %v480 = vunpack.c.h.b16 %v261
      %v481 = vunpack.c.l.b16 %v262
      %v482 = vunpack.c.h.b16 %v262
      %v483 = vunpack.c.l.b16 %v263
      %v484 = vunpack.c.h.b16 %v263
      %v485 = vunpack.c.l.b16 %v264
      %v486 = vunpack.c.h.b16 %v264
      %v487 = vunpack.c.l.b16 %v265
      %v488 = vunpack.c.h.b16 %v265
      %v489 = vunpack.c.l.b16 %v266
      %v490 = vunpack.c.h.b16 %v266
      %v491 = vunpack.c.l.b16 %v267
      %v492 = vunpack.c.h.b16 %v267
      %v493 = vunpack.c.l.b16 %v268
      %v494 = vunpack.c.h.b16 %v268
      %v495 = vunpack.c.l.b16 %v269
      %v496 = vunpack.c.h.b16 %v269
      %v497 = vunpack.c.l.b16 %v270
      %v498 = vunpack.c.h.b16 %v270
      %v499 = vunpack.c.l.b16 %v271
      %v500 = vunpack.c.h.b16 %v271
      %v501 = vunpack.c.l.b16 %v272
      %v502 = vunpack.c.h.b16 %v272
      %v503 = vunpack.c.l.b16 %v273
      %v504 = vunpack.c.h.b16 %v273
      %v505 = vunpack.c.l.b16 %v274
      %v506 = vunpack.c.h.b16 %v274
      %v507 = vunpack.c.l.b16 %v275
      %v508 = vunpack.c.h.b16 %v275
      %v509 = vunpack.c.l.b16 %v276
      %v510 = vunpack.c.h.b16 %v276
      %v511 = vunpack.c.l.b16 %v277
      %v512 = vunpack.c.h.b16 %v277
      %v513 = vunpack.c.l.b16 %v278
      %v514 = vunpack.c.h.b16 %v278
      %v515 = vunpack.c.l.b16 %v279
      %v516 = vunpack.c.h.b16 %v279
      %v517 = vunpack.c.l.b16 %v280
      %v518 = vunpack.c.h.b16 %v280
      %v519 = vunpack.c.l.b16 %v281
      %v520 = vunpack.c.h.b16 %v281
      %v521 = vunpack.c.l.b16 %v282
      %v522 = vunpack.c.h.b16 %v282
      %v523 = vunpack.c.l.b16 %v283
      %v524 = vunpack.c.h.b16 %v283
      %v525 = vunpack.c.l.b16 %v284
      %v526 = vunpack.c.h.b16 %v284
      %v527 = vunpack.c.l.b16 %v285
      %v528 = vunpack.c.h.b16 %v285
      %v529 = vunpack.c.l.b16 %v286
      %v530 = vunpack.c.h.b16 %v286
      %v531 = vunpack.c.l.b16 %v287
      %v532 = vunpack.c.h.b16 %v287
      %v533 = vunpack.c.l.b16 %v288
      %v534 = vunpack.c.h.b16 %v288
      %v535 = vunpack.c.l.b16 %v289
      %v536 = vunpack.c.h.b16 %v289
      %v537 = vunpack.c.l.b16 %v290
      %v538 = vunpack.c.h.b16 %v290
      %v539 = vunpack.c.l.b16 %v291
      %v540 = vunpack.c.h.b16 %v291
      %v541 = vunpack.c.l.b16 %v292
      %v542 = vunpack.c.h.b16 %v292
      %v543 = vunpack.c.l.b16 %v293
      %v544 = vunpack.c.h.b16 %v293
      %v545 = vunpack.c.l.b16 %v294
      %v546 = vunpack.c.h.b16 %v294
      %v547 = vunpack.c.l.b16 %v295
      %v548 = vunpack.c.h.b16 %v295
      %v549 = vpack.c.b16 %v425, %v421
      %v550 = vpack.c.b16 %v426, %v422
      %v551 = vpack.c.b16 %v427, %v423
      %v552 = vpack.c.b16 %v428, %v424
      %v553 = vpack.c.b16 %v433, %v429
      %v554 = vpack.c.b16 %v434, %v430
      %v555 = vpack.c.b16 %v435, %v431
      %v556 = vpack.c.b16 %v436, %v432
      %v557 = vpack.c.b16 %v441, %v437
      %v558 = vpack.c.b16 %v442, %v438
      %v559 = vpack.c.b16 %v443, %v439
      %v560 = vpack.c.b16 %v444, %v440
      %v561 = vpack.c.b16 %v449, %v445
      %v562 = vpack.c.b16 %v450, %v446
      %v563 = vpack.c.b16 %v451, %v447
      %v564 = vpack.c.b16 %v452, %v448
      %v565 = vpack.c.b16 %v457, %v453
      %v566 = vpack.c.b16 %v458, %v454
      %v567 = vpack.c.b16 %v459, %v455
      %v568 = vpack.c.b16 %v460, %v456
      %v569 = vpack.c.b16 %v465, %v461
      %v570 = vpack.c.b16 %v466, %v462
      %v571 = vpack.c.b16 %v467, %v463
      %v572 = vpack.c.b16 %v468, %v464
      %v573 = vpack.c.b16 %v473, %v469
      %v574 = vpack.c.b16 %v474, %v470
      %v575 = vpack.c.b16 %v475, %v471
      %v576 = vpack.c.b16 %v476, %v472
      %v577 = vpack.c.b16 %v481, %v477
      %v578 = vpack.c.b16 %v482, %v478
      %v579 = vpack.c.b16 %v483, %v479
      %v580 = vpack.c.b16 %v484, %v480
      %v581 = vpack.c.b16 %v489, %v485
      %v582 = vpack.c.b16 %v490, %v486
      %v583 = vpack.c.b16 %v491, %v487
      %v584 = vpack.c.b16 %v492, %v488
      %v585 = vpack.c.b16 %v497, %v493
      %v586 = vpack.c.b16 %v498, %v494
      %v587 = vpack.c.b16 %v499, %v495
      %v588 = vpack.c.b16 %v500, %v496
      %v589 = vpack.c.b16 %v505, %v501
      %v590 = vpack.c.b16 %v506, %v502
      %v591 = vpack.c.b16 %v507, %v503
      %v592 = vpack.c.b16 %v508, %v504
      %v593 = vpack.c.b16 %v513, %v509
      %v594 = vpack.c.b16 %v514, %v510
      %v595 = vpack.c.b16 %v515, %v511
      %v596 = vpack.c.b16 %v516, %v512
      %v597 = vpack.c.b16 %v521, %v517
      %v598 = vpack.c.b16 %v522, %v518
      %v599 = vpack.c.b16 %v523, %v519
      %v600 = vpack.c.b16 %v524, %v520
      %v601 = vpack.c.b16 %v529, %v525
      %v602 = vpack.c.b16 %v530, %v526
      %v603 = vpack.c.b16 %v531, %v527
      %v604 = vpack.c.b16 %v532, %v528
      %v605 = vpack.c.b16 %v537, %v533
      %v606 = vpack.c.b16 %v538, %v534
      %v607 = vpack.c.b16 %v539, %v535
      %v608 = vpack.c.b16 %v540, %v536
      %v609 = vpack.c.b16 %v545, %v541
      %v610 = vpack.c.b16 %v546, %v542
      %v611 = vpack.c.b16 %v547, %v543
      %v612 = vpack.c.b16 %v548, %v544
      %v715 = vunpack.c.l.b16 %v296
      %v716 = vunpack.c.l.b16 %v297
      %v717 = vunpack.c.l.b16 %v298
      %v718 = vunpack.c.l.b16 %v299
      %v719 = vunpack.c.l.b16 %v300
      %v720 = vunpack.c.l.b16 %v301
      %v721 = vunpack.c.l.b16 %v302
      %v722 = vunpack.c.l.b16 %v303
      %v723 = vunpack.c.l.b16 %v304
      %v724 = vunpack.c.l.b16 %v305
      %v725 = vunpack.c.l.b16 %v306
      %v726 = vunpack.c.l.b16 %v307
      %v727 = vunpack.c.l.b16 %v308
      %v728 = vunpack.c.l.b16 %v309
      %v729 = vunpack.c.l.b16 %v310
      %v730 = vunpack.c.l.b16 %v311
      %v731 = vunpack.c.l.b16 %v312
      %v732 = vunpack.c.l.b16 %v313
      %v733 = vunpack.c.l.b16 %v314
      %v734 = vunpack.c.l.b16 %v315
      %v735 = vunpack.c.l.b16 %v316
      %v736 = vunpack.c.l.b16 %v317
      %v737 = vunpack.c.l.b16 %v318
      %v738 = vunpack.c.l.b16 %v319
      %v739 = vunpack.c.l.b16 %v320
      %v740 = vunpack.c.l.b16 %v321
      %v741 = vunpack.c.l.b16 %v322
      %v742 = vunpack.c.l.b16 %v323
      %v743 = vunpack.c.l.b16 %v324
      %v744 = vunpack.c.l.b16 %v325
      %v745 = vunpack.c.l.b16 %v326
      %v746 = vunpack.c.l.b16 %v327
      %v747 = vunpack.c.l.b16 %v328
      %v748 = vunpack.c.l.b16 %v329
      %v749 = vunpack.c.l.b16 %v330
      %v750 = vunpack.c.l.b16 %v331
      %v751 = vunpack.c.l.b16 %v332
      %v752 = vunpack.c.l.b16 %v333
      %v753 = vunpack.c.l.b16 %v334
      %v754 = vunpack.c.l.b16 %v335
      %v755 = vunpack.c.l.b16 %v336
      %v756 = vunpack.c.l.b16 %v337
      %v757 = vunpack.c.l.b16 %v338
      %v758 = vunpack.c.l.b16 %v339
      %v759 = vunpack.c.l.b16 %v340
      %v760 = vunpack.c.l.b16 %v341
      %v761 = vunpack.c.l.b16 %v342
      %v762 = vunpack.c.l.b16 %v343
      %v763 = vunpack.c.l.b16 %v344
      %v764 = vunpack.c.l.b16 %v345
      %v765 = vunpack.c.l.b16 %v346
      %v766 = vunpack.c.l.b16 %v347
      %v767 = vunpack.c.l.b16 %v348
      %v768 = vunpack.c.l.b16 %v349
      %v769 = vpack.c.b16 %v716, %v715
      %v770 = vpack.c.b16 %v718, %v717
      %v771 = vpack.c.b16 %v720, %v719
      %v772 = vpack.c.b16 %v722, %v721
      %v773 = vpack.c.b16 %v724, %v723
      %v774 = vpack.c.b16 %v726, %v725
      %v775 = vpack.c.b16 %v728, %v727
      %v776 = vpack.c.b16 %v730, %v729
      %v777 = vpack.c.b16 %v732, %v731
      %v778 = vpack.c.b16 %v734, %v733
      %v779 = vpack.c.b16 %v736, %v735
      %v780 = vpack.c.b16 %v738, %v737
      %v781 = vpack.c.b16 %v740, %v739
      %v782 = vpack.c.b16 %v742, %v741
      %v783 = vpack.c.b16 %v744, %v743
      %v784 = vpack.c.b16 %v746, %v745
      %v785 = vpack.c.b16 %v748, %v747
      %v786 = vpack.c.b16 %v750, %v749
      %v787 = vpack.c.b16 %v752, %v751
      %v788 = vpack.c.b16 %v754, %v753
      %v789 = vpack.c.b16 %v756, %v755
      %v790 = vpack.c.b16 %v758, %v757
      %v791 = vpack.c.b16 %v760, %v759
      %v792 = vpack.c.b16 %v762, %v761
      %v793 = vpack.c.b16 %v764, %v763
      %v794 = vpack.c.b16 %v766, %v765
      %v795 = vpack.c.b16 %v768, %v767
      %vm823 = vcmask 392192
      %v825 = vsel %vm823, %v552, 0
      %v828 = vsel %vm823, %v556, 0
      %v831 = vsel %vm823, %v560, 0
      %v834 = vsel %vm823, %v564, 0
      %v837 = vsel %vm823, %v568, 0
      %v840 = vsel %vm823, %v572, 0
      %v843 = vsel %vm823, %v576, 0
      %v846 = vsel %vm823, %v580, 0
      %v849 = vsel %vm823, %v584, 0
      %v852 = vsel %vm823, %v588, 0
      %v855 = vsel %vm823, %v592, 0
      %v858 = vsel %vm823, %v596, 0
      %v861 = vsel %vm823, %v600, 0
      %v864 = vsel %vm823, %v604, 0
      %v867 = vsel %vm823, %v608, 0
      %v870 = vsel %vm823, %v612, 0
      %872 = vmatprep.subr.bf16.mxu0 0
      %873 = vmatpush1.bf16.msra.mxu0 %v776
      %874 = vmatprep.subr.bf16.mxu0 0
      %875 = vmatpush1.bf16.msra.mxu0 %v775
      %876 = vmatprep.subr.bf16.mxu0 0
      %877 = vmatpush1.bf16.msra.mxu0 %v774
      %878 = vmatprep.subr.bf16.mxu0 0
      %879 = vmatpush1.bf16.msra.mxu0 %v773
      %880 = vmatprep.subr.bf16.mxu0 0
      %881 = vmatpush1.bf16.msra.mxu0 %v772
      %882 = vmatprep.subr.bf16.mxu0 0
      %883 = vmatpush1.bf16.msra.mxu0 %v771
      %884 = vmatprep.subr.bf16.mxu0 0
      %885 = vmatpush1.bf16.msra.mxu0 %v770
      %886 = vmatprep.subr.bf16.mxu0 0
      %887 = vmatpush1.bf16.msra.mxu0 %v769
      %888 = vmatprep.subr.bf16.mxu0 0
      %889 = vmatpush2.bf16.msra.mxu0 %v784
      %890 = vmatprep.subr.bf16.mxu0 0
      %891 = vmatpush2.bf16.msra.mxu0 %v783
      %892 = vmatprep.subr.bf16.mxu0 0
      %893 = vmatpush2.bf16.msra.mxu0 %v782
      %894 = vmatprep.subr.bf16.mxu0 0
      %895 = vmatpush2.bf16.msra.mxu0 %v781
      %896 = vmatprep.subr.bf16.mxu0 0
      %897 = vmatpush2.bf16.msra.mxu0 %v780
      %898 = vmatprep.subr.bf16.mxu0 0
      %899 = vmatpush2.bf16.msra.mxu0 %v779
      %900 = vmatprep.subr.bf16.mxu0 0
      %901 = vmatpush2.bf16.msra.mxu0 %v778
      %902 = vmatprep.subr.bf16.mxu0 0
      %903 = vmatpush2.bf16.msra.mxu0 %v777
      %904 = vmatprep.mubr.bf16.mxu0 %v550
      %905 = vmatmul.mubr.bf16.gmra.mxu0 %v549
      %v906 = vpop.f32.mrf.mxu0
      %v907 = vadd.f32 %v355, %v906
      %v908 = vpop.f32.mrf.mxu0
      %v909 = vpop.f32.mrf.mxu0
      %v910 = vadd.f32 %v355, %v909
      %v911 = vpop.f32.mrf.mxu0
      %912 = vmatprep.mubr.bf16.mxu0 %v554
      %913 = vmatmul.mubr.bf16.gmra.mxu0 %v553
      %v914 = vpop.f32.mrf.mxu0
      %v915 = vadd.f32 %v355, %v914
      %v916 = vpop.f32.mrf.mxu0
      %v917 = vpop.f32.mrf.mxu0
      %v918 = vadd.f32 %v355, %v917
      %v919 = vpop.f32.mrf.mxu0
      %920 = vmatprep.mubr.bf16.mxu0 %v558
      %921 = vmatmul.mubr.bf16.gmra.mxu0 %v557
      %v922 = vpop.f32.mrf.mxu0
      %v923 = vadd.f32 %v355, %v922
      %v924 = vpop.f32.mrf.mxu0
      %v925 = vpop.f32.mrf.mxu0
      %v926 = vadd.f32 %v355, %v925
      %v927 = vpop.f32.mrf.mxu0
      %928 = vmatprep.mubr.bf16.mxu0 %v562
      %929 = vmatmul.mubr.bf16.gmra.mxu0 %v561
      %v930 = vpop.f32.mrf.mxu0
      %v931 = vadd.f32 %v355, %v930
      %v932 = vpop.f32.mrf.mxu0
      %v933 = vpop.f32.mrf.mxu0
      %v934 = vadd.f32 %v355, %v933
      %v935 = vpop.f32.mrf.mxu0
      %936 = vmatprep.mubr.bf16.mxu0 %v566
      %937 = vmatmul.mubr.bf16.gmra.mxu0 %v565
      %v938 = vpop.f32.mrf.mxu0
      %v939 = vadd.f32 %v355, %v938
      %v940 = vpop.f32.mrf.mxu0
      %v941 = vpop.f32.mrf.mxu0
      %v942 = vadd.f32 %v355, %v941
      %v943 = vpop.f32.mrf.mxu0
      %944 = vmatprep.mubr.bf16.mxu0 %v570
      %945 = vmatmul.mubr.bf16.gmra.mxu0 %v569
      %v946 = vpop.f32.mrf.mxu0
      %v947 = vadd.f32 %v355, %v946
      %v948 = vpop.f32.mrf.mxu0
      %v949 = vpop.f32.mrf.mxu0
      %v950 = vadd.f32 %v355, %v949
      %v951 = vpop.f32.mrf.mxu0
      %952 = vmatprep.mubr.bf16.mxu0 %v574
      %953 = vmatmul.mubr.bf16.gmra.mxu0 %v573
      %v954 = vpop.f32.mrf.mxu0
      %v955 = vadd.f32 %v355, %v954
      %v956 = vpop.f32.mrf.mxu0
      %v957 = vpop.f32.mrf.mxu0
      %v958 = vadd.f32 %v355, %v957
      %v959 = vpop.f32.mrf.mxu0
      %960 = vmatprep.mubr.bf16.mxu0 %v578
      %961 = vmatmul.mubr.bf16.gmra.mxu0 %v577
      %v962 = vpop.f32.mrf.mxu0
      %v963 = vadd.f32 %v355, %v962
      %v964 = vpop.f32.mrf.mxu0
      %v965 = vpop.f32.mrf.mxu0
      %v966 = vadd.f32 %v355, %v965
      %v967 = vpop.f32.mrf.mxu0
      %968 = vmatprep.mubr.bf16.mxu0 %v582
      %969 = vmatmul.mubr.bf16.gmra.mxu0 %v581
      %v970 = vpop.f32.mrf.mxu0
      %v971 = vadd.f32 %v355, %v970
      %v972 = vpop.f32.mrf.mxu0
      %v973 = vpop.f32.mrf.mxu0
      %v974 = vadd.f32 %v355, %v973
      %v975 = vpop.f32.mrf.mxu0
      %976 = vmatprep.mubr.bf16.mxu0 %v586
      %977 = vmatmul.mubr.bf16.gmra.mxu0 %v585
      %v978 = vpop.f32.mrf.mxu0
      %v979 = vadd.f32 %v355, %v978
      %v980 = vpop.f32.mrf.mxu0
      %v981 = vpop.f32.mrf.mxu0
      %v982 = vadd.f32 %v355, %v981
      %v983 = vpop.f32.mrf.mxu0
      %984 = vmatprep.mubr.bf16.mxu0 %v590
      %985 = vmatmul.mubr.bf16.gmra.mxu0 %v589
      %v986 = vpop.f32.mrf.mxu0
      %v987 = vadd.f32 %v355, %v986
      %v988 = vpop.f32.mrf.mxu0
      %v989 = vpop.f32.mrf.mxu0
      %v990 = vadd.f32 %v355, %v989
      %v991 = vpop.f32.mrf.mxu0
      %992 = vmatprep.mubr.bf16.mxu0 %v594
      %993 = vmatmul.mubr.bf16.gmra.mxu0 %v593
      %v994 = vpop.f32.mrf.mxu0
      %v995 = vadd.f32 %v355, %v994
      %v996 = vpop.f32.mrf.mxu0
      %v997 = vpop.f32.mrf.mxu0
      %v998 = vadd.f32 %v355, %v997
      %v999 = vpop.f32.mrf.mxu0
      %1000 = vmatprep.mubr.bf16.mxu0 %v598
      %1001 = vmatmul.mubr.bf16.gmra.mxu0 %v597
      %v1002 = vpop.f32.mrf.mxu0
      %v1003 = vadd.f32 %v355, %v1002
      %v1004 = vpop.f32.mrf.mxu0
      %v1005 = vpop.f32.mrf.mxu0
      %v1006 = vadd.f32 %v355, %v1005
      %v1007 = vpop.f32.mrf.mxu0
      %1008 = vmatprep.mubr.bf16.mxu0 %v602
      %1009 = vmatmul.mubr.bf16.gmra.mxu0 %v601
      %v1010 = vpop.f32.mrf.mxu0
      %v1011 = vadd.f32 %v355, %v1010
      %v1012 = vpop.f32.mrf.mxu0
      %v1013 = vpop.f32.mrf.mxu0
      %v1014 = vadd.f32 %v355, %v1013
      %v1015 = vpop.f32.mrf.mxu0
      %1016 = vmatprep.mubr.bf16.mxu0 %v606
      %1017 = vmatmul.mubr.bf16.gmra.mxu0 %v605
      %v1018 = vpop.f32.mrf.mxu0
      %v1019 = vadd.f32 %v355, %v1018
      %v1020 = vpop.f32.mrf.mxu0
      %v1021 = vpop.f32.mrf.mxu0
      %v1022 = vadd.f32 %v355, %v1021
      %v1023 = vpop.f32.mrf.mxu0
      %1024 = vmatprep.mubr.bf16.mxu0 %v610
      %1025 = vmatmul.mubr.bf16.gmra.mxu0 %v609
      %v1026 = vpop.f32.mrf.mxu0
      %v1027 = vadd.f32 %v355, %v1026
      %v1028 = vpop.f32.mrf.mxu0
      %v1029 = vpop.f32.mrf.mxu0
      %v1030 = vadd.f32 %v355, %v1029
      %v1031 = vpop.f32.mrf.mxu0
      %1032 = vdwg.mxu0
      %1033 = vmatprep.subr.bf16.mxu0 0
      %1034 = vmatpush1.bf16.msra.mxu0 %v792
      %1035 = vmatprep.subr.bf16.mxu0 0
      %1036 = vmatpush1.bf16.msra.mxu0 %v791
      %1037 = vmatprep.subr.bf16.mxu0 0
      %1038 = vmatpush1.bf16.msra.mxu0 %v790
      %1039 = vmatprep.subr.bf16.mxu0 0
      %1040 = vmatpush1.bf16.msra.mxu0 %v789
      %1041 = vmatprep.subr.bf16.mxu0 0
      %1042 = vmatpush1.bf16.msra.mxu0 %v788
      %1043 = vmatprep.subr.bf16.mxu0 0
      %1044 = vmatpush1.bf16.msra.mxu0 %v787
      %1045 = vmatprep.subr.bf16.mxu0 0
      %1046 = vmatpush1.bf16.msra.mxu0 %v786
      %1047 = vmatprep.subr.bf16.mxu0 0
      %1048 = vmatpush1.bf16.msra.mxu0 %v785
      %1049 = vmatprep.subr.bf16.mxu0 0
      %1050 = vmatpush2.bf16.msra.mxu0 0
      %1051 = vmatprep.subr.bf16.mxu0 0
      %1052 = vmatpush2.bf16.msra.mxu0 0
      %1053 = vmatprep.subr.bf16.mxu0 0
      %1054 = vmatpush2.bf16.msra.mxu0 0
      %1055 = vmatprep.subr.bf16.mxu0 0
      %1056 = vmatpush2.bf16.msra.mxu0 0
      %1057 = vmatprep.subr.bf16.mxu0 0
      %1058 = vmatpush2.bf16.msra.mxu0 0
      %1059 = vmatprep.subr.bf16.mxu0 0
      %1060 = vmatpush2.bf16.msra.mxu0 %v795
      %1061 = vmatprep.subr.bf16.mxu0 0
      %1062 = vmatpush2.bf16.msra.mxu0 %v794
      %1063 = vmatprep.subr.bf16.mxu0 0
      %1064 = vmatpush2.bf16.msra.mxu0 %v793
      %1065 = vmatprep.mubr.bf16.mxu0 %v825
      %1066 = vmatmul.mubr.bf16.gmra.mxu0 %v551
      %v1067 = vpop.f32.mrf.mxu0
      %v1068 = vadd.f32 %v907, %v1067
      %v1069 = vpop.f32.mrf.mxu0
      %v1070 = vpop.f32.mrf.mxu0
      %v1071 = vadd.f32 %v910, %v1070
      %v1072 = vpop.f32.mrf.mxu0
      %1073 = vmatprep.mubr.bf16.mxu0 %v828
      %1074 = vmatmul.mubr.bf16.gmra.mxu0 %v555
      %v1075 = vpop.f32.mrf.mxu0
      %v1076 = vadd.f32 %v915, %v1075
      %v1077 = vpop.f32.mrf.mxu0
      %v1078 = vpop.f32.mrf.mxu0
      %v1079 = vadd.f32 %v918, %v1078
      %v1080 = vpop.f32.mrf.mxu0
      %1081 = vmatprep.mubr.bf16.mxu0 %v831
      %1082 = vmatmul.mubr.bf16.gmra.mxu0 %v559
      %v1083 = vpop.f32.mrf.mxu0
      %v1084 = vadd.f32 %v923, %v1083
      %v1085 = vpop.f32.mrf.mxu0
      %v1086 = vpop.f32.mrf.mxu0
      %v1087 = vadd.f32 %v926, %v1086
      %v1088 = vpop.f32.mrf.mxu0
      %1089 = vmatprep.mubr.bf16.mxu0 %v834
      %1090 = vmatmul.mubr.bf16.gmra.mxu0 %v563
      %v1091 = vpop.f32.mrf.mxu0
      %v1092 = vadd.f32 %v931, %v1091
      %v1093 = vpop.f32.mrf.mxu0
      %v1094 = vpop.f32.mrf.mxu0
      %v1095 = vadd.f32 %v934, %v1094
      %v1096 = vpop.f32.mrf.mxu0
      %1097 = vmatprep.mubr.bf16.mxu0 %v837
      %1098 = vmatmul.mubr.bf16.gmra.mxu0 %v567
      %v1099 = vpop.f32.mrf.mxu0
      %v1100 = vadd.f32 %v939, %v1099
      %v1101 = vpop.f32.mrf.mxu0
      %v1102 = vpop.f32.mrf.mxu0
      %v1103 = vadd.f32 %v942, %v1102
      %v1104 = vpop.f32.mrf.mxu0
      %1105 = vmatprep.mubr.bf16.mxu0 %v840
      %1106 = vmatmul.mubr.bf16.gmra.mxu0 %v571
      %v1107 = vpop.f32.mrf.mxu0
      %v1108 = vadd.f32 %v947, %v1107
      %v1109 = vpop.f32.mrf.mxu0
      %v1110 = vpop.f32.mrf.mxu0
      %v1111 = vadd.f32 %v950, %v1110
      %v1112 = vpop.f32.mrf.mxu0
      %1113 = vmatprep.mubr.bf16.mxu0 %v843
      %1114 = vmatmul.mubr.bf16.gmra.mxu0 %v575
      %v1115 = vpop.f32.mrf.mxu0
      %v1116 = vadd.f32 %v955, %v1115
      %v1117 = vpop.f32.mrf.mxu0
      %v1118 = vpop.f32.mrf.mxu0
      %v1119 = vadd.f32 %v958, %v1118
      %v1120 = vpop.f32.mrf.mxu0
      %1121 = vmatprep.mubr.bf16.mxu0 %v846
      %1122 = vmatmul.mubr.bf16.gmra.mxu0 %v579
      %v1123 = vpop.f32.mrf.mxu0
      %v1124 = vadd.f32 %v963, %v1123
      %v1125 = vpop.f32.mrf.mxu0
      %v1126 = vpop.f32.mrf.mxu0
      %v1127 = vadd.f32 %v966, %v1126
      %v1128 = vpop.f32.mrf.mxu0
      %1129 = vmatprep.mubr.bf16.mxu0 %v849
      %1130 = vmatmul.mubr.bf16.gmra.mxu0 %v583
      %v1131 = vpop.f32.mrf.mxu0
      %v1132 = vadd.f32 %v971, %v1131
      %v1133 = vpop.f32.mrf.mxu0
      %v1134 = vpop.f32.mrf.mxu0
      %v1135 = vadd.f32 %v974, %v1134
      %v1136 = vpop.f32.mrf.mxu0
      %1137 = vmatprep.mubr.bf16.mxu0 %v852
      %1138 = vmatmul.mubr.bf16.gmra.mxu0 %v587
      %v1139 = vpop.f32.mrf.mxu0
      %v1140 = vadd.f32 %v979, %v1139
      %v1141 = vpop.f32.mrf.mxu0
      %v1142 = vpop.f32.mrf.mxu0
      %v1143 = vadd.f32 %v982, %v1142
      %v1144 = vpop.f32.mrf.mxu0
      %1145 = vmatprep.mubr.bf16.mxu0 %v855
      %1146 = vmatmul.mubr.bf16.gmra.mxu0 %v591
      %v1147 = vpop.f32.mrf.mxu0
      %v1148 = vadd.f32 %v987, %v1147
      %v1149 = vpop.f32.mrf.mxu0
      %v1150 = vpop.f32.mrf.mxu0
      %v1151 = vadd.f32 %v990, %v1150
      %v1152 = vpop.f32.mrf.mxu0
      %1153 = vmatprep.mubr.bf16.mxu0 %v858
      %1154 = vmatmul.mubr.bf16.gmra.mxu0 %v595
      %v1155 = vpop.f32.mrf.mxu0
      %v1156 = vadd.f32 %v995, %v1155
      %v1157 = vpop.f32.mrf.mxu0
      %v1158 = vpop.f32.mrf.mxu0
      %v1159 = vadd.f32 %v998, %v1158
      %v1160 = vpop.f32.mrf.mxu0
      %1161 = vmatprep.mubr.bf16.mxu0 %v861
      %1162 = vmatmul.mubr.bf16.gmra.mxu0 %v599
      %v1163 = vpop.f32.mrf.mxu0
      %v1164 = vadd.f32 %v1003, %v1163
      %v1165 = vpop.f32.mrf.mxu0
      %v1166 = vpop.f32.mrf.mxu0
      %v1167 = vadd.f32 %v1006, %v1166
      %v1168 = vpop.f32.mrf.mxu0
      %1169 = vmatprep.mubr.bf16.mxu0 %v864
      %1170 = vmatmul.mubr.bf16.gmra.mxu0 %v603
      %v1171 = vpop.f32.mrf.mxu0
      %v1172 = vadd.f32 %v1011, %v1171
      %v1173 = vpop.f32.mrf.mxu0
      %v1174 = vpop.f32.mrf.mxu0
      %v1175 = vadd.f32 %v1014, %v1174
      %v1176 = vpop.f32.mrf.mxu0
      %1177 = vmatprep.mubr.bf16.mxu0 %v867
      %1178 = vmatmul.mubr.bf16.gmra.mxu0 %v607
      %v1179 = vpop.f32.mrf.mxu0
      %v1180 = vadd.f32 %v1019, %v1179
      %v1181 = vpop.f32.mrf.mxu0
      %v1182 = vpop.f32.mrf.mxu0
      %v1183 = vadd.f32 %v1022, %v1182
      %v1184 = vpop.f32.mrf.mxu0
      %1185 = vmatprep.mubr.bf16.mxu0 %v870
      %1186 = vmatmul.mubr.bf16.gmra.mxu0 %v611
      %v1187 = vpop.f32.mrf.mxu0
      %v1188 = vadd.f32 %v1027, %v1187
      %v1189 = vpop.f32.mrf.mxu0
      %v1190 = vpop.f32.mrf.mxu0
      %v1191 = vadd.f32 %v1030, %v1190
      %v1192 = vpop.f32.mrf.mxu0
      %1193 = vdwg.mxu0
      %vm1194 = vcmp.ge.f32.partialorder %v1068, 0.0
      %vm1195 = vcmp.ge.f32.partialorder %v1071, 0.0
      %vm1196 = vcmp.ge.f32.partialorder %v1076, 0.0
      %vm1197 = vcmp.ge.f32.partialorder %v1079, 0.0
      %vm1198 = vcmp.ge.f32.partialorder %v1084, 0.0
      %vm1199 = vcmp.ge.f32.partialorder %v1087, 0.0
      %vm1200 = vcmp.ge.f32.partialorder %v1092, 0.0
      %vm1201 = vcmp.ge.f32.partialorder %v1095, 0.0
      %vm1202 = vcmp.ge.f32.partialorder %v1100, 0.0
      %vm1203 = vcmp.ge.f32.partialorder %v1103, 0.0
      %vm1204 = vcmp.ge.f32.partialorder %v1108, 0.0
      %vm1205 = vcmp.ge.f32.partialorder %v1111, 0.0
      %vm1206 = vcmp.ge.f32.partialorder %v1116, 0.0
      %vm1207 = vcmp.ge.f32.partialorder %v1119, 0.0
      %vm1208 = vcmp.ge.f32.partialorder %v1124, 0.0
      %vm1209 = vcmp.ge.f32.partialorder %v1127, 0.0
      %vm1210 = vcmp.ge.f32.partialorder %v1132, 0.0
      %vm1211 = vcmp.ge.f32.partialorder %v1135, 0.0
      %vm1212 = vcmp.ge.f32.partialorder %v1140, 0.0
      %vm1213 = vcmp.ge.f32.partialorder %v1143, 0.0
      %vm1214 = vcmp.ge.f32.partialorder %v1148, 0.0
      %vm1215 = vcmp.ge.f32.partialorder %v1151, 0.0
      %vm1216 = vcmp.ge.f32.partialorder %v1156, 0.0
      %vm1217 = vcmp.ge.f32.partialorder %v1159, 0.0
      %vm1218 = vcmp.ge.f32.partialorder %v1164, 0.0
      %vm1219 = vcmp.ge.f32.partialorder %v1167, 0.0
      %vm1220 = vcmp.ge.f32.partialorder %v1172, 0.0
      %vm1221 = vcmp.ge.f32.partialorder %v1175, 0.0
      %vm1222 = vcmp.ge.f32.partialorder %v1180, 0.0
      %vm1223 = vcmp.ge.f32.partialorder %v1183, 0.0
      %vm1224 = vcmp.ge.f32.partialorder %v1188, 0.0
      %vm1225 = vcmp.ge.f32.partialorder %v1191, 0.0
      %v1226 = vmul.f32 %v1068, 0.2
      %v1227 = vmul.f32 %v1071, 0.2
      %v1228 = vmul.f32 %v1076, 0.2
      %v1229 = vmul.f32 %v1079, 0.2
      %v1230 = vmul.f32 %v1084, 0.2
      %v1231 = vmul.f32 %v1087, 0.2
      %v1232 = vmul.f32 %v1092, 0.2
      %v1233 = vmul.f32 %v1095, 0.2
      %v1234 = vmul.f32 %v1100, 0.2
      %v1235 = vmul.f32 %v1103, 0.2
      %v1236 = vmul.f32 %v1108, 0.2
      %v1237 = vmul.f32 %v1111, 0.2
      %v1238 = vmul.f32 %v1116, 0.2
      %v1239 = vmul.f32 %v1119, 0.2
      %v1240 = vmul.f32 %v1124, 0.2
      %v1241 = vmul.f32 %v1127, 0.2
      %v1242 = vmul.f32 %v1132, 0.2
      %v1243 = vmul.f32 %v1135, 0.2
      %v1244 = vmul.f32 %v1140, 0.2
      %v1245 = vmul.f32 %v1143, 0.2
      %v1246 = vmul.f32 %v1148, 0.2
      %v1247 = vmul.f32 %v1151, 0.2
      %v1248 = vmul.f32 %v1156, 0.2
      %v1249 = vmul.f32 %v1159, 0.2
      %v1250 = vmul.f32 %v1164, 0.2
      %v1251 = vmul.f32 %v1167, 0.2
      %v1252 = vmul.f32 %v1172, 0.2
      %v1253 = vmul.f32 %v1175, 0.2
      %v1254 = vmul.f32 %v1180, 0.2
      %v1255 = vmul.f32 %v1183, 0.2
      %v1256 = vmul.f32 %v1188, 0.2
      %v1257 = vmul.f32 %v1191, 0.2
      %v1258 = vsel %vm1194, %v1068, %v1226
      %v1259 = vsel %vm1195, %v1071, %v1227
      %v1260 = vsel %vm1196, %v1076, %v1228
      %v1261 = vsel %vm1197, %v1079, %v1229
      %v1262 = vsel %vm1198, %v1084, %v1230
      %v1263 = vsel %vm1199, %v1087, %v1231
      %v1264 = vsel %vm1200, %v1092, %v1232
      %v1265 = vsel %vm1201, %v1095, %v1233
      %v1266 = vsel %vm1202, %v1100, %v1234
      %v1267 = vsel %vm1203, %v1103, %v1235
      %v1268 = vsel %vm1204, %v1108, %v1236
      %v1269 = vsel %vm1205, %v1111, %v1237
      %v1270 = vsel %vm1206, %v1116, %v1238
      %v1271 = vsel %vm1207, %v1119, %v1239
      %v1272 = vsel %vm1208, %v1124, %v1240
      %v1273 = vsel %vm1209, %v1127, %v1241
      %v1274 = vsel %vm1210, %v1132, %v1242
      %v1275 = vsel %vm1211, %v1135, %v1243
      %v1276 = vsel %vm1212, %v1140, %v1244
      %v1277 = vsel %vm1213, %v1143, %v1245
      %v1278 = vsel %vm1214, %v1148, %v1246
      %v1279 = vsel %vm1215, %v1151, %v1247
      %v1280 = vsel %vm1216, %v1156, %v1248
      %v1281 = vsel %vm1217, %v1159, %v1249
      %v1282 = vsel %vm1218, %v1164, %v1250
      %v1283 = vsel %vm1219, %v1167, %v1251
      %v1284 = vsel %vm1220, %v1172, %v1252
      %v1285 = vsel %vm1221, %v1175, %v1253
      %v1286 = vsel %vm1222, %v1180, %v1254
      %v1287 = vsel %vm1223, %v1183, %v1255
      %v1288 = vsel %vm1224, %v1188, %v1256
      %v1289 = vsel %vm1225, %v1191, %v1257
      %v1290 = vpack.c.bf16 %v1259, %v1258
      %v1291 = vpack.c.bf16 %v1261, %v1260
      %v1292 = vpack.c.bf16 %v1263, %v1262
      %v1293 = vpack.c.bf16 %v1265, %v1264
      %v1294 = vpack.c.bf16 %v1267, %v1266
      %v1295 = vpack.c.bf16 %v1269, %v1268
      %v1296 = vpack.c.bf16 %v1271, %v1270
      %v1297 = vpack.c.bf16 %v1273, %v1272
      %v1298 = vpack.c.bf16 %v1275, %v1274
      %v1299 = vpack.c.bf16 %v1277, %v1276
      %v1300 = vpack.c.bf16 %v1279, %v1278
      %v1301 = vpack.c.bf16 %v1281, %v1280
      %v1302 = vpack.c.bf16 %v1283, %v1282
      %v1303 = vpack.c.bf16 %v1285, %v1284
      %v1304 = vpack.c.bf16 %v1287, %v1286
      %v1305 = vpack.c.bf16 %v1289, %v1288
      %v1306 = vld [vmem:[%s3] sm:$0xf]
      %v1307 = vld [vmem:[%s3 + $0x4] sm:$0xf]
      %v1308 = vld [vmem:[%s3 + $0x8] sm:$0xf]
      %v1309 = vld [vmem:[%s3 + $0xc] sm:$0xf]
      %v1310 = vld [vmem:[%s3 + $0x10] sm:$0xf]
      %v1311 = vld [vmem:[%s3 + $0x14] sm:$0xf]
      %v1312 = vld [vmem:[%s4] sm:$0x1]
      %v1314 = vlaneseq
      %v1315 = vshrl.u32 %v1314, 7
      %v1316 = vsub.s32 0, %v1315
      %v1317 = vrot.slane %v1312, %v1316
      %v1325 = vunpack.c.l.b16 %v1306
      %v1326 = vunpack.c.l.b16 %v1307
      %v1327 = vunpack.c.l.b16 %v1308
      %v1328 = vunpack.c.l.b16 %v1309
      %v1329 = vunpack.c.l.b16 %v1310
      %v1330 = vunpack.c.l.b16 %v1311
      %v1331 = vpack.c.b16 %v1326, %v1325
      %v1332 = vpack.c.b16 %v1328, %v1327
      %v1333 = vpack.c.b16 %v1330, %v1329
      %v1338 = vsel %vm823, %v1290, 0
      %v1341 = vsel %vm823, %v1291, 0
      %v1344 = vsel %vm823, %v1292, 0
      %v1347 = vsel %vm823, %v1293, 0
      %v1350 = vsel %vm823, %v1294, 0
      %v1353 = vsel %vm823, %v1295, 0
      %v1356 = vsel %vm823, %v1296, 0
      %v1359 = vsel %vm823, %v1297, 0
      %v1362 = vsel %vm823, %v1298, 0
      %v1365 = vsel %vm823, %v1299, 0
      %v1368 = vsel %vm823, %v1300, 0
      %v1371 = vsel %vm823, %v1301, 0
      %v1374 = vsel %vm823, %v1302, 0
      %v1377 = vsel %vm823, %v1303, 0
      %v1380 = vsel %vm823, %v1304, 0
      %v1383 = vsel %vm823, %v1305, 0
      %1385 = vmatprep.subr.bf16.mxu0 0
      %1386 = vmatpush1.bf16.msra.mxu0 0
      %1387 = vmatprep.subr.bf16.mxu0 0
      %1388 = vmatpush1.bf16.msra.mxu0 0
      %1389 = vmatprep.subr.bf16.mxu0 0
      %1390 = vmatpush1.bf16.msra.mxu0 0
      %1391 = vmatprep.subr.bf16.mxu0 0
      %1392 = vmatpush1.bf16.msra.mxu0 0
      %1393 = vmatprep.subr.bf16.mxu0 0
      %1394 = vmatpush1.bf16.msra.mxu0 0
      %1395 = vmatprep.subr.bf16.mxu0 0
      %1396 = vmatpush1.bf16.msra.mxu0 %v1333
      %1397 = vmatprep.subr.bf16.mxu0 0
      %1398 = vmatpush1.bf16.msra.mxu0 %v1332
      %1399 = vmatprep.subr.bf16.mxu0 0
      %1400 = vmatpush1.bf16.msra.mxu0 %v1331
      %1401 = vmatprep.subr.bf16.mxu0 0
      %1402 = vmatpush2.bf16.msra.mxu0 0
      %1403 = vmatprep.subr.bf16.mxu0 0
      %1404 = vmatpush2.bf16.msra.mxu0 0
      %1405 = vmatprep.subr.bf16.mxu0 0
      %1406 = vmatpush2.bf16.msra.mxu0 0
      %1407 = vmatprep.subr.bf16.mxu0 0
      %1408 = vmatpush2.bf16.msra.mxu0 0
      %1409 = vmatprep.subr.bf16.mxu0 0
      %1410 = vmatpush2.bf16.msra.mxu0 0
      %1411 = vmatprep.subr.bf16.mxu0 0
      %1412 = vmatpush2.bf16.msra.mxu0 0
      %1413 = vmatprep.subr.bf16.mxu0 0
      %1414 = vmatpush2.bf16.msra.mxu0 0
      %1415 = vmatprep.subr.bf16.mxu0 0
      %1416 = vmatpush2.bf16.msra.mxu0 0
      %1417 = vmatprep.mubr.bf16.mxu0 0
      %1418 = vmatmul.mubr.bf16.gmra.mxu0 %v1338
      %v1419 = vpop.f32.mrf.mxu0
      %v1420 = vadd.f32 %v1317, %v1419
      %v1421 = vpop.f32.mrf.mxu0
      %v1422 = vpop.f32.mrf.mxu0
      %v1423 = vadd.f32 %v1317, %v1422
      %v1424 = vpop.f32.mrf.mxu0
      %1425 = vmatprep.mubr.bf16.mxu0 0
      %1426 = vmatmul.mubr.bf16.gmra.mxu0 %v1341
      %v1427 = vpop.f32.mrf.mxu0
      %v1428 = vadd.f32 %v1317, %v1427
      %v1429 = vpop.f32.mrf.mxu0
      %v1430 = vpop.f32.mrf.mxu0
      %v1431 = vadd.f32 %v1317, %v1430
      %v1432 = vpop.f32.mrf.mxu0
      %1433 = vmatprep.mubr.bf16.mxu0 0
      %1434 = vmatmul.mubr.bf16.gmra.mxu0 %v1344
      %v1435 = vpop.f32.mrf.mxu0
      %v1436 = vadd.f32 %v1317, %v1435
      %v1437 = vpop.f32.mrf.mxu0
      %v1438 = vpop.f32.mrf.mxu0
      %v1439 = vadd.f32 %v1317, %v1438
      %v1440 = vpop.f32.mrf.mxu0
      %1441 = vmatprep.mubr.bf16.mxu0 0
      %1442 = vmatmul.mubr.bf16.gmra.mxu0 %v1347
      %v1443 = vpop.f32.mrf.mxu0
      %v1444 = vadd.f32 %v1317, %v1443
      %v1445 = vpop.f32.mrf.mxu0
      %v1446 = vpop.f32.mrf.mxu0
      %v1447 = vadd.f32 %v1317, %v1446
      %v1448 = vpop.f32.mrf.mxu0
      %1449 = vmatprep.mubr.bf16.mxu0 0
      %1450 = vmatmul.mubr.bf16.gmra.mxu0 %v1350
      %v1451 = vpop.f32.mrf.mxu0
      %v1452 = vadd.f32 %v1317, %v1451
      %v1453 = vpop.f32.mrf.mxu0
      %v1454 = vpop.f32.mrf.mxu0
      %v1455 = vadd.f32 %v1317, %v1454
      %v1456 = vpop.f32.mrf.mxu0
      %1457 = vmatprep.mubr.bf16.mxu0 0
      %1458 = vmatmul.mubr.bf16.gmra.mxu0 %v1353
      %v1459 = vpop.f32.mrf.mxu0
      %v1460 = vadd.f32 %v1317, %v1459
      %v1461 = vpop.f32.mrf.mxu0
      %v1462 = vpop.f32.mrf.mxu0
      %v1463 = vadd.f32 %v1317, %v1462
      %v1464 = vpop.f32.mrf.mxu0
      %1465 = vmatprep.mubr.bf16.mxu0 0
      %1466 = vmatmul.mubr.bf16.gmra.mxu0 %v1356
      %v1467 = vpop.f32.mrf.mxu0
      %v1468 = vadd.f32 %v1317, %v1467
      %v1469 = vpop.f32.mrf.mxu0
      %v1470 = vpop.f32.mrf.mxu0
      %v1471 = vadd.f32 %v1317, %v1470
      %v1472 = vpop.f32.mrf.mxu0
      %1473 = vmatprep.mubr.bf16.mxu0 0
      %1474 = vmatmul.mubr.bf16.gmra.mxu0 %v1359
      %v1475 = vpop.f32.mrf.mxu0
      %v1476 = vadd.f32 %v1317, %v1475
      %v1477 = vpop.f32.mrf.mxu0
      %v1478 = vpop.f32.mrf.mxu0
      %v1479 = vadd.f32 %v1317, %v1478
      %v1480 = vpop.f32.mrf.mxu0
      %1481 = vmatprep.mubr.bf16.mxu0 0
      %1482 = vmatmul.mubr.bf16.gmra.mxu0 %v1362
      %v1483 = vpop.f32.mrf.mxu0
      %v1484 = vadd.f32 %v1317, %v1483
      %v1485 = vpop.f32.mrf.mxu0
      %v1486 = vpop.f32.mrf.mxu0
      %v1487 = vadd.f32 %v1317, %v1486
      %v1488 = vpop.f32.mrf.mxu0
      %1489 = vmatprep.mubr.bf16.mxu0 0
      %1490 = vmatmul.mubr.bf16.gmra.mxu0 %v1365
      %v1491 = vpop.f32.mrf.mxu0
      %v1492 = vadd.f32 %v1317, %v1491
      %v1493 = vpop.f32.mrf.mxu0
      %v1494 = vpop.f32.mrf.mxu0
      %v1495 = vadd.f32 %v1317, %v1494
      %v1496 = vpop.f32.mrf.mxu0
      %1497 = vmatprep.mubr.bf16.mxu0 0
      %1498 = vmatmul.mubr.bf16.gmra.mxu0 %v1368
      %v1499 = vpop.f32.mrf.mxu0
      %v1500 = vadd.f32 %v1317, %v1499
      %v1501 = vpop.f32.mrf.mxu0
      %v1502 = vpop.f32.mrf.mxu0
      %v1503 = vadd.f32 %v1317, %v1502
      %v1504 = vpop.f32.mrf.mxu0
      %1505 = vmatprep.mubr.bf16.mxu0 0
      %1506 = vmatmul.mubr.bf16.gmra.mxu0 %v1371
      %v1507 = vpop.f32.mrf.mxu0
      %v1508 = vadd.f32 %v1317, %v1507
      %v1509 = vpop.f32.mrf.mxu0
      %v1510 = vpop.f32.mrf.mxu0
      %v1511 = vadd.f32 %v1317, %v1510
      %v1512 = vpop.f32.mrf.mxu0
      %1513 = vmatprep.mubr.bf16.mxu0 0
      %1514 = vmatmul.mubr.bf16.gmra.mxu0 %v1374
      %v1515 = vpop.f32.mrf.mxu0
      %v1516 = vadd.f32 %v1317, %v1515
      %v1517 = vpop.f32.mrf.mxu0
      %v1518 = vpop.f32.mrf.mxu0
      %v1519 = vadd.f32 %v1317, %v1518
      %v1520 = vpop.f32.mrf.mxu0
      %1521 = vmatprep.mubr.bf16.mxu0 0
      %1522 = vmatmul.mubr.bf16.gmra.mxu0 %v1377
      %v1523 = vpop.f32.mrf.mxu0
      %v1524 = vadd.f32 %v1317, %v1523
      %v1525 = vpop.f32.mrf.mxu0
      %v1526 = vpop.f32.mrf.mxu0
      %v1527 = vadd.f32 %v1317, %v1526
      %v1528 = vpop.f32.mrf.mxu0
      %1529 = vmatprep.mubr.bf16.mxu0 0
      %1530 = vmatmul.mubr.bf16.gmra.mxu0 %v1380
      %v1531 = vpop.f32.mrf.mxu0
      %v1532 = vadd.f32 %v1317, %v1531
      %v1533 = vpop.f32.mrf.mxu0
      %v1534 = vpop.f32.mrf.mxu0
      %v1535 = vadd.f32 %v1317, %v1534
      %v1536 = vpop.f32.mrf.mxu0
      %1537 = vmatprep.mubr.bf16.mxu0 0
      %1538 = vmatmul.mubr.bf16.gmra.mxu0 %v1383
      %v1539 = vpop.f32.mrf.mxu0
      %v1540 = vadd.f32 %v1317, %v1539
      %v1541 = vpop.f32.mrf.mxu0
      %v1542 = vpop.f32.mrf.mxu0
      %v1543 = vadd.f32 %v1317, %v1542
      %v1544 = vpop.f32.mrf.mxu0
      %1545 = vdwg.mxu0
      %vm1546 = vcmask 23552
      %1547 = vst.msk [vmem:[%s229] sm:$0xff] %vm1546, %v1420
      %1548 = vst.msk [vmem:[%s229 + $0x8] sm:$0xff] %vm1546, %v1423
      %1549 = vst.msk [vmem:[%s229 + $0x10] sm:$0xff] %vm1546, %v1428
      %1550 = vst.msk [vmem:[%s229 + $0x18] sm:$0xff] %vm1546, %v1431
      %1551 = vst.msk [vmem:[%s229 + $0x20] sm:$0xff] %vm1546, %v1436
      %1552 = vst.msk [vmem:[%s229 + $0x28] sm:$0xff] %vm1546, %v1439
      %1553 = vst.msk [vmem:[%s229 + $0x30] sm:$0xff] %vm1546, %v1444
      %1554 = vst.msk [vmem:[%s229 + $0x38] sm:$0xff] %vm1546, %v1447
      %1555 = vst.msk [vmem:[%s229 + $0x40] sm:$0xff] %vm1546, %v1452
      %1556 = vst.msk [vmem:[%s229 + $0x48] sm:$0xff] %vm1546, %v1455
      %1557 = vst.msk [vmem:[%s229 + $0x50] sm:$0xff] %vm1546, %v1460
      %1558 = vst.msk [vmem:[%s229 + $0x58] sm:$0xff] %vm1546, %v1463
      %1559 = vst.msk [vmem:[%s229 + $0x60] sm:$0xff] %vm1546, %v1468
      %1560 = vst.msk [vmem:[%s229 + $0x68] sm:$0xff] %vm1546, %v1471
      %1561 = vst.msk [vmem:[%s229 + $0x70] sm:$0xff] %vm1546, %v1476
      %1562 = vst.msk [vmem:[%s229 + $0x78] sm:$0xff] %vm1546, %v1479
      %1563 = vst.msk [vmem:[%s229 + $0x80] sm:$0xff] %vm1546, %v1484
      %1564 = vst.msk [vmem:[%s229 + $0x88] sm:$0xff] %vm1546, %v1487
      %1565 = vst.msk [vmem:[%s229 + $0x90] sm:$0xff] %vm1546, %v1492
      %1566 = vst.msk [vmem:[%s229 + $0x98] sm:$0xff] %vm1546, %v1495
      %1567 = vst.msk [vmem:[%s229 + $0xa0] sm:$0xff] %vm1546, %v1500
      %1568 = vst.msk [vmem:[%s229 + $0xa8] sm:$0xff] %vm1546, %v1503
      %1569 = vst.msk [vmem:[%s229 + $0xb0] sm:$0xff] %vm1546, %v1508
      %1570 = vst.msk [vmem:[%s229 + $0xb8] sm:$0xff] %vm1546, %v1511
      %1571 = vst.msk [vmem:[%s229 + $0xc0] sm:$0xff] %vm1546, %v1516
      %1572 = vst.msk [vmem:[%s229 + $0xc8] sm:$0xff] %vm1546, %v1519
      %1573 = vst.msk [vmem:[%s229 + $0xd0] sm:$0xff] %vm1546, %v1524
      %1574 = vst.msk [vmem:[%s229 + $0xd8] sm:$0xff] %vm1546, %v1527
      %1575 = vst.msk [vmem:[%s229 + $0xe0] sm:$0xff] %vm1546, %v1532
      %1576 = vst.msk [vmem:[%s229 + $0xe8] sm:$0xff] %vm1546, %v1535
      %1577 = vst.msk [vmem:[%s229 + $0xf0] sm:$0xff] %vm1546, %v1540
      %1578 = vst.msk [vmem:[%s229 + $0xf8] sm:$0xff] %vm1546, %v1543
      %s1579 = smul.u32 32, %s16
      %p1580 = scmp.lt.s32.totalorder %s1579, 95
      %s1581 = scalar_select %p1580, %s1579, 95
      %s1582 = smul.addr %s1581, 8
      %s1583 = scalar_lea.vmem %s5, %s1582
      // Predicated region
      $region41: #{network_forward.10} parent=39 // pred_check
        %p1584 = pneg %p144
      $region42: #{network_forward.10} parent=39 // pred_check_branch
        %1586 = sbr.rel (%p1584) target = $region44
      $region43: #{network_forward.10} parent=39 // pred_region
        %s1587 = smul.u32 32, %s16
      $region44: #{network_forward.10} parent=39 // pred_fallthru
        _
    $region40: #{network_forward.10} parent=5 // pred_fallthru
      _
    %p1588 = scmp.le.s32.totalorder 2, %s11
    // Predicated region
    $region45: #{network_forward.10} parent=5 // pred_check
      %p1589 = pneg %p1588
    $region46: #{network_forward.10} parent=5 // pred_check_branch
      %1591 = sbr.rel (%p1589) target = $region48
    $region47: #{network_forward.10} parent=5 // pred_region
      %s1592 = ssub.s32 %s11, 2
      // Predicated region
      $region49: #{network_forward.10} parent=47 // pred_check
        %p1593 = pneg %p150
      $region50: #{network_forward.10} parent=47 // pred_check_branch
        %1595 = sbr.rel (%p1593) target = $region52
      $region51: #{network_forward.10} parent=47 // pred_region
        %s1596 = smul.u32 32, %s17
        %p1597 = scmp.lt.s32.totalorder %s1596, 95
        %s1598 = scalar_select %p1597, %s1596, 95
        %s1599 = smul.addr %s1598, 8
        %s1600 = scalar_lea.vmem %s5, %s1599
      $region52: #{network_forward.10} parent=47 // pred_fallthru
        _
    $region48: #{network_forward.10} parent=5 // pred_fallthru
      _
  $region6: #{network_forward.10} parent=0 // loop_footer
    %s15 = sadd.s32 1, %s11
  $region7: #{network_forward.10} parent=0 // loop_footer_branch
    %10 = sbr.rel target = $region3
  $region8: #{network_forward.10} parent=0 // loop_exit
    _

// kernel: network_forward.11
$region0: #{network_forward.11}
  #allocation0 [shape = 'u32[]', space=smem, size = 0x4, offset = 0x4, fixed_abs, tag = 'smem constant byte address 0x4 - core index']
  #allocation1 [shape = 'u32[144,128]{1,0:T(1,128)}', space=vmem, size = 0x12000, scoped, tag = 'internal scratch']
  %s0 = inlined_call_operand.vmem [shape: bf16[512,27], index: 0, kind: input, shape index: {}]
  %s1 = inlined_call_operand.vmem [shape: bf16[27,64], index: 1, kind: input, shape index: {}]
  %s2 = inlined_call_operand.vmem [shape: f32[1,64], index: 2, kind: input, shape index: {}]
  %s3 = inlined_call_operand.vmem [shape: f32[512,64], index: 3, kind: output, shape index: {}]
  %s4 = sld [smem:[#allocation0]]
  $region45: #{network_forward.11} parent=0
    _
  %s6 = ssub.s32 1, %s4
  %s7 = scalar_select 0, %s6, %s4
  loop: start=0, step=1, limit=4
  $region2: #{network_forward.11} parent=0 // loop_pre_header
    _
  $region3: #{network_forward.11} parent=0 // loop_header
    %s9 = sphi 0, %s13
    %p10 = scmp.ge.s32.totalorder %s9, 4
    %s19 = sphi 0, %s21
    %s22 = sphi 0, %s19
    %s23 = sphi 0, %s22
    %s39 = sphi 0, %s23
    %s43 = sphi 0, %s43
    %s45 = sphi 0, %s43
    %s46 = sphi 0, %s45
    %s60 = sphi 0, %s46
    %s64 = sphi 0, %s64
    %s66 = sphi 0, %s64
    %s67 = sphi 0, %s66
    %s81 = sphi 0, %s67
    %s87 = sphi 0, %s89
    %s90 = sphi 0, %s87
    %s91 = sphi 0, %s90
    %s107 = sphi 0, %s91
  $region4: #{network_forward.11} parent=0 // loop_header_branch
    %12 = sbr.rel (%p10) target = $region8
  $region5: #{network_forward.11} parent=0 // loop_body
    %s14 = ssub.s32 %s9, 1
    %s15 = ssub.s32 %s9, 2
    %s16 = sadd.s32 %s9, 1
    %s17 = ssub.s32 %s9, %s16
    %p18 = scmp.eq.s32.totalorder %s17, 0
    %s20 = sadd.s32 %s19, 1
    %s21 = scalar_select %p18, %s19, %s20
    %p24 = pneg %p18
    %p25 = scmp.eq.s32.totalorder %s9, 1
    %p26 = por %p24, %p25
    %p27 = scmp.ne.s32.totalorder %s19, %s22
    %p28 = scmp.eq.s32.totalorder %s9, 0
    %p29 = por %p27, %p28
    %p30 = scmp.ne.s32.totalorder %s19, %s22
    %p31 = scmp.eq.s32.totalorder %s14, 1
    %p32 = por %p30, %p31
    %p33 = scmp.ne.s32.totalorder %s22, %s23
    %p34 = scmp.eq.s32.totalorder %s14, 0
    %p35 = por %p33, %p34
    %p36 = scmp.ne.s32.totalorder %s22, %s23
    %p37 = scmp.eq.s32.totalorder %s15, 1
    %p38 = por %p36, %p37
    %p40 = scmp.ne.s32.totalorder %s23, %s39
    %p41 = scmp.eq.s32.totalorder %s15, 0
    %p42 = por %p40, %p41
    %s44 = sadd.s32 %s43, 1
    %p47 = scmp.eq.s32.totalorder %s9, 1
    %p48 = scmp.ne.s32.totalorder %s43, %s45
    %p49 = scmp.eq.s32.totalorder %s9, 0
    %p50 = por %p48, %p49
    %p51 = scmp.ne.s32.totalorder %s43, %s45
    %p52 = scmp.eq.s32.totalorder %s14, 1
    %p53 = por %p51, %p52
    %p54 = scmp.ne.s32.totalorder %s45, %s46
    %p55 = scmp.eq.s32.totalorder %s14, 0
    %p56 = por %p54, %p55
    %p57 = scmp.ne.s32.totalorder %s45, %s46
    %p58 = scmp.eq.s32.totalorder %s15, 1
    %p59 = por %p57, %p58
    %p61 = scmp.ne.s32.totalorder %s46, %s60
    %p62 = scmp.eq.s32.totalorder %s15, 0
    %p63 = por %p61, %p62
    %s65 = sadd.s32 %s64, 1
    %p68 = scmp.eq.s32.totalorder %s9, 1
    %p69 = scmp.ne.s32.totalorder %s64, %s66
    %p70 = scmp.eq.s32.totalorder %s9, 0
    %p71 = por %p69, %p70
    %p72 = scmp.ne.s32.totalorder %s64, %s66
    %p73 = scmp.eq.s32.totalorder %s14, 1
    %p74 = por %p72, %p73
    %p75 = scmp.ne.s32.totalorder %s66, %s67
    %p76 = scmp.eq.s32.totalorder %s14, 0
    %p77 = por %p75, %p76
    %p78 = scmp.ne.s32.totalorder %s66, %s67
    %p79 = scmp.eq.s32.totalorder %s15, 1
    %p80 = por %p78, %p79
    %p82 = scmp.ne.s32.totalorder %s67, %s81
    %p83 = scmp.eq.s32.totalorder %s15, 0
    %p84 = por %p82, %p83
    %s85 = ssub.s32 %s9, %s16
    %p86 = scmp.eq.s32.totalorder %s85, 0
    %s88 = sadd.s32 %s87, 1
    %s89 = scalar_select %p86, %s87, %s88
    %p92 = pneg %p86
    %p93 = scmp.eq.s32.totalorder %s9, 1
    %p94 = por %p92, %p93
    %p95 = scmp.ne.s32.totalorder %s87, %s90
    %p96 = scmp.eq.s32.totalorder %s9, 0
    %p97 = por %p95, %p96
    %p98 = scmp.ne.s32.totalorder %s87, %s90
    %p99 = scmp.eq.s32.totalorder %s14, 1
    %p100 = por %p98, %p99
    %p101 = scmp.ne.s32.totalorder %s90, %s91
    %p102 = scmp.eq.s32.totalorder %s14, 0
    %p103 = por %p101, %p102
    %p104 = scmp.ne.s32.totalorder %s90, %s91
    %p105 = scmp.eq.s32.totalorder %s15, 1
    %p106 = por %p104, %p105
    %p108 = scmp.ne.s32.totalorder %s91, %s107
    %p109 = scmp.eq.s32.totalorder %s15, 0
    %p110 = por %p108, %p109
    %p111 = scmp.le.s32.totalorder 1, %s9
    %p112 = scmp.lt.s32.totalorder %s9, 3
    %p113 = pnand %p111, %p112
    %p114 = pneg %p113
    // Predicated region
    $region9: #{network_forward.11} parent=5 // pred_check
      _
    $region10: #{network_forward.11} parent=5 // pred_check_branch
      %116 = sbr.rel (%p113) target = $region12
    $region11: #{network_forward.11} parent=5 // pred_region
      %s117 = ssub.s32 %s9, 1
      // Predicated region
      $region13: #{network_forward.11} parent=11 // pred_check
        %p118 = pneg %p56
      $region14: #{network_forward.11} parent=11 // pred_check_branch
        %120 = sbr.rel (%p118) target = $region16
      $region15: #{network_forward.11} parent=11 // pred_region
        _
      $region16: #{network_forward.11} parent=11 // pred_fallthru
        _
      // Predicated region
      $region17: #{network_forward.11} parent=11 // pred_check
        %p121 = pneg %p77
      $region18: #{network_forward.11} parent=11 // pred_check_branch
        %123 = sbr.rel (%p121) target = $region20
      $region19: #{network_forward.11} parent=11 // pred_region
        _
      $region20: #{network_forward.11} parent=11 // pred_fallthru
        _
    $region12: #{network_forward.11} parent=5 // pred_fallthru
      _
    %p124 = scmp.lt.s32.totalorder %s9, 2
    // Predicated region
    $region21: #{network_forward.11} parent=5 // pred_check
      %p125 = pneg %p124
    $region22: #{network_forward.11} parent=5 // pred_check_branch
      %127 = sbr.rel (%p125) target = $region24
    $region23: #{network_forward.11} parent=5 // pred_region
      // Predicated region
      $region25: #{network_forward.11} parent=23 // pred_check
        %p128 = pneg %p29
      $region26: #{network_forward.11} parent=23 // pred_check_branch
        %130 = sbr.rel (%p128) target = $region28
      $region27: #{network_forward.11} parent=23 // pred_region
        %s131 = smul.u32 32, %s9
        %p132 = scmp.lt.s32.totalorder %s131, 63
        %s133 = scalar_select %p132, %s131, 63
        %s134 = smul.addr %s133, 4
        %s135 = scalar_lea.vmem %s0, %s134
        %s136 = smul.u32 32, %s9
      $region28: #{network_forward.11} parent=23 // pred_fallthru
        _
    $region24: #{network_forward.11} parent=5 // pred_fallthru
      _
    %p137 = scmp.le.s32.totalorder 1, %s9
    %p138 = scmp.lt.s32.totalorder %s9, 3
    %p139 = pnand %p137, %p138
    %p140 = pneg %p139
    // Predicated region
    $region29: #{network_forward.11} parent=5 // pred_check
      _
    $region30: #{network_forward.11} parent=5 // pred_check_branch
      %142 = sbr.rel (%p139) target = $region32
    $region31: #{network_forward.11} parent=5 // pred_region
      %s143 = ssub.s32 %s9, 1
      %s144 = smul.u32 32, %s14
      %p145 = scmp.lt.s32.totalorder %s144, 63
      %s146 = scalar_select %p145, %s144, 63
      %s147 = smul.addr %s146, 4
      %s148 = scalar_lea.vmem %s0, %s147
      %p149 = pneg %p35
      %p150 = pneg %p32
      %p151 = pneg %p56
      %p152 = pneg %p53
      %p153 = pneg %p77
      %p154 = pneg %p74
      %p155 = pneg %p103
      %p156 = pneg %p100
      %s157 = smul.u32 32, %s14
      %p158 = scmp.lt.s32.totalorder %s157, 63
      %s159 = scalar_select %p158, %s157, 63
      %s160 = smul.addr %s159, 8
      %s161 = scalar_lea.vmem %s3, %s160
      %s162 = smul.u32 32, %s14
      %p163 = scmp.lt.s32.totalorder %s162, 63
      %s164 = scalar_select %p163, %s162, 63
      %s165 = smul.addr %s164, 4
      %s166 = scalar_lea.vmem %s0, %s165
      %s167 = smul.u32 32, %s14
      %s168 = smul.u32 32, %s14
      %p169 = scmp.lt.s32.totalorder %s168, 63
      %s170 = scalar_select %p169, %s168, 63
      %s171 = smul.addr %s170, 8
      %s172 = scalar_lea.vmem %s3, %s171
      %s173 = smul.u32 32, %s14
      %v175 = vld [vmem:[%s166] sm:$0xf]
      %v176 = vld [vmem:[%s166 + $0x4] sm:$0xf]
      %v177 = vld [vmem:[%s166 + $0x8] sm:$0xf]
      %v178 = vld [vmem:[%s166 + $0xc] sm:$0xf]
      %v179 = vld [vmem:[%s166 + $0x10] sm:$0xf]
      %v180 = vld [vmem:[%s166 + $0x14] sm:$0xf]
      %v181 = vld [vmem:[%s166 + $0x18] sm:$0xf]
      %v182 = vld [vmem:[%s166 + $0x1c] sm:$0xf]
      %v183 = vld [vmem:[%s166 + $0x20] sm:$0xf]
      %v184 = vld [vmem:[%s166 + $0x24] sm:$0xf]
      %v185 = vld [vmem:[%s166 + $0x28] sm:$0xf]
      %v186 = vld [vmem:[%s166 + $0x2c] sm:$0xf]
      %v187 = vld [vmem:[%s166 + $0x30] sm:$0xf]
      %v188 = vld [vmem:[%s166 + $0x34] sm:$0xf]
      %v189 = vld [vmem:[%s166 + $0x38] sm:$0xf]
      %v190 = vld [vmem:[%s166 + $0x3c] sm:$0xf]
      %v191 = vld [vmem:[%s166 + $0x40] sm:$0xf]
      %v192 = vld [vmem:[%s166 + $0x44] sm:$0xf]
      %v193 = vld [vmem:[%s166 + $0x48] sm:$0xf]
      %v194 = vld [vmem:[%s166 + $0x4c] sm:$0xf]
      %v195 = vld [vmem:[%s166 + $0x50] sm:$0xf]
      %v196 = vld [vmem:[%s166 + $0x54] sm:$0xf]
      %v197 = vld [vmem:[%s166 + $0x58] sm:$0xf]
      %v198 = vld [vmem:[%s166 + $0x5c] sm:$0xf]
      %v199 = vld [vmem:[%s166 + $0x60] sm:$0xf]
      %v200 = vld [vmem:[%s166 + $0x64] sm:$0xf]
      %v201 = vld [vmem:[%s166 + $0x68] sm:$0xf]
      %v202 = vld [vmem:[%s166 + $0x6c] sm:$0xf]
      %v203 = vld [vmem:[%s166 + $0x70] sm:$0xf]
      %v204 = vld [vmem:[%s166 + $0x74] sm:$0xf]
      %v205 = vld [vmem:[%s166 + $0x78] sm:$0xf]
      %v206 = vld [vmem:[%s166 + $0x7c] sm:$0xf]
      %v207 = vld [vmem:[%s1] sm:$0xf]
      %v208 = vld [vmem:[%s1 + $0x4] sm:$0xf]
      %v209 = vld [vmem:[%s1 + $0x8] sm:$0xf]
      %v210 = vld [vmem:[%s1 + $0xc] sm:$0x3]
      %v211 = vld [vmem:[%s2] sm:$0x1]
      %v213 = vlaneseq
      %v214 = vshrl.u32 %v213, 7
      %v215 = vsub.s32 0, %v214
      %v216 = vrot.slane %v211, %v215
      %v250 = vunpack.c.l.b16 %v175
      %v251 = vunpack.c.l.b16 %v176
      %v252 = vunpack.c.l.b16 %v177
      %v253 = vunpack.c.l.b16 %v178
      %v254 = vunpack.c.l.b16 %v179
      %v255 = vunpack.c.l.b16 %v180
      %v256 = vunpack.c.l.b16 %v181
      %v257 = vunpack.c.l.b16 %v182
      %v258 = vunpack.c.l.b16 %v183
      %v259 = vunpack.c.l.b16 %v184
      %v260 = vunpack.c.l.b16 %v185
      %v261 = vunpack.c.l.b16 %v186
      %v262 = vunpack.c.l.b16 %v187
      %v263 = vunpack.c.l.b16 %v188
      %v264 = vunpack.c.l.b16 %v189
      %v265 = vunpack.c.l.b16 %v190
      %v266 = vunpack.c.l.b16 %v191
      %v267 = vunpack.c.l.b16 %v192
      %v268 = vunpack.c.l.b16 %v193
      %v269 = vunpack.c.l.b16 %v194
      %v270 = vunpack.c.l.b16 %v195
      %v271 = vunpack.c.l.b16 %v196
      %v272 = vunpack.c.l.b16 %v197
      %v273 = vunpack.c.l.b16 %v198
      %v274 = vunpack.c.l.b16 %v199
      %v275 = vunpack.c.l.b16 %v200
      %v276 = vunpack.c.l.b16 %v201
      %v277 = vunpack.c.l.b16 %v202
      %v278 = vunpack.c.l.b16 %v203
      %v279 = vunpack.c.l.b16 %v204
      %v280 = vunpack.c.l.b16 %v205
      %v281 = vunpack.c.l.b16 %v206
      %v282 = vpack.c.b16 %v251, %v250
      %v283 = vpack.c.b16 %v253, %v252
      %v284 = vpack.c.b16 %v255, %v254
      %v285 = vpack.c.b16 %v257, %v256
      %v286 = vpack.c.b16 %v259, %v258
      %v287 = vpack.c.b16 %v261, %v260
      %v288 = vpack.c.b16 %v263, %v262
      %v289 = vpack.c.b16 %v265, %v264
      %v290 = vpack.c.b16 %v267, %v266
      %v291 = vpack.c.b16 %v269, %v268
      %v292 = vpack.c.b16 %v271, %v270
      %v293 = vpack.c.b16 %v273, %v272
      %v294 = vpack.c.b16 %v275, %v274
      %v295 = vpack.c.b16 %v277, %v276
      %v296 = vpack.c.b16 %v279, %v278
      %v297 = vpack.c.b16 %v281, %v280
      %v302 = vunpack.c.l.b16 %v207
      %v303 = vunpack.c.l.b16 %v208
      %v304 = vunpack.c.l.b16 %v209
      %v305 = vunpack.c.l.b16 %v210
      %v306 = vpack.c.b16 %v303, %v302
      %v307 = vpack.c.b16 %v305, %v304
      %vm309 = vcmask 220160
      %v311 = vsel %vm309, %v282, 0
      %v314 = vsel %vm309, %v283, 0
      %v317 = vsel %vm309, %v284, 0
      %v320 = vsel %vm309, %v285, 0
      %v323 = vsel %vm309, %v286, 0
      %v326 = vsel %vm309, %v287, 0
      %v329 = vsel %vm309, %v288, 0
      %v332 = vsel %vm309, %v289, 0
      %v335 = vsel %vm309, %v290, 0
      %v338 = vsel %vm309, %v291, 0
      %v341 = vsel %vm309, %v292, 0
      %v344 = vsel %vm309, %v293, 0
      %v347 = vsel %vm309, %v294, 0
      %v350 = vsel %vm309, %v295, 0
      %v353 = vsel %vm309, %v296, 0
      %v356 = vsel %vm309, %v297, 0
      %vm358 = vcmask 1044480
      %vm359 = vcmask 1045504
      %v360 = vsel %vm358, 4294967295, 65535
      %v361 = vsel %vm359, %v360, 0
      %v363 = vand.u32 %v307, %v361
      %365 = vmatprep.subr.bf16.mxu0 0
      %366 = vmatpush1.bf16.msra.mxu0 0
      %367 = vmatprep.subr.bf16.mxu0 0
      %368 = vmatpush1.bf16.msra.mxu0 0
      %369 = vmatprep.subr.bf16.mxu0 0
      %370 = vmatpush1.bf16.msra.mxu0 0
      %371 = vmatprep.subr.bf16.mxu0 0
      %372 = vmatpush1.bf16.msra.mxu0 0
      %373 = vmatprep.subr.bf16.mxu0 0
      %374 = vmatpush1.bf16.msra.mxu0 0
      %375 = vmatprep.subr.bf16.mxu0 0
      %376 = vmatpush1.bf16.msra.mxu0 0
      %377 = vmatprep.subr.bf16.mxu0 0
      %378 = vmatpush1.bf16.msra.mxu0 %v363
      %379 = vmatprep.subr.bf16.mxu0 0
      %380 = vmatpush1.bf16.msra.mxu0 %v306
      %381 = vmatprep.subr.bf16.mxu0 0
      %382 = vmatpush2.bf16.msra.mxu0 0
      %383 = vmatprep.subr.bf16.mxu0 0
      %384 = vmatpush2.bf16.msra.mxu0 0
      %385 = vmatprep.subr.bf16.mxu0 0
      %386 = vmatpush2.bf16.msra.mxu0 0
      %387 = vmatprep.subr.bf16.mxu0 0
      %388 = vmatpush2.bf16.msra.mxu0 0
      %389 = vmatprep.subr.bf16.mxu0 0
      %390 = vmatpush2.bf16.msra.mxu0 0
      %391 = vmatprep.subr.bf16.mxu0 0
      %392 = vmatpush2.bf16.msra.mxu0 0
      %393 = vmatprep.subr.bf16.mxu0 0
      %394 = vmatpush2.bf16.msra.mxu0 0
      %395 = vmatprep.subr.bf16.mxu0 0
      %396 = vmatpush2.bf16.msra.mxu0 0
      %397 = vmatprep.mubr.bf16.mxu0 0
      %398 = vmatmul.mubr.bf16.gmra.mxu0 %v311
      %v399 = vpop.f32.mrf.mxu0
      %v400 = vadd.f32 %v216, %v399
      %v401 = vpop.f32.mrf.mxu0
      %v402 = vpop.f32.mrf.mxu0
      %v403 = vadd.f32 %v216, %v402
      %v404 = vpop.f32.mrf.mxu0
      %405 = vmatprep.mubr.bf16.mxu0 0
      %406 = vmatmul.mubr.bf16.gmra.mxu0 %v314
      %v407 = vpop.f32.mrf.mxu0
      %v408 = vadd.f32 %v216, %v407
      %v409 = vpop.f32.mrf.mxu0
      %v410 = vpop.f32.mrf.mxu0
      %v411 = vadd.f32 %v216, %v410
      %v412 = vpop.f32.mrf.mxu0
      %413 = vmatprep.mubr.bf16.mxu0 0
      %414 = vmatmul.mubr.bf16.gmra.mxu0 %v317
      %v415 = vpop.f32.mrf.mxu0
      %v416 = vadd.f32 %v216, %v415
      %v417 = vpop.f32.mrf.mxu0
      %v418 = vpop.f32.mrf.mxu0
      %v419 = vadd.f32 %v216, %v418
      %v420 = vpop.f32.mrf.mxu0
      %421 = vmatprep.mubr.bf16.mxu0 0
      %422 = vmatmul.mubr.bf16.gmra.mxu0 %v320
      %v423 = vpop.f32.mrf.mxu0
      %v424 = vadd.f32 %v216, %v423
      %v425 = vpop.f32.mrf.mxu0
      %v426 = vpop.f32.mrf.mxu0
      %v427 = vadd.f32 %v216, %v426
      %v428 = vpop.f32.mrf.mxu0
      %429 = vmatprep.mubr.bf16.mxu0 0
      %430 = vmatmul.mubr.bf16.gmra.mxu0 %v323
      %v431 = vpop.f32.mrf.mxu0
      %v432 = vadd.f32 %v216, %v431
      %v433 = vpop.f32.mrf.mxu0
      %v434 = vpop.f32.mrf.mxu0
      %v435 = vadd.f32 %v216, %v434
      %v436 = vpop.f32.mrf.mxu0
      %437 = vmatprep.mubr.bf16.mxu0 0
      %438 = vmatmul.mubr.bf16.gmra.mxu0 %v326
      %v439 = vpop.f32.mrf.mxu0
      %v440 = vadd.f32 %v216, %v439
      %v441 = vpop.f32.mrf.mxu0
      %v442 = vpop.f32.mrf.mxu0
      %v443 = vadd.f32 %v216, %v442
      %v444 = vpop.f32.mrf.mxu0
      %445 = vmatprep.mubr.bf16.mxu0 0
      %446 = vmatmul.mubr.bf16.gmra.mxu0 %v329
      %v447 = vpop.f32.mrf.mxu0
      %v448 = vadd.f32 %v216, %v447
      %v449 = vpop.f32.mrf.mxu0
      %v450 = vpop.f32.mrf.mxu0
      %v451 = vadd.f32 %v216, %v450
      %v452 = vpop.f32.mrf.mxu0
      %453 = vmatprep.mubr.bf16.mxu0 0
      %454 = vmatmul.mubr.bf16.gmra.mxu0 %v332
      %v455 = vpop.f32.mrf.mxu0
      %v456 = vadd.f32 %v216, %v455
      %v457 = vpop.f32.mrf.mxu0
      %v458 = vpop.f32.mrf.mxu0
      %v459 = vadd.f32 %v216, %v458
      %v460 = vpop.f32.mrf.mxu0
      %461 = vmatprep.mubr.bf16.mxu0 0
      %462 = vmatmul.mubr.bf16.gmra.mxu0 %v335
      %v463 = vpop.f32.mrf.mxu0
      %v464 = vadd.f32 %v216, %v463
      %v465 = vpop.f32.mrf.mxu0
      %v466 = vpop.f32.mrf.mxu0
      %v467 = vadd.f32 %v216, %v466
      %v468 = vpop.f32.mrf.mxu0
      %469 = vmatprep.mubr.bf16.mxu0 0
      %470 = vmatmul.mubr.bf16.gmra.mxu0 %v338
      %v471 = vpop.f32.mrf.mxu0
      %v472 = vadd.f32 %v216, %v471
      %v473 = vpop.f32.mrf.mxu0
      %v474 = vpop.f32.mrf.mxu0
      %v475 = vadd.f32 %v216, %v474
      %v476 = vpop.f32.mrf.mxu0
      %477 = vmatprep.mubr.bf16.mxu0 0
      %478 = vmatmul.mubr.bf16.gmra.mxu0 %v341
      %v479 = vpop.f32.mrf.mxu0
      %v480 = vadd.f32 %v216, %v479
      %v481 = vpop.f32.mrf.mxu0
      %v482 = vpop.f32.mrf.mxu0
      %v483 = vadd.f32 %v216, %v482
      %v484 = vpop.f32.mrf.mxu0
      %485 = vmatprep.mubr.bf16.mxu0 0
      %486 = vmatmul.mubr.bf16.gmra.mxu0 %v344
      %v487 = vpop.f32.mrf.mxu0
      %v488 = vadd.f32 %v216, %v487
      %v489 = vpop.f32.mrf.mxu0
      %v490 = vpop.f32.mrf.mxu0
      %v491 = vadd.f32 %v216, %v490
      %v492 = vpop.f32.mrf.mxu0
      %493 = vmatprep.mubr.bf16.mxu0 0
      %494 = vmatmul.mubr.bf16.gmra.mxu0 %v347
      %v495 = vpop.f32.mrf.mxu0
      %v496 = vadd.f32 %v216, %v495
      %v497 = vpop.f32.mrf.mxu0
      %v498 = vpop.f32.mrf.mxu0
      %v499 = vadd.f32 %v216, %v498
      %v500 = vpop.f32.mrf.mxu0
      %501 = vmatprep.mubr.bf16.mxu0 0
      %502 = vmatmul.mubr.bf16.gmra.mxu0 %v350
      %v503 = vpop.f32.mrf.mxu0
      %v504 = vadd.f32 %v216, %v503
      %v505 = vpop.f32.mrf.mxu0
      %v506 = vpop.f32.mrf.mxu0
      %v507 = vadd.f32 %v216, %v506
      %v508 = vpop.f32.mrf.mxu0
      %509 = vmatprep.mubr.bf16.mxu0 0
      %510 = vmatmul.mubr.bf16.gmra.mxu0 %v353
      %v511 = vpop.f32.mrf.mxu0
      %v512 = vadd.f32 %v216, %v511
      %v513 = vpop.f32.mrf.mxu0
      %v514 = vpop.f32.mrf.mxu0
      %v515 = vadd.f32 %v216, %v514
      %v516 = vpop.f32.mrf.mxu0
      %517 = vmatprep.mubr.bf16.mxu0 0
      %518 = vmatmul.mubr.bf16.gmra.mxu0 %v356
      %v519 = vpop.f32.mrf.mxu0
      %v520 = vadd.f32 %v216, %v519
      %v521 = vpop.f32.mrf.mxu0
      %v522 = vpop.f32.mrf.mxu0
      %v523 = vadd.f32 %v216, %v522
      %v524 = vpop.f32.mrf.mxu0
      %525 = vdwg.mxu0
      %v526 = vmax.f32 %v400, 0.0
      %v527 = vmax.f32 %v403, 0.0
      %v528 = vmax.f32 %v408, 0.0
      %v529 = vmax.f32 %v411, 0.0
      %v530 = vmax.f32 %v416, 0.0
      %v531 = vmax.f32 %v419, 0.0
      %v532 = vmax.f32 %v424, 0.0
      %v533 = vmax.f32 %v427, 0.0
      %v534 = vmax.f32 %v432, 0.0
      %v535 = vmax.f32 %v435, 0.0
      %v536 = vmax.f32 %v440, 0.0
      %v537 = vmax.f32 %v443, 0.0
      %v538 = vmax.f32 %v448, 0.0
      %v539 = vmax.f32 %v451, 0.0
      %v540 = vmax.f32 %v456, 0.0
      %v541 = vmax.f32 %v459, 0.0
      %v542 = vmax.f32 %v464, 0.0
      %v543 = vmax.f32 %v467, 0.0
      %v544 = vmax.f32 %v472, 0.0
      %v545 = vmax.f32 %v475, 0.0
      %v546 = vmax.f32 %v480, 0.0
      %v547 = vmax.f32 %v483, 0.0
      %v548 = vmax.f32 %v488, 0.0
      %v549 = vmax.f32 %v491, 0.0
      %v550 = vmax.f32 %v496, 0.0
      %v551 = vmax.f32 %v499, 0.0
      %v552 = vmax.f32 %v504, 0.0
      %v553 = vmax.f32 %v507, 0.0
      %v554 = vmax.f32 %v512, 0.0
      %v555 = vmax.f32 %v515, 0.0
      %v556 = vmax.f32 %v520, 0.0
      %v557 = vmax.f32 %v523, 0.0
      %vm558 = vcmask 523264
      %559 = vst.msk [vmem:[%s172] sm:$0xff] %vm558, %v526
      %560 = vst.msk [vmem:[%s172 + $0x8] sm:$0xff] %vm558, %v527
      %561 = vst.msk [vmem:[%s172 + $0x10] sm:$0xff] %vm558, %v528
      %562 = vst.msk [vmem:[%s172 + $0x18] sm:$0xff] %vm558, %v529
      %563 = vst.msk [vmem:[%s172 + $0x20] sm:$0xff] %vm558, %v530
      %564 = vst.msk [vmem:[%s172 + $0x28] sm:$0xff] %vm558, %v531
      %565 = vst.msk [vmem:[%s172 + $0x30] sm:$0xff] %vm558, %v532
      %566 = vst.msk [vmem:[%s172 + $0x38] sm:$0xff] %vm558, %v533
      %567 = vst.msk [vmem:[%s172 + $0x40] sm:$0xff] %vm558, %v534
      %568 = vst.msk [vmem:[%s172 + $0x48] sm:$0xff] %vm558, %v535
      %569 = vst.msk [vmem:[%s172 + $0x50] sm:$0xff] %vm558, %v536
      %570 = vst.msk [vmem:[%s172 + $0x58] sm:$0xff] %vm558, %v537
      %571 = vst.msk [vmem:[%s172 + $0x60] sm:$0xff] %vm558, %v538
      %572 = vst.msk [vmem:[%s172 + $0x68] sm:$0xff] %vm558, %v539
      %573 = vst.msk [vmem:[%s172 + $0x70] sm:$0xff] %vm558, %v540
      %574 = vst.msk [vmem:[%s172 + $0x78] sm:$0xff] %vm558, %v541
      %575 = vst.msk [vmem:[%s172 + $0x80] sm:$0xff] %vm558, %v542
      %576 = vst.msk [vmem:[%s172 + $0x88] sm:$0xff] %vm558, %v543
      %577 = vst.msk [vmem:[%s172 + $0x90] sm:$0xff] %vm558, %v544
      %578 = vst.msk [vmem:[%s172 + $0x98] sm:$0xff] %vm558, %v545
      %579 = vst.msk [vmem:[%s172 + $0xa0] sm:$0xff] %vm558, %v546
      %580 = vst.msk [vmem:[%s172 + $0xa8] sm:$0xff] %vm558, %v547
      %581 = vst.msk [vmem:[%s172 + $0xb0] sm:$0xff] %vm558, %v548
      %582 = vst.msk [vmem:[%s172 + $0xb8] sm:$0xff] %vm558, %v549
      %583 = vst.msk [vmem:[%s172 + $0xc0] sm:$0xff] %vm558, %v550
      %584 = vst.msk [vmem:[%s172 + $0xc8] sm:$0xff] %vm558, %v551
      %585 = vst.msk [vmem:[%s172 + $0xd0] sm:$0xff] %vm558, %v552
      %586 = vst.msk [vmem:[%s172 + $0xd8] sm:$0xff] %vm558, %v553
      %587 = vst.msk [vmem:[%s172 + $0xe0] sm:$0xff] %vm558, %v554
      %588 = vst.msk [vmem:[%s172 + $0xe8] sm:$0xff] %vm558, %v555
      %589 = vst.msk [vmem:[%s172 + $0xf0] sm:$0xff] %vm558, %v556
      %590 = vst.msk [vmem:[%s172 + $0xf8] sm:$0xff] %vm558, %v557
      %s591 = smul.u32 32, %s14
      %p592 = scmp.lt.s32.totalorder %s591, 63
      %s593 = scalar_select %p592, %s591, 63
      %s594 = smul.addr %s593, 8
      %s595 = scalar_lea.vmem %s3, %s594
      // Predicated region
      $region33: #{network_forward.11} parent=31 // pred_check
        %p596 = pneg %p100
      $region34: #{network_forward.11} parent=31 // pred_check_branch
        %598 = sbr.rel (%p596) target = $region36
      $region35: #{network_forward.11} parent=31 // pred_region
        %s599 = smul.u32 32, %s14
      $region36: #{network_forward.11} parent=31 // pred_fallthru
        _
    $region32: #{network_forward.11} parent=5 // pred_fallthru
      _
    %p600 = scmp.le.s32.totalorder 2, %s9
    // Predicated region
    $region37: #{network_forward.11} parent=5 // pred_check
      %p601 = pneg %p600
    $region38: #{network_forward.11} parent=5 // pred_check_branch
      %603 = sbr.rel (%p601) target = $region40
    $region39: #{network_forward.11} parent=5 // pred_region
      %s604 = ssub.s32 %s9, 2
      // Predicated region
      $region41: #{network_forward.11} parent=39 // pred_check
        %p605 = pneg %p106
      $region42: #{network_forward.11} parent=39 // pred_check_branch
        %607 = sbr.rel (%p605) target = $region44
      $region43: #{network_forward.11} parent=39 // pred_region
        %s608 = smul.u32 32, %s15
        %p609 = scmp.lt.s32.totalorder %s608, 63
        %s610 = scalar_select %p609, %s608, 63
        %s611 = smul.addr %s610, 8
        %s612 = scalar_lea.vmem %s3, %s611
      $region44: #{network_forward.11} parent=39 // pred_fallthru
        _
    $region40: #{network_forward.11} parent=5 // pred_fallthru
      _
  $region6: #{network_forward.11} parent=0 // loop_footer
    %s13 = sadd.s32 1, %s9
  $region7: #{network_forward.11} parent=0 // loop_footer_branch
    %8 = sbr.rel target = $region3
  $region8: #{network_forward.11} parent=0 // loop_exit
    _

// kernel: network_forward.15
$region0: #{network_forward.15}
  #allocation0 [shape = 'u32[]', space=smem, size = 0x4, offset = 0x4, fixed_abs, tag = 'smem constant byte address 0x4 - core index']
  #allocation1 [shape = 'u32[144,128]{1,0:T(1,128)}', space=vmem, size = 0x12000, scoped, tag = 'internal scratch']
  %s0 = inlined_call_operand.vmem [shape: bf16[512,576], index: 0, kind: input, shape index: {}]
  %s1 = inlined_call_operand.vmem [shape: bf16[576,3], index: 1, kind: input, shape index: {}]
  %s2 = inlined_call_operand.vmem [shape: f32[1,3], index: 2, kind: input, shape index: {}]
  %s3 = inlined_call_operand.vmem [shape: f32[512,3], index: 3, kind: output, shape index: {}]
  %s4 = sld [smem:[#allocation0]]
  $region45: #{network_forward.15} parent=0
    _
  %s6 = ssub.s32 1, %s4
  %s7 = scalar_select 0, %s6, %s4
  loop: start=0, step=1, limit=4
  $region2: #{network_forward.15} parent=0 // loop_pre_header
    _
  $region3: #{network_forward.15} parent=0 // loop_header
    %s9 = sphi 0, %s13
    %p10 = scmp.ge.s32.totalorder %s9, 4
    %s19 = sphi 0, %s21
    %s22 = sphi 0, %s19
    %s23 = sphi 0, %s22
    %s39 = sphi 0, %s23
    %s43 = sphi 0, %s43
    %s45 = sphi 0, %s43
    %s46 = sphi 0, %s45
    %s60 = sphi 0, %s46
    %s64 = sphi 0, %s64
    %s66 = sphi 0, %s64
    %s67 = sphi 0, %s66
    %s81 = sphi 0, %s67
    %s87 = sphi 0, %s89
    %s90 = sphi 0, %s87
    %s91 = sphi 0, %s90
    %s107 = sphi 0, %s91
  $region4: #{network_forward.15} parent=0 // loop_header_branch
    %12 = sbr.rel (%p10) target = $region8
  $region5: #{network_forward.15} parent=0 // loop_body
    %s14 = ssub.s32 %s9, 1
    %s15 = ssub.s32 %s9, 2
    %s16 = sadd.s32 %s9, 1
    %s17 = ssub.s32 %s9, %s16
    %p18 = scmp.eq.s32.totalorder %s17, 0
    %s20 = sadd.s32 %s19, 1
    %s21 = scalar_select %p18, %s19, %s20
    %p24 = pneg %p18
    %p25 = scmp.eq.s32.totalorder %s9, 1
    %p26 = por %p24, %p25
    %p27 = scmp.ne.s32.totalorder %s19, %s22
    %p28 = scmp.eq.s32.totalorder %s9, 0
    %p29 = por %p27, %p28
    %p30 = scmp.ne.s32.totalorder %s19, %s22
    %p31 = scmp.eq.s32.totalorder %s14, 1
    %p32 = por %p30, %p31
    %p33 = scmp.ne.s32.totalorder %s22, %s23
    %p34 = scmp.eq.s32.totalorder %s14, 0
    %p35 = por %p33, %p34
    %p36 = scmp.ne.s32.totalorder %s22, %s23
    %p37 = scmp.eq.s32.totalorder %s15, 1
    %p38 = por %p36, %p37
    %p40 = scmp.ne.s32.totalorder %s23, %s39
    %p41 = scmp.eq.s32.totalorder %s15, 0
    %p42 = por %p40, %p41
    %s44 = sadd.s32 %s43, 1
    %p47 = scmp.eq.s32.totalorder %s9, 1
    %p48 = scmp.ne.s32.totalorder %s43, %s45
    %p49 = scmp.eq.s32.totalorder %s9, 0
    %p50 = por %p48, %p49
    %p51 = scmp.ne.s32.totalorder %s43, %s45
    %p52 = scmp.eq.s32.totalorder %s14, 1
    %p53 = por %p51, %p52
    %p54 = scmp.ne.s32.totalorder %s45, %s46
    %p55 = scmp.eq.s32.totalorder %s14, 0
    %p56 = por %p54, %p55
    %p57 = scmp.ne.s32.totalorder %s45, %s46
    %p58 = scmp.eq.s32.totalorder %s15, 1
    %p59 = por %p57, %p58
    %p61 = scmp.ne.s32.totalorder %s46, %s60
    %p62 = scmp.eq.s32.totalorder %s15, 0
    %p63 = por %p61, %p62
    %s65 = sadd.s32 %s64, 1
    %p68 = scmp.eq.s32.totalorder %s9, 1
    %p69 = scmp.ne.s32.totalorder %s64, %s66
    %p70 = scmp.eq.s32.totalorder %s9, 0
    %p71 = por %p69, %p70
    %p72 = scmp.ne.s32.totalorder %s64, %s66
    %p73 = scmp.eq.s32.totalorder %s14, 1
    %p74 = por %p72, %p73
    %p75 = scmp.ne.s32.totalorder %s66, %s67
    %p76 = scmp.eq.s32.totalorder %s14, 0
    %p77 = por %p75, %p76
    %p78 = scmp.ne.s32.totalorder %s66, %s67
    %p79 = scmp.eq.s32.totalorder %s15, 1
    %p80 = por %p78, %p79
    %p82 = scmp.ne.s32.totalorder %s67, %s81
    %p83 = scmp.eq.s32.totalorder %s15, 0
    %p84 = por %p82, %p83
    %s85 = ssub.s32 %s9, %s16
    %p86 = scmp.eq.s32.totalorder %s85, 0
    %s88 = sadd.s32 %s87, 1
    %s89 = scalar_select %p86, %s87, %s88
    %p92 = pneg %p86
    %p93 = scmp.eq.s32.totalorder %s9, 1
    %p94 = por %p92, %p93
    %p95 = scmp.ne.s32.totalorder %s87, %s90
    %p96 = scmp.eq.s32.totalorder %s9, 0
    %p97 = por %p95, %p96
    %p98 = scmp.ne.s32.totalorder %s87, %s90
    %p99 = scmp.eq.s32.totalorder %s14, 1
    %p100 = por %p98, %p99
    %p101 = scmp.ne.s32.totalorder %s90, %s91
    %p102 = scmp.eq.s32.totalorder %s14, 0
    %p103 = por %p101, %p102
    %p104 = scmp.ne.s32.totalorder %s90, %s91
    %p105 = scmp.eq.s32.totalorder %s15, 1
    %p106 = por %p104, %p105
    %p108 = scmp.ne.s32.totalorder %s91, %s107
    %p109 = scmp.eq.s32.totalorder %s15, 0
    %p110 = por %p108, %p109
    %p111 = scmp.le.s32.totalorder 1, %s9
    %p112 = scmp.lt.s32.totalorder %s9, 3
    %p113 = pnand %p111, %p112
    %p114 = pneg %p113
    // Predicated region
    $region9: #{network_forward.15} parent=5 // pred_check
      _
    $region10: #{network_forward.15} parent=5 // pred_check_branch
      %116 = sbr.rel (%p113) target = $region12
    $region11: #{network_forward.15} parent=5 // pred_region
      %s117 = ssub.s32 %s9, 1
      // Predicated region
      $region13: #{network_forward.15} parent=11 // pred_check
        %p118 = pneg %p56
      $region14: #{network_forward.15} parent=11 // pred_check_branch
        %120 = sbr.rel (%p118) target = $region16
      $region15: #{network_forward.15} parent=11 // pred_region
        _
      $region16: #{network_forward.15} parent=11 // pred_fallthru
        _
      // Predicated region
      $region17: #{network_forward.15} parent=11 // pred_check
        %p121 = pneg %p77
      $region18: #{network_forward.15} parent=11 // pred_check_branch
        %123 = sbr.rel (%p121) target = $region20
      $region19: #{network_forward.15} parent=11 // pred_region
        _
      $region20: #{network_forward.15} parent=11 // pred_fallthru
        _
    $region12: #{network_forward.15} parent=5 // pred_fallthru
      _
    %p124 = scmp.lt.s32.totalorder %s9, 2
    // Predicated region
    $region21: #{network_forward.15} parent=5 // pred_check
      %p125 = pneg %p124
    $region22: #{network_forward.15} parent=5 // pred_check_branch
      %127 = sbr.rel (%p125) target = $region24
    $region23: #{network_forward.15} parent=5 // pred_region
      // Predicated region
      $region25: #{network_forward.15} parent=23 // pred_check
        %p128 = pneg %p29
      $region26: #{network_forward.15} parent=23 // pred_check_branch
        %130 = sbr.rel (%p128) target = $region28
      $region27: #{network_forward.15} parent=23 // pred_region
        %s131 = smul.u32 32, %s9
        %p132 = scmp.lt.s32.totalorder %s131, 63
        %s133 = scalar_select %p132, %s131, 63
        %s134 = smul.addr %s133, 5
        %s135 = smul.addr %s134, 4
        %s136 = scalar_lea.vmem %s0, %s135
        %s137 = smul.u32 32, %s9
      $region28: #{network_forward.15} parent=23 // pred_fallthru
        _
    $region24: #{network_forward.15} parent=5 // pred_fallthru
      _
    %p138 = scmp.le.s32.totalorder 1, %s9
    %p139 = scmp.lt.s32.totalorder %s9, 3
    %p140 = pnand %p138, %p139
    %p141 = pneg %p140
    // Predicated region
    $region29: #{network_forward.15} parent=5 // pred_check
      _
    $region30: #{network_forward.15} parent=5 // pred_check_branch
      %143 = sbr.rel (%p140) target = $region32
    $region31: #{network_forward.15} parent=5 // pred_region
      %s144 = ssub.s32 %s9, 1
      %s145 = smul.u32 32, %s14
      %p146 = scmp.lt.s32.totalorder %s145, 63
      %s147 = scalar_select %p146, %s145, 63
      %s148 = smul.addr %s147, 5
      %s149 = smul.addr %s148, 4
      %s150 = scalar_lea.vmem %s0, %s149
      %p151 = pneg %p35
      %p152 = pneg %p32
      %p153 = pneg %p56
      %p154 = pneg %p53
      %p155 = pneg %p77
      %p156 = pneg %p74
      %p157 = pneg %p103
      %p158 = pneg %p100
      %s159 = smul.u32 32, %s14
      %p160 = scmp.lt.s32.totalorder %s159, 63
      %s161 = scalar_select %p160, %s159, 63
      %s162 = smul.addr %s161, 8
      %s163 = scalar_lea.vmem %s3, %s162
      %s164 = smul.u32 32, %s14
      %p165 = scmp.lt.s32.totalorder %s164, 63
      %s166 = scalar_select %p165, %s164, 63
      %s167 = smul.addr %s166, 5
      %s168 = smul.addr %s167, 4
      %s169 = scalar_lea.vmem %s0, %s168
      %s170 = smul.u32 32, %s14
      %s171 = smul.u32 32, %s14
      %p172 = scmp.lt.s32.totalorder %s171, 63
      %s173 = scalar_select %p172, %s171, 63
      %s174 = smul.addr %s173, 8
      %s175 = scalar_lea.vmem %s3, %s174
      %s176 = smul.u32 32, %s14
      %v178 = vld [vmem:[%s169] sm:$0xff]
      %v179 = vld [vmem:[%s169 + $0x8] sm:$0xff]
      %v180 = vld [vmem:[%s169 + $0x10] sm:$0xf]
      %v181 = vld [vmem:[%s169 + $0x14] sm:$0xff]
      %v182 = vld [vmem:[%s169 + $0x1c] sm:$0xff]
      %v183 = vld [vmem:[%s169 + $0x24] sm:$0xf]
      %v184 = vld [vmem:[%s169 + $0x28] sm:$0xff]
      %v185 = vld [vmem:[%s169 + $0x30] sm:$0xff]
      %v186 = vld [vmem:[%s169 + $0x38] sm:$0xf]
      %v187 = vld [vmem:[%s169 + $0x3c] sm:$0xff]
      %v188 = vld [vmem:[%s169 + $0x44] sm:$0xff]
      %v189 = vld [vmem:[%s169 + $0x4c] sm:$0xf]
      %v190 = vld [vmem:[%s169 + $0x50] sm:$0xff]
      %v191 = vld [vmem:[%s169 + $0x58] sm:$0xff]
      %v192 = vld [vmem:[%s169 + $0x60] sm:$0xf]
      %v193 = vld [vmem:[%s169 + $0x64] sm:$0xff]
      %v194 = vld [vmem:[%s169 + $0x6c] sm:$0xff]
      %v195 = vld [vmem:[%s169 + $0x74] sm:$0xf]
      %v196 = vld [vmem:[%s169 + $0x78] sm:$0xff]
      %v197 = vld [vmem:[%s169 + $0x80] sm:$0xff]
      %v198 = vld [vmem:[%s169 + $0x88] sm:$0xf]
      %v199 = vld [vmem:[%s169 + $0x8c] sm:$0xff]
      %v200 = vld [vmem:[%s169 + $0x94] sm:$0xff]
      %v201 = vld [vmem:[%s169 + $0x9c] sm:$0xf]
      %v202 = vld [vmem:[%s169 + $0xa0] sm:$0xff]
      %v203 = vld [vmem:[%s169 + $0xa8] sm:$0xff]
      %v204 = vld [vmem:[%s169 + $0xb0] sm:$0xf]
      %v205 = vld [vmem:[%s169 + $0xb4] sm:$0xff]
      %v206 = vld [vmem:[%s169 + $0xbc] sm:$0xff]
      %v207 = vld [vmem:[%s169 + $0xc4] sm:$0xf]
      %v208 = vld [vmem:[%s169 + $0xc8] sm:$0xff]
      %v209 = vld [vmem:[%s169 + $0xd0] sm:$0xff]
      %v210 = vld [vmem:[%s169 + $0xd8] sm:$0xf]
      %v211 = vld [vmem:[%s169 + $0xdc] sm:$0xff]
      %v212 = vld [vmem:[%s169 + $0xe4] sm:$0xff]
      %v213 = vld [vmem:[%s169 + $0xec] sm:$0xf]
      %v214 = vld [vmem:[%s169 + $0xf0] sm:$0xff]
      %v215 = vld [vmem:[%s169 + $0xf8] sm:$0xff]
      %v216 = vld [vmem:[%s169 + $0x100] sm:$0xf]
      %v217 = vld [vmem:[%s169 + $0x104] sm:$0xff]
      %v218 = vld [vmem:[%s169 + $0x10c] sm:$0xff]
      %v219 = vld [vmem:[%s169 + $0x114] sm:$0xf]
      %v220 = vld [vmem:[%s169 + $0x118] sm:$0xff]
      %v221 = vld [vmem:[%s169 + $0x120] sm:$0xff]
      %v222 = vld [vmem:[%s169 + $0x128] sm:$0xf]
      %v223 = vld [vmem:[%s169 + $0x12c] sm:$0xff]
      %v224 = vld [vmem:[%s169 + $0x134] sm:$0xff]
      %v225 = vld [vmem:[%s169 + $0x13c] sm:$0xf]
      %v226 = vld [vmem:[%s169 + $0x140] sm:$0xff]
      %v227 = vld [vmem:[%s169 + $0x148] sm:$0xff]
      %v228 = vld [vmem:[%s169 + $0x150] sm:$0xf]
      %v229 = vld [vmem:[%s169 + $0x154] sm:$0xff]
      %v230 = vld [vmem:[%s169 + $0x15c] sm:$0xff]
      %v231 = vld [vmem:[%s169 + $0x164] sm:$0xf]
      %v232 = vld [vmem:[%s169 + $0x168] sm:$0xff]
      %v233 = vld [vmem:[%s169 + $0x170] sm:$0xff]
      %v234 = vld [vmem:[%s169 + $0x178] sm:$0xf]
      %v235 = vld [vmem:[%s169 + $0x17c] sm:$0xff]
      %v236 = vld [vmem:[%s169 + $0x184] sm:$0xff]
      %v237 = vld [vmem:[%s169 + $0x18c] sm:$0xf]
      %v238 = vld [vmem:[%s169 + $0x190] sm:$0xff]
      %v239 = vld [vmem:[%s169 + $0x198] sm:$0xff]
      %v240 = vld [vmem:[%s169 + $0x1a0] sm:$0xf]
      %v241 = vld [vmem:[%s169 + $0x1a4] sm:$0xff]
      %v242 = vld [vmem:[%s169 + $0x1ac] sm:$0xff]
      %v243 = vld [vmem:[%s169 + $0x1b4] sm:$0xf]
      %v244 = vld [vmem:[%s169 + $0x1b8] sm:$0xff]
      %v245 = vld [vmem:[%s169 + $0x1c0] sm:$0xff]
      %v246 = vld [vmem:[%s169 + $0x1c8] sm:$0xf]
      %v247 = vld [vmem:[%s169 + $0x1cc] sm:$0xff]
      %v248 = vld [vmem:[%s169 + $0x1d4] sm:$0xff]
      %v249 = vld [vmem:[%s169 + $0x1dc] sm:$0xf]
      %v250 = vld [vmem:[%s169 + $0x1e0] sm:$0xff]
      %v251 = vld [vmem:[%s169 + $0x1e8] sm:$0xff]
      %v252 = vld [vmem:[%s169 + $0x1f0] sm:$0xf]
      %v253 = vld [vmem:[%s169 + $0x1f4] sm:$0xff]
      %v254 = vld [vmem:[%s169 + $0x1fc] sm:$0xff]
      %v255 = vld [vmem:[%s169 + $0x204] sm:$0xf]
      %v256 = vld [vmem:[%s169 + $0x208] sm:$0xff]
      %v257 = vld [vmem:[%s169 + $0x210] sm:$0xff]
      %v258 = vld [vmem:[%s169 + $0x218] sm:$0xf]
      %v259 = vld [vmem:[%s169 + $0x21c] sm:$0xff]
      %v260 = vld [vmem:[%s169 + $0x224] sm:$0xff]
      %v261 = vld [vmem:[%s169 + $0x22c] sm:$0xf]
      %v262 = vld [vmem:[%s169 + $0x230] sm:$0xff]
      %v263 = vld [vmem:[%s169 + $0x238] sm:$0xff]
      %v264 = vld [vmem:[%s169 + $0x240] sm:$0xf]
      %v265 = vld [vmem:[%s169 + $0x244] sm:$0xff]
      %v266 = vld [vmem:[%s169 + $0x24c] sm:$0xff]
      %v267 = vld [vmem:[%s169 + $0x254] sm:$0xf]
      %v268 = vld [vmem:[%s169 + $0x258] sm:$0xff]
      %v269 = vld [vmem:[%s169 + $0x260] sm:$0xff]
      %v270 = vld [vmem:[%s169 + $0x268] sm:$0xf]
      %v271 = vld [vmem:[%s169 + $0x26c] sm:$0xff]
      %v272 = vld [vmem:[%s169 + $0x274] sm:$0xff]
      %v273 = vld [vmem:[%s169 + $0x27c] sm:$0xf]
      %v274 = vld [vmem:[%s1] sm:$0xf]
      %v275 = vld [vmem:[%s1 + $0x4] sm:$0xf]
      %v276 = vld [vmem:[%s1 + $0x8] sm:$0xf]
      %v277 = vld [vmem:[%s1 + $0xc] sm:$0xf]
      %v278 = vld [vmem:[%s1 + $0x10] sm:$0xf]
      %v279 = vld [vmem:[%s1 + $0x14] sm:$0xf]
      %v280 = vld [vmem:[%s1 + $0x18] sm:$0xf]
      %v281 = vld [vmem:[%s1 + $0x1c] sm:$0xf]
      %v282 = vld [vmem:[%s1 + $0x20] sm:$0xf]
      %v283 = vld [vmem:[%s1 + $0x24] sm:$0xf]
      %v284 = vld [vmem:[%s1 + $0x28] sm:$0xf]
      %v285 = vld [vmem:[%s1 + $0x2c] sm:$0xf]
      %v286 = vld [vmem:[%s1 + $0x30] sm:$0xf]
      %v287 = vld [vmem:[%s1 + $0x34] sm:$0xf]
      %v288 = vld [vmem:[%s1 + $0x38] sm:$0xf]
      %v289 = vld [vmem:[%s1 + $0x3c] sm:$0xf]
      %v290 = vld [vmem:[%s1 + $0x40] sm:$0xf]
      %v291 = vld [vmem:[%s1 + $0x44] sm:$0xf]
      %v292 = vld [vmem:[%s1 + $0x48] sm:$0xf]
      %v293 = vld [vmem:[%s1 + $0x4c] sm:$0xf]
      %v294 = vld [vmem:[%s1 + $0x50] sm:$0xf]
      %v295 = vld [vmem:[%s1 + $0x54] sm:$0xf]
      %v296 = vld [vmem:[%s1 + $0x58] sm:$0xf]
      %v297 = vld [vmem:[%s1 + $0x5c] sm:$0xf]
      %v298 = vld [vmem:[%s1 + $0x60] sm:$0xf]
      %v299 = vld [vmem:[%s1 + $0x64] sm:$0xf]
      %v300 = vld [vmem:[%s1 + $0x68] sm:$0xf]
      %v301 = vld [vmem:[%s1 + $0x6c] sm:$0xf]
      %v302 = vld [vmem:[%s1 + $0x70] sm:$0xf]
      %v303 = vld [vmem:[%s1 + $0x74] sm:$0xf]
      %v304 = vld [vmem:[%s1 + $0x78] sm:$0xf]
      %v305 = vld [vmem:[%s1 + $0x7c] sm:$0xf]
      %v306 = vld [vmem:[%s1 + $0x80] sm:$0xf]
      %v307 = vld [vmem:[%s1 + $0x84] sm:$0xf]
      %v308 = vld [vmem:[%s1 + $0x88] sm:$0xf]
      %v309 = vld [vmem:[%s1 + $0x8c] sm:$0xf]
      %v310 = vld [vmem:[%s1 + $0x90] sm:$0xf]
      %v311 = vld [vmem:[%s1 + $0x94] sm:$0xf]
      %v312 = vld [vmem:[%s1 + $0x98] sm:$0xf]
      %v313 = vld [vmem:[%s1 + $0x9c] sm:$0xf]
      %v314 = vld [vmem:[%s1 + $0xa0] sm:$0xf]
      %v315 = vld [vmem:[%s1 + $0xa4] sm:$0xf]
      %v316 = vld [vmem:[%s1 + $0xa8] sm:$0xf]
      %v317 = vld [vmem:[%s1 + $0xac] sm:$0xf]
      %v318 = vld [vmem:[%s1 + $0xb0] sm:$0xf]
      %v319 = vld [vmem:[%s1 + $0xb4] sm:$0xf]
      %v320 = vld [vmem:[%s1 + $0xb8] sm:$0xf]
      %v321 = vld [vmem:[%s1 + $0xbc] sm:$0xf]
      %v322 = vld [vmem:[%s1 + $0xc0] sm:$0xf]
      %v323 = vld [vmem:[%s1 + $0xc4] sm:$0xf]
      %v324 = vld [vmem:[%s1 + $0xc8] sm:$0xf]
      %v325 = vld [vmem:[%s1 + $0xcc] sm:$0xf]
      %v326 = vld [vmem:[%s1 + $0xd0] sm:$0xf]
      %v327 = vld [vmem:[%s1 + $0xd4] sm:$0xf]
      %v328 = vld [vmem:[%s1 + $0xd8] sm:$0xf]
      %v329 = vld [vmem:[%s1 + $0xdc] sm:$0xf]
      %v330 = vld [vmem:[%s1 + $0xe0] sm:$0xf]
      %v331 = vld [vmem:[%s1 + $0xe4] sm:$0xf]
      %v332 = vld [vmem:[%s1 + $0xe8] sm:$0xf]
      %v333 = vld [vmem:[%s1 + $0xec] sm:$0xf]
      %v334 = vld [vmem:[%s1 + $0xf0] sm:$0xf]
      %v335 = vld [vmem:[%s1 + $0xf4] sm:$0xf]
      %v336 = vld [vmem:[%s1 + $0xf8] sm:$0xf]
      %v337 = vld [vmem:[%s1 + $0xfc] sm:$0xf]
      %v338 = vld [vmem:[%s1 + $0x100] sm:$0xf]
      %v339 = vld [vmem:[%s1 + $0x104] sm:$0xf]
      %v340 = vld [vmem:[%s1 + $0x108] sm:$0xf]
      %v341 = vld [vmem:[%s1 + $0x10c] sm:$0xf]
      %v342 = vld [vmem:[%s1 + $0x110] sm:$0xf]
      %v343 = vld [vmem:[%s1 + $0x114] sm:$0xf]
      %v344 = vld [vmem:[%s1 + $0x118] sm:$0xf]
      %v345 = vld [vmem:[%s1 + $0x11c] sm:$0xf]
      %v346 = vld [vmem:[%s2] sm:$0x1]
      %v348 = vlaneseq
      %v349 = vshrl.u32 %v348, 7
      %v350 = vsub.s32 0, %v349
      %v351 = vrot.slane %v346, %v350
      %v449 = vunpack.c.l.b16 %v178
      %v450 = vunpack.c.h.b16 %v178
      %v451 = vunpack.c.l.b16 %v179
      %v452 = vunpack.c.h.b16 %v179
      %v453 = vunpack.c.l.b16 %v180
      %v454 = vunpack.c.l.b16 %v181
      %v455 = vunpack.c.h.b16 %v181
      %v456 = vunpack.c.l.b16 %v182
      %v457 = vunpack.c.h.b16 %v182
      %v458 = vunpack.c.l.b16 %v183
      %v459 = vunpack.c.l.b16 %v184
      %v460 = vunpack.c.h.b16 %v184
      %v461 = vunpack.c.l.b16 %v185
      %v462 = vunpack.c.h.b16 %v185
      %v463 = vunpack.c.l.b16 %v186
      %v464 = vunpack.c.l.b16 %v187
      %v465 = vunpack.c.h.b16 %v187
      %v466 = vunpack.c.l.b16 %v188
      %v467 = vunpack.c.h.b16 %v188
      %v468 = vunpack.c.l.b16 %v189
      %v469 = vunpack.c.l.b16 %v190
      %v470 = vunpack.c.h.b16 %v190
      %v471 = vunpack.c.l.b16 %v191
      %v472 = vunpack.c.h.b16 %v191
      %v473 = vunpack.c.l.b16 %v192
      %v474 = vunpack.c.l.b16 %v193
      %v475 = vunpack.c.h.b16 %v193
      %v476 = vunpack.c.l.b16 %v194
      %v477 = vunpack.c.h.b16 %v194
      %v478 = vunpack.c.l.b16 %v195
      %v479 = vunpack.c.l.b16 %v196
      %v480 = vunpack.c.h.b16 %v196
      %v481 = vunpack.c.l.b16 %v197
      %v482 = vunpack.c.h.b16 %v197
      %v483 = vunpack.c.l.b16 %v198
      %v484 = vunpack.c.l.b16 %v199
      %v485 = vunpack.c.h.b16 %v199
      %v486 = vunpack.c.l.b16 %v200
      %v487 = vunpack.c.h.b16 %v200
      %v488 = vunpack.c.l.b16 %v201
      %v489 = vunpack.c.l.b16 %v202
      %v490 = vunpack.c.h.b16 %v202
      %v491 = vunpack.c.l.b16 %v203
      %v492 = vunpack.c.h.b16 %v203
      %v493 = vunpack.c.l.b16 %v204
      %v494 = vunpack.c.l.b16 %v205
      %v495 = vunpack.c.h.b16 %v205
      %v496 = vunpack.c.l.b16 %v206
      %v497 = vunpack.c.h.b16 %v206
      %v498 = vunpack.c.l.b16 %v207
      %v499 = vunpack.c.l.b16 %v208
      %v500 = vunpack.c.h.b16 %v208
      %v501 = vunpack.c.l.b16 %v209
      %v502 = vunpack.c.h.b16 %v209
      %v503 = vunpack.c.l.b16 %v210
      %v504 = vunpack.c.l.b16 %v211
      %v505 = vunpack.c.h.b16 %v211
      %v506 = vunpack.c.l.b16 %v212
      %v507 = vunpack.c.h.b16 %v212
      %v508 = vunpack.c.l.b16 %v213
      %v509 = vunpack.c.l.b16 %v214
      %v510 = vunpack.c.h.b16 %v214
      %v511 = vunpack.c.l.b16 %v215
      %v512 = vunpack.c.h.b16 %v215
      %v513 = vunpack.c.l.b16 %v216
      %v514 = vunpack.c.l.b16 %v217
      %v515 = vunpack.c.h.b16 %v217
      %v516 = vunpack.c.l.b16 %v218
      %v517 = vunpack.c.h.b16 %v218
      %v518 = vunpack.c.l.b16 %v219
      %v519 = vunpack.c.l.b16 %v220
      %v520 = vunpack.c.h.b16 %v220
      %v521 = vunpack.c.l.b16 %v221
      %v522 = vunpack.c.h.b16 %v221
      %v523 = vunpack.c.l.b16 %v222
      %v524 = vunpack.c.l.b16 %v223
      %v525 = vunpack.c.h.b16 %v223
      %v526 = vunpack.c.l.b16 %v224
      %v527 = vunpack.c.h.b16 %v224
      %v528 = vunpack.c.l.b16 %v225
      %v529 = vunpack.c.l.b16 %v226
      %v530 = vunpack.c.h.b16 %v226
      %v531 = vunpack.c.l.b16 %v227
      %v532 = vunpack.c.h.b16 %v227
      %v533 = vunpack.c.l.b16 %v228
      %v534 = vunpack.c.l.b16 %v229
      %v535 = vunpack.c.h.b16 %v229
      %v536 = vunpack.c.l.b16 %v230
      %v537 = vunpack.c.h.b16 %v230
      %v538 = vunpack.c.l.b16 %v231
      %v539 = vunpack.c.l.b16 %v232
      %v540 = vunpack.c.h.b16 %v232
      %v541 = vunpack.c.l.b16 %v233
      %v542 = vunpack.c.h.b16 %v233
      %v543 = vunpack.c.l.b16 %v234
      %v544 = vunpack.c.l.b16 %v235
      %v545 = vunpack.c.h.b16 %v235
      %v546 = vunpack.c.l.b16 %v236
      %v547 = vunpack.c.h.b16 %v236
      %v548 = vunpack.c.l.b16 %v237
      %v549 = vunpack.c.l.b16 %v238
      %v550 = vunpack.c.h.b16 %v238
      %v551 = vunpack.c.l.b16 %v239
      %v552 = vunpack.c.h.b16 %v239
      %v553 = vunpack.c.l.b16 %v240
      %v554 = vunpack.c.l.b16 %v241
      %v555 = vunpack.c.h.b16 %v241
      %v556 = vunpack.c.l.b16 %v242
      %v557 = vunpack.c.h.b16 %v242
      %v558 = vunpack.c.l.b16 %v243
      %v559 = vunpack.c.l.b16 %v244
      %v560 = vunpack.c.h.b16 %v244
      %v561 = vunpack.c.l.b16 %v245
      %v562 = vunpack.c.h.b16 %v245
      %v563 = vunpack.c.l.b16 %v246
      %v564 = vunpack.c.l.b16 %v247
      %v565 = vunpack.c.h.b16 %v247
      %v566 = vunpack.c.l.b16 %v248
      %v567 = vunpack.c.h.b16 %v248
      %v568 = vunpack.c.l.b16 %v249
      %v569 = vunpack.c.l.b16 %v250
      %v570 = vunpack.c.h.b16 %v250
      %v571 = vunpack.c.l.b16 %v251
      %v572 = vunpack.c.h.b16 %v251
      %v573 = vunpack.c.l.b16 %v252
      %v574 = vunpack.c.l.b16 %v253
      %v575 = vunpack.c.h.b16 %v253
      %v576 = vunpack.c.l.b16 %v254
      %v577 = vunpack.c.h.b16 %v254
      %v578 = vunpack.c.l.b16 %v255
      %v579 = vunpack.c.l.b16 %v256
      %v580 = vunpack.c.h.b16 %v256
      %v581 = vunpack.c.l.b16 %v257
      %v582 = vunpack.c.h.b16 %v257
      %v583 = vunpack.c.l.b16 %v258
      %v584 = vunpack.c.l.b16 %v259
      %v585 = vunpack.c.h.b16 %v259
      %v586 = vunpack.c.l.b16 %v260
      %v587 = vunpack.c.h.b16 %v260
      %v588 = vunpack.c.l.b16 %v261
      %v589 = vunpack.c.l.b16 %v262
      %v590 = vunpack.c.h.b16 %v262
      %v591 = vunpack.c.l.b16 %v263
      %v592 = vunpack.c.h.b16 %v263
      %v593 = vunpack.c.l.b16 %v264
      %v594 = vunpack.c.l.b16 %v265
      %v595 = vunpack.c.h.b16 %v265
      %v596 = vunpack.c.l.b16 %v266
      %v597 = vunpack.c.h.b16 %v266
      %v598 = vunpack.c.l.b16 %v267
      %v599 = vunpack.c.l.b16 %v268
      %v600 = vunpack.c.h.b16 %v268
      %v601 = vunpack.c.l.b16 %v269
      %v602 = vunpack.c.h.b16 %v269
      %v603 = vunpack.c.l.b16 %v270
      %v604 = vunpack.c.l.b16 %v271
      %v605 = vunpack.c.h.b16 %v271
      %v606 = vunpack.c.l.b16 %v272
      %v607 = vunpack.c.h.b16 %v272
      %v608 = vunpack.c.l.b16 %v273
      %v609 = vpack.c.b16 %v454, %v449
      %v610 = vpack.c.b16 %v455, %v450
      %v611 = vpack.c.b16 %v456, %v451
      %v612 = vpack.c.b16 %v457, %v452
      %v613 = vpack.c.b16 %v458, %v453
      %v614 = vpack.c.b16 %v464, %v459
      %v615 = vpack.c.b16 %v465, %v460
      %v616 = vpack.c.b16 %v466, %v461
      %v617 = vpack.c.b16 %v467, %v462
      %v618 = vpack.c.b16 %v468, %v463
      %v619 = vpack.c.b16 %v474, %v469
      %v620 = vpack.c.b16 %v475, %v470
      %v621 = vpack.c.b16 %v476, %v471
      %v622 = vpack.c.b16 %v477, %v472
      %v623 = vpack.c.b16 %v478, %v473
      %v624 = vpack.c.b16 %v484, %v479
      %v625 = vpack.c.b16 %v485, %v480
      %v626 = vpack.c.b16 %v486, %v481
      %v627 = vpack.c.b16 %v487, %v482
      %v628 = vpack.c.b16 %v488, %v483
      %v629 = vpack.c.b16 %v494, %v489
      %v630 = vpack.c.b16 %v495, %v490
      %v631 = vpack.c.b16 %v496, %v491
      %v632 = vpack.c.b16 %v497, %v492
      %v633 = vpack.c.b16 %v498, %v493
      %v634 = vpack.c.b16 %v504, %v499
      %v635 = vpack.c.b16 %v505, %v500
      %v636 = vpack.c.b16 %v506, %v501
      %v637 = vpack.c.b16 %v507, %v502
      %v638 = vpack.c.b16 %v508, %v503
      %v639 = vpack.c.b16 %v514, %v509
      %v640 = vpack.c.b16 %v515, %v510
      %v641 = vpack.c.b16 %v516, %v511
      %v642 = vpack.c.b16 %v517, %v512
      %v643 = vpack.c.b16 %v518, %v513
      %v644 = vpack.c.b16 %v524, %v519
      %v645 = vpack.c.b16 %v525, %v520
      %v646 = vpack.c.b16 %v526, %v521
      %v647 = vpack.c.b16 %v527, %v522
      %v648 = vpack.c.b16 %v528, %v523
      %v649 = vpack.c.b16 %v534, %v529
      %v650 = vpack.c.b16 %v535, %v530
      %v651 = vpack.c.b16 %v536, %v531
      %v652 = vpack.c.b16 %v537, %v532
      %v653 = vpack.c.b16 %v538, %v533
      %v654 = vpack.c.b16 %v544, %v539
      %v655 = vpack.c.b16 %v545, %v540
      %v656 = vpack.c.b16 %v546, %v541
      %v657 = vpack.c.b16 %v547, %v542
      %v658 = vpack.c.b16 %v548, %v543
      %v659 = vpack.c.b16 %v554, %v549
      %v660 = vpack.c.b16 %v555, %v550
      %v661 = vpack.c.b16 %v556, %v551
      %v662 = vpack.c.b16 %v557, %v552
      %v663 = vpack.c.b16 %v558, %v553
      %v664 = vpack.c.b16 %v564, %v559
      %v665 = vpack.c.b16 %v565, %v560
      %v666 = vpack.c.b16 %v566, %v561
      %v667 = vpack.c.b16 %v567, %v562
      %v668 = vpack.c.b16 %v568, %v563
      %v669 = vpack.c.b16 %v574, %v569
      %v670 = vpack.c.b16 %v575, %v570
      %v671 = vpack.c.b16 %v576, %v571
      %v672 = vpack.c.b16 %v577, %v572
      %v673 = vpack.c.b16 %v578, %v573
      %v674 = vpack.c.b16 %v584, %v579
      %v675 = vpack.c.b16 %v585, %v580
      %v676 = vpack.c.b16 %v586, %v581
      %v677 = vpack.c.b16 %v587, %v582
      %v678 = vpack.c.b16 %v588, %v583
      %v679 = vpack.c.b16 %v594, %v589
      %v680 = vpack.c.b16 %v595, %v590
      %v681 = vpack.c.b16 %v596, %v591
      %v682 = vpack.c.b16 %v597, %v592
      %v683 = vpack.c.b16 %v598, %v593
      %v684 = vpack.c.b16 %v604, %v599
      %v685 = vpack.c.b16 %v605, %v600
      %v686 = vpack.c.b16 %v606, %v601
      %v687 = vpack.c.b16 %v607, %v602
      %v688 = vpack.c.b16 %v608, %v603
      %v825 = vunpack.c.l.b16 %v274
      %v826 = vunpack.c.l.b16 %v275
      %v827 = vunpack.c.l.b16 %v276
      %v828 = vunpack.c.l.b16 %v277
      %v829 = vunpack.c.l.b16 %v278
      %v830 = vunpack.c.l.b16 %v279
      %v831 = vunpack.c.l.b16 %v280
      %v832 = vunpack.c.l.b16 %v281
      %v833 = vunpack.c.l.b16 %v282
      %v834 = vunpack.c.l.b16 %v283
      %v835 = vunpack.c.l.b16 %v284
      %v836 = vunpack.c.l.b16 %v285
      %v837 = vunpack.c.l.b16 %v286
      %v838 = vunpack.c.l.b16 %v287
      %v839 = vunpack.c.l.b16 %v288
      %v840 = vunpack.c.l.b16 %v289
      %v841 = vunpack.c.l.b16 %v290
      %v842 = vunpack.c.l.b16 %v291
      %v843 = vunpack.c.l.b16 %v292
      %v844 = vunpack.c.l.b16 %v293
      %v845 = vunpack.c.l.b16 %v294
      %v846 = vunpack.c.l.b16 %v295
      %v847 = vunpack.c.l.b16 %v296
      %v848 = vunpack.c.l.b16 %v297
      %v849 = vunpack.c.l.b16 %v298
      %v850 = vunpack.c.l.b16 %v299
      %v851 = vunpack.c.l.b16 %v300
      %v852 = vunpack.c.l.b16 %v301
      %v853 = vunpack.c.l.b16 %v302
      %v854 = vunpack.c.l.b16 %v303
      %v855 = vunpack.c.l.b16 %v304
      %v856 = vunpack.c.l.b16 %v305
      %v857 = vunpack.c.l.b16 %v306
      %v858 = vunpack.c.l.b16 %v307
      %v859 = vunpack.c.l.b16 %v308
      %v860 = vunpack.c.l.b16 %v309
      %v861 = vunpack.c.l.b16 %v310
      %v862 = vunpack.c.l.b16 %v311
      %v863 = vunpack.c.l.b16 %v312
      %v864 = vunpack.c.l.b16 %v313
      %v865 = vunpack.c.l.b16 %v314
      %v866 = vunpack.c.l.b16 %v315
      %v867 = vunpack.c.l.b16 %v316
      %v868 = vunpack.c.l.b16 %v317
      %v869 = vunpack.c.l.b16 %v318
      %v870 = vunpack.c.l.b16 %v319
      %v871 = vunpack.c.l.b16 %v320
      %v872 = vunpack.c.l.b16 %v321
      %v873 = vunpack.c.l.b16 %v322
      %v874 = vunpack.c.l.b16 %v323
      %v875 = vunpack.c.l.b16 %v324
      %v876 = vunpack.c.l.b16 %v325
      %v877 = vunpack.c.l.b16 %v326
      %v878 = vunpack.c.l.b16 %v327
      %v879 = vunpack.c.l.b16 %v328
      %v880 = vunpack.c.l.b16 %v329
      %v881 = vunpack.c.l.b16 %v330
      %v882 = vunpack.c.l.b16 %v331
      %v883 = vunpack.c.l.b16 %v332
      %v884 = vunpack.c.l.b16 %v333
      %v885 = vunpack.c.l.b16 %v334
      %v886 = vunpack.c.l.b16 %v335
      %v887 = vunpack.c.l.b16 %v336
      %v888 = vunpack.c.l.b16 %v337
      %v889 = vunpack.c.l.b16 %v338
      %v890 = vunpack.c.l.b16 %v339
      %v891 = vunpack.c.l.b16 %v340
      %v892 = vunpack.c.l.b16 %v341
      %v893 = vunpack.c.l.b16 %v342
      %v894 = vunpack.c.l.b16 %v343
      %v895 = vunpack.c.l.b16 %v344
      %v896 = vunpack.c.l.b16 %v345
      %v897 = vpack.c.b16 %v826, %v825
      %v898 = vpack.c.b16 %v828, %v827
      %v899 = vpack.c.b16 %v830, %v829
      %v900 = vpack.c.b16 %v832, %v831
      %v901 = vpack.c.b16 %v834, %v833
      %v902 = vpack.c.b16 %v836, %v835
      %v903 = vpack.c.b16 %v838, %v837
      %v904 = vpack.c.b16 %v840, %v839
      %v905 = vpack.c.b16 %v842, %v841
      %v906 = vpack.c.b16 %v844, %v843
      %v907 = vpack.c.b16 %v846, %v845
      %v908 = vpack.c.b16 %v848, %v847
      %v909 = vpack.c.b16 %v850, %v849
      %v910 = vpack.c.b16 %v852, %v851
      %v911 = vpack.c.b16 %v854, %v853
      %v912 = vpack.c.b16 %v856, %v855
      %v913 = vpack.c.b16 %v858, %v857
      %v914 = vpack.c.b16 %v860, %v859
      %v915 = vpack.c.b16 %v862, %v861
      %v916 = vpack.c.b16 %v864, %v863
      %v917 = vpack.c.b16 %v866, %v865
      %v918 = vpack.c.b16 %v868, %v867
      %v919 = vpack.c.b16 %v870, %v869
      %v920 = vpack.c.b16 %v872, %v871
      %v921 = vpack.c.b16 %v874, %v873
      %v922 = vpack.c.b16 %v876, %v875
      %v923 = vpack.c.b16 %v878, %v877
      %v924 = vpack.c.b16 %v880, %v879
      %v925 = vpack.c.b16 %v882, %v881
      %v926 = vpack.c.b16 %v884, %v883
      %v927 = vpack.c.b16 %v886, %v885
      %v928 = vpack.c.b16 %v888, %v887
      %v929 = vpack.c.b16 %v890, %v889
      %v930 = vpack.c.b16 %v892, %v891
      %v931 = vpack.c.b16 %v894, %v893
      %v932 = vpack.c.b16 %v896, %v895
      %vm969 = vcmask 523264
      %v971 = vsel %vm969, %v613, 0
      %v974 = vsel %vm969, %v618, 0
      %v977 = vsel %vm969, %v623, 0
      %v980 = vsel %vm969, %v628, 0
      %v983 = vsel %vm969, %v633, 0
      %v986 = vsel %vm969, %v638, 0
      %v989 = vsel %vm969, %v643, 0
      %v992 = vsel %vm969, %v648, 0
      %v995 = vsel %vm969, %v653, 0
      %v998 = vsel %vm969, %v658, 0
      %v1001 = vsel %vm969, %v663, 0
      %v1004 = vsel %vm969, %v668, 0
      %v1007 = vsel %vm969, %v673, 0
      %v1010 = vsel %vm969, %v678, 0
      %v1013 = vsel %vm969, %v683, 0
      %v1016 = vsel %vm969, %v688, 0
      %1018 = vmatprep.subr.bf16.mxu0 0
      %1019 = vmatpush1.bf16.msra.mxu0 %v904
      %1020 = vmatprep.subr.bf16.mxu0 0
      %1021 = vmatpush1.bf16.msra.mxu0 %v903
      %1022 = vmatprep.subr.bf16.mxu0 0
      %1023 = vmatpush1.bf16.msra.mxu0 %v902
      %1024 = vmatprep.subr.bf16.mxu0 0
      %1025 = vmatpush1.bf16.msra.mxu0 %v901
      %1026 = vmatprep.subr.bf16.mxu0 0
      %1027 = vmatpush1.bf16.msra.mxu0 %v900
      %1028 = vmatprep.subr.bf16.mxu0 0
      %1029 = vmatpush1.bf16.msra.mxu0 %v899
      %1030 = vmatprep.subr.bf16.mxu0 0
      %1031 = vmatpush1.bf16.msra.mxu0 %v898
      %1032 = vmatprep.subr.bf16.mxu0 0
      %1033 = vmatpush1.bf16.msra.mxu0 %v897
      %1034 = vmatprep.subr.bf16.mxu0 0
      %1035 = vmatpush2.bf16.msra.mxu0 %v912
      %1036 = vmatprep.subr.bf16.mxu0 0
      %1037 = vmatpush2.bf16.msra.mxu0 %v911
      %1038 = vmatprep.subr.bf16.mxu0 0
      %1039 = vmatpush2.bf16.msra.mxu0 %v910
      %1040 = vmatprep.subr.bf16.mxu0 0
      %1041 = vmatpush2.bf16.msra.mxu0 %v909
      %1042 = vmatprep.subr.bf16.mxu0 0
      %1043 = vmatpush2.bf16.msra.mxu0 %v908
      %1044 = vmatprep.subr.bf16.mxu0 0
      %1045 = vmatpush2.bf16.msra.mxu0 %v907
      %1046 = vmatprep.subr.bf16.mxu0 0
      %1047 = vmatpush2.bf16.msra.mxu0 %v906
      %1048 = vmatprep.subr.bf16.mxu0 0
      %1049 = vmatpush2.bf16.msra.mxu0 %v905
      %1050 = vmatprep.mubr.bf16.mxu0 %v610
      %1051 = vmatmul.mubr.bf16.gmra.mxu0 %v609
      %v1052 = vpop.f32.mrf.mxu0
      %v1053 = vadd.f32 %v351, %v1052
      %v1054 = vpop.f32.mrf.mxu0
      %v1055 = vpop.f32.mrf.mxu0
      %v1056 = vadd.f32 %v351, %v1055
      %v1057 = vpop.f32.mrf.mxu0
      %1058 = vmatprep.mubr.bf16.mxu0 %v615
      %1059 = vmatmul.mubr.bf16.gmra.mxu0 %v614
      %v1060 = vpop.f32.mrf.mxu0
      %v1061 = vadd.f32 %v351, %v1060
      %v1062 = vpop.f32.mrf.mxu0
      %v1063 = vpop.f32.mrf.mxu0
      %v1064 = vadd.f32 %v351, %v1063
      %v1065 = vpop.f32.mrf.mxu0
      %1066 = vmatprep.mubr.bf16.mxu0 %v620
      %1067 = vmatmul.mubr.bf16.gmra.mxu0 %v619
      %v1068 = vpop.f32.mrf.mxu0
      %v1069 = vadd.f32 %v351, %v1068
      %v1070 = vpop.f32.mrf.mxu0
      %v1071 = vpop.f32.mrf.mxu0
      %v1072 = vadd.f32 %v351, %v1071
      %v1073 = vpop.f32.mrf.mxu0
      %1074 = vmatprep.mubr.bf16.mxu0 %v625
      %1075 = vmatmul.mubr.bf16.gmra.mxu0 %v624
      %v1076 = vpop.f32.mrf.mxu0
      %v1077 = vadd.f32 %v351, %v1076
      %v1078 = vpop.f32.mrf.mxu0
      %v1079 = vpop.f32.mrf.mxu0
      %v1080 = vadd.f32 %v351, %v1079
      %v1081 = vpop.f32.mrf.mxu0
      %1082 = vmatprep.mubr.bf16.mxu0 %v630
      %1083 = vmatmul.mubr.bf16.gmra.mxu0 %v629
      %v1084 = vpop.f32.mrf.mxu0
      %v1085 = vadd.f32 %v351, %v1084
      %v1086 = vpop.f32.mrf.mxu0
      %v1087 = vpop.f32.mrf.mxu0
      %v1088 = vadd.f32 %v351, %v1087
      %v1089 = vpop.f32.mrf.mxu0
      %1090 = vmatprep.mubr.bf16.mxu0 %v635
      %1091 = vmatmul.mubr.bf16.gmra.mxu0 %v634
      %v1092 = vpop.f32.mrf.mxu0
      %v1093 = vadd.f32 %v351, %v1092
      %v1094 = vpop.f32.mrf.mxu0
      %v1095 = vpop.f32.mrf.mxu0
      %v1096 = vadd.f32 %v351, %v1095
      %v1097 = vpop.f32.mrf.mxu0
      %1098 = vmatprep.mubr.bf16.mxu0 %v640
      %1099 = vmatmul.mubr.bf16.gmra.mxu0 %v639
      %v1100 = vpop.f32.mrf.mxu0
      %v1101 = vadd.f32 %v351, %v1100
      %v1102 = vpop.f32.mrf.mxu0
      %v1103 = vpop.f32.mrf.mxu0
      %v1104 = vadd.f32 %v351, %v1103
      %v1105 = vpop.f32.mrf.mxu0
      %1106 = vmatprep.mubr.bf16.mxu0 %v645
      %1107 = vmatmul.mubr.bf16.gmra.mxu0 %v644
      %v1108 = vpop.f32.mrf.mxu0
      %v1109 = vadd.f32 %v351, %v1108
      %v1110 = vpop.f32.mrf.mxu0
      %v1111 = vpop.f32.mrf.mxu0
      %v1112 = vadd.f32 %v351, %v1111
      %v1113 = vpop.f32.mrf.mxu0
      %1114 = vmatprep.mubr.bf16.mxu0 %v650
      %1115 = vmatmul.mubr.bf16.gmra.mxu0 %v649
      %v1116 = vpop.f32.mrf.mxu0
      %v1117 = vadd.f32 %v351, %v1116
      %v1118 = vpop.f32.mrf.mxu0
      %v1119 = vpop.f32.mrf.mxu0
      %v1120 = vadd.f32 %v351, %v1119
      %v1121 = vpop.f32.mrf.mxu0
      %1122 = vmatprep.mubr.bf16.mxu0 %v655
      %1123 = vmatmul.mubr.bf16.gmra.mxu0 %v654
      %v1124 = vpop.f32.mrf.mxu0
      %v1125 = vadd.f32 %v351, %v1124
      %v1126 = vpop.f32.mrf.mxu0
      %v1127 = vpop.f32.mrf.mxu0
      %v1128 = vadd.f32 %v351, %v1127
      %v1129 = vpop.f32.mrf.mxu0
      %1130 = vmatprep.mubr.bf16.mxu0 %v660
      %1131 = vmatmul.mubr.bf16.gmra.mxu0 %v659
      %v1132 = vpop.f32.mrf.mxu0
      %v1133 = vadd.f32 %v351, %v1132
      %v1134 = vpop.f32.mrf.mxu0
      %v1135 = vpop.f32.mrf.mxu0
      %v1136 = vadd.f32 %v351, %v1135
      %v1137 = vpop.f32.mrf.mxu0
      %1138 = vmatprep.mubr.bf16.mxu0 %v665
      %1139 = vmatmul.mubr.bf16.gmra.mxu0 %v664
      %v1140 = vpop.f32.mrf.mxu0
      %v1141 = vadd.f32 %v351, %v1140
      %v1142 = vpop.f32.mrf.mxu0
      %v1143 = vpop.f32.mrf.mxu0
      %v1144 = vadd.f32 %v351, %v1143
      %v1145 = vpop.f32.mrf.mxu0
      %1146 = vmatprep.mubr.bf16.mxu0 %v670
      %1147 = vmatmul.mubr.bf16.gmra.mxu0 %v669
      %v1148 = vpop.f32.mrf.mxu0
      %v1149 = vadd.f32 %v351, %v1148
      %v1150 = vpop.f32.mrf.mxu0
      %v1151 = vpop.f32.mrf.mxu0
      %v1152 = vadd.f32 %v351, %v1151
      %v1153 = vpop.f32.mrf.mxu0
      %1154 = vmatprep.mubr.bf16.mxu0 %v675
      %1155 = vmatmul.mubr.bf16.gmra.mxu0 %v674
      %v1156 = vpop.f32.mrf.mxu0
      %v1157 = vadd.f32 %v351, %v1156
      %v1158 = vpop.f32.mrf.mxu0
      %v1159 = vpop.f32.mrf.mxu0
      %v1160 = vadd.f32 %v351, %v1159
      %v1161 = vpop.f32.mrf.mxu0
      %1162 = vmatprep.mubr.bf16.mxu0 %v680
      %1163 = vmatmul.mubr.bf16.gmra.mxu0 %v679
      %v1164 = vpop.f32.mrf.mxu0
      %v1165 = vadd.f32 %v351, %v1164
      %v1166 = vpop.f32.mrf.mxu0
      %v1167 = vpop.f32.mrf.mxu0
      %v1168 = vadd.f32 %v351, %v1167
      %v1169 = vpop.f32.mrf.mxu0
      %1170 = vmatprep.mubr.bf16.mxu0 %v685
      %1171 = vmatmul.mubr.bf16.gmra.mxu0 %v684
      %v1172 = vpop.f32.mrf.mxu0
      %v1173 = vadd.f32 %v351, %v1172
      %v1174 = vpop.f32.mrf.mxu0
      %v1175 = vpop.f32.mrf.mxu0
      %v1176 = vadd.f32 %v351, %v1175
      %v1177 = vpop.f32.mrf.mxu0
      %1178 = vdwg.mxu0
      %1179 = vmatprep.subr.bf16.mxu0 0
      %1180 = vmatpush1.bf16.msra.mxu0 %v920
      %1181 = vmatprep.subr.bf16.mxu0 0
      %1182 = vmatpush1.bf16.msra.mxu0 %v919
      %1183 = vmatprep.subr.bf16.mxu0 0
      %1184 = vmatpush1.bf16.msra.mxu0 %v918
      %1185 = vmatprep.subr.bf16.mxu0 0
      %1186 = vmatpush1.bf16.msra.mxu0 %v917
      %1187 = vmatprep.subr.bf16.mxu0 0
      %1188 = vmatpush1.bf16.msra.mxu0 %v916
      %1189 = vmatprep.subr.bf16.mxu0 0
      %1190 = vmatpush1.bf16.msra.mxu0 %v915
      %1191 = vmatprep.subr.bf16.mxu0 0
      %1192 = vmatpush1.bf16.msra.mxu0 %v914
      %1193 = vmatprep.subr.bf16.mxu0 0
      %1194 = vmatpush1.bf16.msra.mxu0 %v913
      %1195 = vmatprep.subr.bf16.mxu0 0
      %1196 = vmatpush2.bf16.msra.mxu0 %v928
      %1197 = vmatprep.subr.bf16.mxu0 0
      %1198 = vmatpush2.bf16.msra.mxu0 %v927
      %1199 = vmatprep.subr.bf16.mxu0 0
      %1200 = vmatpush2.bf16.msra.mxu0 %v926
      %1201 = vmatprep.subr.bf16.mxu0 0
      %1202 = vmatpush2.bf16.msra.mxu0 %v925
      %1203 = vmatprep.subr.bf16.mxu0 0
      %1204 = vmatpush2.bf16.msra.mxu0 %v924
      %1205 = vmatprep.subr.bf16.mxu0 0
      %1206 = vmatpush2.bf16.msra.mxu0 %v923
      %1207 = vmatprep.subr.bf16.mxu0 0
      %1208 = vmatpush2.bf16.msra.mxu0 %v922
      %1209 = vmatprep.subr.bf16.mxu0 0
      %1210 = vmatpush2.bf16.msra.mxu0 %v921
      %1211 = vmatprep.mubr.bf16.mxu0 %v612
      %1212 = vmatmul.mubr.bf16.gmra.mxu0 %v611
      %v1213 = vpop.f32.mrf.mxu0
      %v1214 = vadd.f32 %v1053, %v1213
      %v1215 = vpop.f32.mrf.mxu0
      %v1216 = vpop.f32.mrf.mxu0
      %v1217 = vadd.f32 %v1056, %v1216
      %v1218 = vpop.f32.mrf.mxu0
      %1219 = vmatprep.mubr.bf16.mxu0 %v617
      %1220 = vmatmul.mubr.bf16.gmra.mxu0 %v616
      %v1221 = vpop.f32.mrf.mxu0
      %v1222 = vadd.f32 %v1061, %v1221
      %v1223 = vpop.f32.mrf.mxu0
      %v1224 = vpop.f32.mrf.mxu0
      %v1225 = vadd.f32 %v1064, %v1224
      %v1226 = vpop.f32.mrf.mxu0
      %1227 = vmatprep.mubr.bf16.mxu0 %v622
      %1228 = vmatmul.mubr.bf16.gmra.mxu0 %v621
      %v1229 = vpop.f32.mrf.mxu0
      %v1230 = vadd.f32 %v1069, %v1229
      %v1231 = vpop.f32.mrf.mxu0
      %v1232 = vpop.f32.mrf.mxu0
      %v1233 = vadd.f32 %v1072, %v1232
      %v1234 = vpop.f32.mrf.mxu0
      %1235 = vmatprep.mubr.bf16.mxu0 %v627
      %1236 = vmatmul.mubr.bf16.gmra.mxu0 %v626
      %v1237 = vpop.f32.mrf.mxu0
      %v1238 = vadd.f32 %v1077, %v1237
      %v1239 = vpop.f32.mrf.mxu0
      %v1240 = vpop.f32.mrf.mxu0
      %v1241 = vadd.f32 %v1080, %v1240
      %v1242 = vpop.f32.mrf.mxu0
      %1243 = vmatprep.mubr.bf16.mxu0 %v632
      %1244 = vmatmul.mubr.bf16.gmra.mxu0 %v631
      %v1245 = vpop.f32.mrf.mxu0
      %v1246 = vadd.f32 %v1085, %v1245
      %v1247 = vpop.f32.mrf.mxu0
      %v1248 = vpop.f32.mrf.mxu0
      %v1249 = vadd.f32 %v1088, %v1248
      %v1250 = vpop.f32.mrf.mxu0
      %1251 = vmatprep.mubr.bf16.mxu0 %v637
      %1252 = vmatmul.mubr.bf16.gmra.mxu0 %v636
      %v1253 = vpop.f32.mrf.mxu0
      %v1254 = vadd.f32 %v1093, %v1253
      %v1255 = vpop.f32.mrf.mxu0
      %v1256 = vpop.f32.mrf.mxu0
      %v1257 = vadd.f32 %v1096, %v1256
      %v1258 = vpop.f32.mrf.mxu0
      %1259 = vmatprep.mubr.bf16.mxu0 %v642
      %1260 = vmatmul.mubr.bf16.gmra.mxu0 %v641
      %v1261 = vpop.f32.mrf.mxu0
      %v1262 = vadd.f32 %v1101, %v1261
      %v1263 = vpop.f32.mrf.mxu0
      %v1264 = vpop.f32.mrf.mxu0
      %v1265 = vadd.f32 %v1104, %v1264
      %v1266 = vpop.f32.mrf.mxu0
      %1267 = vmatprep.mubr.bf16.mxu0 %v647
      %1268 = vmatmul.mubr.bf16.gmra.mxu0 %v646
      %v1269 = vpop.f32.mrf.mxu0
      %v1270 = vadd.f32 %v1109, %v1269
      %v1271 = vpop.f32.mrf.mxu0
      %v1272 = vpop.f32.mrf.mxu0
      %v1273 = vadd.f32 %v1112, %v1272
      %v1274 = vpop.f32.mrf.mxu0
      %1275 = vmatprep.mubr.bf16.mxu0 %v652
      %1276 = vmatmul.mubr.bf16.gmra.mxu0 %v651
      %v1277 = vpop.f32.mrf.mxu0
      %v1278 = vadd.f32 %v1117, %v1277
      %v1279 = vpop.f32.mrf.mxu0
      %v1280 = vpop.f32.mrf.mxu0
      %v1281 = vadd.f32 %v1120, %v1280
      %v1282 = vpop.f32.mrf.mxu0
      %1283 = vmatprep.mubr.bf16.mxu0 %v657
      %1284 = vmatmul.mubr.bf16.gmra.mxu0 %v656
      %v1285 = vpop.f32.mrf.mxu0
      %v1286 = vadd.f32 %v1125, %v1285
      %v1287 = vpop.f32.mrf.mxu0
      %v1288 = vpop.f32.mrf.mxu0
      %v1289 = vadd.f32 %v1128, %v1288
      %v1290 = vpop.f32.mrf.mxu0
      %1291 = vmatprep.mubr.bf16.mxu0 %v662
      %1292 = vmatmul.mubr.bf16.gmra.mxu0 %v661
      %v1293 = vpop.f32.mrf.mxu0
      %v1294 = vadd.f32 %v1133, %v1293
      %v1295 = vpop.f32.mrf.mxu0
      %v1296 = vpop.f32.mrf.mxu0
      %v1297 = vadd.f32 %v1136, %v1296
      %v1298 = vpop.f32.mrf.mxu0
      %1299 = vmatprep.mubr.bf16.mxu0 %v667
      %1300 = vmatmul.mubr.bf16.gmra.mxu0 %v666
      %v1301 = vpop.f32.mrf.mxu0
      %v1302 = vadd.f32 %v1141, %v1301
      %v1303 = vpop.f32.mrf.mxu0
      %v1304 = vpop.f32.mrf.mxu0
      %v1305 = vadd.f32 %v1144, %v1304
      %v1306 = vpop.f32.mrf.mxu0
      %1307 = vmatprep.mubr.bf16.mxu0 %v672
      %1308 = vmatmul.mubr.bf16.gmra.mxu0 %v671
      %v1309 = vpop.f32.mrf.mxu0
      %v1310 = vadd.f32 %v1149, %v1309
      %v1311 = vpop.f32.mrf.mxu0
      %v1312 = vpop.f32.mrf.mxu0
      %v1313 = vadd.f32 %v1152, %v1312
      %v1314 = vpop.f32.mrf.mxu0
      %1315 = vmatprep.mubr.bf16.mxu0 %v677
      %1316 = vmatmul.mubr.bf16.gmra.mxu0 %v676
      %v1317 = vpop.f32.mrf.mxu0
      %v1318 = vadd.f32 %v1157, %v1317
      %v1319 = vpop.f32.mrf.mxu0
      %v1320 = vpop.f32.mrf.mxu0
      %v1321 = vadd.f32 %v1160, %v1320
      %v1322 = vpop.f32.mrf.mxu0
      %1323 = vmatprep.mubr.bf16.mxu0 %v682
      %1324 = vmatmul.mubr.bf16.gmra.mxu0 %v681
      %v1325 = vpop.f32.mrf.mxu0
      %v1326 = vadd.f32 %v1165, %v1325
      %v1327 = vpop.f32.mrf.mxu0
      %v1328 = vpop.f32.mrf.mxu0
      %v1329 = vadd.f32 %v1168, %v1328
      %v1330 = vpop.f32.mrf.mxu0
      %1331 = vmatprep.mubr.bf16.mxu0 %v687
      %1332 = vmatmul.mubr.bf16.gmra.mxu0 %v686
      %v1333 = vpop.f32.mrf.mxu0
      %v1334 = vadd.f32 %v1173, %v1333
      %v1335 = vpop.f32.mrf.mxu0
      %v1336 = vpop.f32.mrf.mxu0
      %v1337 = vadd.f32 %v1176, %v1336
      %v1338 = vpop.f32.mrf.mxu0
      %1339 = vdwg.mxu0
      %1340 = vmatprep.subr.bf16.mxu0 0
      %1341 = vmatpush1.bf16.msra.mxu0 0
      %1342 = vmatprep.subr.bf16.mxu0 0
      %1343 = vmatpush1.bf16.msra.mxu0 0
      %1344 = vmatprep.subr.bf16.mxu0 0
      %1345 = vmatpush1.bf16.msra.mxu0 0
      %1346 = vmatprep.subr.bf16.mxu0 0
      %1347 = vmatpush1.bf16.msra.mxu0 0
      %1348 = vmatprep.subr.bf16.mxu0 0
      %1349 = vmatpush1.bf16.msra.mxu0 %v932
      %1350 = vmatprep.subr.bf16.mxu0 0
      %1351 = vmatpush1.bf16.msra.mxu0 %v931
      %1352 = vmatprep.subr.bf16.mxu0 0
      %1353 = vmatpush1.bf16.msra.mxu0 %v930
      %1354 = vmatprep.subr.bf16.mxu0 0
      %1355 = vmatpush1.bf16.msra.mxu0 %v929
      %1356 = vmatprep.subr.bf16.mxu0 0
      %1357 = vmatpush2.bf16.msra.mxu0 0
      %1358 = vmatprep.subr.bf16.mxu0 0
      %1359 = vmatpush2.bf16.msra.mxu0 0
      %1360 = vmatprep.subr.bf16.mxu0 0
      %1361 = vmatpush2.bf16.msra.mxu0 0
      %1362 = vmatprep.subr.bf16.mxu0 0
      %1363 = vmatpush2.bf16.msra.mxu0 0
      %1364 = vmatprep.subr.bf16.mxu0 0
      %1365 = vmatpush2.bf16.msra.mxu0 0
      %1366 = vmatprep.subr.bf16.mxu0 0
      %1367 = vmatpush2.bf16.msra.mxu0 0
      %1368 = vmatprep.subr.bf16.mxu0 0
      %1369 = vmatpush2.bf16.msra.mxu0 0
      %1370 = vmatprep.subr.bf16.mxu0 0
      %1371 = vmatpush2.bf16.msra.mxu0 0
      %1372 = vmatprep.mubr.bf16.mxu0 0
      %1373 = vmatmul.mubr.bf16.gmra.mxu0 %v971
      %v1374 = vpop.f32.mrf.mxu0
      %v1375 = vadd.f32 %v1214, %v1374
      %v1376 = vpop.f32.mrf.mxu0
      %v1377 = vpop.f32.mrf.mxu0
      %v1378 = vadd.f32 %v1217, %v1377
      %v1379 = vpop.f32.mrf.mxu0
      %1380 = vmatprep.mubr.bf16.mxu0 0
      %1381 = vmatmul.mubr.bf16.gmra.mxu0 %v974
      %v1382 = vpop.f32.mrf.mxu0
      %v1383 = vadd.f32 %v1222, %v1382
      %v1384 = vpop.f32.mrf.mxu0
      %v1385 = vpop.f32.mrf.mxu0
      %v1386 = vadd.f32 %v1225, %v1385
      %v1387 = vpop.f32.mrf.mxu0
      %1388 = vmatprep.mubr.bf16.mxu0 0
      %1389 = vmatmul.mubr.bf16.gmra.mxu0 %v977
      %v1390 = vpop.f32.mrf.mxu0
      %v1391 = vadd.f32 %v1230, %v1390
      %v1392 = vpop.f32.mrf.mxu0
      %v1393 = vpop.f32.mrf.mxu0
      %v1394 = vadd.f32 %v1233, %v1393
      %v1395 = vpop.f32.mrf.mxu0
      %1396 = vmatprep.mubr.bf16.mxu0 0
      %1397 = vmatmul.mubr.bf16.gmra.mxu0 %v980
      %v1398 = vpop.f32.mrf.mxu0
      %v1399 = vadd.f32 %v1238, %v1398
      %v1400 = vpop.f32.mrf.mxu0
      %v1401 = vpop.f32.mrf.mxu0
      %v1402 = vadd.f32 %v1241, %v1401
      %v1403 = vpop.f32.mrf.mxu0
      %1404 = vmatprep.mubr.bf16.mxu0 0
      %1405 = vmatmul.mubr.bf16.gmra.mxu0 %v983
      %v1406 = vpop.f32.mrf.mxu0
      %v1407 = vadd.f32 %v1246, %v1406
      %v1408 = vpop.f32.mrf.mxu0
      %v1409 = vpop.f32.mrf.mxu0
      %v1410 = vadd.f32 %v1249, %v1409
      %v1411 = vpop.f32.mrf.mxu0
      %1412 = vmatprep.mubr.bf16.mxu0 0
      %1413 = vmatmul.mubr.bf16.gmra.mxu0 %v986
      %v1414 = vpop.f32.mrf.mxu0
      %v1415 = vadd.f32 %v1254, %v1414
      %v1416 = vpop.f32.mrf.mxu0
      %v1417 = vpop.f32.mrf.mxu0
      %v1418 = vadd.f32 %v1257, %v1417
      %v1419 = vpop.f32.mrf.mxu0
      %1420 = vmatprep.mubr.bf16.mxu0 0
      %1421 = vmatmul.mubr.bf16.gmra.mxu0 %v989
      %v1422 = vpop.f32.mrf.mxu0
      %v1423 = vadd.f32 %v1262, %v1422
      %v1424 = vpop.f32.mrf.mxu0
      %v1425 = vpop.f32.mrf.mxu0
      %v1426 = vadd.f32 %v1265, %v1425
      %v1427 = vpop.f32.mrf.mxu0
      %1428 = vmatprep.mubr.bf16.mxu0 0
      %1429 = vmatmul.mubr.bf16.gmra.mxu0 %v992
      %v1430 = vpop.f32.mrf.mxu0
      %v1431 = vadd.f32 %v1270, %v1430
      %v1432 = vpop.f32.mrf.mxu0
      %v1433 = vpop.f32.mrf.mxu0
      %v1434 = vadd.f32 %v1273, %v1433
      %v1435 = vpop.f32.mrf.mxu0
      %1436 = vmatprep.mubr.bf16.mxu0 0
      %1437 = vmatmul.mubr.bf16.gmra.mxu0 %v995
      %v1438 = vpop.f32.mrf.mxu0
      %v1439 = vadd.f32 %v1278, %v1438
      %v1440 = vpop.f32.mrf.mxu0
      %v1441 = vpop.f32.mrf.mxu0
      %v1442 = vadd.f32 %v1281, %v1441
      %v1443 = vpop.f32.mrf.mxu0
      %1444 = vmatprep.mubr.bf16.mxu0 0
      %1445 = vmatmul.mubr.bf16.gmra.mxu0 %v998
      %v1446 = vpop.f32.mrf.mxu0
      %v1447 = vadd.f32 %v1286, %v1446
      %v1448 = vpop.f32.mrf.mxu0
      %v1449 = vpop.f32.mrf.mxu0
      %v1450 = vadd.f32 %v1289, %v1449
      %v1451 = vpop.f32.mrf.mxu0
      %1452 = vmatprep.mubr.bf16.mxu0 0
      %1453 = vmatmul.mubr.bf16.gmra.mxu0 %v1001
      %v1454 = vpop.f32.mrf.mxu0
      %v1455 = vadd.f32 %v1294, %v1454
      %v1456 = vpop.f32.mrf.mxu0
      %v1457 = vpop.f32.mrf.mxu0
      %v1458 = vadd.f32 %v1297, %v1457
      %v1459 = vpop.f32.mrf.mxu0
      %1460 = vmatprep.mubr.bf16.mxu0 0
      %1461 = vmatmul.mubr.bf16.gmra.mxu0 %v1004
      %v1462 = vpop.f32.mrf.mxu0
      %v1463 = vadd.f32 %v1302, %v1462
      %v1464 = vpop.f32.mrf.mxu0
      %v1465 = vpop.f32.mrf.mxu0
      %v1466 = vadd.f32 %v1305, %v1465
      %v1467 = vpop.f32.mrf.mxu0
      %1468 = vmatprep.mubr.bf16.mxu0 0
      %1469 = vmatmul.mubr.bf16.gmra.mxu0 %v1007
      %v1470 = vpop.f32.mrf.mxu0
      %v1471 = vadd.f32 %v1310, %v1470
      %v1472 = vpop.f32.mrf.mxu0
      %v1473 = vpop.f32.mrf.mxu0
      %v1474 = vadd.f32 %v1313, %v1473
      %v1475 = vpop.f32.mrf.mxu0
      %1476 = vmatprep.mubr.bf16.mxu0 0
      %1477 = vmatmul.mubr.bf16.gmra.mxu0 %v1010
      %v1478 = vpop.f32.mrf.mxu0
      %v1479 = vadd.f32 %v1318, %v1478
      %v1480 = vpop.f32.mrf.mxu0
      %v1481 = vpop.f32.mrf.mxu0
      %v1482 = vadd.f32 %v1321, %v1481
      %v1483 = vpop.f32.mrf.mxu0
      %1484 = vmatprep.mubr.bf16.mxu0 0
      %1485 = vmatmul.mubr.bf16.gmra.mxu0 %v1013
      %v1486 = vpop.f32.mrf.mxu0
      %v1487 = vadd.f32 %v1326, %v1486
      %v1488 = vpop.f32.mrf.mxu0
      %v1489 = vpop.f32.mrf.mxu0
      %v1490 = vadd.f32 %v1329, %v1489
      %v1491 = vpop.f32.mrf.mxu0
      %1492 = vmatprep.mubr.bf16.mxu0 0
      %1493 = vmatmul.mubr.bf16.gmra.mxu0 %v1016
      %v1494 = vpop.f32.mrf.mxu0
      %v1495 = vadd.f32 %v1334, %v1494
      %v1496 = vpop.f32.mrf.mxu0
      %v1497 = vpop.f32.mrf.mxu0
      %v1498 = vadd.f32 %v1337, %v1497
      %v1499 = vpop.f32.mrf.mxu0
      %1500 = vdwg.mxu0
      %v1501 = vxor.u32 %v1375, 2147483648
      %v1502 = vxor.u32 %v1378, 2147483648
      %v1503 = vxor.u32 %v1383, 2147483648
      %v1504 = vxor.u32 %v1386, 2147483648
      %v1505 = vxor.u32 %v1391, 2147483648
      %v1506 = vxor.u32 %v1394, 2147483648
      %v1507 = vxor.u32 %v1399, 2147483648
      %v1508 = vxor.u32 %v1402, 2147483648
      %v1509 = vxor.u32 %v1407, 2147483648
      %v1510 = vxor.u32 %v1410, 2147483648
      %v1511 = vxor.u32 %v1415, 2147483648
      %v1512 = vxor.u32 %v1418, 2147483648
      %v1513 = vxor.u32 %v1423, 2147483648
      %v1514 = vxor.u32 %v1426, 2147483648
      %v1515 = vxor.u32 %v1431, 2147483648
      %v1516 = vxor.u32 %v1434, 2147483648
      %v1517 = vxor.u32 %v1439, 2147483648
      %v1518 = vxor.u32 %v1442, 2147483648
      %v1519 = vxor.u32 %v1447, 2147483648
      %v1520 = vxor.u32 %v1450, 2147483648
      %v1521 = vxor.u32 %v1455, 2147483648
      %v1522 = vxor.u32 %v1458, 2147483648
      %v1523 = vxor.u32 %v1463, 2147483648
      %v1524 = vxor.u32 %v1466, 2147483648
      %v1525 = vxor.u32 %v1471, 2147483648
      %v1526 = vxor.u32 %v1474, 2147483648
      %v1527 = vxor.u32 %v1479, 2147483648
      %v1528 = vxor.u32 %v1482, 2147483648
      %v1529 = vxor.u32 %v1487, 2147483648
      %v1530 = vxor.u32 %v1490, 2147483648
      %v1531 = vxor.u32 %v1495, 2147483648
      %v1532 = vxor.u32 %v1498, 2147483648
      %v1533 = vmul.f32 %v1501, 1.442695
      %v1534 = vpow.pop %v1533
      %v1535 = vmul.f32 %v1502, 1.442695
      %v1536 = vpow.pop %v1535
      %v1537 = vmul.f32 %v1503, 1.442695
      %v1538 = vpow.pop %v1537
      %v1539 = vmul.f32 %v1504, 1.442695
      %v1540 = vpow.pop %v1539
      %v1541 = vmul.f32 %v1505, 1.442695
      %v1542 = vpow.pop %v1541
      %v1543 = vmul.f32 %v1506, 1.442695
      %v1544 = vpow.pop %v1543
      %v1545 = vmul.f32 %v1507, 1.442695
      %v1546 = vpow.pop %v1545
      %v1547 = vmul.f32 %v1508, 1.442695
      %v1548 = vpow.pop %v1547
      %v1549 = vmul.f32 %v1509, 1.442695
      %v1550 = vpow.pop %v1549
      %v1551 = vmul.f32 %v1510, 1.442695
      %v1552 = vpow.pop %v1551
      %v1553 = vmul.f32 %v1511, 1.442695
      %v1554 = vpow.pop %v1553
      %v1555 = vmul.f32 %v1512, 1.442695
      %v1556 = vpow.pop %v1555
      %v1557 = vmul.f32 %v1513, 1.442695
      %v1558 = vpow.pop %v1557
      %v1559 = vmul.f32 %v1514, 1.442695
      %v1560 = vpow.pop %v1559
      %v1561 = vmul.f32 %v1515, 1.442695
      %v1562 = vpow.pop %v1561
      %v1563 = vmul.f32 %v1516, 1.442695
      %v1564 = vpow.pop %v1563
      %v1565 = vmul.f32 %v1517, 1.442695
      %v1566 = vpow.pop %v1565
      %v1567 = vmul.f32 %v1518, 1.442695
      %v1568 = vpow.pop %v1567
      %v1569 = vmul.f32 %v1519, 1.442695
      %v1570 = vpow.pop %v1569
      %v1571 = vmul.f32 %v1520, 1.442695
      %v1572 = vpow.pop %v1571
      %v1573 = vmul.f32 %v1521, 1.442695
      %v1574 = vpow.pop %v1573
      %v1575 = vmul.f32 %v1522, 1.442695
      %v1576 = vpow.pop %v1575
      %v1577 = vmul.f32 %v1523, 1.442695
      %v1578 = vpow.pop %v1577
      %v1579 = vmul.f32 %v1524, 1.442695
      %v1580 = vpow.pop %v1579
      %v1581 = vmul.f32 %v1525, 1.442695
      %v1582 = vpow.pop %v1581
      %v1583 = vmul.f32 %v1526, 1.442695
      %v1584 = vpow.pop %v1583
      %v1585 = vmul.f32 %v1527, 1.442695
      %v1586 = vpow.pop %v1585
      %v1587 = vmul.f32 %v1528, 1.442695
      %v1588 = vpow.pop %v1587
      %v1589 = vmul.f32 %v1529, 1.442695
      %v1590 = vpow.pop %v1589
      %v1591 = vmul.f32 %v1530, 1.442695
      %v1592 = vpow.pop %v1591
      %v1593 = vmul.f32 %v1531, 1.442695
      %v1594 = vpow.pop %v1593
      %v1595 = vmul.f32 %v1532, 1.442695
      %v1596 = vpow.pop %v1595
      %v1597 = vadd.f32 %v1534, 1.0
      %v1598 = vadd.f32 %v1536, 1.0
      %v1599 = vadd.f32 %v1538, 1.0
      %v1600 = vadd.f32 %v1540, 1.0
      %v1601 = vadd.f32 %v1542, 1.0
      %v1602 = vadd.f32 %v1544, 1.0
      %v1603 = vadd.f32 %v1546, 1.0
      %v1604 = vadd.f32 %v1548, 1.0
      %v1605 = vadd.f32 %v1550, 1.0
      %v1606 = vadd.f32 %v1552, 1.0
      %v1607 = vadd.f32 %v1554, 1.0
      %v1608 = vadd.f32 %v1556, 1.0
      %v1609 = vadd.f32 %v1558, 1.0
      %v1610 = vadd.f32 %v1560, 1.0
      %v1611 = vadd.f32 %v1562, 1.0
      %v1612 = vadd.f32 %v1564, 1.0
      %v1613 = vadd.f32 %v1566, 1.0
      %v1614 = vadd.f32 %v1568, 1.0
      %v1615 = vadd.f32 %v1570, 1.0
      %v1616 = vadd.f32 %v1572, 1.0
      %v1617 = vadd.f32 %v1574, 1.0
      %v1618 = vadd.f32 %v1576, 1.0
      %v1619 = vadd.f32 %v1578, 1.0
      %v1620 = vadd.f32 %v1580, 1.0
      %v1621 = vadd.f32 %v1582, 1.0
      %v1622 = vadd.f32 %v1584, 1.0
      %v1623 = vadd.f32 %v1586, 1.0
      %v1624 = vadd.f32 %v1588, 1.0
      %v1625 = vadd.f32 %v1590, 1.0
      %v1626 = vadd.f32 %v1592, 1.0
      %v1627 = vadd.f32 %v1594, 1.0
      %v1628 = vadd.f32 %v1596, 1.0
      %v1629 = vrcp.pop %v1597
      %v1630 = vmul.f32 1.0, %v1629
      %v1631 = vrcp.pop %v1598
      %v1632 = vmul.f32 1.0, %v1631
      %v1633 = vrcp.pop %v1599
      %v1634 = vmul.f32 1.0, %v1633
      %v1635 = vrcp.pop %v1600
      %v1636 = vmul.f32 1.0, %v1635
      %v1637 = vrcp.pop %v1601
      %v1638 = vmul.f32 1.0, %v1637
      %v1639 = vrcp.pop %v1602
      %v1640 = vmul.f32 1.0, %v1639
      %v1641 = vrcp.pop %v1603
      %v1642 = vmul.f32 1.0, %v1641
      %v1643 = vrcp.pop %v1604
      %v1644 = vmul.f32 1.0, %v1643
      %v1645 = vrcp.pop %v1605
      %v1646 = vmul.f32 1.0, %v1645
      %v1647 = vrcp.pop %v1606
      %v1648 = vmul.f32 1.0, %v1647
      %v1649 = vrcp.pop %v1607
      %v1650 = vmul.f32 1.0, %v1649
      %v1651 = vrcp.pop %v1608
      %v1652 = vmul.f32 1.0, %v1651
      %v1653 = vrcp.pop %v1609
      %v1654 = vmul.f32 1.0, %v1653
      %v1655 = vrcp.pop %v1610
      %v1656 = vmul.f32 1.0, %v1655
      %v1657 = vrcp.pop %v1611
      %v1658 = vmul.f32 1.0, %v1657
      %v1659 = vrcp.pop %v1612
      %v1660 = vmul.f32 1.0, %v1659
      %v1661 = vrcp.pop %v1613
      %v1662 = vmul.f32 1.0, %v1661
      %v1663 = vrcp.pop %v1614
      %v1664 = vmul.f32 1.0, %v1663
      %v1665 = vrcp.pop %v1615
      %v1666 = vmul.f32 1.0, %v1665
      %v1667 = vrcp.pop %v1616
      %v1668 = vmul.f32 1.0, %v1667
      %v1669 = vrcp.pop %v1617
      %v1670 = vmul.f32 1.0, %v1669
      %v1671 = vrcp.pop %v1618
      %v1672 = vmul.f32 1.0, %v1671
      %v1673 = vrcp.pop %v1619
      %v1674 = vmul.f32 1.0, %v1673
      %v1675 = vrcp.pop %v1620
      %v1676 = vmul.f32 1.0, %v1675
      %v1677 = vrcp.pop %v1621
      %v1678 = vmul.f32 1.0, %v1677
      %v1679 = vrcp.pop %v1622
      %v1680 = vmul.f32 1.0, %v1679
      %v1681 = vrcp.pop %v1623
      %v1682 = vmul.f32 1.0, %v1681
      %v1683 = vrcp.pop %v1624
      %v1684 = vmul.f32 1.0, %v1683
      %v1685 = vrcp.pop %v1625
      %v1686 = vmul.f32 1.0, %v1685
      %v1687 = vrcp.pop %v1626
      %v1688 = vmul.f32 1.0, %v1687
      %v1689 = vrcp.pop %v1627
      %v1690 = vmul.f32 1.0, %v1689
      %v1691 = vrcp.pop %v1628
      %v1692 = vmul.f32 1.0, %v1691
      %v1693 = vmax.f32 %v1630, 0.0001
      %v1694 = vmax.f32 %v1632, 0.0001
      %v1695 = vmax.f32 %v1634, 0.0001
      %v1696 = vmax.f32 %v1636, 0.0001
      %v1697 = vmax.f32 %v1638, 0.0001
      %v1698 = vmax.f32 %v1640, 0.0001
      %v1699 = vmax.f32 %v1642, 0.0001
      %v1700 = vmax.f32 %v1644, 0.0001
      %v1701 = vmax.f32 %v1646, 0.0001
      %v1702 = vmax.f32 %v1648, 0.0001
      %v1703 = vmax.f32 %v1650, 0.0001
      %v1704 = vmax.f32 %v1652, 0.0001
      %v1705 = vmax.f32 %v1654, 0.0001
      %v1706 = vmax.f32 %v1656, 0.0001
      %v1707 = vmax.f32 %v1658, 0.0001
      %v1708 = vmax.f32 %v1660, 0.0001
      %v1709 = vmax.f32 %v1662, 0.0001
      %v1710 = vmax.f32 %v1664, 0.0001
      %v1711 = vmax.f32 %v1666, 0.0001
      %v1712 = vmax.f32 %v1668, 0.0001
      %v1713 = vmax.f32 %v1670, 0.0001
      %v1714 = vmax.f32 %v1672, 0.0001
      %v1715 = vmax.f32 %v1674, 0.0001
      %v1716 = vmax.f32 %v1676, 0.0001
      %v1717 = vmax.f32 %v1678, 0.0001
      %v1718 = vmax.f32 %v1680, 0.0001
      %v1719 = vmax.f32 %v1682, 0.0001
      %v1720 = vmax.f32 %v1684, 0.0001
      %v1721 = vmax.f32 %v1686, 0.0001
      %v1722 = vmax.f32 %v1688, 0.0001
      %v1723 = vmax.f32 %v1690, 0.0001
      %v1724 = vmax.f32 %v1692, 0.0001
      %v1725 = vmin.f32 %v1693, 1.0
      %v1726 = vmin.f32 %v1694, 1.0
      %v1727 = vmin.f32 %v1695, 1.0
      %v1728 = vmin.f32 %v1696, 1.0
      %v1729 = vmin.f32 %v1697, 1.0
      %v1730 = vmin.f32 %v1698, 1.0
      %v1731 = vmin.f32 %v1699, 1.0
      %v1732 = vmin.f32 %v1700, 1.0
      %v1733 = vmin.f32 %v1701, 1.0
      %v1734 = vmin.f32 %v1702, 1.0
      %v1735 = vmin.f32 %v1703, 1.0
      %v1736 = vmin.f32 %v1704, 1.0
      %v1737 = vmin.f32 %v1705, 1.0
      %v1738 = vmin.f32 %v1706, 1.0
      %v1739 = vmin.f32 %v1707, 1.0
      %v1740 = vmin.f32 %v1708, 1.0
      %v1741 = vmin.f32 %v1709, 1.0
      %v1742 = vmin.f32 %v1710, 1.0
      %v1743 = vmin.f32 %v1711, 1.0
      %v1744 = vmin.f32 %v1712, 1.0
      %v1745 = vmin.f32 %v1713, 1.0
      %v1746 = vmin.f32 %v1714, 1.0
      %v1747 = vmin.f32 %v1715, 1.0
      %v1748 = vmin.f32 %v1716, 1.0
      %v1749 = vmin.f32 %v1717, 1.0
      %v1750 = vmin.f32 %v1718, 1.0
      %v1751 = vmin.f32 %v1719, 1.0
      %v1752 = vmin.f32 %v1720, 1.0
      %v1753 = vmin.f32 %v1721, 1.0
      %v1754 = vmin.f32 %v1722, 1.0
      %v1755 = vmin.f32 %v1723, 1.0
      %v1756 = vmin.f32 %v1724, 1.0
      %vm1757 = vcmask 23552
      %1758 = vst.msk [vmem:[%s175] sm:$0xff] %vm1757, %v1725
      %1759 = vst.msk [vmem:[%s175 + $0x8] sm:$0xff] %vm1757, %v1726
      %1760 = vst.msk [vmem:[%s175 + $0x10] sm:$0xff] %vm1757, %v1727
      %1761 = vst.msk [vmem:[%s175 + $0x18] sm:$0xff] %vm1757, %v1728
      %1762 = vst.msk [vmem:[%s175 + $0x20] sm:$0xff] %vm1757, %v1729
      %1763 = vst.msk [vmem:[%s175 + $0x28] sm:$0xff] %vm1757, %v1730
      %1764 = vst.msk [vmem:[%s175 + $0x30] sm:$0xff] %vm1757, %v1731
      %1765 = vst.msk [vmem:[%s175 + $0x38] sm:$0xff] %vm1757, %v1732
      %1766 = vst.msk [vmem:[%s175 + $0x40] sm:$0xff] %vm1757, %v1733
      %1767 = vst.msk [vmem:[%s175 + $0x48] sm:$0xff] %vm1757, %v1734
      %1768 = vst.msk [vmem:[%s175 + $0x50] sm:$0xff] %vm1757, %v1735
      %1769 = vst.msk [vmem:[%s175 + $0x58] sm:$0xff] %vm1757, %v1736
      %1770 = vst.msk [vmem:[%s175 + $0x60] sm:$0xff] %vm1757, %v1737
      %1771 = vst.msk [vmem:[%s175 + $0x68] sm:$0xff] %vm1757, %v1738
      %1772 = vst.msk [vmem:[%s175 + $0x70] sm:$0xff] %vm1757, %v1739
      %1773 = vst.msk [vmem:[%s175 + $0x78] sm:$0xff] %vm1757, %v1740
      %1774 = vst.msk [vmem:[%s175 + $0x80] sm:$0xff] %vm1757, %v1741
      %1775 = vst.msk [vmem:[%s175 + $0x88] sm:$0xff] %vm1757, %v1742
      %1776 = vst.msk [vmem:[%s175 + $0x90] sm:$0xff] %vm1757, %v1743
      %1777 = vst.msk [vmem:[%s175 + $0x98] sm:$0xff] %vm1757, %v1744
      %1778 = vst.msk [vmem:[%s175 + $0xa0] sm:$0xff] %vm1757, %v1745
      %1779 = vst.msk [vmem:[%s175 + $0xa8] sm:$0xff] %vm1757, %v1746
      %1780 = vst.msk [vmem:[%s175 + $0xb0] sm:$0xff] %vm1757, %v1747
      %1781 = vst.msk [vmem:[%s175 + $0xb8] sm:$0xff] %vm1757, %v1748
      %1782 = vst.msk [vmem:[%s175 + $0xc0] sm:$0xff] %vm1757, %v1749
      %1783 = vst.msk [vmem:[%s175 + $0xc8] sm:$0xff] %vm1757, %v1750
      %1784 = vst.msk [vmem:[%s175 + $0xd0] sm:$0xff] %vm1757, %v1751
      %1785 = vst.msk [vmem:[%s175 + $0xd8] sm:$0xff] %vm1757, %v1752
      %1786 = vst.msk [vmem:[%s175 + $0xe0] sm:$0xff] %vm1757, %v1753
      %1787 = vst.msk [vmem:[%s175 + $0xe8] sm:$0xff] %vm1757, %v1754
      %1788 = vst.msk [vmem:[%s175 + $0xf0] sm:$0xff] %vm1757, %v1755
      %1789 = vst.msk [vmem:[%s175 + $0xf8] sm:$0xff] %vm1757, %v1756
      %s1790 = smul.u32 32, %s14
      %p1791 = scmp.lt.s32.totalorder %s1790, 63
      %s1792 = scalar_select %p1791, %s1790, 63
      %s1793 = smul.addr %s1792, 8
      %s1794 = scalar_lea.vmem %s3, %s1793
      // Predicated region
      $region33: #{network_forward.15} parent=31 // pred_check
        %p1795 = pneg %p100
      $region34: #{network_forward.15} parent=31 // pred_check_branch
        %1797 = sbr.rel (%p1795) target = $region36
      $region35: #{network_forward.15} parent=31 // pred_region
        %s1798 = smul.u32 32, %s14
      $region36: #{network_forward.15} parent=31 // pred_fallthru
        _
    $region32: #{network_forward.15} parent=5 // pred_fallthru
      _
    %p1799 = scmp.le.s32.totalorder 2, %s9
    // Predicated region
    $region37: #{network_forward.15} parent=5 // pred_check
      %p1800 = pneg %p1799
    $region38: #{network_forward.15} parent=5 // pred_check_branch
      %1802 = sbr.rel (%p1800) target = $region40
    $region39: #{network_forward.15} parent=5 // pred_region
      %s1803 = ssub.s32 %s9, 2
      // Predicated region
      $region41: #{network_forward.15} parent=39 // pred_check
        %p1804 = pneg %p106
      $region42: #{network_forward.15} parent=39 // pred_check_branch
        %1806 = sbr.rel (%p1804) target = $region44
      $region43: #{network_forward.15} parent=39 // pred_region
        %s1807 = smul.u32 32, %s15
        %p1808 = scmp.lt.s32.totalorder %s1807, 63
        %s1809 = scalar_select %p1808, %s1807, 63
        %s1810 = smul.addr %s1809, 8
        %s1811 = scalar_lea.vmem %s3, %s1810
      $region44: #{network_forward.15} parent=39 // pred_fallthru
        _
    $region40: #{network_forward.15} parent=5 // pred_fallthru
      _
  $region6: #{network_forward.15} parent=0 // loop_footer
    %s13 = sadd.s32 1, %s9
  $region7: #{network_forward.15} parent=0 // loop_footer_branch
    %8 = sbr.rel target = $region3
  $region8: #{network_forward.15} parent=0 // loop_exit
    _

// kernel: network_forward.12
$region0: #{network_forward.12}
  #allocation0 [shape = 'u32[]', space=smem, size = 0x4, offset = 0x4, fixed_abs, tag = 'smem constant byte address 0x4 - core index']
  #allocation1 [shape = 'u32[144,128]{1,0:T(1,128)}', space=vmem, size = 0x12000, scoped, tag = 'internal scratch']
  %s0 = inlined_call_operand.vmem [shape: bf16[512,576], index: 0, kind: input, shape index: {}]
  %s1 = inlined_call_operand.vmem [shape: bf16[576,64], index: 1, kind: input, shape index: {}]
  %s2 = inlined_call_operand.vmem [shape: f32[1,64], index: 2, kind: input, shape index: {}]
  %s3 = inlined_call_operand.vmem [shape: f32[1,64], index: 3, kind: input, shape index: {}]
  %s4 = inlined_call_operand.vmem [shape: f32[1,64], index: 4, kind: input, shape index: {}]
  %s5 = inlined_call_operand.vmem [shape: f32[512,64], index: 5, kind: input, shape index: {}]
  %s6 = inlined_call_operand.vmem [shape: f32[512,64], index: 6, kind: output, shape index: {}]
  %s7 = sld [smem:[#allocation0]]
  $region34: #{network_forward.12} parent=0
    _
  %s9 = ssub.s32 1, %s7
  %s10 = scalar_select 0, %s9, %s7
  // Predicated region
  $region2: #{network_forward.12} parent=0 // pred_check
    _
  $region3: #{network_forward.12} parent=0 // pred_check_branch
    %12 = sbr.rel (0) target = $region5
  $region4: #{network_forward.12} parent=0 // pred_region
    _
  $region5: #{network_forward.12} parent=0 // pred_fallthru
    _
  // Predicated region
  $region6: #{network_forward.12} parent=0 // pred_check
    _
  $region7: #{network_forward.12} parent=0 // pred_check_branch
    %14 = sbr.rel (0) target = $region9
  $region8: #{network_forward.12} parent=0 // pred_region
    _
  $region9: #{network_forward.12} parent=0 // pred_fallthru
    _
  // Predicated region
  $region10: #{network_forward.12} parent=0 // pred_check
    _
  $region11: #{network_forward.12} parent=0 // pred_check_branch
    %16 = sbr.rel (0) target = $region13
  $region12: #{network_forward.12} parent=0 // pred_region
    _
  $region13: #{network_forward.12} parent=0 // pred_fallthru
    _
  // Predicated region
  $region14: #{network_forward.12} parent=0 // pred_check
    _
  $region15: #{network_forward.12} parent=0 // pred_check_branch
    %18 = sbr.rel (0) target = $region17
  $region16: #{network_forward.12} parent=0 // pred_region
    _
  $region17: #{network_forward.12} parent=0 // pred_fallthru
    _
  // Predicated region
  $region18: #{network_forward.12} parent=0 // pred_check
    _
  $region19: #{network_forward.12} parent=0 // pred_check_branch
    %20 = sbr.rel (0) target = $region21
  $region20: #{network_forward.12} parent=0 // pred_region
    _
  $region21: #{network_forward.12} parent=0 // pred_fallthru
    _
  // Predicated region
  $region22: #{network_forward.12} parent=0 // pred_check
    _
  $region23: #{network_forward.12} parent=0 // pred_check_branch
    %22 = sbr.rel (0) target = $region25
  $region24: #{network_forward.12} parent=0 // pred_region
    _
  $region25: #{network_forward.12} parent=0 // pred_fallthru
    _
  %v24 = vld [vmem:[%s0] sm:$0xff]
  %v25 = vld [vmem:[%s0 + $0x8] sm:$0xff]
  %v26 = vld [vmem:[%s0 + $0x10] sm:$0xf]
  %v27 = vld [vmem:[%s0 + $0x14] sm:$0xff]
  %v28 = vld [vmem:[%s0 + $0x1c] sm:$0xff]
  %v29 = vld [vmem:[%s0 + $0x24] sm:$0xf]
  %v30 = vld [vmem:[%s0 + $0x28] sm:$0xff]
  %v31 = vld [vmem:[%s0 + $0x30] sm:$0xff]
  %v32 = vld [vmem:[%s0 + $0x38] sm:$0xf]
  %v33 = vld [vmem:[%s0 + $0x3c] sm:$0xff]
  %v34 = vld [vmem:[%s0 + $0x44] sm:$0xff]
  %v35 = vld [vmem:[%s0 + $0x4c] sm:$0xf]
  %v36 = vld [vmem:[%s0 + $0x50] sm:$0xff]
  %v37 = vld [vmem:[%s0 + $0x58] sm:$0xff]
  %v38 = vld [vmem:[%s0 + $0x60] sm:$0xf]
  %v39 = vld [vmem:[%s0 + $0x64] sm:$0xff]
  %v40 = vld [vmem:[%s0 + $0x6c] sm:$0xff]
  %v41 = vld [vmem:[%s0 + $0x74] sm:$0xf]
  %v42 = vld [vmem:[%s0 + $0x78] sm:$0xff]
  %v43 = vld [vmem:[%s0 + $0x80] sm:$0xff]
  %v44 = vld [vmem:[%s0 + $0x88] sm:$0xf]
  %v45 = vld [vmem:[%s0 + $0x8c] sm:$0xff]
  %v46 = vld [vmem:[%s0 + $0x94] sm:$0xff]
  %v47 = vld [vmem:[%s0 + $0x9c] sm:$0xf]
  %v48 = vld [vmem:[%s0 + $0xa0] sm:$0xff]
  %v49 = vld [vmem:[%s0 + $0xa8] sm:$0xff]
  %v50 = vld [vmem:[%s0 + $0xb0] sm:$0xf]
  %v51 = vld [vmem:[%s0 + $0xb4] sm:$0xff]
  %v52 = vld [vmem:[%s0 + $0xbc] sm:$0xff]
  %v53 = vld [vmem:[%s0 + $0xc4] sm:$0xf]
  %v54 = vld [vmem:[%s0 + $0xc8] sm:$0xff]
  %v55 = vld [vmem:[%s0 + $0xd0] sm:$0xff]
  %v56 = vld [vmem:[%s0 + $0xd8] sm:$0xf]
  %v57 = vld [vmem:[%s0 + $0xdc] sm:$0xff]
  %v58 = vld [vmem:[%s0 + $0xe4] sm:$0xff]
  %v59 = vld [vmem:[%s0 + $0xec] sm:$0xf]
  %v60 = vld [vmem:[%s0 + $0xf0] sm:$0xff]
  %v61 = vld [vmem:[%s0 + $0xf8] sm:$0xff]
  %v62 = vld [vmem:[%s0 + $0x100] sm:$0xf]
  %v63 = vld [vmem:[%s0 + $0x104] sm:$0xff]
  %v64 = vld [vmem:[%s0 + $0x10c] sm:$0xff]
  %v65 = vld [vmem:[%s0 + $0x114] sm:$0xf]
  %v66 = vld [vmem:[%s0 + $0x118] sm:$0xff]
  %v67 = vld [vmem:[%s0 + $0x120] sm:$0xff]
  %v68 = vld [vmem:[%s0 + $0x128] sm:$0xf]
  %v69 = vld [vmem:[%s0 + $0x12c] sm:$0xff]
  %v70 = vld [vmem:[%s0 + $0x134] sm:$0xff]
  %v71 = vld [vmem:[%s0 + $0x13c] sm:$0xf]
  %v72 = vld [vmem:[%s0 + $0x140] sm:$0xff]
  %v73 = vld [vmem:[%s0 + $0x148] sm:$0xff]
  %v74 = vld [vmem:[%s0 + $0x150] sm:$0xf]
  %v75 = vld [vmem:[%s0 + $0x154] sm:$0xff]
  %v76 = vld [vmem:[%s0 + $0x15c] sm:$0xff]
  %v77 = vld [vmem:[%s0 + $0x164] sm:$0xf]
  %v78 = vld [vmem:[%s0 + $0x168] sm:$0xff]
  %v79 = vld [vmem:[%s0 + $0x170] sm:$0xff]
  %v80 = vld [vmem:[%s0 + $0x178] sm:$0xf]
  %v81 = vld [vmem:[%s0 + $0x17c] sm:$0xff]
  %v82 = vld [vmem:[%s0 + $0x184] sm:$0xff]
  %v83 = vld [vmem:[%s0 + $0x18c] sm:$0xf]
  %v84 = vld [vmem:[%s0 + $0x190] sm:$0xff]
  %v85 = vld [vmem:[%s0 + $0x198] sm:$0xff]
  %v86 = vld [vmem:[%s0 + $0x1a0] sm:$0xf]
  %v87 = vld [vmem:[%s0 + $0x1a4] sm:$0xff]
  %v88 = vld [vmem:[%s0 + $0x1ac] sm:$0xff]
  %v89 = vld [vmem:[%s0 + $0x1b4] sm:$0xf]
  %v90 = vld [vmem:[%s0 + $0x1b8] sm:$0xff]
  %v91 = vld [vmem:[%s0 + $0x1c0] sm:$0xff]
  %v92 = vld [vmem:[%s0 + $0x1c8] sm:$0xf]
  %v93 = vld [vmem:[%s0 + $0x1cc] sm:$0xff]
  %v94 = vld [vmem:[%s0 + $0x1d4] sm:$0xff]
  %v95 = vld [vmem:[%s0 + $0x1dc] sm:$0xf]
  %v96 = vld [vmem:[%s0 + $0x1e0] sm:$0xff]
  %v97 = vld [vmem:[%s0 + $0x1e8] sm:$0xff]
  %v98 = vld [vmem:[%s0 + $0x1f0] sm:$0xf]
  %v99 = vld [vmem:[%s0 + $0x1f4] sm:$0xff]
  %v100 = vld [vmem:[%s0 + $0x1fc] sm:$0xff]
  %v101 = vld [vmem:[%s0 + $0x204] sm:$0xf]
  %v102 = vld [vmem:[%s0 + $0x208] sm:$0xff]
  %v103 = vld [vmem:[%s0 + $0x210] sm:$0xff]
  %v104 = vld [vmem:[%s0 + $0x218] sm:$0xf]
  %v105 = vld [vmem:[%s0 + $0x21c] sm:$0xff]
  %v106 = vld [vmem:[%s0 + $0x224] sm:$0xff]
  %v107 = vld [vmem:[%s0 + $0x22c] sm:$0xf]
  %v108 = vld [vmem:[%s0 + $0x230] sm:$0xff]
  %v109 = vld [vmem:[%s0 + $0x238] sm:$0xff]
  %v110 = vld [vmem:[%s0 + $0x240] sm:$0xf]
  %v111 = vld [vmem:[%s0 + $0x244] sm:$0xff]
  %v112 = vld [vmem:[%s0 + $0x24c] sm:$0xff]
  %v113 = vld [vmem:[%s0 + $0x254] sm:$0xf]
  %v114 = vld [vmem:[%s0 + $0x258] sm:$0xff]
  %v115 = vld [vmem:[%s0 + $0x260] sm:$0xff]
  %v116 = vld [vmem:[%s0 + $0x268] sm:$0xf]
  %v117 = vld [vmem:[%s0 + $0x26c] sm:$0xff]
  %v118 = vld [vmem:[%s0 + $0x274] sm:$0xff]
  %v119 = vld [vmem:[%s0 + $0x27c] sm:$0xf]
  %v120 = vld [vmem:[%s0 + $0x280] sm:$0xff]
  %v121 = vld [vmem:[%s0 + $0x288] sm:$0xff]
  %v122 = vld [vmem:[%s0 + $0x290] sm:$0xf]
  %v123 = vld [vmem:[%s0 + $0x294] sm:$0xff]
  %v124 = vld [vmem:[%s0 + $0x29c] sm:$0xff]
  %v125 = vld [vmem:[%s0 + $0x2a4] sm:$0xf]
  %v126 = vld [vmem:[%s0 + $0x2a8] sm:$0xff]
  %v127 = vld [vmem:[%s0 + $0x2b0] sm:$0xff]
  %v128 = vld [vmem:[%s0 + $0x2b8] sm:$0xf]
  %v129 = vld [vmem:[%s0 + $0x2bc] sm:$0xff]
  %v130 = vld [vmem:[%s0 + $0x2c4] sm:$0xff]
  %v131 = vld [vmem:[%s0 + $0x2cc] sm:$0xf]
  %v132 = vld [vmem:[%s0 + $0x2d0] sm:$0xff]
  %v133 = vld [vmem:[%s0 + $0x2d8] sm:$0xff]
  %v134 = vld [vmem:[%s0 + $0x2e0] sm:$0xf]
  %v135 = vld [vmem:[%s0 + $0x2e4] sm:$0xff]
  %v136 = vld [vmem:[%s0 + $0x2ec] sm:$0xff]
  %v137 = vld [vmem:[%s0 + $0x2f4] sm:$0xf]
  %v138 = vld [vmem:[%s0 + $0x2f8] sm:$0xff]
  %v139 = vld [vmem:[%s0 + $0x300] sm:$0xff]
  %v140 = vld [vmem:[%s0 + $0x308] sm:$0xf]
  %v141 = vld [vmem:[%s0 + $0x30c] sm:$0xff]
  %v142 = vld [vmem:[%s0 + $0x314] sm:$0xff]
  %v143 = vld [vmem:[%s0 + $0x31c] sm:$0xf]
  %v144 = vld [vmem:[%s0 + $0x320] sm:$0xff]
  %v145 = vld [vmem:[%s0 + $0x328] sm:$0xff]
  %v146 = vld [vmem:[%s0 + $0x330] sm:$0xf]
  %v147 = vld [vmem:[%s0 + $0x334] sm:$0xff]
  %v148 = vld [vmem:[%s0 + $0x33c] sm:$0xff]
  %v149 = vld [vmem:[%s0 + $0x344] sm:$0xf]
  %v150 = vld [vmem:[%s0 + $0x348] sm:$0xff]
  %v151 = vld [vmem:[%s0 + $0x350] sm:$0xff]
  %v152 = vld [vmem:[%s0 + $0x358] sm:$0xf]
  %v153 = vld [vmem:[%s0 + $0x35c] sm:$0xff]
  %v154 = vld [vmem:[%s0 + $0x364] sm:$0xff]
  %v155 = vld [vmem:[%s0 + $0x36c] sm:$0xf]
  %v156 = vld [vmem:[%s0 + $0x370] sm:$0xff]
  %v157 = vld [vmem:[%s0 + $0x378] sm:$0xff]
  %v158 = vld [vmem:[%s0 + $0x380] sm:$0xf]
  %v159 = vld [vmem:[%s0 + $0x384] sm:$0xff]
  %v160 = vld [vmem:[%s0 + $0x38c] sm:$0xff]
  %v161 = vld [vmem:[%s0 + $0x394] sm:$0xf]
  %v162 = vld [vmem:[%s0 + $0x398] sm:$0xff]
  %v163 = vld [vmem:[%s0 + $0x3a0] sm:$0xff]
  %v164 = vld [vmem:[%s0 + $0x3a8] sm:$0xf]
  %v165 = vld [vmem:[%s0 + $0x3ac] sm:$0xff]
  %v166 = vld [vmem:[%s0 + $0x3b4] sm:$0xff]
  %v167 = vld [vmem:[%s0 + $0x3bc] sm:$0xf]
  %v168 = vld [vmem:[%s0 + $0x3c0] sm:$0xff]
  %v169 = vld [vmem:[%s0 + $0x3c8] sm:$0xff]
  %v170 = vld [vmem:[%s0 + $0x3d0] sm:$0xf]
  %v171 = vld [vmem:[%s0 + $0x3d4] sm:$0xff]
  %v172 = vld [vmem:[%s0 + $0x3dc] sm:$0xff]
  %v173 = vld [vmem:[%s0 + $0x3e4] sm:$0xf]
  %v174 = vld [vmem:[%s0 + $0x3e8] sm:$0xff]
  %v175 = vld [vmem:[%s0 + $0x3f0] sm:$0xff]
  %v176 = vld [vmem:[%s0 + $0x3f8] sm:$0xf]
  %v177 = vld [vmem:[%s0 + $0x3fc] sm:$0xff]
  %v178 = vld [vmem:[%s0 + $0x404] sm:$0xff]
  %v179 = vld [vmem:[%s0 + $0x40c] sm:$0xf]
  %v180 = vld [vmem:[%s0 + $0x410] sm:$0xff]
  %v181 = vld [vmem:[%s0 + $0x418] sm:$0xff]
  %v182 = vld [vmem:[%s0 + $0x420] sm:$0xf]
  %v183 = vld [vmem:[%s0 + $0x424] sm:$0xff]
  %v184 = vld [vmem:[%s0 + $0x42c] sm:$0xff]
  %v185 = vld [vmem:[%s0 + $0x434] sm:$0xf]
  %v186 = vld [vmem:[%s0 + $0x438] sm:$0xff]
  %v187 = vld [vmem:[%s0 + $0x440] sm:$0xff]
  %v188 = vld [vmem:[%s0 + $0x448] sm:$0xf]
  %v189 = vld [vmem:[%s0 + $0x44c] sm:$0xff]
  %v190 = vld [vmem:[%s0 + $0x454] sm:$0xff]
  %v191 = vld [vmem:[%s0 + $0x45c] sm:$0xf]
  %v192 = vld [vmem:[%s0 + $0x460] sm:$0xff]
  %v193 = vld [vmem:[%s0 + $0x468] sm:$0xff]
  %v194 = vld [vmem:[%s0 + $0x470] sm:$0xf]
  %v195 = vld [vmem:[%s0 + $0x474] sm:$0xff]
  %v196 = vld [vmem:[%s0 + $0x47c] sm:$0xff]
  %v197 = vld [vmem:[%s0 + $0x484] sm:$0xf]
  %v198 = vld [vmem:[%s0 + $0x488] sm:$0xff]
  %v199 = vld [vmem:[%s0 + $0x490] sm:$0xff]
  %v200 = vld [vmem:[%s0 + $0x498] sm:$0xf]
  %v201 = vld [vmem:[%s0 + $0x49c] sm:$0xff]
  %v202 = vld [vmem:[%s0 + $0x4a4] sm:$0xff]
  %v203 = vld [vmem:[%s0 + $0x4ac] sm:$0xf]
  %v204 = vld [vmem:[%s0 + $0x4b0] sm:$0xff]
  %v205 = vld [vmem:[%s0 + $0x4b8] sm:$0xff]
  %v206 = vld [vmem:[%s0 + $0x4c0] sm:$0xf]
  %v207 = vld [vmem:[%s0 + $0x4c4] sm:$0xff]
  %v208 = vld [vmem:[%s0 + $0x4cc] sm:$0xff]
  %v209 = vld [vmem:[%s0 + $0x4d4] sm:$0xf]
  %v210 = vld [vmem:[%s0 + $0x4d8] sm:$0xff]
  %v211 = vld [vmem:[%s0 + $0x4e0] sm:$0xff]
  %v212 = vld [vmem:[%s0 + $0x4e8] sm:$0xf]
  %v213 = vld [vmem:[%s0 + $0x4ec] sm:$0xff]
  %v214 = vld [vmem:[%s0 + $0x4f4] sm:$0xff]
  %v215 = vld [vmem:[%s0 + $0x4fc] sm:$0xf]
  %v216 = vld [vmem:[%s1] sm:$0xf]
  %v217 = vld [vmem:[%s1 + $0x4] sm:$0xf]
  %v218 = vld [vmem:[%s1 + $0x8] sm:$0xf]
  %v219 = vld [vmem:[%s1 + $0xc] sm:$0xf]
  %v220 = vld [vmem:[%s1 + $0x10] sm:$0xf]
  %v221 = vld [vmem:[%s1 + $0x14] sm:$0xf]
  %v222 = vld [vmem:[%s1 + $0x18] sm:$0xf]
  %v223 = vld [vmem:[%s1 + $0x1c] sm:$0xf]
  %v224 = vld [vmem:[%s1 + $0x20] sm:$0xf]
  %v225 = vld [vmem:[%s1 + $0x24] sm:$0xf]
  %v226 = vld [vmem:[%s1 + $0x28] sm:$0xf]
  %v227 = vld [vmem:[%s1 + $0x2c] sm:$0xf]
  %v228 = vld [vmem:[%s1 + $0x30] sm:$0xf]
  %v229 = vld [vmem:[%s1 + $0x34] sm:$0xf]
  %v230 = vld [vmem:[%s1 + $0x38] sm:$0xf]
  %v231 = vld [vmem:[%s1 + $0x3c] sm:$0xf]
  %v232 = vld [vmem:[%s1 + $0x40] sm:$0xf]
  %v233 = vld [vmem:[%s1 + $0x44] sm:$0xf]
  %v234 = vld [vmem:[%s1 + $0x48] sm:$0xf]
  %v235 = vld [vmem:[%s1 + $0x4c] sm:$0xf]
  %v236 = vld [vmem:[%s1 + $0x50] sm:$0xf]
  %v237 = vld [vmem:[%s1 + $0x54] sm:$0xf]
  %v238 = vld [vmem:[%s1 + $0x58] sm:$0xf]
  %v239 = vld [vmem:[%s1 + $0x5c] sm:$0xf]
  %v240 = vld [vmem:[%s1 + $0x60] sm:$0xf]
  %v241 = vld [vmem:[%s1 + $0x64] sm:$0xf]
  %v242 = vld [vmem:[%s1 + $0x68] sm:$0xf]
  %v243 = vld [vmem:[%s1 + $0x6c] sm:$0xf]
  %v244 = vld [vmem:[%s1 + $0x70] sm:$0xf]
  %v245 = vld [vmem:[%s1 + $0x74] sm:$0xf]
  %v246 = vld [vmem:[%s1 + $0x78] sm:$0xf]
  %v247 = vld [vmem:[%s1 + $0x7c] sm:$0xf]
  %v248 = vld [vmem:[%s1 + $0x80] sm:$0xf]
  %v249 = vld [vmem:[%s1 + $0x84] sm:$0xf]
  %v250 = vld [vmem:[%s1 + $0x88] sm:$0xf]
  %v251 = vld [vmem:[%s1 + $0x8c] sm:$0xf]
  %v252 = vld [vmem:[%s1 + $0x90] sm:$0xf]
  %v253 = vld [vmem:[%s1 + $0x94] sm:$0xf]
  %v254 = vld [vmem:[%s1 + $0x98] sm:$0xf]
  %v255 = vld [vmem:[%s1 + $0x9c] sm:$0xf]
  %v256 = vld [vmem:[%s1 + $0xa0] sm:$0xf]
  %v257 = vld [vmem:[%s1 + $0xa4] sm:$0xf]
  %v258 = vld [vmem:[%s1 + $0xa8] sm:$0xf]
  %v259 = vld [vmem:[%s1 + $0xac] sm:$0xf]
  %v260 = vld [vmem:[%s1 + $0xb0] sm:$0xf]
  %v261 = vld [vmem:[%s1 + $0xb4] sm:$0xf]
  %v262 = vld [vmem:[%s1 + $0xb8] sm:$0xf]
  %v263 = vld [vmem:[%s1 + $0xbc] sm:$0xf]
  %v264 = vld [vmem:[%s1 + $0xc0] sm:$0xf]
  %v265 = vld [vmem:[%s1 + $0xc4] sm:$0xf]
  %v266 = vld [vmem:[%s1 + $0xc8] sm:$0xf]
  %v267 = vld [vmem:[%s1 + $0xcc] sm:$0xf]
  %v268 = vld [vmem:[%s1 + $0xd0] sm:$0xf]
  %v269 = vld [vmem:[%s1 + $0xd4] sm:$0xf]
  %v270 = vld [vmem:[%s1 + $0xd8] sm:$0xf]
  %v271 = vld [vmem:[%s1 + $0xdc] sm:$0xf]
  %v272 = vld [vmem:[%s1 + $0xe0] sm:$0xf]
  %v273 = vld [vmem:[%s1 + $0xe4] sm:$0xf]
  %v274 = vld [vmem:[%s1 + $0xe8] sm:$0xf]
  %v275 = vld [vmem:[%s1 + $0xec] sm:$0xf]
  %v276 = vld [vmem:[%s1 + $0xf0] sm:$0xf]
  %v277 = vld [vmem:[%s1 + $0xf4] sm:$0xf]
  %v278 = vld [vmem:[%s1 + $0xf8] sm:$0xf]
  %v279 = vld [vmem:[%s1 + $0xfc] sm:$0xf]
  %v280 = vld [vmem:[%s1 + $0x100] sm:$0xf]
  %v281 = vld [vmem:[%s1 + $0x104] sm:$0xf]
  %v282 = vld [vmem:[%s1 + $0x108] sm:$0xf]
  %v283 = vld [vmem:[%s1 + $0x10c] sm:$0xf]
  %v284 = vld [vmem:[%s1 + $0x110] sm:$0xf]
  %v285 = vld [vmem:[%s1 + $0x114] sm:$0xf]
  %v286 = vld [vmem:[%s1 + $0x118] sm:$0xf]
  %v287 = vld [vmem:[%s1 + $0x11c] sm:$0xf]
  %v288 = vld [vmem:[%s2] sm:$0x1]
  %v290 = vlaneseq
  %v291 = vshrl.u32 %v290, 7
  %v292 = vsub.s32 0, %v291
  %v293 = vrot.slane %v288, %v292
  %v487 = vunpack.c.l.b16 %v24
  %v488 = vunpack.c.h.b16 %v24
  %v489 = vunpack.c.l.b16 %v25
  %v490 = vunpack.c.h.b16 %v25
  %v491 = vunpack.c.l.b16 %v26
  %v492 = vunpack.c.l.b16 %v27
  %v493 = vunpack.c.h.b16 %v27
  %v494 = vunpack.c.l.b16 %v28
  %v495 = vunpack.c.h.b16 %v28
  %v496 = vunpack.c.l.b16 %v29
  %v497 = vunpack.c.l.b16 %v30
  %v498 = vunpack.c.h.b16 %v30
  %v499 = vunpack.c.l.b16 %v31
  %v500 = vunpack.c.h.b16 %v31
  %v501 = vunpack.c.l.b16 %v32
  %v502 = vunpack.c.l.b16 %v33
  %v503 = vunpack.c.h.b16 %v33
  %v504 = vunpack.c.l.b16 %v34
  %v505 = vunpack.c.h.b16 %v34
  %v506 = vunpack.c.l.b16 %v35
  %v507 = vunpack.c.l.b16 %v36
  %v508 = vunpack.c.h.b16 %v36
  %v509 = vunpack.c.l.b16 %v37
  %v510 = vunpack.c.h.b16 %v37
  %v511 = vunpack.c.l.b16 %v38
  %v512 = vunpack.c.l.b16 %v39
  %v513 = vunpack.c.h.b16 %v39
  %v514 = vunpack.c.l.b16 %v40
  %v515 = vunpack.c.h.b16 %v40
  %v516 = vunpack.c.l.b16 %v41
  %v517 = vunpack.c.l.b16 %v42
  %v518 = vunpack.c.h.b16 %v42
  %v519 = vunpack.c.l.b16 %v43
  %v520 = vunpack.c.h.b16 %v43
  %v521 = vunpack.c.l.b16 %v44
  %v522 = vunpack.c.l.b16 %v45
  %v523 = vunpack.c.h.b16 %v45
  %v524 = vunpack.c.l.b16 %v46
  %v525 = vunpack.c.h.b16 %v46
  %v526 = vunpack.c.l.b16 %v47
  %v527 = vunpack.c.l.b16 %v48
  %v528 = vunpack.c.h.b16 %v48
  %v529 = vunpack.c.l.b16 %v49
  %v530 = vunpack.c.h.b16 %v49
  %v531 = vunpack.c.l.b16 %v50
  %v532 = vunpack.c.l.b16 %v51
  %v533 = vunpack.c.h.b16 %v51
  %v534 = vunpack.c.l.b16 %v52
  %v535 = vunpack.c.h.b16 %v52
  %v536 = vunpack.c.l.b16 %v53
  %v537 = vunpack.c.l.b16 %v54
  %v538 = vunpack.c.h.b16 %v54
  %v539 = vunpack.c.l.b16 %v55
  %v540 = vunpack.c.h.b16 %v55
  %v541 = vunpack.c.l.b16 %v56
  %v542 = vunpack.c.l.b16 %v57
  %v543 = vunpack.c.h.b16 %v57
  %v544 = vunpack.c.l.b16 %v58
  %v545 = vunpack.c.h.b16 %v58
  %v546 = vunpack.c.l.b16 %v59
  %v547 = vunpack.c.l.b16 %v60
  %v548 = vunpack.c.h.b16 %v60
  %v549 = vunpack.c.l.b16 %v61
  %v550 = vunpack.c.h.b16 %v61
  %v551 = vunpack.c.l.b16 %v62
  %v552 = vunpack.c.l.b16 %v63
  %v553 = vunpack.c.h.b16 %v63
  %v554 = vunpack.c.l.b16 %v64
  %v555 = vunpack.c.h.b16 %v64
  %v556 = vunpack.c.l.b16 %v65
  %v557 = vunpack.c.l.b16 %v66
  %v558 = vunpack.c.h.b16 %v66
  %v559 = vunpack.c.l.b16 %v67
  %v560 = vunpack.c.h.b16 %v67
  %v561 = vunpack.c.l.b16 %v68
  %v562 = vunpack.c.l.b16 %v69
  %v563 = vunpack.c.h.b16 %v69
  %v564 = vunpack.c.l.b16 %v70
  %v565 = vunpack.c.h.b16 %v70
  %v566 = vunpack.c.l.b16 %v71
  %v567 = vunpack.c.l.b16 %v72
  %v568 = vunpack.c.h.b16 %v72
  %v569 = vunpack.c.l.b16 %v73
  %v570 = vunpack.c.h.b16 %v73
  %v571 = vunpack.c.l.b16 %v74
  %v572 = vunpack.c.l.b16 %v75
  %v573 = vunpack.c.h.b16 %v75
  %v574 = vunpack.c.l.b16 %v76
  %v575 = vunpack.c.h.b16 %v76
  %v576 = vunpack.c.l.b16 %v77
  %v577 = vunpack.c.l.b16 %v78
  %v578 = vunpack.c.h.b16 %v78
  %v579 = vunpack.c.l.b16 %v79
  %v580 = vunpack.c.h.b16 %v79
  %v581 = vunpack.c.l.b16 %v80
  %v582 = vunpack.c.l.b16 %v81
  %v583 = vunpack.c.h.b16 %v81
  %v584 = vunpack.c.l.b16 %v82
  %v585 = vunpack.c.h.b16 %v82
  %v586 = vunpack.c.l.b16 %v83
  %v587 = vunpack.c.l.b16 %v84
  %v588 = vunpack.c.h.b16 %v84
  %v589 = vunpack.c.l.b16 %v85
  %v590 = vunpack.c.h.b16 %v85
  %v591 = vunpack.c.l.b16 %v86
  %v592 = vunpack.c.l.b16 %v87
  %v593 = vunpack.c.h.b16 %v87
  %v594 = vunpack.c.l.b16 %v88
  %v595 = vunpack.c.h.b16 %v88
  %v596 = vunpack.c.l.b16 %v89
  %v597 = vunpack.c.l.b16 %v90
  %v598 = vunpack.c.h.b16 %v90
  %v599 = vunpack.c.l.b16 %v91
  %v600 = vunpack.c.h.b16 %v91
  %v601 = vunpack.c.l.b16 %v92
  %v602 = vunpack.c.l.b16 %v93
  %v603 = vunpack.c.h.b16 %v93
  %v604 = vunpack.c.l.b16 %v94
  %v605 = vunpack.c.h.b16 %v94
  %v606 = vunpack.c.l.b16 %v95
  %v607 = vunpack.c.l.b16 %v96
  %v608 = vunpack.c.h.b16 %v96
  %v609 = vunpack.c.l.b16 %v97
  %v610 = vunpack.c.h.b16 %v97
  %v611 = vunpack.c.l.b16 %v98
  %v612 = vunpack.c.l.b16 %v99
  %v613 = vunpack.c.h.b16 %v99
  %v614 = vunpack.c.l.b16 %v100
  %v615 = vunpack.c.h.b16 %v100
  %v616 = vunpack.c.l.b16 %v101
  %v617 = vunpack.c.l.b16 %v102
  %v618 = vunpack.c.h.b16 %v102
  %v619 = vunpack.c.l.b16 %v103
  %v620 = vunpack.c.h.b16 %v103
  %v621 = vunpack.c.l.b16 %v104
  %v622 = vunpack.c.l.b16 %v105
  %v623 = vunpack.c.h.b16 %v105
  %v624 = vunpack.c.l.b16 %v106
  %v625 = vunpack.c.h.b16 %v106
  %v626 = vunpack.c.l.b16 %v107
  %v627 = vunpack.c.l.b16 %v108
  %v628 = vunpack.c.h.b16 %v108
  %v629 = vunpack.c.l.b16 %v109
  %v630 = vunpack.c.h.b16 %v109
  %v631 = vunpack.c.l.b16 %v110
  %v632 = vunpack.c.l.b16 %v111
  %v633 = vunpack.c.h.b16 %v111
  %v634 = vunpack.c.l.b16 %v112
  %v635 = vunpack.c.h.b16 %v112
  %v636 = vunpack.c.l.b16 %v113
  %v637 = vunpack.c.l.b16 %v114
  %v638 = vunpack.c.h.b16 %v114
  %v639 = vunpack.c.l.b16 %v115
  %v640 = vunpack.c.h.b16 %v115
  %v641 = vunpack.c.l.b16 %v116
  %v642 = vunpack.c.l.b16 %v117
  %v643 = vunpack.c.h.b16 %v117
  %v644 = vunpack.c.l.b16 %v118
  %v645 = vunpack.c.h.b16 %v118
  %v646 = vunpack.c.l.b16 %v119
  %v647 = vunpack.c.l.b16 %v120
  %v648 = vunpack.c.h.b16 %v120
  %v649 = vunpack.c.l.b16 %v121
  %v650 = vunpack.c.h.b16 %v121
  %v651 = vunpack.c.l.b16 %v122
  %v652 = vunpack.c.l.b16 %v123
  %v653 = vunpack.c.h.b16 %v123
  %v654 = vunpack.c.l.b16 %v124
  %v655 = vunpack.c.h.b16 %v124
  %v656 = vunpack.c.l.b16 %v125
  %v657 = vunpack.c.l.b16 %v126
  %v658 = vunpack.c.h.b16 %v126
  %v659 = vunpack.c.l.b16 %v127
  %v660 = vunpack.c.h.b16 %v127
  %v661 = vunpack.c.l.b16 %v128
  %v662 = vunpack.c.l.b16 %v129
  %v663 = vunpack.c.h.b16 %v129
  %v664 = vunpack.c.l.b16 %v130
  %v665 = vunpack.c.h.b16 %v130
  %v666 = vunpack.c.l.b16 %v131
  %v667 = vunpack.c.l.b16 %v132
  %v668 = vunpack.c.h.b16 %v132
  %v669 = vunpack.c.l.b16 %v133
  %v670 = vunpack.c.h.b16 %v133
  %v671 = vunpack.c.l.b16 %v134
  %v672 = vunpack.c.l.b16 %v135
  %v673 = vunpack.c.h.b16 %v135
  %v674 = vunpack.c.l.b16 %v136
  %v675 = vunpack.c.h.b16 %v136
  %v676 = vunpack.c.l.b16 %v137
  %v677 = vunpack.c.l.b16 %v138
  %v678 = vunpack.c.h.b16 %v138
  %v679 = vunpack.c.l.b16 %v139
  %v680 = vunpack.c.h.b16 %v139
  %v681 = vunpack.c.l.b16 %v140
  %v682 = vunpack.c.l.b16 %v141
  %v683 = vunpack.c.h.b16 %v141
  %v684 = vunpack.c.l.b16 %v142
  %v685 = vunpack.c.h.b16 %v142
  %v686 = vunpack.c.l.b16 %v143
  %v687 = vunpack.c.l.b16 %v144
  %v688 = vunpack.c.h.b16 %v144
  %v689 = vunpack.c.l.b16 %v145
  %v690 = vunpack.c.h.b16 %v145
  %v691 = vunpack.c.l.b16 %v146
  %v692 = vunpack.c.l.b16 %v147
  %v693 = vunpack.c.h.b16 %v147
  %v694 = vunpack.c.l.b16 %v148
  %v695 = vunpack.c.h.b16 %v148
  %v696 = vunpack.c.l.b16 %v149
  %v697 = vunpack.c.l.b16 %v150
  %v698 = vunpack.c.h.b16 %v150
  %v699 = vunpack.c.l.b16 %v151
  %v700 = vunpack.c.h.b16 %v151
  %v701 = vunpack.c.l.b16 %v152
  %v702 = vunpack.c.l.b16 %v153
  %v703 = vunpack.c.h.b16 %v153
  %v704 = vunpack.c.l.b16 %v154
  %v705 = vunpack.c.h.b16 %v154
  %v706 = vunpack.c.l.b16 %v155
  %v707 = vunpack.c.l.b16 %v156
  %v708 = vunpack.c.h.b16 %v156
  %v709 = vunpack.c.l.b16 %v157
  %v710 = vunpack.c.h.b16 %v157
  %v711 = vunpack.c.l.b16 %v158
  %v712 = vunpack.c.l.b16 %v159
  %v713 = vunpack.c.h.b16 %v159
  %v714 = vunpack.c.l.b16 %v160
  %v715 = vunpack.c.h.b16 %v160
  %v716 = vunpack.c.l.b16 %v161
  %v717 = vunpack.c.l.b16 %v162
  %v718 = vunpack.c.h.b16 %v162
  %v719 = vunpack.c.l.b16 %v163
  %v720 = vunpack.c.h.b16 %v163
  %v721 = vunpack.c.l.b16 %v164
  %v722 = vunpack.c.l.b16 %v165
  %v723 = vunpack.c.h.b16 %v165
  %v724 = vunpack.c.l.b16 %v166
  %v725 = vunpack.c.h.b16 %v166
  %v726 = vunpack.c.l.b16 %v167
  %v727 = vunpack.c.l.b16 %v168
  %v728 = vunpack.c.h.b16 %v168
  %v729 = vunpack.c.l.b16 %v169
  %v730 = vunpack.c.h.b16 %v169
  %v731 = vunpack.c.l.b16 %v170
  %v732 = vunpack.c.l.b16 %v171
  %v733 = vunpack.c.h.b16 %v171
  %v734 = vunpack.c.l.b16 %v172
  %v735 = vunpack.c.h.b16 %v172
  %v736 = vunpack.c.l.b16 %v173
  %v737 = vunpack.c.l.b16 %v174
  %v738 = vunpack.c.h.b16 %v174
  %v739 = vunpack.c.l.b16 %v175
  %v740 = vunpack.c.h.b16 %v175
  %v741 = vunpack.c.l.b16 %v176
  %v742 = vunpack.c.l.b16 %v177
  %v743 = vunpack.c.h.b16 %v177
  %v744 = vunpack.c.l.b16 %v178
  %v745 = vunpack.c.h.b16 %v178
  %v746 = vunpack.c.l.b16 %v179
  %v747 = vunpack.c.l.b16 %v180
  %v748 = vunpack.c.h.b16 %v180
  %v749 = vunpack.c.l.b16 %v181
  %v750 = vunpack.c.h.b16 %v181
  %v751 = vunpack.c.l.b16 %v182
  %v752 = vunpack.c.l.b16 %v183
  %v753 = vunpack.c.h.b16 %v183
  %v754 = vunpack.c.l.b16 %v184
  %v755 = vunpack.c.h.b16 %v184
  %v756 = vunpack.c.l.b16 %v185
  %v757 = vunpack.c.l.b16 %v186
  %v758 = vunpack.c.h.b16 %v186
  %v759 = vunpack.c.l.b16 %v187
  %v760 = vunpack.c.h.b16 %v187
  %v761 = vunpack.c.l.b16 %v188
  %v762 = vunpack.c.l.b16 %v189
  %v763 = vunpack.c.h.b16 %v189
  %v764 = vunpack.c.l.b16 %v190
  %v765 = vunpack.c.h.b16 %v190
  %v766 = vunpack.c.l.b16 %v191
  %v767 = vunpack.c.l.b16 %v192
  %v768 = vunpack.c.h.b16 %v192
  %v769 = vunpack.c.l.b16 %v193
  %v770 = vunpack.c.h.b16 %v193
  %v771 = vunpack.c.l.b16 %v194
  %v772 = vunpack.c.l.b16 %v195
  %v773 = vunpack.c.h.b16 %v195
  %v774 = vunpack.c.l.b16 %v196
  %v775 = vunpack.c.h.b16 %v196
  %v776 = vunpack.c.l.b16 %v197
  %v777 = vunpack.c.l.b16 %v198
  %v778 = vunpack.c.h.b16 %v198
  %v779 = vunpack.c.l.b16 %v199
  %v780 = vunpack.c.h.b16 %v199
  %v781 = vunpack.c.l.b16 %v200
  %v782 = vunpack.c.l.b16 %v201
  %v783 = vunpack.c.h.b16 %v201
  %v784 = vunpack.c.l.b16 %v202
  %v785 = vunpack.c.h.b16 %v202
  %v786 = vunpack.c.l.b16 %v203
  %v787 = vunpack.c.l.b16 %v204
  %v788 = vunpack.c.h.b16 %v204
  %v789 = vunpack.c.l.b16 %v205
  %v790 = vunpack.c.h.b16 %v205
  %v791 = vunpack.c.l.b16 %v206
  %v792 = vunpack.c.l.b16 %v207
  %v793 = vunpack.c.h.b16 %v207
  %v794 = vunpack.c.l.b16 %v208
  %v795 = vunpack.c.h.b16 %v208
  %v796 = vunpack.c.l.b16 %v209
  %v797 = vunpack.c.l.b16 %v210
  %v798 = vunpack.c.h.b16 %v210
  %v799 = vunpack.c.l.b16 %v211
  %v800 = vunpack.c.h.b16 %v211
  %v801 = vunpack.c.l.b16 %v212
  %v802 = vunpack.c.l.b16 %v213
  %v803 = vunpack.c.h.b16 %v213
  %v804 = vunpack.c.l.b16 %v214
  %v805 = vunpack.c.h.b16 %v214
  %v806 = vunpack.c.l.b16 %v215
  %v807 = vpack.c.b16 %v492, %v487
  %v808 = vpack.c.b16 %v493, %v488
  %v809 = vpack.c.b16 %v494, %v489
  %v810 = vpack.c.b16 %v495, %v490
  %v811 = vpack.c.b16 %v496, %v491
  %v812 = vpack.c.b16 %v502, %v497
  %v813 = vpack.c.b16 %v503, %v498
  %v814 = vpack.c.b16 %v504, %v499
  %v815 = vpack.c.b16 %v505, %v500
  %v816 = vpack.c.b16 %v506, %v501
  %v817 = vpack.c.b16 %v512, %v507
  %v818 = vpack.c.b16 %v513, %v508
  %v819 = vpack.c.b16 %v514, %v509
  %v820 = vpack.c.b16 %v515, %v510
  %v821 = vpack.c.b16 %v516, %v511
  %v822 = vpack.c.b16 %v522, %v517
  %v823 = vpack.c.b16 %v523, %v518
  %v824 = vpack.c.b16 %v524, %v519
  %v825 = vpack.c.b16 %v525, %v520
  %v826 = vpack.c.b16 %v526, %v521
  %v827 = vpack.c.b16 %v532, %v527
  %v828 = vpack.c.b16 %v533, %v528
  %v829 = vpack.c.b16 %v534, %v529
  %v830 = vpack.c.b16 %v535, %v530
  %v831 = vpack.c.b16 %v536, %v531
  %v832 = vpack.c.b16 %v542, %v537
  %v833 = vpack.c.b16 %v543, %v538
  %v834 = vpack.c.b16 %v544, %v539
  %v835 = vpack.c.b16 %v545, %v540
  %v836 = vpack.c.b16 %v546, %v541
  %v837 = vpack.c.b16 %v552, %v547
  %v838 = vpack.c.b16 %v553, %v548
  %v839 = vpack.c.b16 %v554, %v549
  %v840 = vpack.c.b16 %v555, %v550
  %v841 = vpack.c.b16 %v556, %v551
  %v842 = vpack.c.b16 %v562, %v557
  %v843 = vpack.c.b16 %v563, %v558
  %v844 = vpack.c.b16 %v564, %v559
  %v845 = vpack.c.b16 %v565, %v560
  %v846 = vpack.c.b16 %v566, %v561
  %v847 = vpack.c.b16 %v572, %v567
  %v848 = vpack.c.b16 %v573, %v568
  %v849 = vpack.c.b16 %v574, %v569
  %v850 = vpack.c.b16 %v575, %v570
  %v851 = vpack.c.b16 %v576, %v571
  %v852 = vpack.c.b16 %v582, %v577
  %v853 = vpack.c.b16 %v583, %v578
  %v854 = vpack.c.b16 %v584, %v579
  %v855 = vpack.c.b16 %v585, %v580
  %v856 = vpack.c.b16 %v586, %v581
  %v857 = vpack.c.b16 %v592, %v587
  %v858 = vpack.c.b16 %v593, %v588
  %v859 = vpack.c.b16 %v594, %v589
  %v860 = vpack.c.b16 %v595, %v590
  %v861 = vpack.c.b16 %v596, %v591
  %v862 = vpack.c.b16 %v602, %v597
  %v863 = vpack.c.b16 %v603, %v598
  %v864 = vpack.c.b16 %v604, %v599
  %v865 = vpack.c.b16 %v605, %v600
  %v866 = vpack.c.b16 %v606, %v601
  %v867 = vpack.c.b16 %v612, %v607
  %v868 = vpack.c.b16 %v613, %v608
  %v869 = vpack.c.b16 %v614, %v609
  %v870 = vpack.c.b16 %v615, %v610
  %v871 = vpack.c.b16 %v616, %v611
  %v872 = vpack.c.b16 %v622, %v617
  %v873 = vpack.c.b16 %v623, %v618
  %v874 = vpack.c.b16 %v624, %v619
  %v875 = vpack.c.b16 %v625, %v620
  %v876 = vpack.c.b16 %v626, %v621
  %v877 = vpack.c.b16 %v632, %v627
  %v878 = vpack.c.b16 %v633, %v628
  %v879 = vpack.c.b16 %v634, %v629
  %v880 = vpack.c.b16 %v635, %v630
  %v881 = vpack.c.b16 %v636, %v631
  %v882 = vpack.c.b16 %v642, %v637
  %v883 = vpack.c.b16 %v643, %v638
  %v884 = vpack.c.b16 %v644, %v639
  %v885 = vpack.c.b16 %v645, %v640
  %v886 = vpack.c.b16 %v646, %v641
  %v887 = vpack.c.b16 %v652, %v647
  %v888 = vpack.c.b16 %v653, %v648
  %v889 = vpack.c.b16 %v654, %v649
  %v890 = vpack.c.b16 %v655, %v650
  %v891 = vpack.c.b16 %v656, %v651
  %v892 = vpack.c.b16 %v662, %v657
  %v893 = vpack.c.b16 %v663, %v658
  %v894 = vpack.c.b16 %v664, %v659
  %v895 = vpack.c.b16 %v665, %v660
  %v896 = vpack.c.b16 %v666, %v661
  %v897 = vpack.c.b16 %v672, %v667
  %v898 = vpack.c.b16 %v673, %v668
  %v899 = vpack.c.b16 %v674, %v669
  %v900 = vpack.c.b16 %v675, %v670
  %v901 = vpack.c.b16 %v676, %v671
  %v902 = vpack.c.b16 %v682, %v677
  %v903 = vpack.c.b16 %v683, %v678
  %v904 = vpack.c.b16 %v684, %v679
  %v905 = vpack.c.b16 %v685, %v680
  %v906 = vpack.c.b16 %v686, %v681
  %v907 = vpack.c.b16 %v692, %v687
  %v908 = vpack.c.b16 %v693, %v688
  %v909 = vpack.c.b16 %v694, %v689
  %v910 = vpack.c.b16 %v695, %v690
  %v911 = vpack.c.b16 %v696, %v691
  %v912 = vpack.c.b16 %v702, %v697
  %v913 = vpack.c.b16 %v703, %v698
  %v914 = vpack.c.b16 %v704, %v699
  %v915 = vpack.c.b16 %v705, %v700
  %v916 = vpack.c.b16 %v706, %v701
  %v917 = vpack.c.b16 %v712, %v707
  %v918 = vpack.c.b16 %v713, %v708
  %v919 = vpack.c.b16 %v714, %v709
  %v920 = vpack.c.b16 %v715, %v710
  %v921 = vpack.c.b16 %v716, %v711
  %v922 = vpack.c.b16 %v722, %v717
  %v923 = vpack.c.b16 %v723, %v718
  %v924 = vpack.c.b16 %v724, %v719
  %v925 = vpack.c.b16 %v725, %v720
  %v926 = vpack.c.b16 %v726, %v721
  %v927 = vpack.c.b16 %v732, %v727
  %v928 = vpack.c.b16 %v733, %v728
  %v929 = vpack.c.b16 %v734, %v729
  %v930 = vpack.c.b16 %v735, %v730
  %v931 = vpack.c.b16 %v736, %v731
  %v932 = vpack.c.b16 %v742, %v737
  %v933 = vpack.c.b16 %v743, %v738
  %v934 = vpack.c.b16 %v744, %v739
  %v935 = vpack.c.b16 %v745, %v740
  %v936 = vpack.c.b16 %v746, %v741
  %v937 = vpack.c.b16 %v752, %v747
  %v938 = vpack.c.b16 %v753, %v748
  %v939 = vpack.c.b16 %v754, %v749
  %v940 = vpack.c.b16 %v755, %v750
  %v941 = vpack.c.b16 %v756, %v751
  %v942 = vpack.c.b16 %v762, %v757
  %v943 = vpack.c.b16 %v763, %v758
  %v944 = vpack.c.b16 %v764, %v759
  %v945 = vpack.c.b16 %v765, %v760
  %v946 = vpack.c.b16 %v766, %v761
  %v947 = vpack.c.b16 %v772, %v767
  %v948 = vpack.c.b16 %v773, %v768
  %v949 = vpack.c.b16 %v774, %v769
  %v950 = vpack.c.b16 %v775, %v770
  %v951 = vpack.c.b16 %v776, %v771
  %v952 = vpack.c.b16 %v782, %v777
  %v953 = vpack.c.b16 %v783, %v778
  %v954 = vpack.c.b16 %v784, %v779
  %v955 = vpack.c.b16 %v785, %v780
  %v956 = vpack.c.b16 %v786, %v781
  %v957 = vpack.c.b16 %v792, %v787
  %v958 = vpack.c.b16 %v793, %v788
  %v959 = vpack.c.b16 %v794, %v789
  %v960 = vpack.c.b16 %v795, %v790
  %v961 = vpack.c.b16 %v796, %v791
  %v962 = vpack.c.b16 %v802, %v797
  %v963 = vpack.c.b16 %v803, %v798
  %v964 = vpack.c.b16 %v804, %v799
  %v965 = vpack.c.b16 %v805, %v800
  %v966 = vpack.c.b16 %v806, %v801
  %v1167 = vunpack.c.l.b16 %v216
  %v1168 = vunpack.c.l.b16 %v217
  %v1169 = vunpack.c.l.b16 %v218
  %v1170 = vunpack.c.l.b16 %v219
  %v1171 = vunpack.c.l.b16 %v220
  %v1172 = vunpack.c.l.b16 %v221
  %v1173 = vunpack.c.l.b16 %v222
  %v1174 = vunpack.c.l.b16 %v223
  %v1175 = vunpack.c.l.b16 %v224
  %v1176 = vunpack.c.l.b16 %v225
  %v1177 = vunpack.c.l.b16 %v226
  %v1178 = vunpack.c.l.b16 %v227
  %v1179 = vunpack.c.l.b16 %v228
  %v1180 = vunpack.c.l.b16 %v229
  %v1181 = vunpack.c.l.b16 %v230
  %v1182 = vunpack.c.l.b16 %v231
  %v1183 = vunpack.c.l.b16 %v232
  %v1184 = vunpack.c.l.b16 %v233
  %v1185 = vunpack.c.l.b16 %v234
  %v1186 = vunpack.c.l.b16 %v235
  %v1187 = vunpack.c.l.b16 %v236
  %v1188 = vunpack.c.l.b16 %v237
  %v1189 = vunpack.c.l.b16 %v238
  %v1190 = vunpack.c.l.b16 %v239
  %v1191 = vunpack.c.l.b16 %v240
  %v1192 = vunpack.c.l.b16 %v241
  %v1193 = vunpack.c.l.b16 %v242
  %v1194 = vunpack.c.l.b16 %v243
  %v1195 = vunpack.c.l.b16 %v244
  %v1196 = vunpack.c.l.b16 %v245
  %v1197 = vunpack.c.l.b16 %v246
  %v1198 = vunpack.c.l.b16 %v247
  %v1199 = vunpack.c.l.b16 %v248
  %v1200 = vunpack.c.l.b16 %v249
  %v1201 = vunpack.c.l.b16 %v250
  %v1202 = vunpack.c.l.b16 %v251
  %v1203 = vunpack.c.l.b16 %v252
  %v1204 = vunpack.c.l.b16 %v253
  %v1205 = vunpack.c.l.b16 %v254
  %v1206 = vunpack.c.l.b16 %v255
  %v1207 = vunpack.c.l.b16 %v256
  %v1208 = vunpack.c.l.b16 %v257
  %v1209 = vunpack.c.l.b16 %v258
  %v1210 = vunpack.c.l.b16 %v259
  %v1211 = vunpack.c.l.b16 %v260
  %v1212 = vunpack.c.l.b16 %v261
  %v1213 = vunpack.c.l.b16 %v262
  %v1214 = vunpack.c.l.b16 %v263
  %v1215 = vunpack.c.l.b16 %v264
  %v1216 = vunpack.c.l.b16 %v265
  %v1217 = vunpack.c.l.b16 %v266
  %v1218 = vunpack.c.l.b16 %v267
  %v1219 = vunpack.c.l.b16 %v268
  %v1220 = vunpack.c.l.b16 %v269
  %v1221 = vunpack.c.l.b16 %v270
  %v1222 = vunpack.c.l.b16 %v271
  %v1223 = vunpack.c.l.b16 %v272
  %v1224 = vunpack.c.l.b16 %v273
  %v1225 = vunpack.c.l.b16 %v274
  %v1226 = vunpack.c.l.b16 %v275
  %v1227 = vunpack.c.l.b16 %v276
  %v1228 = vunpack.c.l.b16 %v277
  %v1229 = vunpack.c.l.b16 %v278
  %v1230 = vunpack.c.l.b16 %v279
  %v1231 = vunpack.c.l.b16 %v280
  %v1232 = vunpack.c.l.b16 %v281
  %v1233 = vunpack.c.l.b16 %v282
  %v1234 = vunpack.c.l.b16 %v283
  %v1235 = vunpack.c.l.b16 %v284
  %v1236 = vunpack.c.l.b16 %v285
  %v1237 = vunpack.c.l.b16 %v286
  %v1238 = vunpack.c.l.b16 %v287
  %v1239 = vpack.c.b16 %v1168, %v1167
  %v1240 = vpack.c.b16 %v1170, %v1169
  %v1241 = vpack.c.b16 %v1172, %v1171
  %v1242 = vpack.c.b16 %v1174, %v1173
  %v1243 = vpack.c.b16 %v1176, %v1175
  %v1244 = vpack.c.b16 %v1178, %v1177
  %v1245 = vpack.c.b16 %v1180, %v1179
  %v1246 = vpack.c.b16 %v1182, %v1181
  %v1247 = vpack.c.b16 %v1184, %v1183
  %v1248 = vpack.c.b16 %v1186, %v1185
  %v1249 = vpack.c.b16 %v1188, %v1187
  %v1250 = vpack.c.b16 %v1190, %v1189
  %v1251 = vpack.c.b16 %v1192, %v1191
  %v1252 = vpack.c.b16 %v1194, %v1193
  %v1253 = vpack.c.b16 %v1196, %v1195
  %v1254 = vpack.c.b16 %v1198, %v1197
  %v1255 = vpack.c.b16 %v1200, %v1199
  %v1256 = vpack.c.b16 %v1202, %v1201
  %v1257 = vpack.c.b16 %v1204, %v1203
  %v1258 = vpack.c.b16 %v1206, %v1205
  %v1259 = vpack.c.b16 %v1208, %v1207
  %v1260 = vpack.c.b16 %v1210, %v1209
  %v1261 = vpack.c.b16 %v1212, %v1211
  %v1262 = vpack.c.b16 %v1214, %v1213
  %v1263 = vpack.c.b16 %v1216, %v1215
  %v1264 = vpack.c.b16 %v1218, %v1217
  %v1265 = vpack.c.b16 %v1220, %v1219
  %v1266 = vpack.c.b16 %v1222, %v1221
  %v1267 = vpack.c.b16 %v1224, %v1223
  %v1268 = vpack.c.b16 %v1226, %v1225
  %v1269 = vpack.c.b16 %v1228, %v1227
  %v1270 = vpack.c.b16 %v1230, %v1229
  %v1271 = vpack.c.b16 %v1232, %v1231
  %v1272 = vpack.c.b16 %v1234, %v1233
  %v1273 = vpack.c.b16 %v1236, %v1235
  %v1274 = vpack.c.b16 %v1238, %v1237
  %vm1311 = vcmask 523264
  %v1313 = vsel %vm1311, %v811, 0
  %v1316 = vsel %vm1311, %v816, 0
  %v1319 = vsel %vm1311, %v821, 0
  %v1322 = vsel %vm1311, %v826, 0
  %v1325 = vsel %vm1311, %v831, 0
  %v1328 = vsel %vm1311, %v836, 0
  %v1331 = vsel %vm1311, %v841, 0
  %v1334 = vsel %vm1311, %v846, 0
  %v1337 = vsel %vm1311, %v851, 0
  %v1340 = vsel %vm1311, %v856, 0
  %v1343 = vsel %vm1311, %v861, 0
  %v1346 = vsel %vm1311, %v866, 0
  %v1349 = vsel %vm1311, %v871, 0
  %v1352 = vsel %vm1311, %v876, 0
  %v1355 = vsel %vm1311, %v881, 0
  %v1358 = vsel %vm1311, %v886, 0
  %v1361 = vsel %vm1311, %v891, 0
  %v1364 = vsel %vm1311, %v896, 0
  %v1367 = vsel %vm1311, %v901, 0
  %v1370 = vsel %vm1311, %v906, 0
  %v1373 = vsel %vm1311, %v911, 0
  %v1376 = vsel %vm1311, %v916, 0
  %v1379 = vsel %vm1311, %v921, 0
  %v1382 = vsel %vm1311, %v926, 0
  %v1385 = vsel %vm1311, %v931, 0
  %v1388 = vsel %vm1311, %v936, 0
  %v1391 = vsel %vm1311, %v941, 0
  %v1394 = vsel %vm1311, %v946, 0
  %v1397 = vsel %vm1311, %v951, 0
  %v1400 = vsel %vm1311, %v956, 0
  %v1403 = vsel %vm1311, %v961, 0
  %v1406 = vsel %vm1311, %v966, 0
  %1408 = vmatprep.subr.bf16.mxu0 0
  %1409 = vmatpush1.bf16.msra.mxu0 %v1246
  %1410 = vmatprep.subr.bf16.mxu0 0
  %1411 = vmatpush1.bf16.msra.mxu0 %v1245
  %1412 = vmatprep.subr.bf16.mxu0 0
  %1413 = vmatpush1.bf16.msra.mxu0 %v1244
  %1414 = vmatprep.subr.bf16.mxu0 0
  %1415 = vmatpush1.bf16.msra.mxu0 %v1243
  %1416 = vmatprep.subr.bf16.mxu0 0
  %1417 = vmatpush1.bf16.msra.mxu0 %v1242
  %1418 = vmatprep.subr.bf16.mxu0 0
  %1419 = vmatpush1.bf16.msra.mxu0 %v1241
  %1420 = vmatprep.subr.bf16.mxu0 0
  %1421 = vmatpush1.bf16.msra.mxu0 %v1240
  %1422 = vmatprep.subr.bf16.mxu0 0
  %1423 = vmatpush1.bf16.msra.mxu0 %v1239
  %1424 = vmatprep.subr.bf16.mxu0 0
  %1425 = vmatpush2.bf16.msra.mxu0 %v1254
  %1426 = vmatprep.subr.bf16.mxu0 0
  %1427 = vmatpush2.bf16.msra.mxu0 %v1253
  %1428 = vmatprep.subr.bf16.mxu0 0
  %1429 = vmatpush2.bf16.msra.mxu0 %v1252
  %1430 = vmatprep.subr.bf16.mxu0 0
  %1431 = vmatpush2.bf16.msra.mxu0 %v1251
  %1432 = vmatprep.subr.bf16.mxu0 0
  %1433 = vmatpush2.bf16.msra.mxu0 %v1250
  %1434 = vmatprep.subr.bf16.mxu0 0
  %1435 = vmatpush2.bf16.msra.mxu0 %v1249
  %1436 = vmatprep.subr.bf16.mxu0 0
  %1437 = vmatpush2.bf16.msra.mxu0 %v1248
  %1438 = vmatprep.subr.bf16.mxu0 0
  %1439 = vmatpush2.bf16.msra.mxu0 %v1247
  %1440 = vmatprep.mubr.bf16.mxu0 %v808
  %1441 = vmatmul.mubr.bf16.gmra.mxu0 %v807
  %v1442 = vpop.f32.mrf.mxu0
  %v1443 = vadd.f32 %v293, %v1442
  %v1444 = vpop.f32.mrf.mxu0
  %v1445 = vpop.f32.mrf.mxu0
  %v1446 = vadd.f32 %v293, %v1445
  %v1447 = vpop.f32.mrf.mxu0
  %1448 = vmatprep.mubr.bf16.mxu0 %v813
  %1449 = vmatmul.mubr.bf16.gmra.mxu0 %v812
  %v1450 = vpop.f32.mrf.mxu0
  %v1451 = vadd.f32 %v293, %v1450
  %v1452 = vpop.f32.mrf.mxu0
  %v1453 = vpop.f32.mrf.mxu0
  %v1454 = vadd.f32 %v293, %v1453
  %v1455 = vpop.f32.mrf.mxu0
  %1456 = vmatprep.mubr.bf16.mxu0 %v818
  %1457 = vmatmul.mubr.bf16.gmra.mxu0 %v817
  %v1458 = vpop.f32.mrf.mxu0
  %v1459 = vadd.f32 %v293, %v1458
  %v1460 = vpop.f32.mrf.mxu0
  %v1461 = vpop.f32.mrf.mxu0
  %v1462 = vadd.f32 %v293, %v1461
  %v1463 = vpop.f32.mrf.mxu0
  %1464 = vmatprep.mubr.bf16.mxu0 %v823
  %1465 = vmatmul.mubr.bf16.gmra.mxu0 %v822
  %v1466 = vpop.f32.mrf.mxu0
  %v1467 = vadd.f32 %v293, %v1466
  %v1468 = vpop.f32.mrf.mxu0
  %v1469 = vpop.f32.mrf.mxu0
  %v1470 = vadd.f32 %v293, %v1469
  %v1471 = vpop.f32.mrf.mxu0
  %1472 = vmatprep.mubr.bf16.mxu0 %v828
  %1473 = vmatmul.mubr.bf16.gmra.mxu0 %v827
  %v1474 = vpop.f32.mrf.mxu0
  %v1475 = vadd.f32 %v293, %v1474
  %v1476 = vpop.f32.mrf.mxu0
  %v1477 = vpop.f32.mrf.mxu0
  %v1478 = vadd.f32 %v293, %v1477
  %v1479 = vpop.f32.mrf.mxu0
  %1480 = vmatprep.mubr.bf16.mxu0 %v833
  %1481 = vmatmul.mubr.bf16.gmra.mxu0 %v832
  %v1482 = vpop.f32.mrf.mxu0
  %v1483 = vadd.f32 %v293, %v1482
  %v1484 = vpop.f32.mrf.mxu0
  %v1485 = vpop.f32.mrf.mxu0
  %v1486 = vadd.f32 %v293, %v1485
  %v1487 = vpop.f32.mrf.mxu0
  %1488 = vmatprep.mubr.bf16.mxu0 %v838
  %1489 = vmatmul.mubr.bf16.gmra.mxu0 %v837
  %v1490 = vpop.f32.mrf.mxu0
  %v1491 = vadd.f32 %v293, %v1490
  %v1492 = vpop.f32.mrf.mxu0
  %v1493 = vpop.f32.mrf.mxu0
  %v1494 = vadd.f32 %v293, %v1493
  %v1495 = vpop.f32.mrf.mxu0
  %1496 = vmatprep.mubr.bf16.mxu0 %v843
  %1497 = vmatmul.mubr.bf16.gmra.mxu0 %v842
  %v1498 = vpop.f32.mrf.mxu0
  %v1499 = vadd.f32 %v293, %v1498
  %v1500 = vpop.f32.mrf.mxu0
  %v1501 = vpop.f32.mrf.mxu0
  %v1502 = vadd.f32 %v293, %v1501
  %v1503 = vpop.f32.mrf.mxu0
  %1504 = vmatprep.mubr.bf16.mxu0 %v848
  %1505 = vmatmul.mubr.bf16.gmra.mxu0 %v847
  %v1506 = vpop.f32.mrf.mxu0
  %v1507 = vadd.f32 %v293, %v1506
  %v1508 = vpop.f32.mrf.mxu0
  %v1509 = vpop.f32.mrf.mxu0
  %v1510 = vadd.f32 %v293, %v1509
  %v1511 = vpop.f32.mrf.mxu0
  %1512 = vmatprep.mubr.bf16.mxu0 %v853
  %1513 = vmatmul.mubr.bf16.gmra.mxu0 %v852
  %v1514 = vpop.f32.mrf.mxu0
  %v1515 = vadd.f32 %v293, %v1514
  %v1516 = vpop.f32.mrf.mxu0
  %v1517 = vpop.f32.mrf.mxu0
  %v1518 = vadd.f32 %v293, %v1517
  %v1519 = vpop.f32.mrf.mxu0
  %1520 = vmatprep.mubr.bf16.mxu0 %v858
  %1521 = vmatmul.mubr.bf16.gmra.mxu0 %v857
  %v1522 = vpop.f32.mrf.mxu0
  %v1523 = vadd.f32 %v293, %v1522
  %v1524 = vpop.f32.mrf.mxu0
  %v1525 = vpop.f32.mrf.mxu0
  %v1526 = vadd.f32 %v293, %v1525
  %v1527 = vpop.f32.mrf.mxu0
  %1528 = vmatprep.mubr.bf16.mxu0 %v863
  %1529 = vmatmul.mubr.bf16.gmra.mxu0 %v862
  %v1530 = vpop.f32.mrf.mxu0
  %v1531 = vadd.f32 %v293, %v1530
  %v1532 = vpop.f32.mrf.mxu0
  %v1533 = vpop.f32.mrf.mxu0
  %v1534 = vadd.f32 %v293, %v1533
  %v1535 = vpop.f32.mrf.mxu0
  %1536 = vmatprep.mubr.bf16.mxu0 %v868
  %1537 = vmatmul.mubr.bf16.gmra.mxu0 %v867
  %v1538 = vpop.f32.mrf.mxu0
  %v1539 = vadd.f32 %v293, %v1538
  %v1540 = vpop.f32.mrf.mxu0
  %v1541 = vpop.f32.mrf.mxu0
  %v1542 = vadd.f32 %v293, %v1541
  %v1543 = vpop.f32.mrf.mxu0
  %1544 = vmatprep.mubr.bf16.mxu0 %v873
  %1545 = vmatmul.mubr.bf16.gmra.mxu0 %v872
  %v1546 = vpop.f32.mrf.mxu0
  %v1547 = vadd.f32 %v293, %v1546
  %v1548 = vpop.f32.mrf.mxu0
  %v1549 = vpop.f32.mrf.mxu0
  %v1550 = vadd.f32 %v293, %v1549
  %v1551 = vpop.f32.mrf.mxu0
  %1552 = vmatprep.mubr.bf16.mxu0 %v878
  %1553 = vmatmul.mubr.bf16.gmra.mxu0 %v877
  %v1554 = vpop.f32.mrf.mxu0
  %v1555 = vadd.f32 %v293, %v1554
  %v1556 = vpop.f32.mrf.mxu0
  %v1557 = vpop.f32.mrf.mxu0
  %v1558 = vadd.f32 %v293, %v1557
  %v1559 = vpop.f32.mrf.mxu0
  %1560 = vmatprep.mubr.bf16.mxu0 %v883
  %1561 = vmatmul.mubr.bf16.gmra.mxu0 %v882
  %v1562 = vpop.f32.mrf.mxu0
  %v1563 = vadd.f32 %v293, %v1562
  %v1564 = vpop.f32.mrf.mxu0
  %v1565 = vpop.f32.mrf.mxu0
  %v1566 = vadd.f32 %v293, %v1565
  %v1567 = vpop.f32.mrf.mxu0
  %1568 = vmatprep.mubr.bf16.mxu0 %v888
  %1569 = vmatmul.mubr.bf16.gmra.mxu0 %v887
  %v1570 = vpop.f32.mrf.mxu0
  %v1571 = vadd.f32 %v293, %v1570
  %v1572 = vpop.f32.mrf.mxu0
  %v1573 = vpop.f32.mrf.mxu0
  %v1574 = vadd.f32 %v293, %v1573
  %v1575 = vpop.f32.mrf.mxu0
  %1576 = vmatprep.mubr.bf16.mxu0 %v893
  %1577 = vmatmul.mubr.bf16.gmra.mxu0 %v892
  %v1578 = vpop.f32.mrf.mxu0
  %v1579 = vadd.f32 %v293, %v1578
  %v1580 = vpop.f32.mrf.mxu0
  %v1581 = vpop.f32.mrf.mxu0
  %v1582 = vadd.f32 %v293, %v1581
  %v1583 = vpop.f32.mrf.mxu0
  %1584 = vmatprep.mubr.bf16.mxu0 %v898
  %1585 = vmatmul.mubr.bf16.gmra.mxu0 %v897
  %v1586 = vpop.f32.mrf.mxu0
  %v1587 = vadd.f32 %v293, %v1586
  %v1588 = vpop.f32.mrf.mxu0
  %v1589 = vpop.f32.mrf.mxu0
  %v1590 = vadd.f32 %v293, %v1589
  %v1591 = vpop.f32.mrf.mxu0
  %1592 = vmatprep.mubr.bf16.mxu0 %v903
  %1593 = vmatmul.mubr.bf16.gmra.mxu0 %v902
  %v1594 = vpop.f32.mrf.mxu0
  %v1595 = vadd.f32 %v293, %v1594
  %v1596 = vpop.f32.mrf.mxu0
  %v1597 = vpop.f32.mrf.mxu0
  %v1598 = vadd.f32 %v293, %v1597
  %v1599 = vpop.f32.mrf.mxu0
  %1600 = vmatprep.mubr.bf16.mxu0 %v908
  %1601 = vmatmul.mubr.bf16.gmra.mxu0 %v907
  %v1602 = vpop.f32.mrf.mxu0
  %v1603 = vadd.f32 %v293, %v1602
  %v1604 = vpop.f32.mrf.mxu0
  %v1605 = vpop.f32.mrf.mxu0
  %v1606 = vadd.f32 %v293, %v1605
  %v1607 = vpop.f32.mrf.mxu0
  %1608 = vmatprep.mubr.bf16.mxu0 %v913
  %1609 = vmatmul.mubr.bf16.gmra.mxu0 %v912
  %v1610 = vpop.f32.mrf.mxu0
  %v1611 = vadd.f32 %v293, %v1610
  %v1612 = vpop.f32.mrf.mxu0
  %v1613 = vpop.f32.mrf.mxu0
  %v1614 = vadd.f32 %v293, %v1613
  %v1615 = vpop.f32.mrf.mxu0
  %1616 = vmatprep.mubr.bf16.mxu0 %v918
  %1617 = vmatmul.mubr.bf16.gmra.mxu0 %v917
  %v1618 = vpop.f32.mrf.mxu0
  %v1619 = vadd.f32 %v293, %v1618
  %v1620 = vpop.f32.mrf.mxu0
  %v1621 = vpop.f32.mrf.mxu0
  %v1622 = vadd.f32 %v293, %v1621
  %v1623 = vpop.f32.mrf.mxu0
  %1624 = vmatprep.mubr.bf16.mxu0 %v923
  %1625 = vmatmul.mubr.bf16.gmra.mxu0 %v922
  %v1626 = vpop.f32.mrf.mxu0
  %v1627 = vadd.f32 %v293, %v1626
  %v1628 = vpop.f32.mrf.mxu0
  %v1629 = vpop.f32.mrf.mxu0
  %v1630 = vadd.f32 %v293, %v1629
  %v1631 = vpop.f32.mrf.mxu0
  %1632 = vmatprep.mubr.bf16.mxu0 %v928
  %1633 = vmatmul.mubr.bf16.gmra.mxu0 %v927
  %v1634 = vpop.f32.mrf.mxu0
  %v1635 = vadd.f32 %v293, %v1634
  %v1636 = vpop.f32.mrf.mxu0
  %v1637 = vpop.f32.mrf.mxu0
  %v1638 = vadd.f32 %v293, %v1637
  %v1639 = vpop.f32.mrf.mxu0
  %1640 = vmatprep.mubr.bf16.mxu0 %v933
  %1641 = vmatmul.mubr.bf16.gmra.mxu0 %v932
  %v1642 = vpop.f32.mrf.mxu0
  %v1643 = vadd.f32 %v293, %v1642
  %v1644 = vpop.f32.mrf.mxu0
  %v1645 = vpop.f32.mrf.mxu0
  %v1646 = vadd.f32 %v293, %v1645
  %v1647 = vpop.f32.mrf.mxu0
  %1648 = vmatprep.mubr.bf16.mxu0 %v938
  %1649 = vmatmul.mubr.bf16.gmra.mxu0 %v937
  %v1650 = vpop.f32.mrf.mxu0
  %v1651 = vadd.f32 %v293, %v1650
  %v1652 = vpop.f32.mrf.mxu0
  %v1653 = vpop.f32.mrf.mxu0
  %v1654 = vadd.f32 %v293, %v1653
  %v1655 = vpop.f32.mrf.mxu0
  %1656 = vmatprep.mubr.bf16.mxu0 %v943
  %1657 = vmatmul.mubr.bf16.gmra.mxu0 %v942
  %v1658 = vpop.f32.mrf.mxu0
  %v1659 = vadd.f32 %v293, %v1658
  %v1660 = vpop.f32.mrf.mxu0
  %v1661 = vpop.f32.mrf.mxu0
  %v1662 = vadd.f32 %v293, %v1661
  %v1663 = vpop.f32.mrf.mxu0
  %1664 = vmatprep.mubr.bf16.mxu0 %v948
  %1665 = vmatmul.mubr.bf16.gmra.mxu0 %v947
  %v1666 = vpop.f32.mrf.mxu0
  %v1667 = vadd.f32 %v293, %v1666
  %v1668 = vpop.f32.mrf.mxu0
  %v1669 = vpop.f32.mrf.mxu0
  %v1670 = vadd.f32 %v293, %v1669
  %v1671 = vpop.f32.mrf.mxu0
  %1672 = vmatprep.mubr.bf16.mxu0 %v953
  %1673 = vmatmul.mubr.bf16.gmra.mxu0 %v952
  %v1674 = vpop.f32.mrf.mxu0
  %v1675 = vadd.f32 %v293, %v1674
  %v1676 = vpop.f32.mrf.mxu0
  %v1677 = vpop.f32.mrf.mxu0
  %v1678 = vadd.f32 %v293, %v1677
  %v1679 = vpop.f32.mrf.mxu0
  %1680 = vmatprep.mubr.bf16.mxu0 %v958
  %1681 = vmatmul.mubr.bf16.gmra.mxu0 %v957
  %v1682 = vpop.f32.mrf.mxu0
  %v1683 = vadd.f32 %v293, %v1682
  %v1684 = vpop.f32.mrf.mxu0
  %v1685 = vpop.f32.mrf.mxu0
  %v1686 = vadd.f32 %v293, %v1685
  %v1687 = vpop.f32.mrf.mxu0
  %1688 = vmatprep.mubr.bf16.mxu0 %v963
  %1689 = vmatmul.mubr.bf16.gmra.mxu0 %v962
  %v1690 = vpop.f32.mrf.mxu0
  %v1691 = vadd.f32 %v293, %v1690
  %v1692 = vpop.f32.mrf.mxu0
  %v1693 = vpop.f32.mrf.mxu0
  %v1694 = vadd.f32 %v293, %v1693
  %v1695 = vpop.f32.mrf.mxu0
  %1696 = vdwg.mxu0
  %1697 = vmatprep.subr.bf16.mxu0 0
  %1698 = vmatpush1.bf16.msra.mxu0 %v1262
  %1699 = vmatprep.subr.bf16.mxu0 0
  %1700 = vmatpush1.bf16.msra.mxu0 %v1261
  %1701 = vmatprep.subr.bf16.mxu0 0
  %1702 = vmatpush1.bf16.msra.mxu0 %v1260
  %1703 = vmatprep.subr.bf16.mxu0 0
  %1704 = vmatpush1.bf16.msra.mxu0 %v1259
  %1705 = vmatprep.subr.bf16.mxu0 0
  %1706 = vmatpush1.bf16.msra.mxu0 %v1258
  %1707 = vmatprep.subr.bf16.mxu0 0
  %1708 = vmatpush1.bf16.msra.mxu0 %v1257
  %1709 = vmatprep.subr.bf16.mxu0 0
  %1710 = vmatpush1.bf16.msra.mxu0 %v1256
  %1711 = vmatprep.subr.bf16.mxu0 0
  %1712 = vmatpush1.bf16.msra.mxu0 %v1255
  %1713 = vmatprep.subr.bf16.mxu0 0
  %1714 = vmatpush2.bf16.msra.mxu0 %v1270
  %1715 = vmatprep.subr.bf16.mxu0 0
  %1716 = vmatpush2.bf16.msra.mxu0 %v1269
  %1717 = vmatprep.subr.bf16.mxu0 0
  %1718 = vmatpush2.bf16.msra.mxu0 %v1268
  %1719 = vmatprep.subr.bf16.mxu0 0
  %1720 = vmatpush2.bf16.msra.mxu0 %v1267
  %1721 = vmatprep.subr.bf16.mxu0 0
  %1722 = vmatpush2.bf16.msra.mxu0 %v1266
  %1723 = vmatprep.subr.bf16.mxu0 0
  %1724 = vmatpush2.bf16.msra.mxu0 %v1265
  %1725 = vmatprep.subr.bf16.mxu0 0
  %1726 = vmatpush2.bf16.msra.mxu0 %v1264
  %1727 = vmatprep.subr.bf16.mxu0 0
  %1728 = vmatpush2.bf16.msra.mxu0 %v1263
  %1729 = vmatprep.mubr.bf16.mxu0 %v810
  %1730 = vmatmul.mubr.bf16.gmra.mxu0 %v809
  %v1731 = vpop.f32.mrf.mxu0
  %v1732 = vadd.f32 %v1443, %v1731
  %v1733 = vpop.f32.mrf.mxu0
  %v1734 = vpop.f32.mrf.mxu0
  %v1735 = vadd.f32 %v1446, %v1734
  %v1736 = vpop.f32.mrf.mxu0
  %1737 = vmatprep.mubr.bf16.mxu0 %v815
  %1738 = vmatmul.mubr.bf16.gmra.mxu0 %v814
  %v1739 = vpop.f32.mrf.mxu0
  %v1740 = vadd.f32 %v1451, %v1739
  %v1741 = vpop.f32.mrf.mxu0
  %v1742 = vpop.f32.mrf.mxu0
  %v1743 = vadd.f32 %v1454, %v1742
  %v1744 = vpop.f32.mrf.mxu0
  %1745 = vmatprep.mubr.bf16.mxu0 %v820
  %1746 = vmatmul.mubr.bf16.gmra.mxu0 %v819
  %v1747 = vpop.f32.mrf.mxu0
  %v1748 = vadd.f32 %v1459, %v1747
  %v1749 = vpop.f32.mrf.mxu0
  %v1750 = vpop.f32.mrf.mxu0
  %v1751 = vadd.f32 %v1462, %v1750
  %v1752 = vpop.f32.mrf.mxu0
  %1753 = vmatprep.mubr.bf16.mxu0 %v825
  %1754 = vmatmul.mubr.bf16.gmra.mxu0 %v824
  %v1755 = vpop.f32.mrf.mxu0
  %v1756 = vadd.f32 %v1467, %v1755
  %v1757 = vpop.f32.mrf.mxu0
  %v1758 = vpop.f32.mrf.mxu0
  %v1759 = vadd.f32 %v1470, %v1758
  %v1760 = vpop.f32.mrf.mxu0
  %1761 = vmatprep.mubr.bf16.mxu0 %v830
  %1762 = vmatmul.mubr.bf16.gmra.mxu0 %v829
  %v1763 = vpop.f32.mrf.mxu0
  %v1764 = vadd.f32 %v1475, %v1763
  %v1765 = vpop.f32.mrf.mxu0
  %v1766 = vpop.f32.mrf.mxu0
  %v1767 = vadd.f32 %v1478, %v1766
  %v1768 = vpop.f32.mrf.mxu0
  %1769 = vmatprep.mubr.bf16.mxu0 %v835
  %1770 = vmatmul.mubr.bf16.gmra.mxu0 %v834
  %v1771 = vpop.f32.mrf.mxu0
  %v1772 = vadd.f32 %v1483, %v1771
  %v1773 = vpop.f32.mrf.mxu0
  %v1774 = vpop.f32.mrf.mxu0
  %v1775 = vadd.f32 %v1486, %v1774
  %v1776 = vpop.f32.mrf.mxu0
  %1777 = vmatprep.mubr.bf16.mxu0 %v840
  %1778 = vmatmul.mubr.bf16.gmra.mxu0 %v839
  %v1779 = vpop.f32.mrf.mxu0
  %v1780 = vadd.f32 %v1491, %v1779
  %v1781 = vpop.f32.mrf.mxu0
  %v1782 = vpop.f32.mrf.mxu0
  %v1783 = vadd.f32 %v1494, %v1782
  %v1784 = vpop.f32.mrf.mxu0
  %1785 = vmatprep.mubr.bf16.mxu0 %v845
  %1786 = vmatmul.mubr.bf16.gmra.mxu0 %v844
  %v1787 = vpop.f32.mrf.mxu0
  %v1788 = vadd.f32 %v1499, %v1787
  %v1789 = vpop.f32.mrf.mxu0
  %v1790 = vpop.f32.mrf.mxu0
  %v1791 = vadd.f32 %v1502, %v1790
  %v1792 = vpop.f32.mrf.mxu0
  %1793 = vmatprep.mubr.bf16.mxu0 %v850
  %1794 = vmatmul.mubr.bf16.gmra.mxu0 %v849
  %v1795 = vpop.f32.mrf.mxu0
  %v1796 = vadd.f32 %v1507, %v1795
  %v1797 = vpop.f32.mrf.mxu0
  %v1798 = vpop.f32.mrf.mxu0
  %v1799 = vadd.f32 %v1510, %v1798
  %v1800 = vpop.f32.mrf.mxu0
  %1801 = vmatprep.mubr.bf16.mxu0 %v855
  %1802 = vmatmul.mubr.bf16.gmra.mxu0 %v854
  %v1803 = vpop.f32.mrf.mxu0
  %v1804 = vadd.f32 %v1515, %v1803
  %v1805 = vpop.f32.mrf.mxu0
  %v1806 = vpop.f32.mrf.mxu0
  %v1807 = vadd.f32 %v1518, %v1806
  %v1808 = vpop.f32.mrf.mxu0
  %1809 = vmatprep.mubr.bf16.mxu0 %v860
  %1810 = vmatmul.mubr.bf16.gmra.mxu0 %v859
  %v1811 = vpop.f32.mrf.mxu0
  %v1812 = vadd.f32 %v1523, %v1811
  %v1813 = vpop.f32.mrf.mxu0
  %v1814 = vpop.f32.mrf.mxu0
  %v1815 = vadd.f32 %v1526, %v1814
  %v1816 = vpop.f32.mrf.mxu0
  %1817 = vmatprep.mubr.bf16.mxu0 %v865
  %1818 = vmatmul.mubr.bf16.gmra.mxu0 %v864
  %v1819 = vpop.f32.mrf.mxu0
  %v1820 = vadd.f32 %v1531, %v1819
  %v1821 = vpop.f32.mrf.mxu0
  %v1822 = vpop.f32.mrf.mxu0
  %v1823 = vadd.f32 %v1534, %v1822
  %v1824 = vpop.f32.mrf.mxu0
  %1825 = vmatprep.mubr.bf16.mxu0 %v870
  %1826 = vmatmul.mubr.bf16.gmra.mxu0 %v869
  %v1827 = vpop.f32.mrf.mxu0
  %v1828 = vadd.f32 %v1539, %v1827
  %v1829 = vpop.f32.mrf.mxu0
  %v1830 = vpop.f32.mrf.mxu0
  %v1831 = vadd.f32 %v1542, %v1830
  %v1832 = vpop.f32.mrf.mxu0
  %1833 = vmatprep.mubr.bf16.mxu0 %v875
  %1834 = vmatmul.mubr.bf16.gmra.mxu0 %v874
  %v1835 = vpop.f32.mrf.mxu0
  %v1836 = vadd.f32 %v1547, %v1835
  %v1837 = vpop.f32.mrf.mxu0
  %v1838 = vpop.f32.mrf.mxu0
  %v1839 = vadd.f32 %v1550, %v1838
  %v1840 = vpop.f32.mrf.mxu0
  %1841 = vmatprep.mubr.bf16.mxu0 %v880
  %1842 = vmatmul.mubr.bf16.gmra.mxu0 %v879
  %v1843 = vpop.f32.mrf.mxu0
  %v1844 = vadd.f32 %v1555, %v1843
  %v1845 = vpop.f32.mrf.mxu0
  %v1846 = vpop.f32.mrf.mxu0
  %v1847 = vadd.f32 %v1558, %v1846
  %v1848 = vpop.f32.mrf.mxu0
  %1849 = vmatprep.mubr.bf16.mxu0 %v885
  %1850 = vmatmul.mubr.bf16.gmra.mxu0 %v884
  %v1851 = vpop.f32.mrf.mxu0
  %v1852 = vadd.f32 %v1563, %v1851
  %v1853 = vpop.f32.mrf.mxu0
  %v1854 = vpop.f32.mrf.mxu0
  %v1855 = vadd.f32 %v1566, %v1854
  %v1856 = vpop.f32.mrf.mxu0
  %1857 = vmatprep.mubr.bf16.mxu0 %v890
  %1858 = vmatmul.mubr.bf16.gmra.mxu0 %v889
  %v1859 = vpop.f32.mrf.mxu0
  %v1860 = vadd.f32 %v1571, %v1859
  %v1861 = vpop.f32.mrf.mxu0
  %v1862 = vpop.f32.mrf.mxu0
  %v1863 = vadd.f32 %v1574, %v1862
  %v1864 = vpop.f32.mrf.mxu0
  %1865 = vmatprep.mubr.bf16.mxu0 %v895
  %1866 = vmatmul.mubr.bf16.gmra.mxu0 %v894
  %v1867 = vpop.f32.mrf.mxu0
  %v1868 = vadd.f32 %v1579, %v1867
  %v1869 = vpop.f32.mrf.mxu0
  %v1870 = vpop.f32.mrf.mxu0
  %v1871 = vadd.f32 %v1582, %v1870
  %v1872 = vpop.f32.mrf.mxu0
  %1873 = vmatprep.mubr.bf16.mxu0 %v900
  %1874 = vmatmul.mubr.bf16.gmra.mxu0 %v899
  %v1875 = vpop.f32.mrf.mxu0
  %v1876 = vadd.f32 %v1587, %v1875
  %v1877 = vpop.f32.mrf.mxu0
  %v1878 = vpop.f32.mrf.mxu0
  %v1879 = vadd.f32 %v1590, %v1878
  %v1880 = vpop.f32.mrf.mxu0
  %1881 = vmatprep.mubr.bf16.mxu0 %v905
  %1882 = vmatmul.mubr.bf16.gmra.mxu0 %v904
  %v1883 = vpop.f32.mrf.mxu0
  %v1884 = vadd.f32 %v1595, %v1883
  %v1885 = vpop.f32.mrf.mxu0
  %v1886 = vpop.f32.mrf.mxu0
  %v1887 = vadd.f32 %v1598, %v1886
  %v1888 = vpop.f32.mrf.mxu0
  %1889 = vmatprep.mubr.bf16.mxu0 %v910
  %1890 = vmatmul.mubr.bf16.gmra.mxu0 %v909
  %v1891 = vpop.f32.mrf.mxu0
  %v1892 = vadd.f32 %v1603, %v1891
  %v1893 = vpop.f32.mrf.mxu0
  %v1894 = vpop.f32.mrf.mxu0
  %v1895 = vadd.f32 %v1606, %v1894
  %v1896 = vpop.f32.mrf.mxu0
  %1897 = vmatprep.mubr.bf16.mxu0 %v915
  %1898 = vmatmul.mubr.bf16.gmra.mxu0 %v914
  %v1899 = vpop.f32.mrf.mxu0
  %v1900 = vadd.f32 %v1611, %v1899
  %v1901 = vpop.f32.mrf.mxu0
  %v1902 = vpop.f32.mrf.mxu0
  %v1903 = vadd.f32 %v1614, %v1902
  %v1904 = vpop.f32.mrf.mxu0
  %1905 = vmatprep.mubr.bf16.mxu0 %v920
  %1906 = vmatmul.mubr.bf16.gmra.mxu0 %v919
  %v1907 = vpop.f32.mrf.mxu0
  %v1908 = vadd.f32 %v1619, %v1907
  %v1909 = vpop.f32.mrf.mxu0
  %v1910 = vpop.f32.mrf.mxu0
  %v1911 = vadd.f32 %v1622, %v1910
  %v1912 = vpop.f32.mrf.mxu0
  %1913 = vmatprep.mubr.bf16.mxu0 %v925
  %1914 = vmatmul.mubr.bf16.gmra.mxu0 %v924
  %v1915 = vpop.f32.mrf.mxu0
  %v1916 = vadd.f32 %v1627, %v1915
  %v1917 = vpop.f32.mrf.mxu0
  %v1918 = vpop.f32.mrf.mxu0
  %v1919 = vadd.f32 %v1630, %v1918
  %v1920 = vpop.f32.mrf.mxu0
  %1921 = vmatprep.mubr.bf16.mxu0 %v930
  %1922 = vmatmul.mubr.bf16.gmra.mxu0 %v929
  %v1923 = vpop.f32.mrf.mxu0
  %v1924 = vadd.f32 %v1635, %v1923
  %v1925 = vpop.f32.mrf.mxu0
  %v1926 = vpop.f32.mrf.mxu0
  %v1927 = vadd.f32 %v1638, %v1926
  %v1928 = vpop.f32.mrf.mxu0
  %1929 = vmatprep.mubr.bf16.mxu0 %v935
  %1930 = vmatmul.mubr.bf16.gmra.mxu0 %v934
  %v1931 = vpop.f32.mrf.mxu0
  %v1932 = vadd.f32 %v1643, %v1931
  %v1933 = vpop.f32.mrf.mxu0
  %v1934 = vpop.f32.mrf.mxu0
  %v1935 = vadd.f32 %v1646, %v1934
  %v1936 = vpop.f32.mrf.mxu0
  %1937 = vmatprep.mubr.bf16.mxu0 %v940
  %1938 = vmatmul.mubr.bf16.gmra.mxu0 %v939
  %v1939 = vpop.f32.mrf.mxu0
  %v1940 = vadd.f32 %v1651, %v1939
  %v1941 = vpop.f32.mrf.mxu0
  %v1942 = vpop.f32.mrf.mxu0
  %v1943 = vadd.f32 %v1654, %v1942
  %v1944 = vpop.f32.mrf.mxu0
  %1945 = vmatprep.mubr.bf16.mxu0 %v945
  %1946 = vmatmul.mubr.bf16.gmra.mxu0 %v944
  %v1947 = vpop.f32.mrf.mxu0
  %v1948 = vadd.f32 %v1659, %v1947
  %v1949 = vpop.f32.mrf.mxu0
  %v1950 = vpop.f32.mrf.mxu0
  %v1951 = vadd.f32 %v1662, %v1950
  %v1952 = vpop.f32.mrf.mxu0
  %1953 = vmatprep.mubr.bf16.mxu0 %v950
  %1954 = vmatmul.mubr.bf16.gmra.mxu0 %v949
  %v1955 = vpop.f32.mrf.mxu0
  %v1956 = vadd.f32 %v1667, %v1955
  %v1957 = vpop.f32.mrf.mxu0
  %v1958 = vpop.f32.mrf.mxu0
  %v1959 = vadd.f32 %v1670, %v1958
  %v1960 = vpop.f32.mrf.mxu0
  %1961 = vmatprep.mubr.bf16.mxu0 %v955
  %1962 = vmatmul.mubr.bf16.gmra.mxu0 %v954
  %v1963 = vpop.f32.mrf.mxu0
  %v1964 = vadd.f32 %v1675, %v1963
  %v1965 = vpop.f32.mrf.mxu0
  %v1966 = vpop.f32.mrf.mxu0
  %v1967 = vadd.f32 %v1678, %v1966
  %v1968 = vpop.f32.mrf.mxu0
  %1969 = vmatprep.mubr.bf16.mxu0 %v960
  %1970 = vmatmul.mubr.bf16.gmra.mxu0 %v959
  %v1971 = vpop.f32.mrf.mxu0
  %v1972 = vadd.f32 %v1683, %v1971
  %v1973 = vpop.f32.mrf.mxu0
  %v1974 = vpop.f32.mrf.mxu0
  %v1975 = vadd.f32 %v1686, %v1974
  %v1976 = vpop.f32.mrf.mxu0
  %1977 = vmatprep.mubr.bf16.mxu0 %v965
  %1978 = vmatmul.mubr.bf16.gmra.mxu0 %v964
  %v1979 = vpop.f32.mrf.mxu0
  %v1980 = vadd.f32 %v1691, %v1979
  %v1981 = vpop.f32.mrf.mxu0
  %v1982 = vpop.f32.mrf.mxu0
  %v1983 = vadd.f32 %v1694, %v1982
  %v1984 = vpop.f32.mrf.mxu0
  %1985 = vdwg.mxu0
  %1986 = vmatprep.subr.bf16.mxu0 0
  %1987 = vmatpush1.bf16.msra.mxu0 0
  %1988 = vmatprep.subr.bf16.mxu0 0
  %1989 = vmatpush1.bf16.msra.mxu0 0
  %1990 = vmatprep.subr.bf16.mxu0 0
  %1991 = vmatpush1.bf16.msra.mxu0 0
  %1992 = vmatprep.subr.bf16.mxu0 0
  %1993 = vmatpush1.bf16.msra.mxu0 0
  %1994 = vmatprep.subr.bf16.mxu0 0
  %1995 = vmatpush1.bf16.msra.mxu0 %v1274
  %1996 = vmatprep.subr.bf16.mxu0 0
  %1997 = vmatpush1.bf16.msra.mxu0 %v1273
  %1998 = vmatprep.subr.bf16.mxu0 0
  %1999 = vmatpush1.bf16.msra.mxu0 %v1272
  %2000 = vmatprep.subr.bf16.mxu0 0
  %2001 = vmatpush1.bf16.msra.mxu0 %v1271
  %2002 = vmatprep.subr.bf16.mxu0 0
  %2003 = vmatpush2.bf16.msra.mxu0 0
  %2004 = vmatprep.subr.bf16.mxu0 0
  %2005 = vmatpush2.bf16.msra.mxu0 0
  %2006 = vmatprep.subr.bf16.mxu0 0
  %2007 = vmatpush2.bf16.msra.mxu0 0
  %2008 = vmatprep.subr.bf16.mxu0 0
  %2009 = vmatpush2.bf16.msra.mxu0 0
  %2010 = vmatprep.subr.bf16.mxu0 0
  %2011 = vmatpush2.bf16.msra.mxu0 0
  %2012 = vmatprep.subr.bf16.mxu0 0
  %2013 = vmatpush2.bf16.msra.mxu0 0
  %2014 = vmatprep.subr.bf16.mxu0 0
  %2015 = vmatpush2.bf16.msra.mxu0 0
  %2016 = vmatprep.subr.bf16.mxu0 0
  %2017 = vmatpush2.bf16.msra.mxu0 0
  %2018 = vmatprep.mubr.bf16.mxu0 0
  %2019 = vmatmul.mubr.bf16.gmra.mxu0 %v1313
  %v2020 = vpop.f32.mrf.mxu0
  %v2021 = vadd.f32 %v1732, %v2020
  %v2022 = vpop.f32.mrf.mxu0
  %v2023 = vpop.f32.mrf.mxu0
  %v2024 = vadd.f32 %v1735, %v2023
  %v2025 = vpop.f32.mrf.mxu0
  %2026 = vmatprep.mubr.bf16.mxu0 0
  %2027 = vmatmul.mubr.bf16.gmra.mxu0 %v1316
  %v2028 = vpop.f32.mrf.mxu0
  %v2029 = vadd.f32 %v1740, %v2028
  %v2030 = vpop.f32.mrf.mxu0
  %v2031 = vpop.f32.mrf.mxu0
  %v2032 = vadd.f32 %v1743, %v2031
  %v2033 = vpop.f32.mrf.mxu0
  %2034 = vmatprep.mubr.bf16.mxu0 0
  %2035 = vmatmul.mubr.bf16.gmra.mxu0 %v1319
  %v2036 = vpop.f32.mrf.mxu0
  %v2037 = vadd.f32 %v1748, %v2036
  %v2038 = vpop.f32.mrf.mxu0
  %v2039 = vpop.f32.mrf.mxu0
  %v2040 = vadd.f32 %v1751, %v2039
  %v2041 = vpop.f32.mrf.mxu0
  %2042 = vmatprep.mubr.bf16.mxu0 0
  %2043 = vmatmul.mubr.bf16.gmra.mxu0 %v1322
  %v2044 = vpop.f32.mrf.mxu0
  %v2045 = vadd.f32 %v1756, %v2044
  %v2046 = vpop.f32.mrf.mxu0
  %v2047 = vpop.f32.mrf.mxu0
  %v2048 = vadd.f32 %v1759, %v2047
  %v2049 = vpop.f32.mrf.mxu0
  %2050 = vmatprep.mubr.bf16.mxu0 0
  %2051 = vmatmul.mubr.bf16.gmra.mxu0 %v1325
  %v2052 = vpop.f32.mrf.mxu0
  %v2053 = vadd.f32 %v1764, %v2052
  %v2054 = vpop.f32.mrf.mxu0
  %v2055 = vpop.f32.mrf.mxu0
  %v2056 = vadd.f32 %v1767, %v2055
  %v2057 = vpop.f32.mrf.mxu0
  %2058 = vmatprep.mubr.bf16.mxu0 0
  %2059 = vmatmul.mubr.bf16.gmra.mxu0 %v1328
  %v2060 = vpop.f32.mrf.mxu0
  %v2061 = vadd.f32 %v1772, %v2060
  %v2062 = vpop.f32.mrf.mxu0
  %v2063 = vpop.f32.mrf.mxu0
  %v2064 = vadd.f32 %v1775, %v2063
  %v2065 = vpop.f32.mrf.mxu0
  %2066 = vmatprep.mubr.bf16.mxu0 0
  %2067 = vmatmul.mubr.bf16.gmra.mxu0 %v1331
  %v2068 = vpop.f32.mrf.mxu0
  %v2069 = vadd.f32 %v1780, %v2068
  %v2070 = vpop.f32.mrf.mxu0
  %v2071 = vpop.f32.mrf.mxu0
  %v2072 = vadd.f32 %v1783, %v2071
  %v2073 = vpop.f32.mrf.mxu0
  %2074 = vmatprep.mubr.bf16.mxu0 0
  %2075 = vmatmul.mubr.bf16.gmra.mxu0 %v1334
  %v2076 = vpop.f32.mrf.mxu0
  %v2077 = vadd.f32 %v1788, %v2076
  %v2078 = vpop.f32.mrf.mxu0
  %v2079 = vpop.f32.mrf.mxu0
  %v2080 = vadd.f32 %v1791, %v2079
  %v2081 = vpop.f32.mrf.mxu0
  %2082 = vmatprep.mubr.bf16.mxu0 0
  %2083 = vmatmul.mubr.bf16.gmra.mxu0 %v1337
  %v2084 = vpop.f32.mrf.mxu0
  %v2085 = vadd.f32 %v1796, %v2084
  %v2086 = vpop.f32.mrf.mxu0
  %v2087 = vpop.f32.mrf.mxu0
  %v2088 = vadd.f32 %v1799, %v2087
  %v2089 = vpop.f32.mrf.mxu0
  %2090 = vmatprep.mubr.bf16.mxu0 0
  %2091 = vmatmul.mubr.bf16.gmra.mxu0 %v1340
  %v2092 = vpop.f32.mrf.mxu0
  %v2093 = vadd.f32 %v1804, %v2092
  %v2094 = vpop.f32.mrf.mxu0
  %v2095 = vpop.f32.mrf.mxu0
  %v2096 = vadd.f32 %v1807, %v2095
  %v2097 = vpop.f32.mrf.mxu0
  %2098 = vmatprep.mubr.bf16.mxu0 0
  %2099 = vmatmul.mubr.bf16.gmra.mxu0 %v1343
  %v2100 = vpop.f32.mrf.mxu0
  %v2101 = vadd.f32 %v1812, %v2100
  %v2102 = vpop.f32.mrf.mxu0
  %v2103 = vpop.f32.mrf.mxu0
  %v2104 = vadd.f32 %v1815, %v2103
  %v2105 = vpop.f32.mrf.mxu0
  %2106 = vmatprep.mubr.bf16.mxu0 0
  %2107 = vmatmul.mubr.bf16.gmra.mxu0 %v1346
  %v2108 = vpop.f32.mrf.mxu0
  %v2109 = vadd.f32 %v1820, %v2108
  %v2110 = vpop.f32.mrf.mxu0
  %v2111 = vpop.f32.mrf.mxu0
  %v2112 = vadd.f32 %v1823, %v2111
  %v2113 = vpop.f32.mrf.mxu0
  %2114 = vmatprep.mubr.bf16.mxu0 0
  %2115 = vmatmul.mubr.bf16.gmra.mxu0 %v1349
  %v2116 = vpop.f32.mrf.mxu0
  %v2117 = vadd.f32 %v1828, %v2116
  %v2118 = vpop.f32.mrf.mxu0
  %v2119 = vpop.f32.mrf.mxu0
  %v2120 = vadd.f32 %v1831, %v2119
  %v2121 = vpop.f32.mrf.mxu0
  %2122 = vmatprep.mubr.bf16.mxu0 0
  %2123 = vmatmul.mubr.bf16.gmra.mxu0 %v1352
  %v2124 = vpop.f32.mrf.mxu0
  %v2125 = vadd.f32 %v1836, %v2124
  %v2126 = vpop.f32.mrf.mxu0
  %v2127 = vpop.f32.mrf.mxu0
  %v2128 = vadd.f32 %v1839, %v2127
  %v2129 = vpop.f32.mrf.mxu0
  %2130 = vmatprep.mubr.bf16.mxu0 0
  %2131 = vmatmul.mubr.bf16.gmra.mxu0 %v1355
  %v2132 = vpop.f32.mrf.mxu0
  %v2133 = vadd.f32 %v1844, %v2132
  %v2134 = vpop.f32.mrf.mxu0
  %v2135 = vpop.f32.mrf.mxu0
  %v2136 = vadd.f32 %v1847, %v2135
  %v2137 = vpop.f32.mrf.mxu0
  %2138 = vmatprep.mubr.bf16.mxu0 0
  %2139 = vmatmul.mubr.bf16.gmra.mxu0 %v1358
  %v2140 = vpop.f32.mrf.mxu0
  %v2141 = vadd.f32 %v1852, %v2140
  %v2142 = vpop.f32.mrf.mxu0
  %v2143 = vpop.f32.mrf.mxu0
  %v2144 = vadd.f32 %v1855, %v2143
  %v2145 = vpop.f32.mrf.mxu0
  %2146 = vmatprep.mubr.bf16.mxu0 0
  %2147 = vmatmul.mubr.bf16.gmra.mxu0 %v1361
  %v2148 = vpop.f32.mrf.mxu0
  %v2149 = vadd.f32 %v1860, %v2148
  %v2150 = vpop.f32.mrf.mxu0
  %v2151 = vpop.f32.mrf.mxu0
  %v2152 = vadd.f32 %v1863, %v2151
  %v2153 = vpop.f32.mrf.mxu0
  %2154 = vmatprep.mubr.bf16.mxu0 0
  %2155 = vmatmul.mubr.bf16.gmra.mxu0 %v1364
  %v2156 = vpop.f32.mrf.mxu0
  %v2157 = vadd.f32 %v1868, %v2156
  %v2158 = vpop.f32.mrf.mxu0
  %v2159 = vpop.f32.mrf.mxu0
  %v2160 = vadd.f32 %v1871, %v2159
  %v2161 = vpop.f32.mrf.mxu0
  %2162 = vmatprep.mubr.bf16.mxu0 0
  %2163 = vmatmul.mubr.bf16.gmra.mxu0 %v1367
  %v2164 = vpop.f32.mrf.mxu0
  %v2165 = vadd.f32 %v1876, %v2164
  %v2166 = vpop.f32.mrf.mxu0
  %v2167 = vpop.f32.mrf.mxu0
  %v2168 = vadd.f32 %v1879, %v2167
  %v2169 = vpop.f32.mrf.mxu0
  %2170 = vmatprep.mubr.bf16.mxu0 0
  %2171 = vmatmul.mubr.bf16.gmra.mxu0 %v1370
  %v2172 = vpop.f32.mrf.mxu0
  %v2173 = vadd.f32 %v1884, %v2172
  %v2174 = vpop.f32.mrf.mxu0
  %v2175 = vpop.f32.mrf.mxu0
  %v2176 = vadd.f32 %v1887, %v2175
  %v2177 = vpop.f32.mrf.mxu0
  %2178 = vmatprep.mubr.bf16.mxu0 0
  %2179 = vmatmul.mubr.bf16.gmra.mxu0 %v1373
  %v2180 = vpop.f32.mrf.mxu0
  %v2181 = vadd.f32 %v1892, %v2180
  %v2182 = vpop.f32.mrf.mxu0
  %v2183 = vpop.f32.mrf.mxu0
  %v2184 = vadd.f32 %v1895, %v2183
  %v2185 = vpop.f32.mrf.mxu0
  %2186 = vmatprep.mubr.bf16.mxu0 0
  %2187 = vmatmul.mubr.bf16.gmra.mxu0 %v1376
  %v2188 = vpop.f32.mrf.mxu0
  %v2189 = vadd.f32 %v1900, %v2188
  %v2190 = vpop.f32.mrf.mxu0
  %v2191 = vpop.f32.mrf.mxu0
  %v2192 = vadd.f32 %v1903, %v2191
  %v2193 = vpop.f32.mrf.mxu0
  %2194 = vmatprep.mubr.bf16.mxu0 0
  %2195 = vmatmul.mubr.bf16.gmra.mxu0 %v1379
  %v2196 = vpop.f32.mrf.mxu0
  %v2197 = vadd.f32 %v1908, %v2196
  %v2198 = vpop.f32.mrf.mxu0
  %v2199 = vpop.f32.mrf.mxu0
  %v2200 = vadd.f32 %v1911, %v2199
  %v2201 = vpop.f32.mrf.mxu0
  %2202 = vmatprep.mubr.bf16.mxu0 0
  %2203 = vmatmul.mubr.bf16.gmra.mxu0 %v1382
  %v2204 = vpop.f32.mrf.mxu0
  %v2205 = vadd.f32 %v1916, %v2204
  %v2206 = vpop.f32.mrf.mxu0
  %v2207 = vpop.f32.mrf.mxu0
  %v2208 = vadd.f32 %v1919, %v2207
  %v2209 = vpop.f32.mrf.mxu0
  %2210 = vmatprep.mubr.bf16.mxu0 0
  %2211 = vmatmul.mubr.bf16.gmra.mxu0 %v1385
  %v2212 = vpop.f32.mrf.mxu0
  %v2213 = vadd.f32 %v1924, %v2212
  %v2214 = vpop.f32.mrf.mxu0
  %v2215 = vpop.f32.mrf.mxu0
  %v2216 = vadd.f32 %v1927, %v2215
  %v2217 = vpop.f32.mrf.mxu0
  %2218 = vmatprep.mubr.bf16.mxu0 0
  %2219 = vmatmul.mubr.bf16.gmra.mxu0 %v1388
  %v2220 = vpop.f32.mrf.mxu0
  %v2221 = vadd.f32 %v1932, %v2220
  %v2222 = vpop.f32.mrf.mxu0
  %v2223 = vpop.f32.mrf.mxu0
  %v2224 = vadd.f32 %v1935, %v2223
  %v2225 = vpop.f32.mrf.mxu0
  %2226 = vmatprep.mubr.bf16.mxu0 0
  %2227 = vmatmul.mubr.bf16.gmra.mxu0 %v1391
  %v2228 = vpop.f32.mrf.mxu0
  %v2229 = vadd.f32 %v1940, %v2228
  %v2230 = vpop.f32.mrf.mxu0
  %v2231 = vpop.f32.mrf.mxu0
  %v2232 = vadd.f32 %v1943, %v2231
  %v2233 = vpop.f32.mrf.mxu0
  %2234 = vmatprep.mubr.bf16.mxu0 0
  %2235 = vmatmul.mubr.bf16.gmra.mxu0 %v1394
  %v2236 = vpop.f32.mrf.mxu0
  %v2237 = vadd.f32 %v1948, %v2236
  %v2238 = vpop.f32.mrf.mxu0
  %v2239 = vpop.f32.mrf.mxu0
  %v2240 = vadd.f32 %v1951, %v2239
  %v2241 = vpop.f32.mrf.mxu0
  %2242 = vmatprep.mubr.bf16.mxu0 0
  %2243 = vmatmul.mubr.bf16.gmra.mxu0 %v1397
  %v2244 = vpop.f32.mrf.mxu0
  %v2245 = vadd.f32 %v1956, %v2244
  %v2246 = vpop.f32.mrf.mxu0
  %v2247 = vpop.f32.mrf.mxu0
  %v2248 = vadd.f32 %v1959, %v2247
  %v2249 = vpop.f32.mrf.mxu0
  %2250 = vmatprep.mubr.bf16.mxu0 0
  %2251 = vmatmul.mubr.bf16.gmra.mxu0 %v1400
  %v2252 = vpop.f32.mrf.mxu0
  %v2253 = vadd.f32 %v1964, %v2252
  %v2254 = vpop.f32.mrf.mxu0
  %v2255 = vpop.f32.mrf.mxu0
  %v2256 = vadd.f32 %v1967, %v2255
  %v2257 = vpop.f32.mrf.mxu0
  %2258 = vmatprep.mubr.bf16.mxu0 0
  %2259 = vmatmul.mubr.bf16.gmra.mxu0 %v1403
  %v2260 = vpop.f32.mrf.mxu0
  %v2261 = vadd.f32 %v1972, %v2260
  %v2262 = vpop.f32.mrf.mxu0
  %v2263 = vpop.f32.mrf.mxu0
  %v2264 = vadd.f32 %v1975, %v2263
  %v2265 = vpop.f32.mrf.mxu0
  %2266 = vmatprep.mubr.bf16.mxu0 0
  %2267 = vmatmul.mubr.bf16.gmra.mxu0 %v1406
  %v2268 = vpop.f32.mrf.mxu0
  %v2269 = vadd.f32 %v1980, %v2268
  %v2270 = vpop.f32.mrf.mxu0
  %v2271 = vpop.f32.mrf.mxu0
  %v2272 = vadd.f32 %v1983, %v2271
  %v2273 = vpop.f32.mrf.mxu0
  %2274 = vdwg.mxu0
  %v2275 = vsel %vm1311, %v2021, 0.0
  %v2276 = vsel %vm1311, %v2024, 0.0
  %v2277 = vadd.f32 %v2275, %v2276
  %v2278 = vsel %vm1311, %v2029, 0.0
  %v2279 = vadd.f32 %v2277, %v2278
  %v2280 = vsel %vm1311, %v2032, 0.0
  %v2281 = vadd.f32 %v2279, %v2280
  %v2282 = vsel %vm1311, %v2037, 0.0
  %v2283 = vadd.f32 %v2281, %v2282
  %v2284 = vsel %vm1311, %v2040, 0.0
  %v2285 = vadd.f32 %v2283, %v2284
  %v2286 = vsel %vm1311, %v2045, 0.0
  %v2287 = vadd.f32 %v2285, %v2286
  %v2288 = vsel %vm1311, %v2048, 0.0
  %v2289 = vadd.f32 %v2287, %v2288
  %v2290 = vsel %vm1311, %v2053, 0.0
  %v2291 = vadd.f32 %v2289, %v2290
  %v2292 = vsel %vm1311, %v2056, 0.0
  %v2293 = vadd.f32 %v2291, %v2292
  %v2294 = vsel %vm1311, %v2061, 0.0
  %v2295 = vadd.f32 %v2293, %v2294
  %v2296 = vsel %vm1311, %v2064, 0.0
  %v2297 = vadd.f32 %v2295, %v2296
  %v2298 = vsel %vm1311, %v2069, 0.0
  %v2299 = vadd.f32 %v2297, %v2298
  %v2300 = vsel %vm1311, %v2072, 0.0
  %v2301 = vadd.f32 %v2299, %v2300
  %v2302 = vsel %vm1311, %v2077, 0.0
  %v2303 = vadd.f32 %v2301, %v2302
  %v2304 = vsel %vm1311, %v2080, 0.0
  %v2305 = vadd.f32 %v2303, %v2304
  %v2306 = vsel %vm1311, %v2085, 0.0
  %v2307 = vadd.f32 %v2305, %v2306
  %v2308 = vsel %vm1311, %v2088, 0.0
  %v2309 = vadd.f32 %v2307, %v2308
  %v2310 = vsel %vm1311, %v2093, 0.0
  %v2311 = vadd.f32 %v2309, %v2310
  %v2312 = vsel %vm1311, %v2096, 0.0
  %v2313 = vadd.f32 %v2311, %v2312
  %v2314 = vsel %vm1311, %v2101, 0.0
  %v2315 = vadd.f32 %v2313, %v2314
  %v2316 = vsel %vm1311, %v2104, 0.0
  %v2317 = vadd.f32 %v2315, %v2316
  %v2318 = vsel %vm1311, %v2109, 0.0
  %v2319 = vadd.f32 %v2317, %v2318
  %v2320 = vsel %vm1311, %v2112, 0.0
  %v2321 = vadd.f32 %v2319, %v2320
  %v2322 = vsel %vm1311, %v2117, 0.0
  %v2323 = vadd.f32 %v2321, %v2322
  %v2324 = vsel %vm1311, %v2120, 0.0
  %v2325 = vadd.f32 %v2323, %v2324
  %v2326 = vsel %vm1311, %v2125, 0.0
  %v2327 = vadd.f32 %v2325, %v2326
  %v2328 = vsel %vm1311, %v2128, 0.0
  %v2329 = vadd.f32 %v2327, %v2328
  %v2330 = vsel %vm1311, %v2133, 0.0
  %v2331 = vadd.f32 %v2329, %v2330
  %v2332 = vsel %vm1311, %v2136, 0.0
  %v2333 = vadd.f32 %v2331, %v2332
  %v2334 = vsel %vm1311, %v2141, 0.0
  %v2335 = vadd.f32 %v2333, %v2334
  %v2336 = vsel %vm1311, %v2144, 0.0
  %v2337 = vadd.f32 %v2335, %v2336
  %v2338 = vsel %vm1311, %v2149, 0.0
  %v2339 = vadd.f32 %v2337, %v2338
  %v2340 = vsel %vm1311, %v2152, 0.0
  %v2341 = vadd.f32 %v2339, %v2340
  %v2342 = vsel %vm1311, %v2157, 0.0
  %v2343 = vadd.f32 %v2341, %v2342
  %v2344 = vsel %vm1311, %v2160, 0.0
  %v2345 = vadd.f32 %v2343, %v2344
  %v2346 = vsel %vm1311, %v2165, 0.0
  %v2347 = vadd.f32 %v2345, %v2346
  %v2348 = vsel %vm1311, %v2168, 0.0
  %v2349 = vadd.f32 %v2347, %v2348
  %v2350 = vsel %vm1311, %v2173, 0.0
  %v2351 = vadd.f32 %v2349, %v2350
  %v2352 = vsel %vm1311, %v2176, 0.0
  %v2353 = vadd.f32 %v2351, %v2352
  %v2354 = vsel %vm1311, %v2181, 0.0
  %v2355 = vadd.f32 %v2353, %v2354
  %v2356 = vsel %vm1311, %v2184, 0.0
  %v2357 = vadd.f32 %v2355, %v2356
  %v2358 = vsel %vm1311, %v2189, 0.0
  %v2359 = vadd.f32 %v2357, %v2358
  %v2360 = vsel %vm1311, %v2192, 0.0
  %v2361 = vadd.f32 %v2359, %v2360
  %v2362 = vsel %vm1311, %v2197, 0.0
  %v2363 = vadd.f32 %v2361, %v2362
  %v2364 = vsel %vm1311, %v2200, 0.0
  %v2365 = vadd.f32 %v2363, %v2364
  %v2366 = vsel %vm1311, %v2205, 0.0
  %v2367 = vadd.f32 %v2365, %v2366
  %v2368 = vsel %vm1311, %v2208, 0.0
  %v2369 = vadd.f32 %v2367, %v2368
  %v2370 = vsel %vm1311, %v2213, 0.0
  %v2371 = vadd.f32 %v2369, %v2370
  %v2372 = vsel %vm1311, %v2216, 0.0
  %v2373 = vadd.f32 %v2371, %v2372
  %v2374 = vsel %vm1311, %v2221, 0.0
  %v2375 = vadd.f32 %v2373, %v2374
  %v2376 = vsel %vm1311, %v2224, 0.0
  %v2377 = vadd.f32 %v2375, %v2376
  %v2378 = vsel %vm1311, %v2229, 0.0
  %v2379 = vadd.f32 %v2377, %v2378
  %v2380 = vsel %vm1311, %v2232, 0.0
  %v2381 = vadd.f32 %v2379, %v2380
  %v2382 = vsel %vm1311, %v2237, 0.0
  %v2383 = vadd.f32 %v2381, %v2382
  %v2384 = vsel %vm1311, %v2240, 0.0
  %v2385 = vadd.f32 %v2383, %v2384
  %v2386 = vsel %vm1311, %v2245, 0.0
  %v2387 = vadd.f32 %v2385, %v2386
  %v2388 = vsel %vm1311, %v2248, 0.0
  %v2389 = vadd.f32 %v2387, %v2388
  %v2390 = vsel %vm1311, %v2253, 0.0
  %v2391 = vadd.f32 %v2389, %v2390
  %v2392 = vsel %vm1311, %v2256, 0.0
  %v2393 = vadd.f32 %v2391, %v2392
  %v2394 = vsel %vm1311, %v2261, 0.0
  %v2395 = vadd.f32 %v2393, %v2394
  %v2396 = vsel %vm1311, %v2264, 0.0
  %v2397 = vadd.f32 %v2395, %v2396
  %v2398 = vsel %vm1311, %v2269, 0.0
  %v2399 = vadd.f32 %v2397, %v2398
  %v2400 = vsel %vm1311, %v2272, 0.0
  %v2401 = vadd.f32 %v2399, %v2400
  %v2402 = vrot.slane %v2401, 4
  %v2403 = vadd.f32 %v2401, %v2402
  %v2404 = vrot.slane %v2403, 2
  %v2405 = vadd.f32 %v2403, %v2404
  %v2406 = vrot.slane %v2405, 1
  %v2407 = vadd.f32 %v2405, %v2406
  %v2408 = vrcp.pop 512.0
  %v2409 = vmul.f32 %v2407, %v2408
  %v2410 = vsub.f32 %v2021, %v2409
  %v2411 = vsub.f32 %v2024, %v2409
  %v2412 = vsub.f32 %v2029, %v2409
  %v2413 = vsub.f32 %v2032, %v2409
  %v2414 = vsub.f32 %v2037, %v2409
  %v2415 = vsub.f32 %v2040, %v2409
  %v2416 = vsub.f32 %v2045, %v2409
  %v2417 = vsub.f32 %v2048, %v2409
  %v2418 = vsub.f32 %v2053, %v2409
  %v2419 = vsub.f32 %v2056, %v2409
  %v2420 = vsub.f32 %v2061, %v2409
  %v2421 = vsub.f32 %v2064, %v2409
  %v2422 = vsub.f32 %v2069, %v2409
  %v2423 = vsub.f32 %v2072, %v2409
  %v2424 = vsub.f32 %v2077, %v2409
  %v2425 = vsub.f32 %v2080, %v2409
  %v2426 = vsub.f32 %v2085, %v2409
  %v2427 = vsub.f32 %v2088, %v2409
  %v2428 = vsub.f32 %v2093, %v2409
  %v2429 = vsub.f32 %v2096, %v2409
  %v2430 = vsub.f32 %v2101, %v2409
  %v2431 = vsub.f32 %v2104, %v2409
  %v2432 = vsub.f32 %v2109, %v2409
  %v2433 = vsub.f32 %v2112, %v2409
  %v2434 = vsub.f32 %v2117, %v2409
  %v2435 = vsub.f32 %v2120, %v2409
  %v2436 = vsub.f32 %v2125, %v2409
  %v2437 = vsub.f32 %v2128, %v2409
  %v2438 = vsub.f32 %v2133, %v2409
  %v2439 = vsub.f32 %v2136, %v2409
  %v2440 = vsub.f32 %v2141, %v2409
  %v2441 = vsub.f32 %v2144, %v2409
  %v2442 = vsub.f32 %v2149, %v2409
  %v2443 = vsub.f32 %v2152, %v2409
  %v2444 = vsub.f32 %v2157, %v2409
  %v2445 = vsub.f32 %v2160, %v2409
  %v2446 = vsub.f32 %v2165, %v2409
  %v2447 = vsub.f32 %v2168, %v2409
  %v2448 = vsub.f32 %v2173, %v2409
  %v2449 = vsub.f32 %v2176, %v2409
  %v2450 = vsub.f32 %v2181, %v2409
  %v2451 = vsub.f32 %v2184, %v2409
  %v2452 = vsub.f32 %v2189, %v2409
  %v2453 = vsub.f32 %v2192, %v2409
  %v2454 = vsub.f32 %v2197, %v2409
  %v2455 = vsub.f32 %v2200, %v2409
  %v2456 = vsub.f32 %v2205, %v2409
  %v2457 = vsub.f32 %v2208, %v2409
  %v2458 = vsub.f32 %v2213, %v2409
  %v2459 = vsub.f32 %v2216, %v2409
  %v2460 = vsub.f32 %v2221, %v2409
  %v2461 = vsub.f32 %v2224, %v2409
  %v2462 = vsub.f32 %v2229, %v2409
  %v2463 = vsub.f32 %v2232, %v2409
  %v2464 = vsub.f32 %v2237, %v2409
  %v2465 = vsub.f32 %v2240, %v2409
  %v2466 = vsub.f32 %v2245, %v2409
  %v2467 = vsub.f32 %v2248, %v2409
  %v2468 = vsub.f32 %v2253, %v2409
  %v2469 = vsub.f32 %v2256, %v2409
  %v2470 = vsub.f32 %v2261, %v2409
  %v2471 = vsub.f32 %v2264, %v2409
  %v2472 = vsub.f32 %v2269, %v2409
  %v2473 = vsub.f32 %v2272, %v2409
  %v2474 = vmul.f32 %v2410, %v2410
  %v2475 = vmul.f32 %v2411, %v2411
  %v2476 = vmul.f32 %v2412, %v2412
  %v2477 = vmul.f32 %v2413, %v2413
  %v2478 = vmul.f32 %v2414, %v2414
  %v2479 = vmul.f32 %v2415, %v2415
  %v2480 = vmul.f32 %v2416, %v2416
  %v2481 = vmul.f32 %v2417, %v2417
  %v2482 = vmul.f32 %v2418, %v2418
  %v2483 = vmul.f32 %v2419, %v2419
  %v2484 = vmul.f32 %v2420, %v2420
  %v2485 = vmul.f32 %v2421, %v2421
  %v2486 = vmul.f32 %v2422, %v2422
  %v2487 = vmul.f32 %v2423, %v2423
  %v2488 = vmul.f32 %v2424, %v2424
  %v2489 = vmul.f32 %v2425, %v2425
  %v2490 = vmul.f32 %v2426, %v2426
  %v2491 = vmul.f32 %v2427, %v2427
  %v2492 = vmul.f32 %v2428, %v2428
  %v2493 = vmul.f32 %v2429, %v2429
  %v2494 = vmul.f32 %v2430, %v2430
  %v2495 = vmul.f32 %v2431, %v2431
  %v2496 = vmul.f32 %v2432, %v2432
  %v2497 = vmul.f32 %v2433, %v2433
  %v2498 = vmul.f32 %v2434, %v2434
  %v2499 = vmul.f32 %v2435, %v2435
  %v2500 = vmul.f32 %v2436, %v2436
  %v2501 = vmul.f32 %v2437, %v2437
  %v2502 = vmul.f32 %v2438, %v2438
  %v2503 = vmul.f32 %v2439, %v2439
  %v2504 = vmul.f32 %v2440, %v2440
  %v2505 = vmul.f32 %v2441, %v2441
  %v2506 = vmul.f32 %v2442, %v2442
  %v2507 = vmul.f32 %v2443, %v2443
  %v2508 = vmul.f32 %v2444, %v2444
  %v2509 = vmul.f32 %v2445, %v2445
  %v2510 = vmul.f32 %v2446, %v2446
  %v2511 = vmul.f32 %v2447, %v2447
  %v2512 = vmul.f32 %v2448, %v2448
  %v2513 = vmul.f32 %v2449, %v2449
  %v2514 = vmul.f32 %v2450, %v2450
  %v2515 = vmul.f32 %v2451, %v2451
  %v2516 = vmul.f32 %v2452, %v2452
  %v2517 = vmul.f32 %v2453, %v2453
  %v2518 = vmul.f32 %v2454, %v2454
  %v2519 = vmul.f32 %v2455, %v2455
  %v2520 = vmul.f32 %v2456, %v2456
  %v2521 = vmul.f32 %v2457, %v2457
  %v2522 = vmul.f32 %v2458, %v2458
  %v2523 = vmul.f32 %v2459, %v2459
  %v2524 = vmul.f32 %v2460, %v2460
  %v2525 = vmul.f32 %v2461, %v2461
  %v2526 = vmul.f32 %v2462, %v2462
  %v2527 = vmul.f32 %v2463, %v2463
  %v2528 = vmul.f32 %v2464, %v2464
  %v2529 = vmul.f32 %v2465, %v2465
  %v2530 = vmul.f32 %v2466, %v2466
  %v2531 = vmul.f32 %v2467, %v2467
  %v2532 = vmul.f32 %v2468, %v2468
  %v2533 = vmul.f32 %v2469, %v2469
  %v2534 = vmul.f32 %v2470, %v2470
  %v2535 = vmul.f32 %v2471, %v2471
  %v2536 = vmul.f32 %v2472, %v2472
  %v2537 = vmul.f32 %v2473, %v2473
  %v2538 = vsel %vm1311, %v2474, 0.0
  %v2539 = vsel %vm1311, %v2475, 0.0
  %v2540 = vadd.f32 %v2538, %v2539
  %v2541 = vsel %vm1311, %v2476, 0.0
  %v2542 = vadd.f32 %v2540, %v2541
  %v2543 = vsel %vm1311, %v2477, 0.0
  %v2544 = vadd.f32 %v2542, %v2543
  %v2545 = vsel %vm1311, %v2478, 0.0
  %v2546 = vadd.f32 %v2544, %v2545
  %v2547 = vsel %vm1311, %v2479, 0.0
  %v2548 = vadd.f32 %v2546, %v2547
  %v2549 = vsel %vm1311, %v2480, 0.0
  %v2550 = vadd.f32 %v2548, %v2549
  %v2551 = vsel %vm1311, %v2481, 0.0
  %v2552 = vadd.f32 %v2550, %v2551
  %v2553 = vsel %vm1311, %v2482, 0.0
  %v2554 = vadd.f32 %v2552, %v2553
  %v2555 = vsel %vm1311, %v2483, 0.0
  %v2556 = vadd.f32 %v2554, %v2555
  %v2557 = vsel %vm1311, %v2484, 0.0
  %v2558 = vadd.f32 %v2556, %v2557
  %v2559 = vsel %vm1311, %v2485, 0.0
  %v2560 = vadd.f32 %v2558, %v2559
  %v2561 = vsel %vm1311, %v2486, 0.0
  %v2562 = vadd.f32 %v2560, %v2561
  %v2563 = vsel %vm1311, %v2487, 0.0
  %v2564 = vadd.f32 %v2562, %v2563
  %v2565 = vsel %vm1311, %v2488, 0.0
  %v2566 = vadd.f32 %v2564, %v2565
  %v2567 = vsel %vm1311, %v2489, 0.0
  %v2568 = vadd.f32 %v2566, %v2567
  %v2569 = vsel %vm1311, %v2490, 0.0
  %v2570 = vadd.f32 %v2568, %v2569
  %v2571 = vsel %vm1311, %v2491, 0.0
  %v2572 = vadd.f32 %v2570, %v2571
  %v2573 = vsel %vm1311, %v2492, 0.0
  %v2574 = vadd.f32 %v2572, %v2573
  %v2575 = vsel %vm1311, %v2493, 0.0
  %v2576 = vadd.f32 %v2574, %v2575
  %v2577 = vsel %vm1311, %v2494, 0.0
  %v2578 = vadd.f32 %v2576, %v2577
  %v2579 = vsel %vm1311, %v2495, 0.0
  %v2580 = vadd.f32 %v2578, %v2579
  %v2581 = vsel %vm1311, %v2496, 0.0
  %v2582 = vadd.f32 %v2580, %v2581
  %v2583 = vsel %vm1311, %v2497, 0.0
  %v2584 = vadd.f32 %v2582, %v2583
  %v2585 = vsel %vm1311, %v2498, 0.0
  %v2586 = vadd.f32 %v2584, %v2585
  %v2587 = vsel %vm1311, %v2499, 0.0
  %v2588 = vadd.f32 %v2586, %v2587
  %v2589 = vsel %vm1311, %v2500, 0.0
  %v2590 = vadd.f32 %v2588, %v2589
  %v2591 = vsel %vm1311, %v2501, 0.0
  %v2592 = vadd.f32 %v2590, %v2591
  %v2593 = vsel %vm1311, %v2502, 0.0
  %v2594 = vadd.f32 %v2592, %v2593
  %v2595 = vsel %vm1311, %v2503, 0.0
  %v2596 = vadd.f32 %v2594, %v2595
  %v2597 = vsel %vm1311, %v2504, 0.0
  %v2598 = vadd.f32 %v2596, %v2597
  %v2599 = vsel %vm1311, %v2505, 0.0
  %v2600 = vadd.f32 %v2598, %v2599
  %v2601 = vsel %vm1311, %v2506, 0.0
  %v2602 = vadd.f32 %v2600, %v2601
  %v2603 = vsel %vm1311, %v2507, 0.0
  %v2604 = vadd.f32 %v2602, %v2603
  %v2605 = vsel %vm1311, %v2508, 0.0
  %v2606 = vadd.f32 %v2604, %v2605
  %v2607 = vsel %vm1311, %v2509, 0.0
  %v2608 = vadd.f32 %v2606, %v2607
  %v2609 = vsel %vm1311, %v2510, 0.0
  %v2610 = vadd.f32 %v2608, %v2609
  %v2611 = vsel %vm1311, %v2511, 0.0
  %v2612 = vadd.f32 %v2610, %v2611
  %v2613 = vsel %vm1311, %v2512, 0.0
  %v2614 = vadd.f32 %v2612, %v2613
  %v2615 = vsel %vm1311, %v2513, 0.0
  %v2616 = vadd.f32 %v2614, %v2615
  %v2617 = vsel %vm1311, %v2514, 0.0
  %v2618 = vadd.f32 %v2616, %v2617
  %v2619 = vsel %vm1311, %v2515, 0.0
  %v2620 = vadd.f32 %v2618, %v2619
  %v2621 = vsel %vm1311, %v2516, 0.0
  %v2622 = vadd.f32 %v2620, %v2621
  %v2623 = vsel %vm1311, %v2517, 0.0
  %v2624 = vadd.f32 %v2622, %v2623
  %v2625 = vsel %vm1311, %v2518, 0.0
  %v2626 = vadd.f32 %v2624, %v2625
  %v2627 = vsel %vm1311, %v2519, 0.0
  %v2628 = vadd.f32 %v2626, %v2627
  %v2629 = vsel %vm1311, %v2520, 0.0
  %v2630 = vadd.f32 %v2628, %v2629
  %v2631 = vsel %vm1311, %v2521, 0.0
  %v2632 = vadd.f32 %v2630, %v2631
  %v2633 = vsel %vm1311, %v2522, 0.0
  %v2634 = vadd.f32 %v2632, %v2633
  %v2635 = vsel %vm1311, %v2523, 0.0
  %v2636 = vadd.f32 %v2634, %v2635
  %v2637 = vsel %vm1311, %v2524, 0.0
  %v2638 = vadd.f32 %v2636, %v2637
  %v2639 = vsel %vm1311, %v2525, 0.0
  %v2640 = vadd.f32 %v2638, %v2639
  %v2641 = vsel %vm1311, %v2526, 0.0
  %v2642 = vadd.f32 %v2640, %v2641
  %v2643 = vsel %vm1311, %v2527, 0.0
  %v2644 = vadd.f32 %v2642, %v2643
  %v2645 = vsel %vm1311, %v2528, 0.0
  %v2646 = vadd.f32 %v2644, %v2645
  %v2647 = vsel %vm1311, %v2529, 0.0
  %v2648 = vadd.f32 %v2646, %v2647
  %v2649 = vsel %vm1311, %v2530, 0.0
  %v2650 = vadd.f32 %v2648, %v2649
  %v2651 = vsel %vm1311, %v2531, 0.0
  %v2652 = vadd.f32 %v2650, %v2651
  %v2653 = vsel %vm1311, %v2532, 0.0
  %v2654 = vadd.f32 %v2652, %v2653
  %v2655 = vsel %vm1311, %v2533, 0.0
  %v2656 = vadd.f32 %v2654, %v2655
  %v2657 = vsel %vm1311, %v2534, 0.0
  %v2658 = vadd.f32 %v2656, %v2657
  %v2659 = vsel %vm1311, %v2535, 0.0
  %v2660 = vadd.f32 %v2658, %v2659
  %v2661 = vsel %vm1311, %v2536, 0.0
  %v2662 = vadd.f32 %v2660, %v2661
  %v2663 = vsel %vm1311, %v2537, 0.0
  %v2664 = vadd.f32 %v2662, %v2663
  %v2665 = vrot.slane %v2664, 4
  %v2666 = vadd.f32 %v2664, %v2665
  %v2667 = vrot.slane %v2666, 2
  %v2668 = vadd.f32 %v2666, %v2667
  %v2669 = vrot.slane %v2668, 1
  %v2670 = vadd.f32 %v2668, %v2669
  %v2671 = vmul.f32 %v2670, %v2408
  %v2672 = vadd.f32 %v2671, 1e-05
  %v2673 = vrsqrt.pop %v2672
  %v2674 = vmul.f32 %v2410, %v2673
  %v2675 = vmul.f32 %v2411, %v2673
  %v2676 = vmul.f32 %v2412, %v2673
  %v2677 = vmul.f32 %v2413, %v2673
  %v2678 = vmul.f32 %v2414, %v2673
  %v2679 = vmul.f32 %v2415, %v2673
  %v2680 = vmul.f32 %v2416, %v2673
  %v2681 = vmul.f32 %v2417, %v2673
  %v2682 = vmul.f32 %v2418, %v2673
  %v2683 = vmul.f32 %v2419, %v2673
  %v2684 = vmul.f32 %v2420, %v2673
  %v2685 = vmul.f32 %v2421, %v2673
  %v2686 = vmul.f32 %v2422, %v2673
  %v2687 = vmul.f32 %v2423, %v2673
  %v2688 = vmul.f32 %v2424, %v2673
  %v2689 = vmul.f32 %v2425, %v2673
  %v2690 = vmul.f32 %v2426, %v2673
  %v2691 = vmul.f32 %v2427, %v2673
  %v2692 = vmul.f32 %v2428, %v2673
  %v2693 = vmul.f32 %v2429, %v2673
  %v2694 = vmul.f32 %v2430, %v2673
  %v2695 = vmul.f32 %v2431, %v2673
  %v2696 = vmul.f32 %v2432, %v2673
  %v2697 = vmul.f32 %v2433, %v2673
  %v2698 = vmul.f32 %v2434, %v2673
  %v2699 = vmul.f32 %v2435, %v2673
  %v2700 = vmul.f32 %v2436, %v2673
  %v2701 = vmul.f32 %v2437, %v2673
  %v2702 = vmul.f32 %v2438, %v2673
  %v2703 = vmul.f32 %v2439, %v2673
  %v2704 = vmul.f32 %v2440, %v2673
  %v2705 = vmul.f32 %v2441, %v2673
  %v2706 = vmul.f32 %v2442, %v2673
  %v2707 = vmul.f32 %v2443, %v2673
  %v2708 = vmul.f32 %v2444, %v2673
  %v2709 = vmul.f32 %v2445, %v2673
  %v2710 = vmul.f32 %v2446, %v2673
  %v2711 = vmul.f32 %v2447, %v2673
  %v2712 = vmul.f32 %v2448, %v2673
  %v2713 = vmul.f32 %v2449, %v2673
  %v2714 = vmul.f32 %v2450, %v2673
  %v2715 = vmul.f32 %v2451, %v2673
  %v2716 = vmul.f32 %v2452, %v2673
  %v2717 = vmul.f32 %v2453, %v2673
  %v2718 = vmul.f32 %v2454, %v2673
  %v2719 = vmul.f32 %v2455, %v2673
  %v2720 = vmul.f32 %v2456, %v2673
  %v2721 = vmul.f32 %v2457, %v2673
  %v2722 = vmul.f32 %v2458, %v2673
  %v2723 = vmul.f32 %v2459, %v2673
  %v2724 = vmul.f32 %v2460, %v2673
  %v2725 = vmul.f32 %v2461, %v2673
  %v2726 = vmul.f32 %v2462, %v2673
  %v2727 = vmul.f32 %v2463, %v2673
  %v2728 = vmul.f32 %v2464, %v2673
  %v2729 = vmul.f32 %v2465, %v2673
  %v2730 = vmul.f32 %v2466, %v2673
  %v2731 = vmul.f32 %v2467, %v2673
  %v2732 = vmul.f32 %v2468, %v2673
  %v2733 = vmul.f32 %v2469, %v2673
  %v2734 = vmul.f32 %v2470, %v2673
  %v2735 = vmul.f32 %v2471, %v2673
  %v2736 = vmul.f32 %v2472, %v2673
  %v2737 = vmul.f32 %v2473, %v2673
  %v2738 = vld [vmem:[%s3] sm:$0x1]
  %v2740 = vlaneseq
  %v2741 = vshrl.u32 %v2740, 7
  %v2742 = vsub.s32 0, %v2741
  %v2743 = vrot.slane %v2738, %v2742
  %v2745 = vmul.f32 %v2674, %v2743
  %v2746 = vmul.f32 %v2675, %v2743
  %v2747 = vmul.f32 %v2676, %v2743
  %v2748 = vmul.f32 %v2677, %v2743
  %v2749 = vmul.f32 %v2678, %v2743
  %v2750 = vmul.f32 %v2679, %v2743
  %v2751 = vmul.f32 %v2680, %v2743
  %v2752 = vmul.f32 %v2681, %v2743
  %v2753 = vmul.f32 %v2682, %v2743
  %v2754 = vmul.f32 %v2683, %v2743
  %v2755 = vmul.f32 %v2684, %v2743
  %v2756 = vmul.f32 %v2685, %v2743
  %v2757 = vmul.f32 %v2686, %v2743
  %v2758 = vmul.f32 %v2687, %v2743
  %v2759 = vmul.f32 %v2688, %v2743
  %v2760 = vmul.f32 %v2689, %v2743
  %v2761 = vmul.f32 %v2690, %v2743
  %v2762 = vmul.f32 %v2691, %v2743
  %v2763 = vmul.f32 %v2692, %v2743
  %v2764 = vmul.f32 %v2693, %v2743
  %v2765 = vmul.f32 %v2694, %v2743
  %v2766 = vmul.f32 %v2695, %v2743
  %v2767 = vmul.f32 %v2696, %v2743
  %v2768 = vmul.f32 %v2697, %v2743
  %v2769 = vmul.f32 %v2698, %v2743
  %v2770 = vmul.f32 %v2699, %v2743
  %v2771 = vmul.f32 %v2700, %v2743
  %v2772 = vmul.f32 %v2701, %v2743
  %v2773 = vmul.f32 %v2702, %v2743
  %v2774 = vmul.f32 %v2703, %v2743
  %v2775 = vmul.f32 %v2704, %v2743
  %v2776 = vmul.f32 %v2705, %v2743
  %v2777 = vmul.f32 %v2706, %v2743
  %v2778 = vmul.f32 %v2707, %v2743
  %v2779 = vmul.f32 %v2708, %v2743
  %v2780 = vmul.f32 %v2709, %v2743
  %v2781 = vmul.f32 %v2710, %v2743
  %v2782 = vmul.f32 %v2711, %v2743
  %v2783 = vmul.f32 %v2712, %v2743
  %v2784 = vmul.f32 %v2713, %v2743
  %v2785 = vmul.f32 %v2714, %v2743
  %v2786 = vmul.f32 %v2715, %v2743
  %v2787 = vmul.f32 %v2716, %v2743
  %v2788 = vmul.f32 %v2717, %v2743
  %v2789 = vmul.f32 %v2718, %v2743
  %v2790 = vmul.f32 %v2719, %v2743
  %v2791 = vmul.f32 %v2720, %v2743
  %v2792 = vmul.f32 %v2721, %v2743
  %v2793 = vmul.f32 %v2722, %v2743
  %v2794 = vmul.f32 %v2723, %v2743
  %v2795 = vmul.f32 %v2724, %v2743
  %v2796 = vmul.f32 %v2725, %v2743
  %v2797 = vmul.f32 %v2726, %v2743
  %v2798 = vmul.f32 %v2727, %v2743
  %v2799 = vmul.f32 %v2728, %v2743
  %v2800 = vmul.f32 %v2729, %v2743
  %v2801 = vmul.f32 %v2730, %v2743
  %v2802 = vmul.f32 %v2731, %v2743
  %v2803 = vmul.f32 %v2732, %v2743
  %v2804 = vmul.f32 %v2733, %v2743
  %v2805 = vmul.f32 %v2734, %v2743
  %v2806 = vmul.f32 %v2735, %v2743
  %v2807 = vmul.f32 %v2736, %v2743
  %v2808 = vmul.f32 %v2737, %v2743
  %v2809 = vld [vmem:[%s4] sm:$0x1]
  %v2811 = vlaneseq
  %v2812 = vshrl.u32 %v2811, 7
  %v2813 = vsub.s32 0, %v2812
  %v2814 = vrot.slane %v2809, %v2813
  %v2816 = vadd.f32 %v2745, %v2814
  %v2817 = vadd.f32 %v2746, %v2814
  %v2818 = vadd.f32 %v2747, %v2814
  %v2819 = vadd.f32 %v2748, %v2814
  %v2820 = vadd.f32 %v2749, %v2814
  %v2821 = vadd.f32 %v2750, %v2814
  %v2822 = vadd.f32 %v2751, %v2814
  %v2823 = vadd.f32 %v2752, %v2814
  %v2824 = vadd.f32 %v2753, %v2814
  %v2825 = vadd.f32 %v2754, %v2814
  %v2826 = vadd.f32 %v2755, %v2814
  %v2827 = vadd.f32 %v2756, %v2814
  %v2828 = vadd.f32 %v2757, %v2814
  %v2829 = vadd.f32 %v2758, %v2814
  %v2830 = vadd.f32 %v2759, %v2814
  %v2831 = vadd.f32 %v2760, %v2814
  %v2832 = vadd.f32 %v2761, %v2814
  %v2833 = vadd.f32 %v2762, %v2814
  %v2834 = vadd.f32 %v2763, %v2814
  %v2835 = vadd.f32 %v2764, %v2814
  %v2836 = vadd.f32 %v2765, %v2814
  %v2837 = vadd.f32 %v2766, %v2814
  %v2838 = vadd.f32 %v2767, %v2814
  %v2839 = vadd.f32 %v2768, %v2814
  %v2840 = vadd.f32 %v2769, %v2814
  %v2841 = vadd.f32 %v2770, %v2814
  %v2842 = vadd.f32 %v2771, %v2814
  %v2843 = vadd.f32 %v2772, %v2814
  %v2844 = vadd.f32 %v2773, %v2814
  %v2845 = vadd.f32 %v2774, %v2814
  %v2846 = vadd.f32 %v2775, %v2814
  %v2847 = vadd.f32 %v2776, %v2814
  %v2848 = vadd.f32 %v2777, %v2814
  %v2849 = vadd.f32 %v2778, %v2814
  %v2850 = vadd.f32 %v2779, %v2814
  %v2851 = vadd.f32 %v2780, %v2814
  %v2852 = vadd.f32 %v2781, %v2814
  %v2853 = vadd.f32 %v2782, %v2814
  %v2854 = vadd.f32 %v2783, %v2814
  %v2855 = vadd.f32 %v2784, %v2814
  %v2856 = vadd.f32 %v2785, %v2814
  %v2857 = vadd.f32 %v2786, %v2814
  %v2858 = vadd.f32 %v2787, %v2814
  %v2859 = vadd.f32 %v2788, %v2814
  %v2860 = vadd.f32 %v2789, %v2814
  %v2861 = vadd.f32 %v2790, %v2814
  %v2862 = vadd.f32 %v2791, %v2814
  %v2863 = vadd.f32 %v2792, %v2814
  %v2864 = vadd.f32 %v2793, %v2814
  %v2865 = vadd.f32 %v2794, %v2814
  %v2866 = vadd.f32 %v2795, %v2814
  %v2867 = vadd.f32 %v2796, %v2814
  %v2868 = vadd.f32 %v2797, %v2814
  %v2869 = vadd.f32 %v2798, %v2814
  %v2870 = vadd.f32 %v2799, %v2814
  %v2871 = vadd.f32 %v2800, %v2814
  %v2872 = vadd.f32 %v2801, %v2814
  %v2873 = vadd.f32 %v2802, %v2814
  %v2874 = vadd.f32 %v2803, %v2814
  %v2875 = vadd.f32 %v2804, %v2814
  %v2876 = vadd.f32 %v2805, %v2814
  %v2877 = vadd.f32 %v2806, %v2814
  %v2878 = vadd.f32 %v2807, %v2814
  %v2879 = vadd.f32 %v2808, %v2814
  %v2880 = vld [vmem:[%s5] sm:$0xff]
  %v2881 = vld [vmem:[%s5 + $0x8] sm:$0xff]
  %v2882 = vld [vmem:[%s5 + $0x10] sm:$0xff]
  %v2883 = vld [vmem:[%s5 + $0x18] sm:$0xff]
  %v2884 = vld [vmem:[%s5 + $0x20] sm:$0xff]
  %v2885 = vld [vmem:[%s5 + $0x28] sm:$0xff]
  %v2886 = vld [vmem:[%s5 + $0x30] sm:$0xff]
  %v2887 = vld [vmem:[%s5 + $0x38] sm:$0xff]
  %v2888 = vld [vmem:[%s5 + $0x40] sm:$0xff]
  %v2889 = vld [vmem:[%s5 + $0x48] sm:$0xff]
  %v2890 = vld [vmem:[%s5 + $0x50] sm:$0xff]
  %v2891 = vld [vmem:[%s5 + $0x58] sm:$0xff]
  %v2892 = vld [vmem:[%s5 + $0x60] sm:$0xff]
  %v2893 = vld [vmem:[%s5 + $0x68] sm:$0xff]
  %v2894 = vld [vmem:[%s5 + $0x70] sm:$0xff]
  %v2895 = vld [vmem:[%s5 + $0x78] sm:$0xff]
  %v2896 = vld [vmem:[%s5 + $0x80] sm:$0xff]
  %v2897 = vld [vmem:[%s5 + $0x88] sm:$0xff]
  %v2898 = vld [vmem:[%s5 + $0x90] sm:$0xff]
  %v2899 = vld [vmem:[%s5 + $0x98] sm:$0xff]
  %v2900 = vld [vmem:[%s5 + $0xa0] sm:$0xff]
  %v2901 = vld [vmem:[%s5 + $0xa8] sm:$0xff]
  %v2902 = vld [vmem:[%s5 + $0xb0] sm:$0xff]
  %v2903 = vld [vmem:[%s5 + $0xb8] sm:$0xff]
  %v2904 = vld [vmem:[%s5 + $0xc0] sm:$0xff]
  %v2905 = vld [vmem:[%s5 + $0xc8] sm:$0xff]
  %v2906 = vld [vmem:[%s5 + $0xd0] sm:$0xff]
  %v2907 = vld [vmem:[%s5 + $0xd8] sm:$0xff]
  %v2908 = vld [vmem:[%s5 + $0xe0] sm:$0xff]
  %v2909 = vld [vmem:[%s5 + $0xe8] sm:$0xff]
  %v2910 = vld [vmem:[%s5 + $0xf0] sm:$0xff]
  %v2911 = vld [vmem:[%s5 + $0xf8] sm:$0xff]
  %v2912 = vld [vmem:[%s5 + $0x100] sm:$0xff]
  %v2913 = vld [vmem:[%s5 + $0x108] sm:$0xff]
  %v2914 = vld [vmem:[%s5 + $0x110] sm:$0xff]
  %v2915 = vld [vmem:[%s5 + $0x118] sm:$0xff]
  %v2916 = vld [vmem:[%s5 + $0x120] sm:$0xff]
  %v2917 = vld [vmem:[%s5 + $0x128] sm:$0xff]
  %v2918 = vld [vmem:[%s5 + $0x130] sm:$0xff]
  %v2919 = vld [vmem:[%s5 + $0x138] sm:$0xff]
  %v2920 = vld [vmem:[%s5 + $0x140] sm:$0xff]
  %v2921 = vld [vmem:[%s5 + $0x148] sm:$0xff]
  %v2922 = vld [vmem:[%s5 + $0x150] sm:$0xff]
  %v2923 = vld [vmem:[%s5 + $0x158] sm:$0xff]
  %v2924 = vld [vmem:[%s5 + $0x160] sm:$0xff]
  %v2925 = vld [vmem:[%s5 + $0x168] sm:$0xff]
  %v2926 = vld [vmem:[%s5 + $0x170] sm:$0xff]
  %v2927 = vld [vmem:[%s5 + $0x178] sm:$0xff]
  %v2928 = vld [vmem:[%s5 + $0x180] sm:$0xff]
  %v2929 = vld [vmem:[%s5 + $0x188] sm:$0xff]
  %v2930 = vld [vmem:[%s5 + $0x190] sm:$0xff]
  %v2931 = vld [vmem:[%s5 + $0x198] sm:$0xff]
  %v2932 = vld [vmem:[%s5 + $0x1a0] sm:$0xff]
  %v2933 = vld [vmem:[%s5 + $0x1a8] sm:$0xff]
  %v2934 = vld [vmem:[%s5 + $0x1b0] sm:$0xff]
  %v2935 = vld [vmem:[%s5 + $0x1b8] sm:$0xff]
  %v2936 = vld [vmem:[%s5 + $0x1c0] sm:$0xff]
  %v2937 = vld [vmem:[%s5 + $0x1c8] sm:$0xff]
  %v2938 = vld [vmem:[%s5 + $0x1d0] sm:$0xff]
  %v2939 = vld [vmem:[%s5 + $0x1d8] sm:$0xff]
  %v2940 = vld [vmem:[%s5 + $0x1e0] sm:$0xff]
  %v2941 = vld [vmem:[%s5 + $0x1e8] sm:$0xff]
  %v2942 = vld [vmem:[%s5 + $0x1f0] sm:$0xff]
  %v2943 = vld [vmem:[%s5 + $0x1f8] sm:$0xff]
  %v2944 = vmax.f32 %v2816, 0.0
  %v2945 = vmax.f32 %v2817, 0.0
  %v2946 = vmax.f32 %v2818, 0.0
  %v2947 = vmax.f32 %v2819, 0.0
  %v2948 = vmax.f32 %v2820, 0.0
  %v2949 = vmax.f32 %v2821, 0.0
  %v2950 = vmax.f32 %v2822, 0.0
  %v2951 = vmax.f32 %v2823, 0.0
  %v2952 = vmax.f32 %v2824, 0.0
  %v2953 = vmax.f32 %v2825, 0.0
  %v2954 = vmax.f32 %v2826, 0.0
  %v2955 = vmax.f32 %v2827, 0.0
  %v2956 = vmax.f32 %v2828, 0.0
  %v2957 = vmax.f32 %v2829, 0.0
  %v2958 = vmax.f32 %v2830, 0.0
  %v2959 = vmax.f32 %v2831, 0.0
  %v2960 = vmax.f32 %v2832, 0.0
  %v2961 = vmax.f32 %v2833, 0.0
  %v2962 = vmax.f32 %v2834, 0.0
  %v2963 = vmax.f32 %v2835, 0.0
  %v2964 = vmax.f32 %v2836, 0.0
  %v2965 = vmax.f32 %v2837, 0.0
  %v2966 = vmax.f32 %v2838, 0.0
  %v2967 = vmax.f32 %v2839, 0.0
  %v2968 = vmax.f32 %v2840, 0.0
  %v2969 = vmax.f32 %v2841, 0.0
  %v2970 = vmax.f32 %v2842, 0.0
  %v2971 = vmax.f32 %v2843, 0.0
  %v2972 = vmax.f32 %v2844, 0.0
  %v2973 = vmax.f32 %v2845, 0.0
  %v2974 = vmax.f32 %v2846, 0.0
  %v2975 = vmax.f32 %v2847, 0.0
  %v2976 = vmax.f32 %v2848, 0.0
  %v2977 = vmax.f32 %v2849, 0.0
  %v2978 = vmax.f32 %v2850, 0.0
  %v2979 = vmax.f32 %v2851, 0.0
  %v2980 = vmax.f32 %v2852, 0.0
  %v2981 = vmax.f32 %v2853, 0.0
  %v2982 = vmax.f32 %v2854, 0.0
  %v2983 = vmax.f32 %v2855, 0.0
  %v2984 = vmax.f32 %v2856, 0.0
  %v2985 = vmax.f32 %v2857, 0.0
  %v2986 = vmax.f32 %v2858, 0.0
  %v2987 = vmax.f32 %v2859, 0.0
  %v2988 = vmax.f32 %v2860, 0.0
  %v2989 = vmax.f32 %v2861, 0.0
  %v2990 = vmax.f32 %v2862, 0.0
  %v2991 = vmax.f32 %v2863, 0.0
  %v2992 = vmax.f32 %v2864, 0.0
  %v2993 = vmax.f32 %v2865, 0.0
  %v2994 = vmax.f32 %v2866, 0.0
  %v2995 = vmax.f32 %v2867, 0.0
  %v2996 = vmax.f32 %v2868, 0.0
  %v2997 = vmax.f32 %v2869, 0.0
  %v2998 = vmax.f32 %v2870, 0.0
  %v2999 = vmax.f32 %v2871, 0.0
  %v3000 = vmax.f32 %v2872, 0.0
  %v3001 = vmax.f32 %v2873, 0.0
  %v3002 = vmax.f32 %v2874, 0.0
  %v3003 = vmax.f32 %v2875, 0.0
  %v3004 = vmax.f32 %v2876, 0.0
  %v3005 = vmax.f32 %v2877, 0.0
  %v3006 = vmax.f32 %v2878, 0.0
  %v3007 = vmax.f32 %v2879, 0.0
  %v3008 = vadd.f32 %v2880, %v2944
  %v3009 = vadd.f32 %v2881, %v2945
  %v3010 = vadd.f32 %v2882, %v2946
  %v3011 = vadd.f32 %v2883, %v2947
  %v3012 = vadd.f32 %v2884, %v2948
  %v3013 = vadd.f32 %v2885, %v2949
  %v3014 = vadd.f32 %v2886, %v2950
  %v3015 = vadd.f32 %v2887, %v2951
  %v3016 = vadd.f32 %v2888, %v2952
  %v3017 = vadd.f32 %v2889, %v2953
  %v3018 = vadd.f32 %v2890, %v2954
  %v3019 = vadd.f32 %v2891, %v2955
  %v3020 = vadd.f32 %v2892, %v2956
  %v3021 = vadd.f32 %v2893, %v2957
  %v3022 = vadd.f32 %v2894, %v2958
  %v3023 = vadd.f32 %v2895, %v2959
  %v3024 = vadd.f32 %v2896, %v2960
  %v3025 = vadd.f32 %v2897, %v2961
  %v3026 = vadd.f32 %v2898, %v2962
  %v3027 = vadd.f32 %v2899, %v2963
  %v3028 = vadd.f32 %v2900, %v2964
  %v3029 = vadd.f32 %v2901, %v2965
  %v3030 = vadd.f32 %v2902, %v2966
  %v3031 = vadd.f32 %v2903, %v2967
  %v3032 = vadd.f32 %v2904, %v2968
  %v3033 = vadd.f32 %v2905, %v2969
  %v3034 = vadd.f32 %v2906, %v2970
  %v3035 = vadd.f32 %v2907, %v2971
  %v3036 = vadd.f32 %v2908, %v2972
  %v3037 = vadd.f32 %v2909, %v2973
  %v3038 = vadd.f32 %v2910, %v2974
  %v3039 = vadd.f32 %v2911, %v2975
  %v3040 = vadd.f32 %v2912, %v2976
  %v3041 = vadd.f32 %v2913, %v2977
  %v3042 = vadd.f32 %v2914, %v2978
  %v3043 = vadd.f32 %v2915, %v2979
  %v3044 = vadd.f32 %v2916, %v2980
  %v3045 = vadd.f32 %v2917, %v2981
  %v3046 = vadd.f32 %v2918, %v2982
  %v3047 = vadd.f32 %v2919, %v2983
  %v3048 = vadd.f32 %v2920, %v2984
  %v3049 = vadd.f32 %v2921, %v2985
  %v3050 = vadd.f32 %v2922, %v2986
  %v3051 = vadd.f32 %v2923, %v2987
  %v3052 = vadd.f32 %v2924, %v2988
  %v3053 = vadd.f32 %v2925, %v2989
  %v3054 = vadd.f32 %v2926, %v2990
  %v3055 = vadd.f32 %v2927, %v2991
  %v3056 = vadd.f32 %v2928, %v2992
  %v3057 = vadd.f32 %v2929, %v2993
  %v3058 = vadd.f32 %v2930, %v2994
  %v3059 = vadd.f32 %v2931, %v2995
  %v3060 = vadd.f32 %v2932, %v2996
  %v3061 = vadd.f32 %v2933, %v2997
  %v3062 = vadd.f32 %v2934, %v2998
  %v3063 = vadd.f32 %v2935, %v2999
  %v3064 = vadd.f32 %v2936, %v3000
  %v3065 = vadd.f32 %v2937, %v3001
  %v3066 = vadd.f32 %v2938, %v3002
  %v3067 = vadd.f32 %v2939, %v3003
  %v3068 = vadd.f32 %v2940, %v3004
  %v3069 = vadd.f32 %v2941, %v3005
  %v3070 = vadd.f32 %v2942, %v3006
  %v3071 = vadd.f32 %v2943, %v3007
  %3072 = vst.msk [vmem:[%s6] sm:$0xff] %vm1311, %v3008
  %3073 = vst.msk [vmem:[%s6 + $0x8] sm:$0xff] %vm1311, %v3009
  %3074 = vst.msk [vmem:[%s6 + $0x10] sm:$0xff] %vm1311, %v3010
  %3075 = vst.msk [vmem:[%s6 + $0x18] sm:$0xff] %vm1311, %v3011
  %3076 = vst.msk [vmem:[%s6 + $0x20] sm:$0xff] %vm1311, %v3012
  %3077 = vst.msk [vmem:[%s6 + $0x28] sm:$0xff] %vm1311, %v3013
  %3078 = vst.msk [vmem:[%s6 + $0x30] sm:$0xff] %vm1311, %v3014
  %3079 = vst.msk [vmem:[%s6 + $0x38] sm:$0xff] %vm1311, %v3015
  %3080 = vst.msk [vmem:[%s6 + $0x40] sm:$0xff] %vm1311, %v3016
  %3081 = vst.msk [vmem:[%s6 + $0x48] sm:$0xff] %vm1311, %v3017
  %3082 = vst.msk [vmem:[%s6 + $0x50] sm:$0xff] %vm1311, %v3018
  %3083 = vst.msk [vmem:[%s6 + $0x58] sm:$0xff] %vm1311, %v3019
  %3084 = vst.msk [vmem:[%s6 + $0x60] sm:$0xff] %vm1311, %v3020
  %3085 = vst.msk [vmem:[%s6 + $0x68] sm:$0xff] %vm1311, %v3021
  %3086 = vst.msk [vmem:[%s6 + $0x70] sm:$0xff] %vm1311, %v3022
  %3087 = vst.msk [vmem:[%s6 + $0x78] sm:$0xff] %vm1311, %v3023
  %3088 = vst.msk [vmem:[%s6 + $0x80] sm:$0xff] %vm1311, %v3024
  %3089 = vst.msk [vmem:[%s6 + $0x88] sm:$0xff] %vm1311, %v3025
  %3090 = vst.msk [vmem:[%s6 + $0x90] sm:$0xff] %vm1311, %v3026
  %3091 = vst.msk [vmem:[%s6 + $0x98] sm:$0xff] %vm1311, %v3027
  %3092 = vst.msk [vmem:[%s6 + $0xa0] sm:$0xff] %vm1311, %v3028
  %3093 = vst.msk [vmem:[%s6 + $0xa8] sm:$0xff] %vm1311, %v3029
  %3094 = vst.msk [vmem:[%s6 + $0xb0] sm:$0xff] %vm1311, %v3030
  %3095 = vst.msk [vmem:[%s6 + $0xb8] sm:$0xff] %vm1311, %v3031
  %3096 = vst.msk [vmem:[%s6 + $0xc0] sm:$0xff] %vm1311, %v3032
  %3097 = vst.msk [vmem:[%s6 + $0xc8] sm:$0xff] %vm1311, %v3033
  %3098 = vst.msk [vmem:[%s6 + $0xd0] sm:$0xff] %vm1311, %v3034
  %3099 = vst.msk [vmem:[%s6 + $0xd8] sm:$0xff] %vm1311, %v3035
  %3100 = vst.msk [vmem:[%s6 + $0xe0] sm:$0xff] %vm1311, %v3036
  %3101 = vst.msk [vmem:[%s6 + $0xe8] sm:$0xff] %vm1311, %v3037
  %3102 = vst.msk [vmem:[%s6 + $0xf0] sm:$0xff] %vm1311, %v3038
  %3103 = vst.msk [vmem:[%s6 + $0xf8] sm:$0xff] %vm1311, %v3039
  %3104 = vst.msk [vmem:[%s6 + $0x100] sm:$0xff] %vm1311, %v3040
  %3105 = vst.msk [vmem:[%s6 + $0x108] sm:$0xff] %vm1311, %v3041
  %3106 = vst.msk [vmem:[%s6 + $0x110] sm:$0xff] %vm1311, %v3042
  %3107 = vst.msk [vmem:[%s6 + $0x118] sm:$0xff] %vm1311, %v3043
  %3108 = vst.msk [vmem:[%s6 + $0x120] sm:$0xff] %vm1311, %v3044
  %3109 = vst.msk [vmem:[%s6 + $0x128] sm:$0xff] %vm1311, %v3045
  %3110 = vst.msk [vmem:[%s6 + $0x130] sm:$0xff] %vm1311, %v3046
  %3111 = vst.msk [vmem:[%s6 + $0x138] sm:$0xff] %vm1311, %v3047
  %3112 = vst.msk [vmem:[%s6 + $0x140] sm:$0xff] %vm1311, %v3048
  %3113 = vst.msk [vmem:[%s6 + $0x148] sm:$0xff] %vm1311, %v3049
  %3114 = vst.msk [vmem:[%s6 + $0x150] sm:$0xff] %vm1311, %v3050
  %3115 = vst.msk [vmem:[%s6 + $0x158] sm:$0xff] %vm1311, %v3051
  %3116 = vst.msk [vmem:[%s6 + $0x160] sm:$0xff] %vm1311, %v3052
  %3117 = vst.msk [vmem:[%s6 + $0x168] sm:$0xff] %vm1311, %v3053
  %3118 = vst.msk [vmem:[%s6 + $0x170] sm:$0xff] %vm1311, %v3054
  %3119 = vst.msk [vmem:[%s6 + $0x178] sm:$0xff] %vm1311, %v3055
  %3120 = vst.msk [vmem:[%s6 + $0x180] sm:$0xff] %vm1311, %v3056
  %3121 = vst.msk [vmem:[%s6 + $0x188] sm:$0xff] %vm1311, %v3057
  %3122 = vst.msk [vmem:[%s6 + $0x190] sm:$0xff] %vm1311, %v3058
  %3123 = vst.msk [vmem:[%s6 + $0x198] sm:$0xff] %vm1311, %v3059
  %3124 = vst.msk [vmem:[%s6 + $0x1a0] sm:$0xff] %vm1311, %v3060
  %3125 = vst.msk [vmem:[%s6 + $0x1a8] sm:$0xff] %vm1311, %v3061
  %3126 = vst.msk [vmem:[%s6 + $0x1b0] sm:$0xff] %vm1311, %v3062
  %3127 = vst.msk [vmem:[%s6 + $0x1b8] sm:$0xff] %vm1311, %v3063
  %3128 = vst.msk [vmem:[%s6 + $0x1c0] sm:$0xff] %vm1311, %v3064
  %3129 = vst.msk [vmem:[%s6 + $0x1c8] sm:$0xff] %vm1311, %v3065
  %3130 = vst.msk [vmem:[%s6 + $0x1d0] sm:$0xff] %vm1311, %v3066
  %3131 = vst.msk [vmem:[%s6 + $0x1d8] sm:$0xff] %vm1311, %v3067
  %3132 = vst.msk [vmem:[%s6 + $0x1e0] sm:$0xff] %vm1311, %v3068
  %3133 = vst.msk [vmem:[%s6 + $0x1e8] sm:$0xff] %vm1311, %v3069
  %3134 = vst.msk [vmem:[%s6 + $0x1f0] sm:$0xff] %vm1311, %v3070
  %3135 = vst.msk [vmem:[%s6 + $0x1f8] sm:$0xff] %vm1311, %v3071
  // Predicated region
  $region26: #{network_forward.12} parent=0 // pred_check
    _
  $region27: #{network_forward.12} parent=0 // pred_check_branch
    %3137 = sbr.rel (0) target = $region29
  $region28: #{network_forward.12} parent=0 // pred_region
    _
  $region29: #{network_forward.12} parent=0 // pred_fallthru
    _
  // Predicated region
  $region30: #{network_forward.12} parent=0 // pred_check
    _
  $region31: #{network_forward.12} parent=0 // pred_check_branch
    %3139 = sbr.rel (0) target = $region33
  $region32: #{network_forward.12} parent=0 // pred_region
    _
  $region33: #{network_forward.12} parent=0 // pred_fallthru
    _

// kernel: network_forward.17
$region0: #{network_forward.17}
  #allocation0 [shape = 'u32[]', space=smem, size = 0x4, offset = 0x4, fixed_abs, tag = 'smem constant byte address 0x4 - core index']
  #allocation1 [shape = 'u32[144,128]{1,0:T(1,128)}', space=vmem, size = 0x12000, scoped, tag = 'internal scratch']
  %s0 = inlined_call_operand.vmem [shape: f32[12,36,36], index: 0, kind: input, shape index: {}]
  %s1 = inlined_call_operand.vmem [shape: f32[36,16], index: 1, kind: input, shape index: {}]
  %s2 = inlined_call_operand.vmem [shape: f32[16,36], index: 2, kind: input, shape index: {}]
  %s3 = inlined_call_operand.vmem [shape: f32[12,16,16], index: 3, kind: output, shape index: {}]
  %s4 = sld [smem:[#allocation0]]
  $region45: #{network_forward.17} parent=0
    _
  %s6 = ssub.s32 1, %s4
  %s7 = scalar_select 0, %s6, %s4
  loop: start=0, step=1, limit=4
  $region2: #{network_forward.17} parent=0 // loop_pre_header
    _
  $region3: #{network_forward.17} parent=0 // loop_header
    %s9 = sphi 0, %s13
    %p10 = scmp.ge.s32.totalorder %s9, 4
    %s19 = sphi 0, %s21
    %s22 = sphi 0, %s19
    %s23 = sphi 0, %s22
    %s39 = sphi 0, %s23
    %s43 = sphi 0, %s43
    %s45 = sphi 0, %s43
    %s46 = sphi 0, %s45
    %s60 = sphi 0, %s46
    %s64 = sphi 0, %s64
    %s66 = sphi 0, %s64
    %s67 = sphi 0, %s66
    %s81 = sphi 0, %s67
    %s87 = sphi 0, %s89
    %s90 = sphi 0, %s87
    %s91 = sphi 0, %s90
    %s107 = sphi 0, %s91
  $region4: #{network_forward.17} parent=0 // loop_header_branch
    %12 = sbr.rel (%p10) target = $region8
  $region5: #{network_forward.17} parent=0 // loop_body
    %s14 = ssub.s32 %s9, 1
    %s15 = ssub.s32 %s9, 2
    %s16 = sadd.s32 %s9, 1
    %s17 = ssub.s32 %s9, %s16
    %p18 = scmp.eq.s32.totalorder %s17, 0
    %s20 = sadd.s32 %s19, 1
    %s21 = scalar_select %p18, %s19, %s20
    %p24 = pneg %p18
    %p25 = scmp.eq.s32.totalorder %s9, 1
    %p26 = por %p24, %p25
    %p27 = scmp.ne.s32.totalorder %s19, %s22
    %p28 = scmp.eq.s32.totalorder %s9, 0
    %p29 = por %p27, %p28
    %p30 = scmp.ne.s32.totalorder %s19, %s22
    %p31 = scmp.eq.s32.totalorder %s14, 1
    %p32 = por %p30, %p31
    %p33 = scmp.ne.s32.totalorder %s22, %s23
    %p34 = scmp.eq.s32.totalorder %s14, 0
    %p35 = por %p33, %p34
    %p36 = scmp.ne.s32.totalorder %s22, %s23
    %p37 = scmp.eq.s32.totalorder %s15, 1
    %p38 = por %p36, %p37
    %p40 = scmp.ne.s32.totalorder %s23, %s39
    %p41 = scmp.eq.s32.totalorder %s15, 0
    %p42 = por %p40, %p41
    %s44 = sadd.s32 %s43, 1
    %p47 = scmp.eq.s32.totalorder %s9, 1
    %p48 = scmp.ne.s32.totalorder %s43, %s45
    %p49 = scmp.eq.s32.totalorder %s9, 0
    %p50 = por %p48, %p49
    %p51 = scmp.ne.s32.totalorder %s43, %s45
    %p52 = scmp.eq.s32.totalorder %s14, 1
    %p53 = por %p51, %p52
    %p54 = scmp.ne.s32.totalorder %s45, %s46
    %p55 = scmp.eq.s32.totalorder %s14, 0
    %p56 = por %p54, %p55
    %p57 = scmp.ne.s32.totalorder %s45, %s46
    %p58 = scmp.eq.s32.totalorder %s15, 1
    %p59 = por %p57, %p58
    %p61 = scmp.ne.s32.totalorder %s46, %s60
    %p62 = scmp.eq.s32.totalorder %s15, 0
    %p63 = por %p61, %p62
    %s65 = sadd.s32 %s64, 1
    %p68 = scmp.eq.s32.totalorder %s9, 1
    %p69 = scmp.ne.s32.totalorder %s64, %s66
    %p70 = scmp.eq.s32.totalorder %s9, 0
    %p71 = por %p69, %p70
    %p72 = scmp.ne.s32.totalorder %s64, %s66
    %p73 = scmp.eq.s32.totalorder %s14, 1
    %p74 = por %p72, %p73
    %p75 = scmp.ne.s32.totalorder %s66, %s67
    %p76 = scmp.eq.s32.totalorder %s14, 0
    %p77 = por %p75, %p76
    %p78 = scmp.ne.s32.totalorder %s66, %s67
    %p79 = scmp.eq.s32.totalorder %s15, 1
    %p80 = por %p78, %p79
    %p82 = scmp.ne.s32.totalorder %s67, %s81
    %p83 = scmp.eq.s32.totalorder %s15, 0
    %p84 = por %p82, %p83
    %s85 = ssub.s32 %s9, %s16
    %p86 = scmp.eq.s32.totalorder %s85, 0
    %s88 = sadd.s32 %s87, 1
    %s89 = scalar_select %p86, %s87, %s88
    %p92 = pneg %p86
    %p93 = scmp.eq.s32.totalorder %s9, 1
    %p94 = por %p92, %p93
    %p95 = scmp.ne.s32.totalorder %s87, %s90
    %p96 = scmp.eq.s32.totalorder %s9, 0
    %p97 = por %p95, %p96
    %p98 = scmp.ne.s32.totalorder %s87, %s90
    %p99 = scmp.eq.s32.totalorder %s14, 1
    %p100 = por %p98, %p99
    %p101 = scmp.ne.s32.totalorder %s90, %s91
    %p102 = scmp.eq.s32.totalorder %s14, 0
    %p103 = por %p101, %p102
    %p104 = scmp.ne.s32.totalorder %s90, %s91
    %p105 = scmp.eq.s32.totalorder %s15, 1
    %p106 = por %p104, %p105
    %p108 = scmp.ne.s32.totalorder %s91, %s107
    %p109 = scmp.eq.s32.totalorder %s15, 0
    %p110 = por %p108, %p109
    %p111 = scmp.le.s32.totalorder 1, %s9
    %p112 = scmp.lt.s32.totalorder %s9, 3
    %p113 = pnand %p111, %p112
    %p114 = pneg %p113
    // Predicated region
    $region9: #{network_forward.17} parent=5 // pred_check
      _
    $region10: #{network_forward.17} parent=5 // pred_check_branch
      %116 = sbr.rel (%p113) target = $region12
    $region11: #{network_forward.17} parent=5 // pred_region
      %s117 = ssub.s32 %s9, 1
      // Predicated region
      $region13: #{network_forward.17} parent=11 // pred_check
        %p118 = pneg %p56
      $region14: #{network_forward.17} parent=11 // pred_check_branch
        %120 = sbr.rel (%p118) target = $region16
      $region15: #{network_forward.17} parent=11 // pred_region
        _
      $region16: #{network_forward.17} parent=11 // pred_fallthru
        _
      // Predicated region
      $region17: #{network_forward.17} parent=11 // pred_check
        %p121 = pneg %p77
      $region18: #{network_forward.17} parent=11 // pred_check_branch
        %123 = sbr.rel (%p121) target = $region20
      $region19: #{network_forward.17} parent=11 // pred_region
        _
      $region20: #{network_forward.17} parent=11 // pred_fallthru
        _
    $region12: #{network_forward.17} parent=5 // pred_fallthru
      _
    %p124 = scmp.lt.s32.totalorder %s9, 2
    // Predicated region
    $region21: #{network_forward.17} parent=5 // pred_check
      %p125 = pneg %p124
    $region22: #{network_forward.17} parent=5 // pred_check_branch
      %127 = sbr.rel (%p125) target = $region24
    $region23: #{network_forward.17} parent=5 // pred_region
      // Predicated region
      $region25: #{network_forward.17} parent=23 // pred_check
        %p128 = pneg %p29
      $region26: #{network_forward.17} parent=23 // pred_check_branch
        %130 = sbr.rel (%p128) target = $region28
      $region27: #{network_forward.17} parent=23 // pred_region
        %s131 = smul.u32 6, %s9
        %p132 = scmp.lt.s32.totalorder %s131, 11
        %s133 = scalar_select %p132, %s131, 11
        %s134 = smul.addr %s133, 5
        %s135 = smul.addr %s134, 8
        %s136 = scalar_lea.vmem %s0, %s135
        %s137 = smul.u32 6, %s9
      $region28: #{network_forward.17} parent=23 // pred_fallthru
        _
    $region24: #{network_forward.17} parent=5 // pred_fallthru
      _
    %p138 = scmp.le.s32.totalorder 1, %s9
    %p139 = scmp.lt.s32.totalorder %s9, 3
    %p140 = pnand %p138, %p139
    %p141 = pneg %p140
    // Predicated region
    $region29: #{network_forward.17} parent=5 // pred_check
      _
    $region30: #{network_forward.17} parent=5 // pred_check_branch
      %143 = sbr.rel (%p140) target = $region32
    $region31: #{network_forward.17} parent=5 // pred_region
      %s144 = ssub.s32 %s9, 1
      %s145 = smul.u32 6, %s14
      %p146 = scmp.lt.s32.totalorder %s145, 11
      %s147 = scalar_select %p146, %s145, 11
      %s148 = smul.addr %s147, 5
      %s149 = smul.addr %s148, 8
      %s150 = scalar_lea.vmem %s0, %s149
      %p151 = pneg %p35
      %p152 = pneg %p32
      %p153 = pneg %p56
      %p154 = pneg %p53
      %p155 = pneg %p77
      %p156 = pneg %p74
      %p157 = pneg %p103
      %p158 = pneg %p100
      %s159 = smul.u32 6, %s14
      %p160 = scmp.lt.s32.totalorder %s159, 11
      %s161 = scalar_select %p160, %s159, 11
      %s162 = smul.addr %s161, 2
      %s163 = smul.addr %s162, 8
      %s164 = scalar_lea.vmem %s3, %s163
      %s165 = smul.u32 6, %s14
      %p166 = scmp.lt.s32.totalorder %s165, 11
      %s167 = scalar_select %p166, %s165, 11
      %s168 = smul.addr %s167, 5
      %s169 = smul.addr %s168, 8
      %s170 = scalar_lea.vmem %s0, %s169
      %s171 = smul.u32 6, %s14
      %s172 = smul.u32 6, %s14
      %p173 = scmp.lt.s32.totalorder %s172, 11
      %s174 = scalar_select %p173, %s172, 11
      %s175 = smul.addr %s174, 2
      %s176 = smul.addr %s175, 8
      %s177 = scalar_lea.vmem %s3, %s176
      %s178 = smul.u32 6, %s14
      %v179 = vld [vmem:[%s1] sm:$0xff]
      %v180 = vld [vmem:[%s1 + $0x8] sm:$0xff]
      %v181 = vld [vmem:[%s1 + $0x10] sm:$0xff]
      %v182 = vld [vmem:[%s1 + $0x18] sm:$0xff]
      %v183 = vld [vmem:[%s1 + $0x20] sm:$0xf]
      %v184 = vld [vmem:[%s2] sm:$0xff]
      %v185 = vld [vmem:[%s2 + $0x8] sm:$0xff]
      %v186 = vld [vmem:[%s170] sm:$0xff]
      %v187 = vld [vmem:[%s170 + $0x8] sm:$0xff]
      %v188 = vld [vmem:[%s170 + $0x10] sm:$0xff]
      %v189 = vld [vmem:[%s170 + $0x18] sm:$0xff]
      %v190 = vld [vmem:[%s170 + $0x20] sm:$0xf]
      %vm191 = vcmask 293888
      %v193 = vsel %vm191, %v186, 0
      %v196 = vsel %vm191, %v187, 0
      %v199 = vsel %vm191, %v188, 0
      %v202 = vsel %vm191, %v189, 0
      %v205 = vsel %vm191, %v190, 0
      %vm207 = vcmask 1043456
      %v209 = vsel %vm207, %v183, 0
      %211 = vmatprep.subr.mxu0 0.0
      %212 = vmatpush1.msra.mxu0 0.0
      %213 = vmatprep.subr.mxu0 0.0
      %214 = vmatpush1.msra.mxu0 0.0
      %215 = vmatprep.subr.mxu0 0.0
      %216 = vmatpush1.msra.mxu0 0.0
      %217 = vmatprep.subr.mxu0 0.0
      %218 = vmatpush1.msra.mxu0 0.0
      %219 = vmatprep.subr.mxu0 0.0
      %220 = vmatpush1.msra.mxu0 0.0
      %221 = vmatprep.subr.mxu0 0.0
      %222 = vmatpush1.msra.mxu0 0.0
      %223 = vmatprep.subr.mxu0 0.0
      %224 = vmatpush1.msra.mxu0 0.0
      %225 = vmatprep.subr.mxu0 0.0
      %226 = vmatpush1.msra.mxu0 0.0
      %227 = vmatprep.subr.mxu0 0.0
      %228 = vmatpush1.msra.mxu0 0.0
      %229 = vmatprep.subr.mxu0 0.0
      %230 = vmatpush1.msra.mxu0 0.0
      %231 = vmatprep.subr.mxu0 0.0
      %232 = vmatpush1.msra.mxu0 0.0
      %233 = vmatprep.subr.mxu0 0.0
      %234 = vmatpush1.msra.mxu0 %v209
      %235 = vmatprep.subr.mxu0 0.0
      %236 = vmatpush1.msra.mxu0 %v182
      %237 = vmatprep.subr.mxu0 0.0
      %238 = vmatpush1.msra.mxu0 %v181
      %239 = vmatprep.subr.mxu0 0.0
      %240 = vmatpush1.msra.mxu0 %v180
      %241 = vmatprep.subr.mxu0 0.0
      %242 = vmatpush1.msra.mxu0 %v179
      %243 = vmatprep.subr.mxu0 0.0
      %244 = vmatpush2.msra.mxu0 0.0
      %245 = vmatprep.subr.mxu0 0.0
      %246 = vmatpush2.msra.mxu0 0.0
      %247 = vmatprep.subr.mxu0 0.0
      %248 = vmatpush2.msra.mxu0 0.0
      %249 = vmatprep.subr.mxu0 0.0
      %250 = vmatpush2.msra.mxu0 0.0
      %251 = vmatprep.subr.mxu0 0.0
      %252 = vmatpush2.msra.mxu0 0.0
      %253 = vmatprep.subr.mxu0 0.0
      %254 = vmatpush2.msra.mxu0 0.0
      %255 = vmatprep.subr.mxu0 0.0
      %256 = vmatpush2.msra.mxu0 0.0
      %257 = vmatprep.subr.mxu0 0.0
      %258 = vmatpush2.msra.mxu0 0.0
      %259 = vmatprep.subr.mxu0 0.0
      %260 = vmatpush2.msra.mxu0 0.0
      %261 = vmatprep.subr.mxu0 0.0
      %262 = vmatpush2.msra.mxu0 0.0
      %263 = vmatprep.subr.mxu0 0.0
      %264 = vmatpush2.msra.mxu0 0.0
      %265 = vmatprep.subr.mxu0 0.0
      %266 = vmatpush2.msra.mxu0 0.0
      %267 = vmatprep.subr.mxu0 0.0
      %268 = vmatpush2.msra.mxu0 0.0
      %269 = vmatprep.subr.mxu0 0.0
      %270 = vmatpush2.msra.mxu0 0.0
      %271 = vmatprep.subr.mxu0 0.0
      %272 = vmatpush2.msra.mxu0 0.0
      %273 = vmatprep.subr.mxu0 0.0
      %274 = vmatpush2.msra.mxu0 0.0
      %275 = vmatprep.mubr.f32.mxu0 0.0
      %276 = vmatmul.mubr.f32.gmra.mxu0 %v193
      %v277 = vpop.f32.mrf.mxu0
      %v278 = vadd.f32 0.0, %v277
      %v279 = vpop.f32.mrf.mxu0
      %280 = vmatprep.mubr.f32.mxu0 0.0
      %281 = vmatmul.mubr.f32.gmra.mxu0 %v196
      %v282 = vpop.f32.mrf.mxu0
      %v283 = vadd.f32 0.0, %v282
      %v284 = vpop.f32.mrf.mxu0
      %285 = vmatprep.mubr.f32.mxu0 0.0
      %286 = vmatmul.mubr.f32.gmra.mxu0 %v199
      %v287 = vpop.f32.mrf.mxu0
      %v288 = vadd.f32 0.0, %v287
      %v289 = vpop.f32.mrf.mxu0
      %290 = vmatprep.mubr.f32.mxu0 0.0
      %291 = vmatmul.mubr.f32.gmra.mxu0 %v202
      %v292 = vpop.f32.mrf.mxu0
      %v293 = vadd.f32 0.0, %v292
      %v294 = vpop.f32.mrf.mxu0
      %295 = vmatprep.mubr.f32.mxu0 0.0
      %296 = vmatmul.mubr.f32.gmra.mxu0 %v205
      %v297 = vpop.f32.mrf.mxu0
      %v298 = vadd.f32 0.0, %v297
      %v299 = vpop.f32.mrf.mxu0
      %300 = vdwg.mxu0
      %v302 = vsel %vm191, %v184, 0
      %v305 = vsel %vm191, %v185, 0
      %v308 = vsel %vm207, %v298, 0
      %310 = vmatprep.subr.mxu0 0.0
      %311 = vmatpush1.msra.mxu0 0.0
      %312 = vmatprep.subr.mxu0 0.0
      %313 = vmatpush1.msra.mxu0 0.0
      %314 = vmatprep.subr.mxu0 0.0
      %315 = vmatpush1.msra.mxu0 0.0
      %316 = vmatprep.subr.mxu0 0.0
      %317 = vmatpush1.msra.mxu0 0.0
      %318 = vmatprep.subr.mxu0 0.0
      %319 = vmatpush1.msra.mxu0 0.0
      %320 = vmatprep.subr.mxu0 0.0
      %321 = vmatpush1.msra.mxu0 0.0
      %322 = vmatprep.subr.mxu0 0.0
      %323 = vmatpush1.msra.mxu0 0.0
      %324 = vmatprep.subr.mxu0 0.0
      %325 = vmatpush1.msra.mxu0 0.0
      %326 = vmatprep.subr.mxu0 0.0
      %327 = vmatpush1.msra.mxu0 0.0
      %328 = vmatprep.subr.mxu0 0.0
      %329 = vmatpush1.msra.mxu0 0.0
      %330 = vmatprep.subr.mxu0 0.0
      %331 = vmatpush1.msra.mxu0 0.0
      %332 = vmatprep.subr.mxu0 0.0
      %333 = vmatpush1.msra.mxu0 %v308
      %334 = vmatprep.subr.mxu0 0.0
      %335 = vmatpush1.msra.mxu0 %v293
      %336 = vmatprep.subr.mxu0 0.0
      %337 = vmatpush1.msra.mxu0 %v288
      %338 = vmatprep.subr.mxu0 0.0
      %339 = vmatpush1.msra.mxu0 %v283
      %340 = vmatprep.subr.mxu0 0.0
      %341 = vmatpush1.msra.mxu0 %v278
      %342 = vmatprep.subr.mxu0 0.0
      %343 = vmatpush2.msra.mxu0 0.0
      %344 = vmatprep.subr.mxu0 0.0
      %345 = vmatpush2.msra.mxu0 0.0
      %346 = vmatprep.subr.mxu0 0.0
      %347 = vmatpush2.msra.mxu0 0.0
      %348 = vmatprep.subr.mxu0 0.0
      %349 = vmatpush2.msra.mxu0 0.0
      %350 = vmatprep.subr.mxu0 0.0
      %351 = vmatpush2.msra.mxu0 0.0
      %352 = vmatprep.subr.mxu0 0.0
      %353 = vmatpush2.msra.mxu0 0.0
      %354 = vmatprep.subr.mxu0 0.0
      %355 = vmatpush2.msra.mxu0 0.0
      %356 = vmatprep.subr.mxu0 0.0
      %357 = vmatpush2.msra.mxu0 0.0
      %358 = vmatprep.subr.mxu0 0.0
      %359 = vmatpush2.msra.mxu0 0.0
      %360 = vmatprep.subr.mxu0 0.0
      %361 = vmatpush2.msra.mxu0 0.0
      %362 = vmatprep.subr.mxu0 0.0
      %363 = vmatpush2.msra.mxu0 0.0
      %364 = vmatprep.subr.mxu0 0.0
      %365 = vmatpush2.msra.mxu0 0.0
      %366 = vmatprep.subr.mxu0 0.0
      %367 = vmatpush2.msra.mxu0 0.0
      %368 = vmatprep.subr.mxu0 0.0
      %369 = vmatpush2.msra.mxu0 0.0
      %370 = vmatprep.subr.mxu0 0.0
      %371 = vmatpush2.msra.mxu0 0.0
      %372 = vmatprep.subr.mxu0 0.0
      %373 = vmatpush2.msra.mxu0 0.0
      %374 = vmatprep.mubr.f32.mxu0 0.0
      %375 = vmatmul.mubr.f32.gmra.mxu0 %v302
      %v376 = vpop.f32.mrf.mxu0
      %v377 = vadd.f32 0.0, %v376
      %v378 = vpop.f32.mrf.mxu0
      %379 = vmatprep.mubr.f32.mxu0 0.0
      %380 = vmatmul.mubr.f32.gmra.mxu0 %v305
      %v381 = vpop.f32.mrf.mxu0
      %v382 = vadd.f32 0.0, %v381
      %v383 = vpop.f32.mrf.mxu0
      %384 = vdwg.mxu0
      %vm385 = vcmask 130048
      %386 = vst.msk [vmem:[%s177] sm:$0xff] %vm385, %v377
      %387 = vst.msk [vmem:[%s177 + $0x8] sm:$0xff] %vm385, %v382
      %s388 = scalar_lea.vmem %s170, 40
      %v389 = vld [vmem:[%s388] sm:$0xff]
      %v390 = vld [vmem:[%s388 + $0x8] sm:$0xff]
      %v391 = vld [vmem:[%s388 + $0x10] sm:$0xff]
      %v392 = vld [vmem:[%s388 + $0x18] sm:$0xff]
      %v393 = vld [vmem:[%s388 + $0x20] sm:$0xf]
      %v395 = vsel %vm191, %v389, 0
      %v398 = vsel %vm191, %v390, 0
      %v401 = vsel %vm191, %v391, 0
      %v404 = vsel %vm191, %v392, 0
      %v407 = vsel %vm191, %v393, 0
      %409 = vmatprep.subr.mxu0 0.0
      %410 = vmatpush1.msra.mxu0 0.0
      %411 = vmatprep.subr.mxu0 0.0
      %412 = vmatpush1.msra.mxu0 0.0
      %413 = vmatprep.subr.mxu0 0.0
      %414 = vmatpush1.msra.mxu0 0.0
      %415 = vmatprep.subr.mxu0 0.0
      %416 = vmatpush1.msra.mxu0 0.0
      %417 = vmatprep.subr.mxu0 0.0
      %418 = vmatpush1.msra.mxu0 0.0
      %419 = vmatprep.subr.mxu0 0.0
      %420 = vmatpush1.msra.mxu0 0.0
      %421 = vmatprep.subr.mxu0 0.0
      %422 = vmatpush1.msra.mxu0 0.0
      %423 = vmatprep.subr.mxu0 0.0
      %424 = vmatpush1.msra.mxu0 0.0
      %425 = vmatprep.subr.mxu0 0.0
      %426 = vmatpush1.msra.mxu0 0.0
      %427 = vmatprep.subr.mxu0 0.0
      %428 = vmatpush1.msra.mxu0 0.0
      %429 = vmatprep.subr.mxu0 0.0
      %430 = vmatpush1.msra.mxu0 0.0
      %431 = vmatprep.subr.mxu0 0.0
      %432 = vmatpush1.msra.mxu0 %v209
      %433 = vmatprep.subr.mxu0 0.0
      %434 = vmatpush1.msra.mxu0 %v182
      %435 = vmatprep.subr.mxu0 0.0
      %436 = vmatpush1.msra.mxu0 %v181
      %437 = vmatprep.subr.mxu0 0.0
      %438 = vmatpush1.msra.mxu0 %v180
      %439 = vmatprep.subr.mxu0 0.0
      %440 = vmatpush1.msra.mxu0 %v179
      %441 = vmatprep.subr.mxu0 0.0
      %442 = vmatpush2.msra.mxu0 0.0
      %443 = vmatprep.subr.mxu0 0.0
      %444 = vmatpush2.msra.mxu0 0.0
      %445 = vmatprep.subr.mxu0 0.0
      %446 = vmatpush2.msra.mxu0 0.0
      %447 = vmatprep.subr.mxu0 0.0
      %448 = vmatpush2.msra.mxu0 0.0
      %449 = vmatprep.subr.mxu0 0.0
      %450 = vmatpush2.msra.mxu0 0.0
      %451 = vmatprep.subr.mxu0 0.0
      %452 = vmatpush2.msra.mxu0 0.0
      %453 = vmatprep.subr.mxu0 0.0
      %454 = vmatpush2.msra.mxu0 0.0
      %455 = vmatprep.subr.mxu0 0.0
      %456 = vmatpush2.msra.mxu0 0.0
      %457 = vmatprep.subr.mxu0 0.0
      %458 = vmatpush2.msra.mxu0 0.0
      %459 = vmatprep.subr.mxu0 0.0
      %460 = vmatpush2.msra.mxu0 0.0
      %461 = vmatprep.subr.mxu0 0.0
      %462 = vmatpush2.msra.mxu0 0.0
      %463 = vmatprep.subr.mxu0 0.0
      %464 = vmatpush2.msra.mxu0 0.0
      %465 = vmatprep.subr.mxu0 0.0
      %466 = vmatpush2.msra.mxu0 0.0
      %467 = vmatprep.subr.mxu0 0.0
      %468 = vmatpush2.msra.mxu0 0.0
      %469 = vmatprep.subr.mxu0 0.0
      %470 = vmatpush2.msra.mxu0 0.0
      %471 = vmatprep.subr.mxu0 0.0
      %472 = vmatpush2.msra.mxu0 0.0
      %473 = vmatprep.mubr.f32.mxu0 0.0
      %474 = vmatmul.mubr.f32.gmra.mxu0 %v395
      %v475 = vpop.f32.mrf.mxu0
      %v476 = vadd.f32 0.0, %v475
      %v477 = vpop.f32.mrf.mxu0
      %478 = vmatprep.mubr.f32.mxu0 0.0
      %479 = vmatmul.mubr.f32.gmra.mxu0 %v398
      %v480 = vpop.f32.mrf.mxu0
      %v481 = vadd.f32 0.0, %v480
      %v482 = vpop.f32.mrf.mxu0
      %483 = vmatprep.mubr.f32.mxu0 0.0
      %484 = vmatmul.mubr.f32.gmra.mxu0 %v401
      %v485 = vpop.f32.mrf.mxu0
      %v486 = vadd.f32 0.0, %v485
      %v487 = vpop.f32.mrf.mxu0
      %488 = vmatprep.mubr.f32.mxu0 0.0
      %489 = vmatmul.mubr.f32.gmra.mxu0 %v404
      %v490 = vpop.f32.mrf.mxu0
      %v491 = vadd.f32 0.0, %v490
      %v492 = vpop.f32.mrf.mxu0
      %493 = vmatprep.mubr.f32.mxu0 0.0
      %494 = vmatmul.mubr.f32.gmra.mxu0 %v407
      %v495 = vpop.f32.mrf.mxu0
      %v496 = vadd.f32 0.0, %v495
      %v497 = vpop.f32.mrf.mxu0
      %498 = vdwg.mxu0
      %v500 = vsel %vm207, %v496, 0
      %502 = vmatprep.subr.mxu0 0.0
      %503 = vmatpush1.msra.mxu0 0.0
      %504 = vmatprep.subr.mxu0 0.0
      %505 = vmatpush1.msra.mxu0 0.0
      %506 = vmatprep.subr.mxu0 0.0
      %507 = vmatpush1.msra.mxu0 0.0
      %508 = vmatprep.subr.mxu0 0.0
      %509 = vmatpush1.msra.mxu0 0.0
      %510 = vmatprep.subr.mxu0 0.0
      %511 = vmatpush1.msra.mxu0 0.0
      %512 = vmatprep.subr.mxu0 0.0
      %513 = vmatpush1.msra.mxu0 0.0
      %514 = vmatprep.subr.mxu0 0.0
      %515 = vmatpush1.msra.mxu0 0.0
      %516 = vmatprep.subr.mxu0 0.0
      %517 = vmatpush1.msra.mxu0 0.0
      %518 = vmatprep.subr.mxu0 0.0
      %519 = vmatpush1.msra.mxu0 0.0
      %520 = vmatprep.subr.mxu0 0.0
      %521 = vmatpush1.msra.mxu0 0.0
      %522 = vmatprep.subr.mxu0 0.0
      %523 = vmatpush1.msra.mxu0 0.0
      %524 = vmatprep.subr.mxu0 0.0
      %525 = vmatpush1.msra.mxu0 %v500
      %526 = vmatprep.subr.mxu0 0.0
      %527 = vmatpush1.msra.mxu0 %v491
      %528 = vmatprep.subr.mxu0 0.0
      %529 = vmatpush1.msra.mxu0 %v486
      %530 = vmatprep.subr.mxu0 0.0
      %531 = vmatpush1.msra.mxu0 %v481
      %532 = vmatprep.subr.mxu0 0.0
      %533 = vmatpush1.msra.mxu0 %v476
      %534 = vmatprep.subr.mxu0 0.0
      %535 = vmatpush2.msra.mxu0 0.0
      %536 = vmatprep.subr.mxu0 0.0
      %537 = vmatpush2.msra.mxu0 0.0
      %538 = vmatprep.subr.mxu0 0.0
      %539 = vmatpush2.msra.mxu0 0.0
      %540 = vmatprep.subr.mxu0 0.0
      %541 = vmatpush2.msra.mxu0 0.0
      %542 = vmatprep.subr.mxu0 0.0
      %543 = vmatpush2.msra.mxu0 0.0
      %544 = vmatprep.subr.mxu0 0.0
      %545 = vmatpush2.msra.mxu0 0.0
      %546 = vmatprep.subr.mxu0 0.0
      %547 = vmatpush2.msra.mxu0 0.0
      %548 = vmatprep.subr.mxu0 0.0
      %549 = vmatpush2.msra.mxu0 0.0
      %550 = vmatprep.subr.mxu0 0.0
      %551 = vmatpush2.msra.mxu0 0.0
      %552 = vmatprep.subr.mxu0 0.0
      %553 = vmatpush2.msra.mxu0 0.0
      %554 = vmatprep.subr.mxu0 0.0
      %555 = vmatpush2.msra.mxu0 0.0
      %556 = vmatprep.subr.mxu0 0.0
      %557 = vmatpush2.msra.mxu0 0.0
      %558 = vmatprep.subr.mxu0 0.0
      %559 = vmatpush2.msra.mxu0 0.0
      %560 = vmatprep.subr.mxu0 0.0
      %561 = vmatpush2.msra.mxu0 0.0
      %562 = vmatprep.subr.mxu0 0.0
      %563 = vmatpush2.msra.mxu0 0.0
      %564 = vmatprep.subr.mxu0 0.0
      %565 = vmatpush2.msra.mxu0 0.0
      %566 = vmatprep.mubr.f32.mxu0 0.0
      %567 = vmatmul.mubr.f32.gmra.mxu0 %v302
      %v568 = vpop.f32.mrf.mxu0
      %v569 = vadd.f32 0.0, %v568
      %v570 = vpop.f32.mrf.mxu0
      %571 = vmatprep.mubr.f32.mxu0 0.0
      %572 = vmatmul.mubr.f32.gmra.mxu0 %v305
      %v573 = vpop.f32.mrf.mxu0
      %v574 = vadd.f32 0.0, %v573
      %v575 = vpop.f32.mrf.mxu0
      %576 = vdwg.mxu0
      %s577 = scalar_lea.vmem %s177, 16
      %578 = vst.msk [vmem:[%s577] sm:$0xff] %vm385, %v569
      %579 = vst.msk [vmem:[%s577 + $0x8] sm:$0xff] %vm385, %v574
      %s580 = scalar_lea.vmem %s170, 80
      %v581 = vld [vmem:[%s580] sm:$0xff]
      %v582 = vld [vmem:[%s580 + $0x8] sm:$0xff]
      %v583 = vld [vmem:[%s580 + $0x10] sm:$0xff]
      %v584 = vld [vmem:[%s580 + $0x18] sm:$0xff]
      %v585 = vld [vmem:[%s580 + $0x20] sm:$0xf]
      %v587 = vsel %vm191, %v581, 0
      %v590 = vsel %vm191, %v582, 0
      %v593 = vsel %vm191, %v583, 0
      %v596 = vsel %vm191, %v584, 0
      %v599 = vsel %vm191, %v585, 0
      %601 = vmatprep.subr.mxu0 0.0
      %602 = vmatpush1.msra.mxu0 0.0
      %603 = vmatprep.subr.mxu0 0.0
      %604 = vmatpush1.msra.mxu0 0.0
      %605 = vmatprep.subr.mxu0 0.0
      %606 = vmatpush1.msra.mxu0 0.0
      %607 = vmatprep.subr.mxu0 0.0
      %608 = vmatpush1.msra.mxu0 0.0
      %609 = vmatprep.subr.mxu0 0.0
      %610 = vmatpush1.msra.mxu0 0.0
      %611 = vmatprep.subr.mxu0 0.0
      %612 = vmatpush1.msra.mxu0 0.0
      %613 = vmatprep.subr.mxu0 0.0
      %614 = vmatpush1.msra.mxu0 0.0
      %615 = vmatprep.subr.mxu0 0.0
      %616 = vmatpush1.msra.mxu0 0.0
      %617 = vmatprep.subr.mxu0 0.0
      %618 = vmatpush1.msra.mxu0 0.0
      %619 = vmatprep.subr.mxu0 0.0
      %620 = vmatpush1.msra.mxu0 0.0
      %621 = vmatprep.subr.mxu0 0.0
      %622 = vmatpush1.msra.mxu0 0.0
      %623 = vmatprep.subr.mxu0 0.0
      %624 = vmatpush1.msra.mxu0 %v209
      %625 = vmatprep.subr.mxu0 0.0
      %626 = vmatpush1.msra.mxu0 %v182
      %627 = vmatprep.subr.mxu0 0.0
      %628 = vmatpush1.msra.mxu0 %v181
      %629 = vmatprep.subr.mxu0 0.0
      %630 = vmatpush1.msra.mxu0 %v180
      %631 = vmatprep.subr.mxu0 0.0
      %632 = vmatpush1.msra.mxu0 %v179
      %633 = vmatprep.subr.mxu0 0.0
      %634 = vmatpush2.msra.mxu0 0.0
      %635 = vmatprep.subr.mxu0 0.0
      %636 = vmatpush2.msra.mxu0 0.0
      %637 = vmatprep.subr.mxu0 0.0
      %638 = vmatpush2.msra.mxu0 0.0
      %639 = vmatprep.subr.mxu0 0.0
      %640 = vmatpush2.msra.mxu0 0.0
      %641 = vmatprep.subr.mxu0 0.0
      %642 = vmatpush2.msra.mxu0 0.0
      %643 = vmatprep.subr.mxu0 0.0
      %644 = vmatpush2.msra.mxu0 0.0
      %645 = vmatprep.subr.mxu0 0.0
      %646 = vmatpush2.msra.mxu0 0.0
      %647 = vmatprep.subr.mxu0 0.0
      %648 = vmatpush2.msra.mxu0 0.0
      %649 = vmatprep.subr.mxu0 0.0
      %650 = vmatpush2.msra.mxu0 0.0
      %651 = vmatprep.subr.mxu0 0.0
      %652 = vmatpush2.msra.mxu0 0.0
      %653 = vmatprep.subr.mxu0 0.0
      %654 = vmatpush2.msra.mxu0 0.0
      %655 = vmatprep.subr.mxu0 0.0
      %656 = vmatpush2.msra.mxu0 0.0
      %657 = vmatprep.subr.mxu0 0.0
      %658 = vmatpush2.msra.mxu0 0.0
      %659 = vmatprep.subr.mxu0 0.0
      %660 = vmatpush2.msra.mxu0 0.0
      %661 = vmatprep.subr.mxu0 0.0
      %662 = vmatpush2.msra.mxu0 0.0
      %663 = vmatprep.subr.mxu0 0.0
      %664 = vmatpush2.msra.mxu0 0.0
      %665 = vmatprep.mubr.f32.mxu0 0.0
      %666 = vmatmul.mubr.f32.gmra.mxu0 %v587
      %v667 = vpop.f32.mrf.mxu0
      %v668 = vadd.f32 0.0, %v667
      %v669 = vpop.f32.mrf.mxu0
      %670 = vmatprep.mubr.f32.mxu0 0.0
      %671 = vmatmul.mubr.f32.gmra.mxu0 %v590
      %v672 = vpop.f32.mrf.mxu0
      %v673 = vadd.f32 0.0, %v672
      %v674 = vpop.f32.mrf.mxu0
      %675 = vmatprep.mubr.f32.mxu0 0.0
      %676 = vmatmul.mubr.f32.gmra.mxu0 %v593
      %v677 = vpop.f32.mrf.mxu0
      %v678 = vadd.f32 0.0, %v677
      %v679 = vpop.f32.mrf.mxu0
      %680 = vmatprep.mubr.f32.mxu0 0.0
      %681 = vmatmul.mubr.f32.gmra.mxu0 %v596
      %v682 = vpop.f32.mrf.mxu0
      %v683 = vadd.f32 0.0, %v682
      %v684 = vpop.f32.mrf.mxu0
      %685 = vmatprep.mubr.f32.mxu0 0.0
      %686 = vmatmul.mubr.f32.gmra.mxu0 %v599
      %v687 = vpop.f32.mrf.mxu0
      %v688 = vadd.f32 0.0, %v687
      %v689 = vpop.f32.mrf.mxu0
      %690 = vdwg.mxu0
      %v692 = vsel %vm207, %v688, 0
      %694 = vmatprep.subr.mxu0 0.0
      %695 = vmatpush1.msra.mxu0 0.0
      %696 = vmatprep.subr.mxu0 0.0
      %697 = vmatpush1.msra.mxu0 0.0
      %698 = vmatprep.subr.mxu0 0.0
      %699 = vmatpush1.msra.mxu0 0.0
      %700 = vmatprep.subr.mxu0 0.0
      %701 = vmatpush1.msra.mxu0 0.0
      %702 = vmatprep.subr.mxu0 0.0
      %703 = vmatpush1.msra.mxu0 0.0
      %704 = vmatprep.subr.mxu0 0.0
      %705 = vmatpush1.msra.mxu0 0.0
      %706 = vmatprep.subr.mxu0 0.0
      %707 = vmatpush1.msra.mxu0 0.0
      %708 = vmatprep.subr.mxu0 0.0
      %709 = vmatpush1.msra.mxu0 0.0
      %710 = vmatprep.subr.mxu0 0.0
      %711 = vmatpush1.msra.mxu0 0.0
      %712 = vmatprep.subr.mxu0 0.0
      %713 = vmatpush1.msra.mxu0 0.0
      %714 = vmatprep.subr.mxu0 0.0
      %715 = vmatpush1.msra.mxu0 0.0
      %716 = vmatprep.subr.mxu0 0.0
      %717 = vmatpush1.msra.mxu0 %v692
      %718 = vmatprep.subr.mxu0 0.0
      %719 = vmatpush1.msra.mxu0 %v683
      %720 = vmatprep.subr.mxu0 0.0
      %721 = vmatpush1.msra.mxu0 %v678
      %722 = vmatprep.subr.mxu0 0.0
      %723 = vmatpush1.msra.mxu0 %v673
      %724 = vmatprep.subr.mxu0 0.0
      %725 = vmatpush1.msra.mxu0 %v668
      %726 = vmatprep.subr.mxu0 0.0
      %727 = vmatpush2.msra.mxu0 0.0
      %728 = vmatprep.subr.mxu0 0.0
      %729 = vmatpush2.msra.mxu0 0.0
      %730 = vmatprep.subr.mxu0 0.0
      %731 = vmatpush2.msra.mxu0 0.0
      %732 = vmatprep.subr.mxu0 0.0
      %733 = vmatpush2.msra.mxu0 0.0
      %734 = vmatprep.subr.mxu0 0.0
      %735 = vmatpush2.msra.mxu0 0.0
      %736 = vmatprep.subr.mxu0 0.0
      %737 = vmatpush2.msra.mxu0 0.0
      %738 = vmatprep.subr.mxu0 0.0
      %739 = vmatpush2.msra.mxu0 0.0
      %740 = vmatprep.subr.mxu0 0.0
      %741 = vmatpush2.msra.mxu0 0.0
      %742 = vmatprep.subr.mxu0 0.0
      %743 = vmatpush2.msra.mxu0 0.0
      %744 = vmatprep.subr.mxu0 0.0
      %745 = vmatpush2.msra.mxu0 0.0
      %746 = vmatprep.subr.mxu0 0.0
      %747 = vmatpush2.msra.mxu0 0.0
      %748 = vmatprep.subr.mxu0 0.0
      %749 = vmatpush2.msra.mxu0 0.0
      %750 = vmatprep.subr.mxu0 0.0
      %751 = vmatpush2.msra.mxu0 0.0
      %752 = vmatprep.subr.mxu0 0.0
      %753 = vmatpush2.msra.mxu0 0.0
      %754 = vmatprep.subr.mxu0 0.0
      %755 = vmatpush2.msra.mxu0 0.0
      %756 = vmatprep.subr.mxu0 0.0
      %757 = vmatpush2.msra.mxu0 0.0
      %758 = vmatprep.mubr.f32.mxu0 0.0
      %759 = vmatmul.mubr.f32.gmra.mxu0 %v302
      %v760 = vpop.f32.mrf.mxu0
      %v761 = vadd.f32 0.0, %v760
      %v762 = vpop.f32.mrf.mxu0
      %763 = vmatprep.mubr.f32.mxu0 0.0
      %764 = vmatmul.mubr.f32.gmra.mxu0 %v305
      %v765 = vpop.f32.mrf.mxu0
      %v766 = vadd.f32 0.0, %v765
      %v767 = vpop.f32.mrf.mxu0
      %768 = vdwg.mxu0
      %s769 = scalar_lea.vmem %s177, 32
      %770 = vst.msk [vmem:[%s769] sm:$0xff] %vm385, %v761
      %771 = vst.msk [vmem:[%s769 + $0x8] sm:$0xff] %vm385, %v766
      %s772 = scalar_lea.vmem %s170, 120
      %v773 = vld [vmem:[%s772] sm:$0xff]
      %v774 = vld [vmem:[%s772 + $0x8] sm:$0xff]
      %v775 = vld [vmem:[%s772 + $0x10] sm:$0xff]
      %v776 = vld [vmem:[%s772 + $0x18] sm:$0xff]
      %v777 = vld [vmem:[%s772 + $0x20] sm:$0xf]
      %v779 = vsel %vm191, %v773, 0
      %v782 = vsel %vm191, %v774, 0
      %v785 = vsel %vm191, %v775, 0
      %v788 = vsel %vm191, %v776, 0
      %v791 = vsel %vm191, %v777, 0
      %793 = vmatprep.subr.mxu0 0.0
      %794 = vmatpush1.msra.mxu0 0.0
      %795 = vmatprep.subr.mxu0 0.0
      %796 = vmatpush1.msra.mxu0 0.0
      %797 = vmatprep.subr.mxu0 0.0
      %798 = vmatpush1.msra.mxu0 0.0
      %799 = vmatprep.subr.mxu0 0.0
      %800 = vmatpush1.msra.mxu0 0.0
      %801 = vmatprep.subr.mxu0 0.0
      %802 = vmatpush1.msra.mxu0 0.0
      %803 = vmatprep.subr.mxu0 0.0
      %804 = vmatpush1.msra.mxu0 0.0
      %805 = vmatprep.subr.mxu0 0.0
      %806 = vmatpush1.msra.mxu0 0.0
      %807 = vmatprep.subr.mxu0 0.0
      %808 = vmatpush1.msra.mxu0 0.0
      %809 = vmatprep.subr.mxu0 0.0
      %810 = vmatpush1.msra.mxu0 0.0
      %811 = vmatprep.subr.mxu0 0.0
      %812 = vmatpush1.msra.mxu0 0.0
      %813 = vmatprep.subr.mxu0 0.0
      %814 = vmatpush1.msra.mxu0 0.0
      %815 = vmatprep.subr.mxu0 0.0
      %816 = vmatpush1.msra.mxu0 %v209
      %817 = vmatprep.subr.mxu0 0.0
      %818 = vmatpush1.msra.mxu0 %v182
      %819 = vmatprep.subr.mxu0 0.0
      %820 = vmatpush1.msra.mxu0 %v181
      %821 = vmatprep.subr.mxu0 0.0
      %822 = vmatpush1.msra.mxu0 %v180
      %823 = vmatprep.subr.mxu0 0.0
      %824 = vmatpush1.msra.mxu0 %v179
      %825 = vmatprep.subr.mxu0 0.0
      %826 = vmatpush2.msra.mxu0 0.0
      %827 = vmatprep.subr.mxu0 0.0
      %828 = vmatpush2.msra.mxu0 0.0
      %829 = vmatprep.subr.mxu0 0.0
      %830 = vmatpush2.msra.mxu0 0.0
      %831 = vmatprep.subr.mxu0 0.0
      %832 = vmatpush2.msra.mxu0 0.0
      %833 = vmatprep.subr.mxu0 0.0
      %834 = vmatpush2.msra.mxu0 0.0
      %835 = vmatprep.subr.mxu0 0.0
      %836 = vmatpush2.msra.mxu0 0.0
      %837 = vmatprep.subr.mxu0 0.0
      %838 = vmatpush2.msra.mxu0 0.0
      %839 = vmatprep.subr.mxu0 0.0
      %840 = vmatpush2.msra.mxu0 0.0
      %841 = vmatprep.subr.mxu0 0.0
      %842 = vmatpush2.msra.mxu0 0.0
      %843 = vmatprep.subr.mxu0 0.0
      %844 = vmatpush2.msra.mxu0 0.0
      %845 = vmatprep.subr.mxu0 0.0
      %846 = vmatpush2.msra.mxu0 0.0
      %847 = vmatprep.subr.mxu0 0.0
      %848 = vmatpush2.msra.mxu0 0.0
      %849 = vmatprep.subr.mxu0 0.0
      %850 = vmatpush2.msra.mxu0 0.0
      %851 = vmatprep.subr.mxu0 0.0
      %852 = vmatpush2.msra.mxu0 0.0
      %853 = vmatprep.subr.mxu0 0.0
      %854 = vmatpush2.msra.mxu0 0.0
      %855 = vmatprep.subr.mxu0 0.0
      %856 = vmatpush2.msra.mxu0 0.0
      %857 = vmatprep.mubr.f32.mxu0 0.0
      %858 = vmatmul.mubr.f32.gmra.mxu0 %v779
      %v859 = vpop.f32.mrf.mxu0
      %v860 = vadd.f32 0.0, %v859
      %v861 = vpop.f32.mrf.mxu0
      %862 = vmatprep.mubr.f32.mxu0 0.0
      %863 = vmatmul.mubr.f32.gmra.mxu0 %v782
      %v864 = vpop.f32.mrf.mxu0
      %v865 = vadd.f32 0.0, %v864
      %v866 = vpop.f32.mrf.mxu0
      %867 = vmatprep.mubr.f32.mxu0 0.0
      %868 = vmatmul.mubr.f32.gmra.mxu0 %v785
      %v869 = vpop.f32.mrf.mxu0
      %v870 = vadd.f32 0.0, %v869
      %v871 = vpop.f32.mrf.mxu0
      %872 = vmatprep.mubr.f32.mxu0 0.0
      %873 = vmatmul.mubr.f32.gmra.mxu0 %v788
      %v874 = vpop.f32.mrf.mxu0
      %v875 = vadd.f32 0.0, %v874
      %v876 = vpop.f32.mrf.mxu0
      %877 = vmatprep.mubr.f32.mxu0 0.0
      %878 = vmatmul.mubr.f32.gmra.mxu0 %v791
      %v879 = vpop.f32.mrf.mxu0
      %v880 = vadd.f32 0.0, %v879
      %v881 = vpop.f32.mrf.mxu0
      %882 = vdwg.mxu0
      %v884 = vsel %vm207, %v880, 0
      %886 = vmatprep.subr.mxu0 0.0
      %887 = vmatpush1.msra.mxu0 0.0
      %888 = vmatprep.subr.mxu0 0.0
      %889 = vmatpush1.msra.mxu0 0.0
      %890 = vmatprep.subr.mxu0 0.0
      %891 = vmatpush1.msra.mxu0 0.0
      %892 = vmatprep.subr.mxu0 0.0
      %893 = vmatpush1.msra.mxu0 0.0
      %894 = vmatprep.subr.mxu0 0.0
      %895 = vmatpush1.msra.mxu0 0.0
      %896 = vmatprep.subr.mxu0 0.0
      %897 = vmatpush1.msra.mxu0 0.0
      %898 = vmatprep.subr.mxu0 0.0
      %899 = vmatpush1.msra.mxu0 0.0
      %900 = vmatprep.subr.mxu0 0.0
      %901 = vmatpush1.msra.mxu0 0.0
      %902 = vmatprep.subr.mxu0 0.0
      %903 = vmatpush1.msra.mxu0 0.0
      %904 = vmatprep.subr.mxu0 0.0
      %905 = vmatpush1.msra.mxu0 0.0
      %906 = vmatprep.subr.mxu0 0.0
      %907 = vmatpush1.msra.mxu0 0.0
      %908 = vmatprep.subr.mxu0 0.0
      %909 = vmatpush1.msra.mxu0 %v884
      %910 = vmatprep.subr.mxu0 0.0
      %911 = vmatpush1.msra.mxu0 %v875
      %912 = vmatprep.subr.mxu0 0.0
      %913 = vmatpush1.msra.mxu0 %v870
      %914 = vmatprep.subr.mxu0 0.0
      %915 = vmatpush1.msra.mxu0 %v865
      %916 = vmatprep.subr.mxu0 0.0
      %917 = vmatpush1.msra.mxu0 %v860
      %918 = vmatprep.subr.mxu0 0.0
      %919 = vmatpush2.msra.mxu0 0.0
      %920 = vmatprep.subr.mxu0 0.0
      %921 = vmatpush2.msra.mxu0 0.0
      %922 = vmatprep.subr.mxu0 0.0
      %923 = vmatpush2.msra.mxu0 0.0
      %924 = vmatprep.subr.mxu0 0.0
      %925 = vmatpush2.msra.mxu0 0.0
      %926 = vmatprep.subr.mxu0 0.0
      %927 = vmatpush2.msra.mxu0 0.0
      %928 = vmatprep.subr.mxu0 0.0
      %929 = vmatpush2.msra.mxu0 0.0
      %930 = vmatprep.subr.mxu0 0.0
      %931 = vmatpush2.msra.mxu0 0.0
      %932 = vmatprep.subr.mxu0 0.0
      %933 = vmatpush2.msra.mxu0 0.0
      %934 = vmatprep.subr.mxu0 0.0
      %935 = vmatpush2.msra.mxu0 0.0
      %936 = vmatprep.subr.mxu0 0.0
      %937 = vmatpush2.msra.mxu0 0.0
      %938 = vmatprep.subr.mxu0 0.0
      %939 = vmatpush2.msra.mxu0 0.0
      %940 = vmatprep.subr.mxu0 0.0
      %941 = vmatpush2.msra.mxu0 0.0
      %942 = vmatprep.subr.mxu0 0.0
      %943 = vmatpush2.msra.mxu0 0.0
      %944 = vmatprep.subr.mxu0 0.0
      %945 = vmatpush2.msra.mxu0 0.0
      %946 = vmatprep.subr.mxu0 0.0
      %947 = vmatpush2.msra.mxu0 0.0
      %948 = vmatprep.subr.mxu0 0.0
      %949 = vmatpush2.msra.mxu0 0.0
      %950 = vmatprep.mubr.f32.mxu0 0.0
      %951 = vmatmul.mubr.f32.gmra.mxu0 %v302
      %v952 = vpop.f32.mrf.mxu0
      %v953 = vadd.f32 0.0, %v952
      %v954 = vpop.f32.mrf.mxu0
      %955 = vmatprep.mubr.f32.mxu0 0.0
      %956 = vmatmul.mubr.f32.gmra.mxu0 %v305
      %v957 = vpop.f32.mrf.mxu0
      %v958 = vadd.f32 0.0, %v957
      %v959 = vpop.f32.mrf.mxu0
      %960 = vdwg.mxu0
      %s961 = scalar_lea.vmem %s177, 48
      %962 = vst.msk [vmem:[%s961] sm:$0xff] %vm385, %v953
      %963 = vst.msk [vmem:[%s961 + $0x8] sm:$0xff] %vm385, %v958
      %s964 = scalar_lea.vmem %s170, 160
      %v965 = vld [vmem:[%s964] sm:$0xff]
      %v966 = vld [vmem:[%s964 + $0x8] sm:$0xff]
      %v967 = vld [vmem:[%s964 + $0x10] sm:$0xff]
      %v968 = vld [vmem:[%s964 + $0x18] sm:$0xff]
      %v969 = vld [vmem:[%s964 + $0x20] sm:$0xf]
      %v971 = vsel %vm191, %v965, 0
      %v974 = vsel %vm191, %v966, 0
      %v977 = vsel %vm191, %v967, 0
      %v980 = vsel %vm191, %v968, 0
      %v983 = vsel %vm191, %v969, 0
      %985 = vmatprep.subr.mxu0 0.0
      %986 = vmatpush1.msra.mxu0 0.0
      %987 = vmatprep.subr.mxu0 0.0
      %988 = vmatpush1.msra.mxu0 0.0
      %989 = vmatprep.subr.mxu0 0.0
      %990 = vmatpush1.msra.mxu0 0.0
      %991 = vmatprep.subr.mxu0 0.0
      %992 = vmatpush1.msra.mxu0 0.0
      %993 = vmatprep.subr.mxu0 0.0
      %994 = vmatpush1.msra.mxu0 0.0
      %995 = vmatprep.subr.mxu0 0.0
      %996 = vmatpush1.msra.mxu0 0.0
      %997 = vmatprep.subr.mxu0 0.0
      %998 = vmatpush1.msra.mxu0 0.0
      %999 = vmatprep.subr.mxu0 0.0
      %1000 = vmatpush1.msra.mxu0 0.0
      %1001 = vmatprep.subr.mxu0 0.0
      %1002 = vmatpush1.msra.mxu0 0.0
      %1003 = vmatprep.subr.mxu0 0.0
      %1004 = vmatpush1.msra.mxu0 0.0
      %1005 = vmatprep.subr.mxu0 0.0
      %1006 = vmatpush1.msra.mxu0 0.0
      %1007 = vmatprep.subr.mxu0 0.0
      %1008 = vmatpush1.msra.mxu0 %v209
      %1009 = vmatprep.subr.mxu0 0.0
      %1010 = vmatpush1.msra.mxu0 %v182
      %1011 = vmatprep.subr.mxu0 0.0
      %1012 = vmatpush1.msra.mxu0 %v181
      %1013 = vmatprep.subr.mxu0 0.0
      %1014 = vmatpush1.msra.mxu0 %v180
      %1015 = vmatprep.subr.mxu0 0.0
      %1016 = vmatpush1.msra.mxu0 %v179
      %1017 = vmatprep.subr.mxu0 0.0
      %1018 = vmatpush2.msra.mxu0 0.0
      %1019 = vmatprep.subr.mxu0 0.0
      %1020 = vmatpush2.msra.mxu0 0.0
      %1021 = vmatprep.subr.mxu0 0.0
      %1022 = vmatpush2.msra.mxu0 0.0
      %1023 = vmatprep.subr.mxu0 0.0
      %1024 = vmatpush2.msra.mxu0 0.0
      %1025 = vmatprep.subr.mxu0 0.0
      %1026 = vmatpush2.msra.mxu0 0.0
      %1027 = vmatprep.subr.mxu0 0.0
      %1028 = vmatpush2.msra.mxu0 0.0
      %1029 = vmatprep.subr.mxu0 0.0
      %1030 = vmatpush2.msra.mxu0 0.0
      %1031 = vmatprep.subr.mxu0 0.0
      %1032 = vmatpush2.msra.mxu0 0.0
      %1033 = vmatprep.subr.mxu0 0.0
      %1034 = vmatpush2.msra.mxu0 0.0
      %1035 = vmatprep.subr.mxu0 0.0
      %1036 = vmatpush2.msra.mxu0 0.0
      %1037 = vmatprep.subr.mxu0 0.0
      %1038 = vmatpush2.msra.mxu0 0.0
      %1039 = vmatprep.subr.mxu0 0.0
      %1040 = vmatpush2.msra.mxu0 0.0
      %1041 = vmatprep.subr.mxu0 0.0
      %1042 = vmatpush2.msra.mxu0 0.0
      %1043 = vmatprep.subr.mxu0 0.0
      %1044 = vmatpush2.msra.mxu0 0.0
      %1045 = vmatprep.subr.mxu0 0.0
      %1046 = vmatpush2.msra.mxu0 0.0
      %1047 = vmatprep.subr.mxu0 0.0
      %1048 = vmatpush2.msra.mxu0 0.0
      %1049 = vmatprep.mubr.f32.mxu0 0.0
      %1050 = vmatmul.mubr.f32.gmra.mxu0 %v971
      %v1051 = vpop.f32.mrf.mxu0
      %v1052 = vadd.f32 0.0, %v1051
      %v1053 = vpop.f32.mrf.mxu0
      %1054 = vmatprep.mubr.f32.mxu0 0.0
      %1055 = vmatmul.mubr.f32.gmra.mxu0 %v974
      %v1056 = vpop.f32.mrf.mxu0
      %v1057 = vadd.f32 0.0, %v1056
      %v1058 = vpop.f32.mrf.mxu0
      %1059 = vmatprep.mubr.f32.mxu0 0.0
      %1060 = vmatmul.mubr.f32.gmra.mxu0 %v977
      %v1061 = vpop.f32.mrf.mxu0
      %v1062 = vadd.f32 0.0, %v1061
      %v1063 = vpop.f32.mrf.mxu0
      %1064 = vmatprep.mubr.f32.mxu0 0.0
      %1065 = vmatmul.mubr.f32.gmra.mxu0 %v980
      %v1066 = vpop.f32.mrf.mxu0
      %v1067 = vadd.f32 0.0, %v1066
      %v1068 = vpop.f32.mrf.mxu0
      %1069 = vmatprep.mubr.f32.mxu0 0.0
      %1070 = vmatmul.mubr.f32.gmra.mxu0 %v983
      %v1071 = vpop.f32.mrf.mxu0
      %v1072 = vadd.f32 0.0, %v1071
      %v1073 = vpop.f32.mrf.mxu0
      %1074 = vdwg.mxu0
      %v1076 = vsel %vm207, %v1072, 0
      %1078 = vmatprep.subr.mxu0 0.0
      %1079 = vmatpush1.msra.mxu0 0.0
      %1080 = vmatprep.subr.mxu0 0.0
      %1081 = vmatpush1.msra.mxu0 0.0
      %1082 = vmatprep.subr.mxu0 0.0
      %1083 = vmatpush1.msra.mxu0 0.0
      %1084 = vmatprep.subr.mxu0 0.0
      %1085 = vmatpush1.msra.mxu0 0.0
      %1086 = vmatprep.subr.mxu0 0.0
      %1087 = vmatpush1.msra.mxu0 0.0
      %1088 = vmatprep.subr.mxu0 0.0
      %1089 = vmatpush1.msra.mxu0 0.0
      %1090 = vmatprep.subr.mxu0 0.0
      %1091 = vmatpush1.msra.mxu0 0.0
      %1092 = vmatprep.subr.mxu0 0.0
      %1093 = vmatpush1.msra.mxu0 0.0
      %1094 = vmatprep.subr.mxu0 0.0
      %1095 = vmatpush1.msra.mxu0 0.0
      %1096 = vmatprep.subr.mxu0 0.0
      %1097 = vmatpush1.msra.mxu0 0.0
      %1098 = vmatprep.subr.mxu0 0.0
      %1099 = vmatpush1.msra.mxu0 0.0
      %1100 = vmatprep.subr.mxu0 0.0
      %1101 = vmatpush1.msra.mxu0 %v1076
      %1102 = vmatprep.subr.mxu0 0.0
      %1103 = vmatpush1.msra.mxu0 %v1067
      %1104 = vmatprep.subr.mxu0 0.0
      %1105 = vmatpush1.msra.mxu0 %v1062
      %1106 = vmatprep.subr.mxu0 0.0
      %1107 = vmatpush1.msra.mxu0 %v1057
      %1108 = vmatprep.subr.mxu0 0.0
      %1109 = vmatpush1.msra.mxu0 %v1052
      %1110 = vmatprep.subr.mxu0 0.0
      %1111 = vmatpush2.msra.mxu0 0.0
      %1112 = vmatprep.subr.mxu0 0.0
      %1113 = vmatpush2.msra.mxu0 0.0
      %1114 = vmatprep.subr.mxu0 0.0
      %1115 = vmatpush2.msra.mxu0 0.0
      %1116 = vmatprep.subr.mxu0 0.0
      %1117 = vmatpush2.msra.mxu0 0.0
      %1118 = vmatprep.subr.mxu0 0.0
      %1119 = vmatpush2.msra.mxu0 0.0
      %1120 = vmatprep.subr.mxu0 0.0
      %1121 = vmatpush2.msra.mxu0 0.0
      %1122 = vmatprep.subr.mxu0 0.0
      %1123 = vmatpush2.msra.mxu0 0.0
      %1124 = vmatprep.subr.mxu0 0.0
      %1125 = vmatpush2.msra.mxu0 0.0
      %1126 = vmatprep.subr.mxu0 0.0
      %1127 = vmatpush2.msra.mxu0 0.0
      %1128 = vmatprep.subr.mxu0 0.0
      %1129 = vmatpush2.msra.mxu0 0.0
      %1130 = vmatprep.subr.mxu0 0.0
      %1131 = vmatpush2.msra.mxu0 0.0
      %1132 = vmatprep.subr.mxu0 0.0
      %1133 = vmatpush2.msra.mxu0 0.0
      %1134 = vmatprep.subr.mxu0 0.0
      %1135 = vmatpush2.msra.mxu0 0.0
      %1136 = vmatprep.subr.mxu0 0.0
      %1137 = vmatpush2.msra.mxu0 0.0
      %1138 = vmatprep.subr.mxu0 0.0
      %1139 = vmatpush2.msra.mxu0 0.0
      %1140 = vmatprep.subr.mxu0 0.0
      %1141 = vmatpush2.msra.mxu0 0.0
      %1142 = vmatprep.mubr.f32.mxu0 0.0
      %1143 = vmatmul.mubr.f32.gmra.mxu0 %v302
      %v1144 = vpop.f32.mrf.mxu0
      %v1145 = vadd.f32 0.0, %v1144
      %v1146 = vpop.f32.mrf.mxu0
      %1147 = vmatprep.mubr.f32.mxu0 0.0
      %1148 = vmatmul.mubr.f32.gmra.mxu0 %v305
      %v1149 = vpop.f32.mrf.mxu0
      %v1150 = vadd.f32 0.0, %v1149
      %v1151 = vpop.f32.mrf.mxu0
      %1152 = vdwg.mxu0
      %s1153 = scalar_lea.vmem %s177, 64
      %1154 = vst.msk [vmem:[%s1153] sm:$0xff] %vm385, %v1145
      %1155 = vst.msk [vmem:[%s1153 + $0x8] sm:$0xff] %vm385, %v1150
      %s1156 = scalar_lea.vmem %s170, 200
      %v1157 = vld [vmem:[%s1156] sm:$0xff]
      %v1158 = vld [vmem:[%s1156 + $0x8] sm:$0xff]
      %v1159 = vld [vmem:[%s1156 + $0x10] sm:$0xff]
      %v1160 = vld [vmem:[%s1156 + $0x18] sm:$0xff]
      %v1161 = vld [vmem:[%s1156 + $0x20] sm:$0xf]
      %v1163 = vsel %vm191, %v1157, 0
      %v1166 = vsel %vm191, %v1158, 0
      %v1169 = vsel %vm191, %v1159, 0
      %v1172 = vsel %vm191, %v1160, 0
      %v1175 = vsel %vm191, %v1161, 0
      %1177 = vmatprep.subr.mxu0 0.0
      %1178 = vmatpush1.msra.mxu0 0.0
      %1179 = vmatprep.subr.mxu0 0.0
      %1180 = vmatpush1.msra.mxu0 0.0
      %1181 = vmatprep.subr.mxu0 0.0
      %1182 = vmatpush1.msra.mxu0 0.0
      %1183 = vmatprep.subr.mxu0 0.0
      %1184 = vmatpush1.msra.mxu0 0.0
      %1185 = vmatprep.subr.mxu0 0.0
      %1186 = vmatpush1.msra.mxu0 0.0
      %1187 = vmatprep.subr.mxu0 0.0
      %1188 = vmatpush1.msra.mxu0 0.0
      %1189 = vmatprep.subr.mxu0 0.0
      %1190 = vmatpush1.msra.mxu0 0.0
      %1191 = vmatprep.subr.mxu0 0.0
      %1192 = vmatpush1.msra.mxu0 0.0
      %1193 = vmatprep.subr.mxu0 0.0
      %1194 = vmatpush1.msra.mxu0 0.0
      %1195 = vmatprep.subr.mxu0 0.0
      %1196 = vmatpush1.msra.mxu0 0.0
      %1197 = vmatprep.subr.mxu0 0.0
      %1198 = vmatpush1.msra.mxu0 0.0
      %1199 = vmatprep.subr.mxu0 0.0
      %1200 = vmatpush1.msra.mxu0 %v209
      %1201 = vmatprep.subr.mxu0 0.0
      %1202 = vmatpush1.msra.mxu0 %v182
      %1203 = vmatprep.subr.mxu0 0.0
      %1204 = vmatpush1.msra.mxu0 %v181
      %1205 = vmatprep.subr.mxu0 0.0
      %1206 = vmatpush1.msra.mxu0 %v180
      %1207 = vmatprep.subr.mxu0 0.0
      %1208 = vmatpush1.msra.mxu0 %v179
      %1209 = vmatprep.subr.mxu0 0.0
      %1210 = vmatpush2.msra.mxu0 0.0
      %1211 = vmatprep.subr.mxu0 0.0
      %1212 = vmatpush2.msra.mxu0 0.0
      %1213 = vmatprep.subr.mxu0 0.0
      %1214 = vmatpush2.msra.mxu0 0.0
      %1215 = vmatprep.subr.mxu0 0.0
      %1216 = vmatpush2.msra.mxu0 0.0
      %1217 = vmatprep.subr.mxu0 0.0
      %1218 = vmatpush2.msra.mxu0 0.0
      %1219 = vmatprep.subr.mxu0 0.0
      %1220 = vmatpush2.msra.mxu0 0.0
      %1221 = vmatprep.subr.mxu0 0.0
      %1222 = vmatpush2.msra.mxu0 0.0
      %1223 = vmatprep.subr.mxu0 0.0
      %1224 = vmatpush2.msra.mxu0 0.0
      %1225 = vmatprep.subr.mxu0 0.0
      %1226 = vmatpush2.msra.mxu0 0.0
      %1227 = vmatprep.subr.mxu0 0.0
      %1228 = vmatpush2.msra.mxu0 0.0
      %1229 = vmatprep.subr.mxu0 0.0
      %1230 = vmatpush2.msra.mxu0 0.0
      %1231 = vmatprep.subr.mxu0 0.0
      %1232 = vmatpush2.msra.mxu0 0.0
      %1233 = vmatprep.subr.mxu0 0.0
      %1234 = vmatpush2.msra.mxu0 0.0
      %1235 = vmatprep.subr.mxu0 0.0
      %1236 = vmatpush2.msra.mxu0 0.0
      %1237 = vmatprep.subr.mxu0 0.0
      %1238 = vmatpush2.msra.mxu0 0.0
      %1239 = vmatprep.subr.mxu0 0.0
      %1240 = vmatpush2.msra.mxu0 0.0
      %1241 = vmatprep.mubr.f32.mxu0 0.0
      %1242 = vmatmul.mubr.f32.gmra.mxu0 %v1163
      %v1243 = vpop.f32.mrf.mxu0
      %v1244 = vadd.f32 0.0, %v1243
      %v1245 = vpop.f32.mrf.mxu0
      %1246 = vmatprep.mubr.f32.mxu0 0.0
      %1247 = vmatmul.mubr.f32.gmra.mxu0 %v1166
      %v1248 = vpop.f32.mrf.mxu0
      %v1249 = vadd.f32 0.0, %v1248
      %v1250 = vpop.f32.mrf.mxu0
      %1251 = vmatprep.mubr.f32.mxu0 0.0
      %1252 = vmatmul.mubr.f32.gmra.mxu0 %v1169
      %v1253 = vpop.f32.mrf.mxu0
      %v1254 = vadd.f32 0.0, %v1253
      %v1255 = vpop.f32.mrf.mxu0
      %1256 = vmatprep.mubr.f32.mxu0 0.0
      %1257 = vmatmul.mubr.f32.gmra.mxu0 %v1172
      %v1258 = vpop.f32.mrf.mxu0
      %v1259 = vadd.f32 0.0, %v1258
      %v1260 = vpop.f32.mrf.mxu0
      %1261 = vmatprep.mubr.f32.mxu0 0.0
      %1262 = vmatmul.mubr.f32.gmra.mxu0 %v1175
      %v1263 = vpop.f32.mrf.mxu0
      %v1264 = vadd.f32 0.0, %v1263
      %v1265 = vpop.f32.mrf.mxu0
      %1266 = vdwg.mxu0
      %v1268 = vsel %vm207, %v1264, 0
      %1270 = vmatprep.subr.mxu0 0.0
      %1271 = vmatpush1.msra.mxu0 0.0
      %1272 = vmatprep.subr.mxu0 0.0
      %1273 = vmatpush1.msra.mxu0 0.0
      %1274 = vmatprep.subr.mxu0 0.0
      %1275 = vmatpush1.msra.mxu0 0.0
      %1276 = vmatprep.subr.mxu0 0.0
      %1277 = vmatpush1.msra.mxu0 0.0
      %1278 = vmatprep.subr.mxu0 0.0
      %1279 = vmatpush1.msra.mxu0 0.0
      %1280 = vmatprep.subr.mxu0 0.0
      %1281 = vmatpush1.msra.mxu0 0.0
      %1282 = vmatprep.subr.mxu0 0.0
      %1283 = vmatpush1.msra.mxu0 0.0
      %1284 = vmatprep.subr.mxu0 0.0
      %1285 = vmatpush1.msra.mxu0 0.0
      %1286 = vmatprep.subr.mxu0 0.0
      %1287 = vmatpush1.msra.mxu0 0.0
      %1288 = vmatprep.subr.mxu0 0.0
      %1289 = vmatpush1.msra.mxu0 0.0
      %1290 = vmatprep.subr.mxu0 0.0
      %1291 = vmatpush1.msra.mxu0 0.0
      %1292 = vmatprep.subr.mxu0 0.0
      %1293 = vmatpush1.msra.mxu0 %v1268
      %1294 = vmatprep.subr.mxu0 0.0
      %1295 = vmatpush1.msra.mxu0 %v1259
      %1296 = vmatprep.subr.mxu0 0.0
      %1297 = vmatpush1.msra.mxu0 %v1254
      %1298 = vmatprep.subr.mxu0 0.0
      %1299 = vmatpush1.msra.mxu0 %v1249
      %1300 = vmatprep.subr.mxu0 0.0
      %1301 = vmatpush1.msra.mxu0 %v1244
      %1302 = vmatprep.subr.mxu0 0.0
      %1303 = vmatpush2.msra.mxu0 0.0
      %1304 = vmatprep.subr.mxu0 0.0
      %1305 = vmatpush2.msra.mxu0 0.0
      %1306 = vmatprep.subr.mxu0 0.0
      %1307 = vmatpush2.msra.mxu0 0.0
      %1308 = vmatprep.subr.mxu0 0.0
      %1309 = vmatpush2.msra.mxu0 0.0
      %1310 = vmatprep.subr.mxu0 0.0
      %1311 = vmatpush2.msra.mxu0 0.0
      %1312 = vmatprep.subr.mxu0 0.0
      %1313 = vmatpush2.msra.mxu0 0.0
      %1314 = vmatprep.subr.mxu0 0.0
      %1315 = vmatpush2.msra.mxu0 0.0
      %1316 = vmatprep.subr.mxu0 0.0
      %1317 = vmatpush2.msra.mxu0 0.0
      %1318 = vmatprep.subr.mxu0 0.0
      %1319 = vmatpush2.msra.mxu0 0.0
      %1320 = vmatprep.subr.mxu0 0.0
      %1321 = vmatpush2.msra.mxu0 0.0
      %1322 = vmatprep.subr.mxu0 0.0
      %1323 = vmatpush2.msra.mxu0 0.0
      %1324 = vmatprep.subr.mxu0 0.0
      %1325 = vmatpush2.msra.mxu0 0.0
      %1326 = vmatprep.subr.mxu0 0.0
      %1327 = vmatpush2.msra.mxu0 0.0
      %1328 = vmatprep.subr.mxu0 0.0
      %1329 = vmatpush2.msra.mxu0 0.0
      %1330 = vmatprep.subr.mxu0 0.0
      %1331 = vmatpush2.msra.mxu0 0.0
      %1332 = vmatprep.subr.mxu0 0.0
      %1333 = vmatpush2.msra.mxu0 0.0
      %1334 = vmatprep.mubr.f32.mxu0 0.0
      %1335 = vmatmul.mubr.f32.gmra.mxu0 %v302
      %v1336 = vpop.f32.mrf.mxu0
      %v1337 = vadd.f32 0.0, %v1336
      %v1338 = vpop.f32.mrf.mxu0
      %1339 = vmatprep.mubr.f32.mxu0 0.0
      %1340 = vmatmul.mubr.f32.gmra.mxu0 %v305
      %v1341 = vpop.f32.mrf.mxu0
      %v1342 = vadd.f32 0.0, %v1341
      %v1343 = vpop.f32.mrf.mxu0
      %1344 = vdwg.mxu0
      %s1345 = scalar_lea.vmem %s177, 80
      %1346 = vst.msk [vmem:[%s1345] sm:$0xff] %vm385, %v1337
      %1347 = vst.msk [vmem:[%s1345 + $0x8] sm:$0xff] %vm385, %v1342
      %s1348 = smul.u32 6, %s14
      %p1349 = scmp.lt.s32.totalorder %s1348, 11
      %s1350 = scalar_select %p1349, %s1348, 11
      %s1351 = smul.addr %s1350, 2
      %s1352 = smul.addr %s1351, 8
      %s1353 = scalar_lea.vmem %s3, %s1352
      // Predicated region
      $region33: #{network_forward.17} parent=31 // pred_check
        %p1354 = pneg %p100
      $region34: #{network_forward.17} parent=31 // pred_check_branch
        %1356 = sbr.rel (%p1354) target = $region36
      $region35: #{network_forward.17} parent=31 // pred_region
        %s1357 = smul.u32 6, %s14
      $region36: #{network_forward.17} parent=31 // pred_fallthru
        _
    $region32: #{network_forward.17} parent=5 // pred_fallthru
      _
    %p1358 = scmp.le.s32.totalorder 2, %s9
    // Predicated region
    $region37: #{network_forward.17} parent=5 // pred_check
      %p1359 = pneg %p1358
    $region38: #{network_forward.17} parent=5 // pred_check_branch
      %1361 = sbr.rel (%p1359) target = $region40
    $region39: #{network_forward.17} parent=5 // pred_region
      %s1362 = ssub.s32 %s9, 2
      // Predicated region
      $region41: #{network_forward.17} parent=39 // pred_check
        %p1363 = pneg %p106
      $region42: #{network_forward.17} parent=39 // pred_check_branch
        %1365 = sbr.rel (%p1363) target = $region44
      $region43: #{network_forward.17} parent=39 // pred_region
        %s1366 = smul.u32 6, %s15
        %p1367 = scmp.lt.s32.totalorder %s1366, 11
        %s1368 = scalar_select %p1367, %s1366, 11
        %s1369 = smul.addr %s1368, 2
        %s1370 = smul.addr %s1369, 8
        %s1371 = scalar_lea.vmem %s3, %s1370
      $region44: #{network_forward.17} parent=39 // pred_fallthru
        _
    $region40: #{network_forward.17} parent=5 // pred_fallthru
      _
  $region6: #{network_forward.17} parent=0 // loop_footer
    %s13 = sadd.s32 1, %s9
  $region7: #{network_forward.17} parent=0 // loop_footer_branch
    %8 = sbr.rel target = $region3
  $region8: #{network_forward.17} parent=0 // loop_exit
    _

// kernel: network_forward.16
$region0: #{network_forward.16}
  #allocation0 [shape = 'u32[]', space=smem, size = 0x4, offset = 0x4, fixed_abs, tag = 'smem constant byte address 0x4 - core index']
  #allocation1 [shape = 'u32[144,128]{1,0:T(1,128)}', space=vmem, size = 0x12000, scoped, tag = 'internal scratch']
  %s0 = inlined_call_operand.vmem [shape: f32[25,32,8], index: 0, kind: input, shape index: {}]
  %s1 = inlined_call_operand.vmem [shape: f32[25,32,8], index: 1, kind: input, shape index: {}]
  %s2 = inlined_call_operand.vmem [shape: f32[32,8], index: 2, kind: output, shape index: {}]
  %s3 = sld [smem:[#allocation0]]
  $region18: #{network_forward.16} parent=0
    _
  %s5 = ssub.s32 1, %s3
  %s6 = scalar_select 0, %s5, %s3
  // Predicated region
  $region2: #{network_forward.16} parent=0 // pred_check
    _
  $region3: #{network_forward.16} parent=0 // pred_check_branch
    %8 = sbr.rel (0) target = $region5
  $region4: #{network_forward.16} parent=0 // pred_region
    _
  $region5: #{network_forward.16} parent=0 // pred_fallthru
    _
  // Predicated region
  $region6: #{network_forward.16} parent=0 // pred_check
    _
  $region7: #{network_forward.16} parent=0 // pred_check_branch
    %10 = sbr.rel (0) target = $region9
  $region8: #{network_forward.16} parent=0 // pred_region
    _
  $region9: #{network_forward.16} parent=0 // pred_fallthru
    _
  %v11 = vld [vmem:[%s0] sm:$0xff]
  %v12 = vld [vmem:[%s0 + $0x8] sm:$0xff]
  %v13 = vld [vmem:[%s0 + $0x10] sm:$0xff]
  %v14 = vld [vmem:[%s0 + $0x18] sm:$0xff]
  %v15 = vld [vmem:[%s0 + $0x20] sm:$0xff]
  %v16 = vld [vmem:[%s0 + $0x28] sm:$0xff]
  %v17 = vld [vmem:[%s0 + $0x30] sm:$0xff]
  %v18 = vld [vmem:[%s0 + $0x38] sm:$0xff]
  %v19 = vld [vmem:[%s0 + $0x40] sm:$0xff]
  %v20 = vld [vmem:[%s0 + $0x48] sm:$0xff]
  %v21 = vld [vmem:[%s0 + $0x50] sm:$0xff]
  %v22 = vld [vmem:[%s0 + $0x58] sm:$0xff]
  %v23 = vld [vmem:[%s0 + $0x60] sm:$0xff]
  %v24 = vld [vmem:[%s0 + $0x68] sm:$0xff]
  %v25 = vld [vmem:[%s0 + $0x70] sm:$0xff]
  %v26 = vld [vmem:[%s0 + $0x78] sm:$0xff]
  %v27 = vld [vmem:[%s0 + $0x80] sm:$0xff]
  %v28 = vld [vmem:[%s0 + $0x88] sm:$0xff]
  %v29 = vld [vmem:[%s0 + $0x90] sm:$0xff]
  %v30 = vld [vmem:[%s0 + $0x98] sm:$0xff]
  %v31 = vld [vmem:[%s0 + $0xa0] sm:$0xff]
  %v32 = vld [vmem:[%s0 + $0xa8] sm:$0xff]
  %v33 = vld [vmem:[%s0 + $0xb0] sm:$0xff]
  %v34 = vld [vmem:[%s0 + $0xb8] sm:$0xff]
  %v35 = vld [vmem:[%s0 + $0xc0] sm:$0xff]
  %v36 = vld [vmem:[%s0 + $0xc8] sm:$0xff]
  %v37 = vld [vmem:[%s0 + $0xd0] sm:$0xff]
  %v38 = vld [vmem:[%s0 + $0xd8] sm:$0xff]
  %v39 = vld [vmem:[%s0 + $0xe0] sm:$0xff]
  %v40 = vld [vmem:[%s0 + $0xe8] sm:$0xff]
  %v41 = vld [vmem:[%s0 + $0xf0] sm:$0xff]
  %v42 = vld [vmem:[%s0 + $0xf8] sm:$0xff]
  %v43 = vld [vmem:[%s0 + $0x100] sm:$0xff]
  %v44 = vld [vmem:[%s0 + $0x108] sm:$0xff]
  %v45 = vld [vmem:[%s0 + $0x110] sm:$0xff]
  %v46 = vld [vmem:[%s0 + $0x118] sm:$0xff]
  %v47 = vld [vmem:[%s0 + $0x120] sm:$0xff]
  %v48 = vld [vmem:[%s0 + $0x128] sm:$0xff]
  %v49 = vld [vmem:[%s0 + $0x130] sm:$0xff]
  %v50 = vld [vmem:[%s0 + $0x138] sm:$0xff]
  %v51 = vld [vmem:[%s0 + $0x140] sm:$0xff]
  %v52 = vld [vmem:[%s0 + $0x148] sm:$0xff]
  %v53 = vld [vmem:[%s0 + $0x150] sm:$0xff]
  %v54 = vld [vmem:[%s0 + $0x158] sm:$0xff]
  %v55 = vld [vmem:[%s0 + $0x160] sm:$0xff]
  %v56 = vld [vmem:[%s0 + $0x168] sm:$0xff]
  %v57 = vld [vmem:[%s0 + $0x170] sm:$0xff]
  %v58 = vld [vmem:[%s0 + $0x178] sm:$0xff]
  %v59 = vld [vmem:[%s0 + $0x180] sm:$0xff]
  %v60 = vld [vmem:[%s0 + $0x188] sm:$0xff]
  %v61 = vld [vmem:[%s0 + $0x190] sm:$0xff]
  %v62 = vld [vmem:[%s0 + $0x198] sm:$0xff]
  %v63 = vld [vmem:[%s0 + $0x1a0] sm:$0xff]
  %v64 = vld [vmem:[%s0 + $0x1a8] sm:$0xff]
  %v65 = vld [vmem:[%s0 + $0x1b0] sm:$0xff]
  %v66 = vld [vmem:[%s0 + $0x1b8] sm:$0xff]
  %v67 = vld [vmem:[%s0 + $0x1c0] sm:$0xff]
  %v68 = vld [vmem:[%s0 + $0x1c8] sm:$0xff]
  %v69 = vld [vmem:[%s0 + $0x1d0] sm:$0xff]
  %v70 = vld [vmem:[%s0 + $0x1d8] sm:$0xff]
  %v71 = vld [vmem:[%s0 + $0x1e0] sm:$0xff]
  %v72 = vld [vmem:[%s0 + $0x1e8] sm:$0xff]
  %v73 = vld [vmem:[%s0 + $0x1f0] sm:$0xff]
  %v74 = vld [vmem:[%s0 + $0x1f8] sm:$0xff]
  %v75 = vld [vmem:[%s0 + $0x200] sm:$0xff]
  %v76 = vld [vmem:[%s0 + $0x208] sm:$0xff]
  %v77 = vld [vmem:[%s0 + $0x210] sm:$0xff]
  %v78 = vld [vmem:[%s0 + $0x218] sm:$0xff]
  %v79 = vld [vmem:[%s0 + $0x220] sm:$0xff]
  %v80 = vld [vmem:[%s0 + $0x228] sm:$0xff]
  %v81 = vld [vmem:[%s0 + $0x230] sm:$0xff]
  %v82 = vld [vmem:[%s0 + $0x238] sm:$0xff]
  %v83 = vld [vmem:[%s0 + $0x240] sm:$0xff]
  %v84 = vld [vmem:[%s0 + $0x248] sm:$0xff]
  %v85 = vld [vmem:[%s0 + $0x250] sm:$0xff]
  %v86 = vld [vmem:[%s0 + $0x258] sm:$0xff]
  %v87 = vld [vmem:[%s0 + $0x260] sm:$0xff]
  %v88 = vld [vmem:[%s0 + $0x268] sm:$0xff]
  %v89 = vld [vmem:[%s0 + $0x270] sm:$0xff]
  %v90 = vld [vmem:[%s0 + $0x278] sm:$0xff]
  %v91 = vld [vmem:[%s0 + $0x280] sm:$0xff]
  %v92 = vld [vmem:[%s0 + $0x288] sm:$0xff]
  %v93 = vld [vmem:[%s0 + $0x290] sm:$0xff]
  %v94 = vld [vmem:[%s0 + $0x298] sm:$0xff]
  %v95 = vld [vmem:[%s0 + $0x2a0] sm:$0xff]
  %v96 = vld [vmem:[%s0 + $0x2a8] sm:$0xff]
  %v97 = vld [vmem:[%s0 + $0x2b0] sm:$0xff]
  %v98 = vld [vmem:[%s0 + $0x2b8] sm:$0xff]
  %v99 = vld [vmem:[%s0 + $0x2c0] sm:$0xff]
  %v100 = vld [vmem:[%s0 + $0x2c8] sm:$0xff]
  %v101 = vld [vmem:[%s0 + $0x2d0] sm:$0xff]
  %v102 = vld [vmem:[%s0 + $0x2d8] sm:$0xff]
  %v103 = vld [vmem:[%s0 + $0x2e0] sm:$0xff]
  %v104 = vld [vmem:[%s0 + $0x2e8] sm:$0xff]
  %v105 = vld [vmem:[%s0 + $0x2f0] sm:$0xff]
  %v106 = vld [vmem:[%s0 + $0x2f8] sm:$0xff]
  %v107 = vld [vmem:[%s0 + $0x300] sm:$0xff]
  %v108 = vld [vmem:[%s0 + $0x308] sm:$0xff]
  %v109 = vld [vmem:[%s0 + $0x310] sm:$0xff]
  %v110 = vld [vmem:[%s0 + $0x318] sm:$0xff]
  %vm111 = vcmask 64512
  %v112 = vsel %vm111, %v11, 0.0
  %v113 = vsel %vm111, %v15, 0.0
  %v114 = vadd.f32 %v112, %v113
  %v115 = vsel %vm111, %v19, 0.0
  %v116 = vadd.f32 %v114, %v115
  %v117 = vsel %vm111, %v23, 0.0
  %v118 = vadd.f32 %v116, %v117
  %v119 = vsel %vm111, %v27, 0.0
  %v120 = vadd.f32 %v118, %v119
  %v121 = vsel %vm111, %v31, 0.0
  %v122 = vadd.f32 %v120, %v121
  %v123 = vsel %vm111, %v35, 0.0
  %v124 = vadd.f32 %v122, %v123
  %v125 = vsel %vm111, %v39, 0.0
  %v126 = vadd.f32 %v124, %v125
  %v127 = vsel %vm111, %v43, 0.0
  %v128 = vadd.f32 %v126, %v127
  %v129 = vsel %vm111, %v47, 0.0
  %v130 = vadd.f32 %v128, %v129
  %v131 = vsel %vm111, %v51, 0.0
  %v132 = vadd.f32 %v130, %v131
  %v133 = vsel %vm111, %v55, 0.0
  %v134 = vadd.f32 %v132, %v133
  %v135 = vsel %vm111, %v59, 0.0
  %v136 = vadd.f32 %v134, %v135
  %v137 = vsel %vm111, %v63, 0.0
  %v138 = vadd.f32 %v136, %v137
  %v139 = vsel %vm111, %v67, 0.0
  %v140 = vadd.f32 %v138, %v139
  %v141 = vsel %vm111, %v71, 0.0
  %v142 = vadd.f32 %v140, %v141
  %v143 = vsel %vm111, %v75, 0.0
  %v144 = vadd.f32 %v142, %v143
  %v145 = vsel %vm111, %v79, 0.0
  %v146 = vadd.f32 %v144, %v145
  %v147 = vsel %vm111, %v83, 0.0
  %v148 = vadd.f32 %v146, %v147
  %v149 = vsel %vm111, %v87, 0.0
  %v150 = vadd.f32 %v148, %v149
  %v151 = vsel %vm111, %v91, 0.0
  %v152 = vadd.f32 %v150, %v151
  %v153 = vsel %vm111, %v95, 0.0
  %v154 = vadd.f32 %v152, %v153
  %v155 = vsel %vm111, %v99, 0.0
  %v156 = vadd.f32 %v154, %v155
  %v157 = vsel %vm111, %v103, 0.0
  %v158 = vadd.f32 %v156, %v157
  %v159 = vsel %vm111, %v107, 0.0
  %v160 = vadd.f32 %v158, %v159
  %v161 = vsel %vm111, %v12, 0.0
  %v162 = vsel %vm111, %v16, 0.0
  %v163 = vadd.f32 %v161, %v162
  %v164 = vsel %vm111, %v20, 0.0
  %v165 = vadd.f32 %v163, %v164
  %v166 = vsel %vm111, %v24, 0.0
  %v167 = vadd.f32 %v165, %v166
  %v168 = vsel %vm111, %v28, 0.0
  %v169 = vadd.f32 %v167, %v168
  %v170 = vsel %vm111, %v32, 0.0
  %v171 = vadd.f32 %v169, %v170
  %v172 = vsel %vm111, %v36, 0.0
  %v173 = vadd.f32 %v171, %v172
  %v174 = vsel %vm111, %v40, 0.0
  %v175 = vadd.f32 %v173, %v174
  %v176 = vsel %vm111, %v44, 0.0
  %v177 = vadd.f32 %v175, %v176
  %v178 = vsel %vm111, %v48, 0.0
  %v179 = vadd.f32 %v177, %v178
  %v180 = vsel %vm111, %v52, 0.0
  %v181 = vadd.f32 %v179, %v180
  %v182 = vsel %vm111, %v56, 0.0
  %v183 = vadd.f32 %v181, %v182
  %v184 = vsel %vm111, %v60, 0.0
  %v185 = vadd.f32 %v183, %v184
  %v186 = vsel %vm111, %v64, 0.0
  %v187 = vadd.f32 %v185, %v186
  %v188 = vsel %vm111, %v68, 0.0
  %v189 = vadd.f32 %v187, %v188
  %v190 = vsel %vm111, %v72, 0.0
  %v191 = vadd.f32 %v189, %v190
  %v192 = vsel %vm111, %v76, 0.0
  %v193 = vadd.f32 %v191, %v192
  %v194 = vsel %vm111, %v80, 0.0
  %v195 = vadd.f32 %v193, %v194
  %v196 = vsel %vm111, %v84, 0.0
  %v197 = vadd.f32 %v195, %v196
  %v198 = vsel %vm111, %v88, 0.0
  %v199 = vadd.f32 %v197, %v198
  %v200 = vsel %vm111, %v92, 0.0
  %v201 = vadd.f32 %v199, %v200
  %v202 = vsel %vm111, %v96, 0.0
  %v203 = vadd.f32 %v201, %v202
  %v204 = vsel %vm111, %v100, 0.0
  %v205 = vadd.f32 %v203, %v204
  %v206 = vsel %vm111, %v104, 0.0
  %v207 = vadd.f32 %v205, %v206
  %v208 = vsel %vm111, %v108, 0.0
  %v209 = vadd.f32 %v207, %v208
  %v210 = vsel %vm111, %v13, 0.0
  %v211 = vsel %vm111, %v17, 0.0
  %v212 = vadd.f32 %v210, %v211
  %v213 = vsel %vm111, %v21, 0.0
  %v214 = vadd.f32 %v212, %v213
  %v215 = vsel %vm111, %v25, 0.0
  %v216 = vadd.f32 %v214, %v215
  %v217 = vsel %vm111, %v29, 0.0
  %v218 = vadd.f32 %v216, %v217
  %v219 = vsel %vm111, %v33, 0.0
  %v220 = vadd.f32 %v218, %v219
  %v221 = vsel %vm111, %v37, 0.0
  %v222 = vadd.f32 %v220, %v221
  %v223 = vsel %vm111, %v41, 0.0
  %v224 = vadd.f32 %v222, %v223
  %v225 = vsel %vm111, %v45, 0.0
  %v226 = vadd.f32 %v224, %v225
  %v227 = vsel %vm111, %v49, 0.0
  %v228 = vadd.f32 %v226, %v227
  %v229 = vsel %vm111, %v53, 0.0
  %v230 = vadd.f32 %v228, %v229
  %v231 = vsel %vm111, %v57, 0.0
  %v232 = vadd.f32 %v230, %v231
  %v233 = vsel %vm111, %v61, 0.0
  %v234 = vadd.f32 %v232, %v233
  %v235 = vsel %vm111, %v65, 0.0
  %v236 = vadd.f32 %v234, %v235
  %v237 = vsel %vm111, %v69, 0.0
  %v238 = vadd.f32 %v236, %v237
  %v239 = vsel %vm111, %v73, 0.0
  %v240 = vadd.f32 %v238, %v239
  %v241 = vsel %vm111, %v77, 0.0
  %v242 = vadd.f32 %v240, %v241
  %v243 = vsel %vm111, %v81, 0.0
  %v244 = vadd.f32 %v242, %v243
  %v245 = vsel %vm111, %v85, 0.0
  %v246 = vadd.f32 %v244, %v245
  %v247 = vsel %vm111, %v89, 0.0
  %v248 = vadd.f32 %v246, %v247
  %v249 = vsel %vm111, %v93, 0.0
  %v250 = vadd.f32 %v248, %v249
  %v251 = vsel %vm111, %v97, 0.0
  %v252 = vadd.f32 %v250, %v251
  %v253 = vsel %vm111, %v101, 0.0
  %v254 = vadd.f32 %v252, %v253
  %v255 = vsel %vm111, %v105, 0.0
  %v256 = vadd.f32 %v254, %v255
  %v257 = vsel %vm111, %v109, 0.0
  %v258 = vadd.f32 %v256, %v257
  %v259 = vsel %vm111, %v14, 0.0
  %v260 = vsel %vm111, %v18, 0.0
  %v261 = vadd.f32 %v259, %v260
  %v262 = vsel %vm111, %v22, 0.0
  %v263 = vadd.f32 %v261, %v262
  %v264 = vsel %vm111, %v26, 0.0
  %v265 = vadd.f32 %v263, %v264
  %v266 = vsel %vm111, %v30, 0.0
  %v267 = vadd.f32 %v265, %v266
  %v268 = vsel %vm111, %v34, 0.0
  %v269 = vadd.f32 %v267, %v268
  %v270 = vsel %vm111, %v38, 0.0
  %v271 = vadd.f32 %v269, %v270
  %v272 = vsel %vm111, %v42, 0.0
  %v273 = vadd.f32 %v271, %v272
  %v274 = vsel %vm111, %v46, 0.0
  %v275 = vadd.f32 %v273, %v274
  %v276 = vsel %vm111, %v50, 0.0
  %v277 = vadd.f32 %v275, %v276
  %v278 = vsel %vm111, %v54, 0.0
  %v279 = vadd.f32 %v277, %v278
  %v280 = vsel %vm111, %v58, 0.0
  %v281 = vadd.f32 %v279, %v280
  %v282 = vsel %vm111, %v62, 0.0
  %v283 = vadd.f32 %v281, %v282
  %v284 = vsel %vm111, %v66, 0.0
  %v285 = vadd.f32 %v283, %v284
  %v286 = vsel %vm111, %v70, 0.0
  %v287 = vadd.f32 %v285, %v286
  %v288 = vsel %vm111, %v74, 0.0
  %v289 = vadd.f32 %v287, %v288
  %v290 = vsel %vm111, %v78, 0.0
  %v291 = vadd.f32 %v289, %v290
  %v292 = vsel %vm111, %v82, 0.0
  %v293 = vadd.f32 %v291, %v292
  %v294 = vsel %vm111, %v86, 0.0
  %v295 = vadd.f32 %v293, %v294
  %v296 = vsel %vm111, %v90, 0.0
  %v297 = vadd.f32 %v295, %v296
  %v298 = vsel %vm111, %v94, 0.0
  %v299 = vadd.f32 %v297, %v298
  %v300 = vsel %vm111, %v98, 0.0
  %v301 = vadd.f32 %v299, %v300
  %v302 = vsel %vm111, %v102, 0.0
  %v303 = vadd.f32 %v301, %v302
  %v304 = vsel %vm111, %v106, 0.0
  %v305 = vadd.f32 %v303, %v304
  %v306 = vsel %vm111, %v110, 0.0
  %v307 = vadd.f32 %v305, %v306
  %v308 = vmul.f32 %v160, 0.04
  %v309 = vmul.f32 %v209, 0.04
  %v310 = vmul.f32 %v258, 0.04
  %v311 = vmul.f32 %v307, 0.04
  %v312 = vsub.f32 %v11, %v308
  %v313 = vsub.f32 %v12, %v309
  %v314 = vsub.f32 %v13, %v310
  %v315 = vsub.f32 %v14, %v311
  %v316 = vsub.f32 %v15, %v308
  %v317 = vsub.f32 %v16, %v309
  %v318 = vsub.f32 %v17, %v310
  %v319 = vsub.f32 %v18, %v311
  %v320 = vsub.f32 %v19, %v308
  %v321 = vsub.f32 %v20, %v309
  %v322 = vsub.f32 %v21, %v310
  %v323 = vsub.f32 %v22, %v311
  %v324 = vsub.f32 %v23, %v308
  %v325 = vsub.f32 %v24, %v309
  %v326 = vsub.f32 %v25, %v310
  %v327 = vsub.f32 %v26, %v311
  %v328 = vsub.f32 %v27, %v308
  %v329 = vsub.f32 %v28, %v309
  %v330 = vsub.f32 %v29, %v310
  %v331 = vsub.f32 %v30, %v311
  %v332 = vsub.f32 %v31, %v308
  %v333 = vsub.f32 %v32, %v309
  %v334 = vsub.f32 %v33, %v310
  %v335 = vsub.f32 %v34, %v311
  %v336 = vsub.f32 %v35, %v308
  %v337 = vsub.f32 %v36, %v309
  %v338 = vsub.f32 %v37, %v310
  %v339 = vsub.f32 %v38, %v311
  %v340 = vsub.f32 %v39, %v308
  %v341 = vsub.f32 %v40, %v309
  %v342 = vsub.f32 %v41, %v310
  %v343 = vsub.f32 %v42, %v311
  %v344 = vsub.f32 %v43, %v308
  %v345 = vsub.f32 %v44, %v309
  %v346 = vsub.f32 %v45, %v310
  %v347 = vsub.f32 %v46, %v311
  %v348 = vsub.f32 %v47, %v308
  %v349 = vsub.f32 %v48, %v309
  %v350 = vsub.f32 %v49, %v310
  %v351 = vsub.f32 %v50, %v311
  %v352 = vsub.f32 %v51, %v308
  %v353 = vsub.f32 %v52, %v309
  %v354 = vsub.f32 %v53, %v310
  %v355 = vsub.f32 %v54, %v311
  %v356 = vsub.f32 %v55, %v308
  %v357 = vsub.f32 %v56, %v309
  %v358 = vsub.f32 %v57, %v310
  %v359 = vsub.f32 %v58, %v311
  %v360 = vsub.f32 %v59, %v308
  %v361 = vsub.f32 %v60, %v309
  %v362 = vsub.f32 %v61, %v310
  %v363 = vsub.f32 %v62, %v311
  %v364 = vsub.f32 %v63, %v308
  %v365 = vsub.f32 %v64, %v309
  %v366 = vsub.f32 %v65, %v310
  %v367 = vsub.f32 %v66, %v311
  %v368 = vsub.f32 %v67, %v308
  %v369 = vsub.f32 %v68, %v309
  %v370 = vsub.f32 %v69, %v310
  %v371 = vsub.f32 %v70, %v311
  %v372 = vsub.f32 %v71, %v308
  %v373 = vsub.f32 %v72, %v309
  %v374 = vsub.f32 %v73, %v310
  %v375 = vsub.f32 %v74, %v311
  %v376 = vsub.f32 %v75, %v308
  %v377 = vsub.f32 %v76, %v309
  %v378 = vsub.f32 %v77, %v310
  %v379 = vsub.f32 %v78, %v311
  %v380 = vsub.f32 %v79, %v308
  %v381 = vsub.f32 %v80, %v309
  %v382 = vsub.f32 %v81, %v310
  %v383 = vsub.f32 %v82, %v311
  %v384 = vsub.f32 %v83, %v308
  %v385 = vsub.f32 %v84, %v309
  %v386 = vsub.f32 %v85, %v310
  %v387 = vsub.f32 %v86, %v311
  %v388 = vsub.f32 %v87, %v308
  %v389 = vsub.f32 %v88, %v309
  %v390 = vsub.f32 %v89, %v310
  %v391 = vsub.f32 %v90, %v311
  %v392 = vsub.f32 %v91, %v308
  %v393 = vsub.f32 %v92, %v309
  %v394 = vsub.f32 %v93, %v310
  %v395 = vsub.f32 %v94, %v311
  %v396 = vsub.f32 %v95, %v308
  %v397 = vsub.f32 %v96, %v309
  %v398 = vsub.f32 %v97, %v310
  %v399 = vsub.f32 %v98, %v311
  %v400 = vsub.f32 %v99, %v308
  %v401 = vsub.f32 %v100, %v309
  %v402 = vsub.f32 %v101, %v310
  %v403 = vsub.f32 %v102, %v311
  %v404 = vsub.f32 %v103, %v308
  %v405 = vsub.f32 %v104, %v309
  %v406 = vsub.f32 %v105, %v310
  %v407 = vsub.f32 %v106, %v311
  %v408 = vsub.f32 %v107, %v308
  %v409 = vsub.f32 %v108, %v309
  %v410 = vsub.f32 %v109, %v310
  %v411 = vsub.f32 %v110, %v311
  %v412 = vmul.f32 %v312, %v312
  %v413 = vmul.f32 %v313, %v313
  %v414 = vmul.f32 %v314, %v314
  %v415 = vmul.f32 %v315, %v315
  %v416 = vmul.f32 %v316, %v316
  %v417 = vmul.f32 %v317, %v317
  %v418 = vmul.f32 %v318, %v318
  %v419 = vmul.f32 %v319, %v319
  %v420 = vmul.f32 %v320, %v320
  %v421 = vmul.f32 %v321, %v321
  %v422 = vmul.f32 %v322, %v322
  %v423 = vmul.f32 %v323, %v323
  %v424 = vmul.f32 %v324, %v324
  %v425 = vmul.f32 %v325, %v325
  %v426 = vmul.f32 %v326, %v326
  %v427 = vmul.f32 %v327, %v327
  %v428 = vmul.f32 %v328, %v328
  %v429 = vmul.f32 %v329, %v329
  %v430 = vmul.f32 %v330, %v330
  %v431 = vmul.f32 %v331, %v331
  %v432 = vmul.f32 %v332, %v332
  %v433 = vmul.f32 %v333, %v333
  %v434 = vmul.f32 %v334, %v334
  %v435 = vmul.f32 %v335, %v335
  %v436 = vmul.f32 %v336, %v336
  %v437 = vmul.f32 %v337, %v337
  %v438 = vmul.f32 %v338, %v338
  %v439 = vmul.f32 %v339, %v339
  %v440 = vmul.f32 %v340, %v340
  %v441 = vmul.f32 %v341, %v341
  %v442 = vmul.f32 %v342, %v342
  %v443 = vmul.f32 %v343, %v343
  %v444 = vmul.f32 %v344, %v344
  %v445 = vmul.f32 %v345, %v345
  %v446 = vmul.f32 %v346, %v346
  %v447 = vmul.f32 %v347, %v347
  %v448 = vmul.f32 %v348, %v348
  %v449 = vmul.f32 %v349, %v349
  %v450 = vmul.f32 %v350, %v350
  %v451 = vmul.f32 %v351, %v351
  %v452 = vmul.f32 %v352, %v352
  %v453 = vmul.f32 %v353, %v353
  %v454 = vmul.f32 %v354, %v354
  %v455 = vmul.f32 %v355, %v355
  %v456 = vmul.f32 %v356, %v356
  %v457 = vmul.f32 %v357, %v357
  %v458 = vmul.f32 %v358, %v358
  %v459 = vmul.f32 %v359, %v359
  %v460 = vmul.f32 %v360, %v360
  %v461 = vmul.f32 %v361, %v361
  %v462 = vmul.f32 %v362, %v362
  %v463 = vmul.f32 %v363, %v363
  %v464 = vmul.f32 %v364, %v364
  %v465 = vmul.f32 %v365, %v365
  %v466 = vmul.f32 %v366, %v366
  %v467 = vmul.f32 %v367, %v367
  %v468 = vmul.f32 %v368, %v368
  %v469 = vmul.f32 %v369, %v369
  %v470 = vmul.f32 %v370, %v370
  %v471 = vmul.f32 %v371, %v371
  %v472 = vmul.f32 %v372, %v372
  %v473 = vmul.f32 %v373, %v373
  %v474 = vmul.f32 %v374, %v374
  %v475 = vmul.f32 %v375, %v375
  %v476 = vmul.f32 %v376, %v376
  %v477 = vmul.f32 %v377, %v377
  %v478 = vmul.f32 %v378, %v378
  %v479 = vmul.f32 %v379, %v379
  %v480 = vmul.f32 %v380, %v380
  %v481 = vmul.f32 %v381, %v381
  %v482 = vmul.f32 %v382, %v382
  %v483 = vmul.f32 %v383, %v383
  %v484 = vmul.f32 %v384, %v384
  %v485 = vmul.f32 %v385, %v385
  %v486 = vmul.f32 %v386, %v386
  %v487 = vmul.f32 %v387, %v387
  %v488 = vmul.f32 %v388, %v388
  %v489 = vmul.f32 %v389, %v389
  %v490 = vmul.f32 %v390, %v390
  %v491 = vmul.f32 %v391, %v391
  %v492 = vmul.f32 %v392, %v392
  %v493 = vmul.f32 %v393, %v393
  %v494 = vmul.f32 %v394, %v394
  %v495 = vmul.f32 %v395, %v395
  %v496 = vmul.f32 %v396, %v396
  %v497 = vmul.f32 %v397, %v397
  %v498 = vmul.f32 %v398, %v398
  %v499 = vmul.f32 %v399, %v399
  %v500 = vmul.f32 %v400, %v400
  %v501 = vmul.f32 %v401, %v401
  %v502 = vmul.f32 %v402, %v402
  %v503 = vmul.f32 %v403, %v403
  %v504 = vmul.f32 %v404, %v404
  %v505 = vmul.f32 %v405, %v405
  %v506 = vmul.f32 %v406, %v406
  %v507 = vmul.f32 %v407, %v407
  %v508 = vmul.f32 %v408, %v408
  %v509 = vmul.f32 %v409, %v409
  %v510 = vmul.f32 %v410, %v410
  %v511 = vmul.f32 %v411, %v411
  %v512 = vsel %vm111, %v412, 0.0
  %v513 = vsel %vm111, %v416, 0.0
  %v514 = vadd.f32 %v512, %v513
  %v515 = vsel %vm111, %v420, 0.0
  %v516 = vadd.f32 %v514, %v515
  %v517 = vsel %vm111, %v424, 0.0
  %v518 = vadd.f32 %v516, %v517
  %v519 = vsel %vm111, %v428, 0.0
  %v520 = vadd.f32 %v518, %v519
  %v521 = vsel %vm111, %v432, 0.0
  %v522 = vadd.f32 %v520, %v521
  %v523 = vsel %vm111, %v436, 0.0
  %v524 = vadd.f32 %v522, %v523
  %v525 = vsel %vm111, %v440, 0.0
  %v526 = vadd.f32 %v524, %v525
  %v527 = vsel %vm111, %v444, 0.0
  %v528 = vadd.f32 %v526, %v527
  %v529 = vsel %vm111, %v448, 0.0
  %v530 = vadd.f32 %v528, %v529
  %v531 = vsel %vm111, %v452, 0.0
  %v532 = vadd.f32 %v530, %v531
  %v533 = vsel %vm111, %v456, 0.0
  %v534 = vadd.f32 %v532, %v533
  %v535 = vsel %vm111, %v460, 0.0
  %v536 = vadd.f32 %v534, %v535
  %v537 = vsel %vm111, %v464, 0.0
  %v538 = vadd.f32 %v536, %v537
  %v539 = vsel %vm111, %v468, 0.0
  %v540 = vadd.f32 %v538, %v539
  %v541 = vsel %vm111, %v472, 0.0
  %v542 = vadd.f32 %v540, %v541
  %v543 = vsel %vm111, %v476, 0.0
  %v544 = vadd.f32 %v542, %v543
  %v545 = vsel %vm111, %v480, 0.0
  %v546 = vadd.f32 %v544, %v545
  %v547 = vsel %vm111, %v484, 0.0
  %v548 = vadd.f32 %v546, %v547
  %v549 = vsel %vm111, %v488, 0.0
  %v550 = vadd.f32 %v548, %v549
  %v551 = vsel %vm111, %v492, 0.0
  %v552 = vadd.f32 %v550, %v551
  %v553 = vsel %vm111, %v496, 0.0
  %v554 = vadd.f32 %v552, %v553
  %v555 = vsel %vm111, %v500, 0.0
  %v556 = vadd.f32 %v554, %v555
  %v557 = vsel %vm111, %v504, 0.0
  %v558 = vadd.f32 %v556, %v557
  %v559 = vsel %vm111, %v508, 0.0
  %v560 = vadd.f32 %v558, %v559
  %v561 = vsel %vm111, %v413, 0.0
  %v562 = vsel %vm111, %v417, 0.0
  %v563 = vadd.f32 %v561, %v562
  %v564 = vsel %vm111, %v421, 0.0
  %v565 = vadd.f32 %v563, %v564
  %v566 = vsel %vm111, %v425, 0.0
  %v567 = vadd.f32 %v565, %v566
  %v568 = vsel %vm111, %v429, 0.0
  %v569 = vadd.f32 %v567, %v568
  %v570 = vsel %vm111, %v433, 0.0
  %v571 = vadd.f32 %v569, %v570
  %v572 = vsel %vm111, %v437, 0.0
  %v573 = vadd.f32 %v571, %v572
  %v574 = vsel %vm111, %v441, 0.0
  %v575 = vadd.f32 %v573, %v574
  %v576 = vsel %vm111, %v445, 0.0
  %v577 = vadd.f32 %v575, %v576
  %v578 = vsel %vm111, %v449, 0.0
  %v579 = vadd.f32 %v577, %v578
  %v580 = vsel %vm111, %v453, 0.0
  %v581 = vadd.f32 %v579, %v580
  %v582 = vsel %vm111, %v457, 0.0
  %v583 = vadd.f32 %v581, %v582
  %v584 = vsel %vm111, %v461, 0.0
  %v585 = vadd.f32 %v583, %v584
  %v586 = vsel %vm111, %v465, 0.0
  %v587 = vadd.f32 %v585, %v586
  %v588 = vsel %vm111, %v469, 0.0
  %v589 = vadd.f32 %v587, %v588
  %v590 = vsel %vm111, %v473, 0.0
  %v591 = vadd.f32 %v589, %v590
  %v592 = vsel %vm111, %v477, 0.0
  %v593 = vadd.f32 %v591, %v592
  %v594 = vsel %vm111, %v481, 0.0
  %v595 = vadd.f32 %v593, %v594
  %v596 = vsel %vm111, %v485, 0.0
  %v597 = vadd.f32 %v595, %v596
  %v598 = vsel %vm111, %v489, 0.0
  %v599 = vadd.f32 %v597, %v598
  %v600 = vsel %vm111, %v493, 0.0
  %v601 = vadd.f32 %v599, %v600
  %v602 = vsel %vm111, %v497, 0.0
  %v603 = vadd.f32 %v601, %v602
  %v604 = vsel %vm111, %v501, 0.0
  %v605 = vadd.f32 %v603, %v604
  %v606 = vsel %vm111, %v505, 0.0
  %v607 = vadd.f32 %v605, %v606
  %v608 = vsel %vm111, %v509, 0.0
  %v609 = vadd.f32 %v607, %v608
  %v610 = vsel %vm111, %v414, 0.0
  %v611 = vsel %vm111, %v418, 0.0
  %v612 = vadd.f32 %v610, %v611
  %v613 = vsel %vm111, %v422, 0.0
  %v614 = vadd.f32 %v612, %v613
  %v615 = vsel %vm111, %v426, 0.0
  %v616 = vadd.f32 %v614, %v615
  %v617 = vsel %vm111, %v430, 0.0
  %v618 = vadd.f32 %v616, %v617
  %v619 = vsel %vm111, %v434, 0.0
  %v620 = vadd.f32 %v618, %v619
  %v621 = vsel %vm111, %v438, 0.0
  %v622 = vadd.f32 %v620, %v621
  %v623 = vsel %vm111, %v442, 0.0
  %v624 = vadd.f32 %v622, %v623
  %v625 = vsel %vm111, %v446, 0.0
  %v626 = vadd.f32 %v624, %v625
  %v627 = vsel %vm111, %v450, 0.0
  %v628 = vadd.f32 %v626, %v627
  %v629 = vsel %vm111, %v454, 0.0
  %v630 = vadd.f32 %v628, %v629
  %v631 = vsel %vm111, %v458, 0.0
  %v632 = vadd.f32 %v630, %v631
  %v633 = vsel %vm111, %v462, 0.0
  %v634 = vadd.f32 %v632, %v633
  %v635 = vsel %vm111, %v466, 0.0
  %v636 = vadd.f32 %v634, %v635
  %v637 = vsel %vm111, %v470, 0.0
  %v638 = vadd.f32 %v636, %v637
  %v639 = vsel %vm111, %v474, 0.0
  %v640 = vadd.f32 %v638, %v639
  %v641 = vsel %vm111, %v478, 0.0
  %v642 = vadd.f32 %v640, %v641
  %v643 = vsel %vm111, %v482, 0.0
  %v644 = vadd.f32 %v642, %v643
  %v645 = vsel %vm111, %v486, 0.0
  %v646 = vadd.f32 %v644, %v645
  %v647 = vsel %vm111, %v490, 0.0
  %v648 = vadd.f32 %v646, %v647
  %v649 = vsel %vm111, %v494, 0.0
  %v650 = vadd.f32 %v648, %v649
  %v651 = vsel %vm111, %v498, 0.0
  %v652 = vadd.f32 %v650, %v651
  %v653 = vsel %vm111, %v502, 0.0
  %v654 = vadd.f32 %v652, %v653
  %v655 = vsel %vm111, %v506, 0.0
  %v656 = vadd.f32 %v654, %v655
  %v657 = vsel %vm111, %v510, 0.0
  %v658 = vadd.f32 %v656, %v657
  %v659 = vsel %vm111, %v415, 0.0
  %v660 = vsel %vm111, %v419, 0.0
  %v661 = vadd.f32 %v659, %v660
  %v662 = vsel %vm111, %v423, 0.0
  %v663 = vadd.f32 %v661, %v662
  %v664 = vsel %vm111, %v427, 0.0
  %v665 = vadd.f32 %v663, %v664
  %v666 = vsel %vm111, %v431, 0.0
  %v667 = vadd.f32 %v665, %v666
  %v668 = vsel %vm111, %v435, 0.0
  %v669 = vadd.f32 %v667, %v668
  %v670 = vsel %vm111, %v439, 0.0
  %v671 = vadd.f32 %v669, %v670
  %v672 = vsel %vm111, %v443, 0.0
  %v673 = vadd.f32 %v671, %v672
  %v674 = vsel %vm111, %v447, 0.0
  %v675 = vadd.f32 %v673, %v674
  %v676 = vsel %vm111, %v451, 0.0
  %v677 = vadd.f32 %v675, %v676
  %v678 = vsel %vm111, %v455, 0.0
  %v679 = vadd.f32 %v677, %v678
  %v680 = vsel %vm111, %v459, 0.0
  %v681 = vadd.f32 %v679, %v680
  %v682 = vsel %vm111, %v463, 0.0
  %v683 = vadd.f32 %v681, %v682
  %v684 = vsel %vm111, %v467, 0.0
  %v685 = vadd.f32 %v683, %v684
  %v686 = vsel %vm111, %v471, 0.0
  %v687 = vadd.f32 %v685, %v686
  %v688 = vsel %vm111, %v475, 0.0
  %v689 = vadd.f32 %v687, %v688
  %v690 = vsel %vm111, %v479, 0.0
  %v691 = vadd.f32 %v689, %v690
  %v692 = vsel %vm111, %v483, 0.0
  %v693 = vadd.f32 %v691, %v692
  %v694 = vsel %vm111, %v487, 0.0
  %v695 = vadd.f32 %v693, %v694
  %v696 = vsel %vm111, %v491, 0.0
  %v697 = vadd.f32 %v695, %v696
  %v698 = vsel %vm111, %v495, 0.0
  %v699 = vadd.f32 %v697, %v698
  %v700 = vsel %vm111, %v499, 0.0
  %v701 = vadd.f32 %v699, %v700
  %v702 = vsel %vm111, %v503, 0.0
  %v703 = vadd.f32 %v701, %v702
  %v704 = vsel %vm111, %v507, 0.0
  %v705 = vadd.f32 %v703, %v704
  %v706 = vsel %vm111, %v511, 0.0
  %v707 = vadd.f32 %v705, %v706
  %v708 = vmul.f32 %v560, 0.04
  %v709 = vmul.f32 %v609, 0.04
  %v710 = vmul.f32 %v658, 0.04
  %v711 = vmul.f32 %v707, 0.04
  %v712 = vadd.f32 %v708, 1e-09
  %v713 = vadd.f32 %v709, 1e-09
  %v714 = vadd.f32 %v710, 1e-09
  %v715 = vadd.f32 %v711, 1e-09
  %v716 = vrsqrt.pop %v712
  %v717 = vmul.f32 %v712, %v716
  %vm718 = vcmp.eq.f32.partialorder %v712, inf
  %v719 = vsel %vm718, %v712, %v717
  %vm720 = vcmp.eq.f32.partialorder %v712, 0.0
  %v721 = vand.u32 %v712, 2147483648
  %v722 = vsel %vm720, %v721, %v719
  %v723 = vrsqrt.pop %v713
  %v724 = vmul.f32 %v713, %v723
  %vm725 = vcmp.eq.f32.partialorder %v713, inf
  %v726 = vsel %vm725, %v713, %v724
  %vm727 = vcmp.eq.f32.partialorder %v713, 0.0
  %v728 = vand.u32 %v713, 2147483648
  %v729 = vsel %vm727, %v728, %v726
  %v730 = vrsqrt.pop %v714
  %v731 = vmul.f32 %v714, %v730
  %vm732 = vcmp.eq.f32.partialorder %v714, inf
  %v733 = vsel %vm732, %v714, %v731
  %vm734 = vcmp.eq.f32.partialorder %v714, 0.0
  %v735 = vand.u32 %v714, 2147483648
  %v736 = vsel %vm734, %v735, %v733
  %v737 = vrsqrt.pop %v715
  %v738 = vmul.f32 %v715, %v737
  %vm739 = vcmp.eq.f32.partialorder %v715, inf
  %v740 = vsel %vm739, %v715, %v738
  %vm741 = vcmp.eq.f32.partialorder %v715, 0.0
  %v742 = vand.u32 %v715, 2147483648
  %v743 = vsel %vm741, %v742, %v740
  %v744 = vld [vmem:[%s1] sm:$0xff]
  %v745 = vld [vmem:[%s1 + $0x8] sm:$0xff]
  %v746 = vld [vmem:[%s1 + $0x10] sm:$0xff]
  %v747 = vld [vmem:[%s1 + $0x18] sm:$0xff]
  %v748 = vld [vmem:[%s1 + $0x20] sm:$0xff]
  %v749 = vld [vmem:[%s1 + $0x28] sm:$0xff]
  %v750 = vld [vmem:[%s1 + $0x30] sm:$0xff]
  %v751 = vld [vmem:[%s1 + $0x38] sm:$0xff]
  %v752 = vld [vmem:[%s1 + $0x40] sm:$0xff]
  %v753 = vld [vmem:[%s1 + $0x48] sm:$0xff]
  %v754 = vld [vmem:[%s1 + $0x50] sm:$0xff]
  %v755 = vld [vmem:[%s1 + $0x58] sm:$0xff]
  %v756 = vld [vmem:[%s1 + $0x60] sm:$0xff]
  %v757 = vld [vmem:[%s1 + $0x68] sm:$0xff]
  %v758 = vld [vmem:[%s1 + $0x70] sm:$0xff]
  %v759 = vld [vmem:[%s1 + $0x78] sm:$0xff]
  %v760 = vld [vmem:[%s1 + $0x80] sm:$0xff]
  %v761 = vld [vmem:[%s1 + $0x88] sm:$0xff]
  %v762 = vld [vmem:[%s1 + $0x90] sm:$0xff]
  %v763 = vld [vmem:[%s1 + $0x98] sm:$0xff]
  %v764 = vld [vmem:[%s1 + $0xa0] sm:$0xff]
  %v765 = vld [vmem:[%s1 + $0xa8] sm:$0xff]
  %v766 = vld [vmem:[%s1 + $0xb0] sm:$0xff]
  %v767 = vld [vmem:[%s1 + $0xb8] sm:$0xff]
  %v768 = vld [vmem:[%s1 + $0xc0] sm:$0xff]
  %v769 = vld [vmem:[%s1 + $0xc8] sm:$0xff]
  %v770 = vld [vmem:[%s1 + $0xd0] sm:$0xff]
  %v771 = vld [vmem:[%s1 + $0xd8] sm:$0xff]
  %v772 = vld [vmem:[%s1 + $0xe0] sm:$0xff]
  %v773 = vld [vmem:[%s1 + $0xe8] sm:$0xff]
  %v774 = vld [vmem:[%s1 + $0xf0] sm:$0xff]
  %v775 = vld [vmem:[%s1 + $0xf8] sm:$0xff]
  %v776 = vld [vmem:[%s1 + $0x100] sm:$0xff]
  %v777 = vld [vmem:[%s1 + $0x108] sm:$0xff]
  %v778 = vld [vmem:[%s1 + $0x110] sm:$0xff]
  %v779 = vld [vmem:[%s1 + $0x118] sm:$0xff]
  %v780 = vld [vmem:[%s1 + $0x120] sm:$0xff]
  %v781 = vld [vmem:[%s1 + $0x128] sm:$0xff]
  %v782 = vld [vmem:[%s1 + $0x130] sm:$0xff]
  %v783 = vld [vmem:[%s1 + $0x138] sm:$0xff]
  %v784 = vld [vmem:[%s1 + $0x140] sm:$0xff]
  %v785 = vld [vmem:[%s1 + $0x148] sm:$0xff]
  %v786 = vld [vmem:[%s1 + $0x150] sm:$0xff]
  %v787 = vld [vmem:[%s1 + $0x158] sm:$0xff]
  %v788 = vld [vmem:[%s1 + $0x160] sm:$0xff]
  %v789 = vld [vmem:[%s1 + $0x168] sm:$0xff]
  %v790 = vld [vmem:[%s1 + $0x170] sm:$0xff]
  %v791 = vld [vmem:[%s1 + $0x178] sm:$0xff]
  %v792 = vld [vmem:[%s1 + $0x180] sm:$0xff]
  %v793 = vld [vmem:[%s1 + $0x188] sm:$0xff]
  %v794 = vld [vmem:[%s1 + $0x190] sm:$0xff]
  %v795 = vld [vmem:[%s1 + $0x198] sm:$0xff]
  %v796 = vld [vmem:[%s1 + $0x1a0] sm:$0xff]
  %v797 = vld [vmem:[%s1 + $0x1a8] sm:$0xff]
  %v798 = vld [vmem:[%s1 + $0x1b0] sm:$0xff]
  %v799 = vld [vmem:[%s1 + $0x1b8] sm:$0xff]
  %v800 = vld [vmem:[%s1 + $0x1c0] sm:$0xff]
  %v801 = vld [vmem:[%s1 + $0x1c8] sm:$0xff]
  %v802 = vld [vmem:[%s1 + $0x1d0] sm:$0xff]
  %v803 = vld [vmem:[%s1 + $0x1d8] sm:$0xff]
  %v804 = vld [vmem:[%s1 + $0x1e0] sm:$0xff]
  %v805 = vld [vmem:[%s1 + $0x1e8] sm:$0xff]
  %v806 = vld [vmem:[%s1 + $0x1f0] sm:$0xff]
  %v807 = vld [vmem:[%s1 + $0x1f8] sm:$0xff]
  %v808 = vld [vmem:[%s1 + $0x200] sm:$0xff]
  %v809 = vld [vmem:[%s1 + $0x208] sm:$0xff]
  %v810 = vld [vmem:[%s1 + $0x210] sm:$0xff]
  %v811 = vld [vmem:[%s1 + $0x218] sm:$0xff]
  %v812 = vld [vmem:[%s1 + $0x220] sm:$0xff]
  %v813 = vld [vmem:[%s1 + $0x228] sm:$0xff]
  %v814 = vld [vmem:[%s1 + $0x230] sm:$0xff]
  %v815 = vld [vmem:[%s1 + $0x238] sm:$0xff]
  %v816 = vld [vmem:[%s1 + $0x240] sm:$0xff]
  %v817 = vld [vmem:[%s1 + $0x248] sm:$0xff]
  %v818 = vld [vmem:[%s1 + $0x250] sm:$0xff]
  %v819 = vld [vmem:[%s1 + $0x258] sm:$0xff]
  %v820 = vld [vmem:[%s1 + $0x260] sm:$0xff]
  %v821 = vld [vmem:[%s1 + $0x268] sm:$0xff]
  %v822 = vld [vmem:[%s1 + $0x270] sm:$0xff]
  %v823 = vld [vmem:[%s1 + $0x278] sm:$0xff]
  %v824 = vld [vmem:[%s1 + $0x280] sm:$0xff]
  %v825 = vld [vmem:[%s1 + $0x288] sm:$0xff]
  %v826 = vld [vmem:[%s1 + $0x290] sm:$0xff]
  %v827 = vld [vmem:[%s1 + $0x298] sm:$0xff]
  %v828 = vld [vmem:[%s1 + $0x2a0] sm:$0xff]
  %v829 = vld [vmem:[%s1 + $0x2a8] sm:$0xff]
  %v830 = vld [vmem:[%s1 + $0x2b0] sm:$0xff]
  %v831 = vld [vmem:[%s1 + $0x2b8] sm:$0xff]
  %v832 = vld [vmem:[%s1 + $0x2c0] sm:$0xff]
  %v833 = vld [vmem:[%s1 + $0x2c8] sm:$0xff]
  %v834 = vld [vmem:[%s1 + $0x2d0] sm:$0xff]
  %v835 = vld [vmem:[%s1 + $0x2d8] sm:$0xff]
  %v836 = vld [vmem:[%s1 + $0x2e0] sm:$0xff]
  %v837 = vld [vmem:[%s1 + $0x2e8] sm:$0xff]
  %v838 = vld [vmem:[%s1 + $0x2f0] sm:$0xff]
  %v839 = vld [vmem:[%s1 + $0x2f8] sm:$0xff]
  %v840 = vld [vmem:[%s1 + $0x300] sm:$0xff]
  %v841 = vld [vmem:[%s1 + $0x308] sm:$0xff]
  %v842 = vld [vmem:[%s1 + $0x310] sm:$0xff]
  %v843 = vld [vmem:[%s1 + $0x318] sm:$0xff]
  %v844 = vsel %vm111, %v744, 0.0
  %v845 = vsel %vm111, %v748, 0.0
  %v846 = vadd.f32 %v844, %v845
  %v847 = vsel %vm111, %v752, 0.0
  %v848 = vadd.f32 %v846, %v847
  %v849 = vsel %vm111, %v756, 0.0
  %v850 = vadd.f32 %v848, %v849
  %v851 = vsel %vm111, %v760, 0.0
  %v852 = vadd.f32 %v850, %v851
  %v853 = vsel %vm111, %v764, 0.0
  %v854 = vadd.f32 %v852, %v853
  %v855 = vsel %vm111, %v768, 0.0
  %v856 = vadd.f32 %v854, %v855
  %v857 = vsel %vm111, %v772, 0.0
  %v858 = vadd.f32 %v856, %v857
  %v859 = vsel %vm111, %v776, 0.0
  %v860 = vadd.f32 %v858, %v859
  %v861 = vsel %vm111, %v780, 0.0
  %v862 = vadd.f32 %v860, %v861
  %v863 = vsel %vm111, %v784, 0.0
  %v864 = vadd.f32 %v862, %v863
  %v865 = vsel %vm111, %v788, 0.0
  %v866 = vadd.f32 %v864, %v865
  %v867 = vsel %vm111, %v792, 0.0
  %v868 = vadd.f32 %v866, %v867
  %v869 = vsel %vm111, %v796, 0.0
  %v870 = vadd.f32 %v868, %v869
  %v871 = vsel %vm111, %v800, 0.0
  %v872 = vadd.f32 %v870, %v871
  %v873 = vsel %vm111, %v804, 0.0
  %v874 = vadd.f32 %v872, %v873
  %v875 = vsel %vm111, %v808, 0.0
  %v876 = vadd.f32 %v874, %v875
  %v877 = vsel %vm111, %v812, 0.0
  %v878 = vadd.f32 %v876, %v877
  %v879 = vsel %vm111, %v816, 0.0
  %v880 = vadd.f32 %v878, %v879
  %v881 = vsel %vm111, %v820, 0.0
  %v882 = vadd.f32 %v880, %v881
  %v883 = vsel %vm111, %v824, 0.0
  %v884 = vadd.f32 %v882, %v883
  %v885 = vsel %vm111, %v828, 0.0
  %v886 = vadd.f32 %v884, %v885
  %v887 = vsel %vm111, %v832, 0.0
  %v888 = vadd.f32 %v886, %v887
  %v889 = vsel %vm111, %v836, 0.0
  %v890 = vadd.f32 %v888, %v889
  %v891 = vsel %vm111, %v840, 0.0
  %v892 = vadd.f32 %v890, %v891
  %v893 = vsel %vm111, %v745, 0.0
  %v894 = vsel %vm111, %v749, 0.0
  %v895 = vadd.f32 %v893, %v894
  %v896 = vsel %vm111, %v753, 0.0
  %v897 = vadd.f32 %v895, %v896
  %v898 = vsel %vm111, %v757, 0.0
  %v899 = vadd.f32 %v897, %v898
  %v900 = vsel %vm111, %v761, 0.0
  %v901 = vadd.f32 %v899, %v900
  %v902 = vsel %vm111, %v765, 0.0
  %v903 = vadd.f32 %v901, %v902
  %v904 = vsel %vm111, %v769, 0.0
  %v905 = vadd.f32 %v903, %v904
  %v906 = vsel %vm111, %v773, 0.0
  %v907 = vadd.f32 %v905, %v906
  %v908 = vsel %vm111, %v777, 0.0
  %v909 = vadd.f32 %v907, %v908
  %v910 = vsel %vm111, %v781, 0.0
  %v911 = vadd.f32 %v909, %v910
  %v912 = vsel %vm111, %v785, 0.0
  %v913 = vadd.f32 %v911, %v912
  %v914 = vsel %vm111, %v789, 0.0
  %v915 = vadd.f32 %v913, %v914
  %v916 = vsel %vm111, %v793, 0.0
  %v917 = vadd.f32 %v915, %v916
  %v918 = vsel %vm111, %v797, 0.0
  %v919 = vadd.f32 %v917, %v918
  %v920 = vsel %vm111, %v801, 0.0
  %v921 = vadd.f32 %v919, %v920
  %v922 = vsel %vm111, %v805, 0.0
  %v923 = vadd.f32 %v921, %v922
  %v924 = vsel %vm111, %v809, 0.0
  %v925 = vadd.f32 %v923, %v924
  %v926 = vsel %vm111, %v813, 0.0
  %v927 = vadd.f32 %v925, %v926
  %v928 = vsel %vm111, %v817, 0.0
  %v929 = vadd.f32 %v927, %v928
  %v930 = vsel %vm111, %v821, 0.0
  %v931 = vadd.f32 %v929, %v930
  %v932 = vsel %vm111, %v825, 0.0
  %v933 = vadd.f32 %v931, %v932
  %v934 = vsel %vm111, %v829, 0.0
  %v935 = vadd.f32 %v933, %v934
  %v936 = vsel %vm111, %v833, 0.0
  %v937 = vadd.f32 %v935, %v936
  %v938 = vsel %vm111, %v837, 0.0
  %v939 = vadd.f32 %v937, %v938
  %v940 = vsel %vm111, %v841, 0.0
  %v941 = vadd.f32 %v939, %v940
  %v942 = vsel %vm111, %v746, 0.0
  %v943 = vsel %vm111, %v750, 0.0
  %v944 = vadd.f32 %v942, %v943
  %v945 = vsel %vm111, %v754, 0.0
  %v946 = vadd.f32 %v944, %v945
  %v947 = vsel %vm111, %v758, 0.0
  %v948 = vadd.f32 %v946, %v947
  %v949 = vsel %vm111, %v762, 0.0
  %v950 = vadd.f32 %v948, %v949
  %v951 = vsel %vm111, %v766, 0.0
  %v952 = vadd.f32 %v950, %v951
  %v953 = vsel %vm111, %v770, 0.0
  %v954 = vadd.f32 %v952, %v953
  %v955 = vsel %vm111, %v774, 0.0
  %v956 = vadd.f32 %v954, %v955
  %v957 = vsel %vm111, %v778, 0.0
  %v958 = vadd.f32 %v956, %v957
  %v959 = vsel %vm111, %v782, 0.0
  %v960 = vadd.f32 %v958, %v959
  %v961 = vsel %vm111, %v786, 0.0
  %v962 = vadd.f32 %v960, %v961
  %v963 = vsel %vm111, %v790, 0.0
  %v964 = vadd.f32 %v962, %v963
  %v965 = vsel %vm111, %v794, 0.0
  %v966 = vadd.f32 %v964, %v965
  %v967 = vsel %vm111, %v798, 0.0
  %v968 = vadd.f32 %v966, %v967
  %v969 = vsel %vm111, %v802, 0.0
  %v970 = vadd.f32 %v968, %v969
  %v971 = vsel %vm111, %v806, 0.0
  %v972 = vadd.f32 %v970, %v971
  %v973 = vsel %vm111, %v810, 0.0
  %v974 = vadd.f32 %v972, %v973
  %v975 = vsel %vm111, %v814, 0.0
  %v976 = vadd.f32 %v974, %v975
  %v977 = vsel %vm111, %v818, 0.0
  %v978 = vadd.f32 %v976, %v977
  %v979 = vsel %vm111, %v822, 0.0
  %v980 = vadd.f32 %v978, %v979
  %v981 = vsel %vm111, %v826, 0.0
  %v982 = vadd.f32 %v980, %v981
  %v983 = vsel %vm111, %v830, 0.0
  %v984 = vadd.f32 %v982, %v983
  %v985 = vsel %vm111, %v834, 0.0
  %v986 = vadd.f32 %v984, %v985
  %v987 = vsel %vm111, %v838, 0.0
  %v988 = vadd.f32 %v986, %v987
  %v989 = vsel %vm111, %v842, 0.0
  %v990 = vadd.f32 %v988, %v989
  %v991 = vsel %vm111, %v747, 0.0
  %v992 = vsel %vm111, %v751, 0.0
  %v993 = vadd.f32 %v991, %v992
  %v994 = vsel %vm111, %v755, 0.0
  %v995 = vadd.f32 %v993, %v994
  %v996 = vsel %vm111, %v759, 0.0
  %v997 = vadd.f32 %v995, %v996
  %v998 = vsel %vm111, %v763, 0.0
  %v999 = vadd.f32 %v997, %v998
  %v1000 = vsel %vm111, %v767, 0.0
  %v1001 = vadd.f32 %v999, %v1000
  %v1002 = vsel %vm111, %v771, 0.0
  %v1003 = vadd.f32 %v1001, %v1002
  %v1004 = vsel %vm111, %v775, 0.0
  %v1005 = vadd.f32 %v1003, %v1004
  %v1006 = vsel %vm111, %v779, 0.0
  %v1007 = vadd.f32 %v1005, %v1006
  %v1008 = vsel %vm111, %v783, 0.0
  %v1009 = vadd.f32 %v1007, %v1008
  %v1010 = vsel %vm111, %v787, 0.0
  %v1011 = vadd.f32 %v1009, %v1010
  %v1012 = vsel %vm111, %v791, 0.0
  %v1013 = vadd.f32 %v1011, %v1012
  %v1014 = vsel %vm111, %v795, 0.0
  %v1015 = vadd.f32 %v1013, %v1014
  %v1016 = vsel %vm111, %v799, 0.0
  %v1017 = vadd.f32 %v1015, %v1016
  %v1018 = vsel %vm111, %v803, 0.0
  %v1019 = vadd.f32 %v1017, %v1018
  %v1020 = vsel %vm111, %v807, 0.0
  %v1021 = vadd.f32 %v1019, %v1020
  %v1022 = vsel %vm111, %v811, 0.0
  %v1023 = vadd.f32 %v1021, %v1022
  %v1024 = vsel %vm111, %v815, 0.0
  %v1025 = vadd.f32 %v1023, %v1024
  %v1026 = vsel %vm111, %v819, 0.0
  %v1027 = vadd.f32 %v1025, %v1026
  %v1028 = vsel %vm111, %v823, 0.0
  %v1029 = vadd.f32 %v1027, %v1028
  %v1030 = vsel %vm111, %v827, 0.0
  %v1031 = vadd.f32 %v1029, %v1030
  %v1032 = vsel %vm111, %v831, 0.0
  %v1033 = vadd.f32 %v1031, %v1032
  %v1034 = vsel %vm111, %v835, 0.0
  %v1035 = vadd.f32 %v1033, %v1034
  %v1036 = vsel %vm111, %v839, 0.0
  %v1037 = vadd.f32 %v1035, %v1036
  %v1038 = vsel %vm111, %v843, 0.0
  %v1039 = vadd.f32 %v1037, %v1038
  %v1040 = vmul.f32 %v892, 0.04
  %v1041 = vmul.f32 %v941, 0.04
  %v1042 = vmul.f32 %v990, 0.04
  %v1043 = vmul.f32 %v1039, 0.04
  %v1044 = vsub.f32 %v744, %v1040
  %v1045 = vsub.f32 %v745, %v1041
  %v1046 = vsub.f32 %v746, %v1042
  %v1047 = vsub.f32 %v747, %v1043
  %v1048 = vsub.f32 %v748, %v1040
  %v1049 = vsub.f32 %v749, %v1041
  %v1050 = vsub.f32 %v750, %v1042
  %v1051 = vsub.f32 %v751, %v1043
  %v1052 = vsub.f32 %v752, %v1040
  %v1053 = vsub.f32 %v753, %v1041
  %v1054 = vsub.f32 %v754, %v1042
  %v1055 = vsub.f32 %v755, %v1043
  %v1056 = vsub.f32 %v756, %v1040
  %v1057 = vsub.f32 %v757, %v1041
  %v1058 = vsub.f32 %v758, %v1042
  %v1059 = vsub.f32 %v759, %v1043
  %v1060 = vsub.f32 %v760, %v1040
  %v1061 = vsub.f32 %v761, %v1041
  %v1062 = vsub.f32 %v762, %v1042
  %v1063 = vsub.f32 %v763, %v1043
  %v1064 = vsub.f32 %v764, %v1040
  %v1065 = vsub.f32 %v765, %v1041
  %v1066 = vsub.f32 %v766, %v1042
  %v1067 = vsub.f32 %v767, %v1043
  %v1068 = vsub.f32 %v768, %v1040
  %v1069 = vsub.f32 %v769, %v1041
  %v1070 = vsub.f32 %v770, %v1042
  %v1071 = vsub.f32 %v771, %v1043
  %v1072 = vsub.f32 %v772, %v1040
  %v1073 = vsub.f32 %v773, %v1041
  %v1074 = vsub.f32 %v774, %v1042
  %v1075 = vsub.f32 %v775, %v1043
  %v1076 = vsub.f32 %v776, %v1040
  %v1077 = vsub.f32 %v777, %v1041
  %v1078 = vsub.f32 %v778, %v1042
  %v1079 = vsub.f32 %v779, %v1043
  %v1080 = vsub.f32 %v780, %v1040
  %v1081 = vsub.f32 %v781, %v1041
  %v1082 = vsub.f32 %v782, %v1042
  %v1083 = vsub.f32 %v783, %v1043
  %v1084 = vsub.f32 %v784, %v1040
  %v1085 = vsub.f32 %v785, %v1041
  %v1086 = vsub.f32 %v786, %v1042
  %v1087 = vsub.f32 %v787, %v1043
  %v1088 = vsub.f32 %v788, %v1040
  %v1089 = vsub.f32 %v789, %v1041
  %v1090 = vsub.f32 %v790, %v1042
  %v1091 = vsub.f32 %v791, %v1043
  %v1092 = vsub.f32 %v792, %v1040
  %v1093 = vsub.f32 %v793, %v1041
  %v1094 = vsub.f32 %v794, %v1042
  %v1095 = vsub.f32 %v795, %v1043
  %v1096 = vsub.f32 %v796, %v1040
  %v1097 = vsub.f32 %v797, %v1041
  %v1098 = vsub.f32 %v798, %v1042
  %v1099 = vsub.f32 %v799, %v1043
  %v1100 = vsub.f32 %v800, %v1040
  %v1101 = vsub.f32 %v801, %v1041
  %v1102 = vsub.f32 %v802, %v1042
  %v1103 = vsub.f32 %v803, %v1043
  %v1104 = vsub.f32 %v804, %v1040
  %v1105 = vsub.f32 %v805, %v1041
  %v1106 = vsub.f32 %v806, %v1042
  %v1107 = vsub.f32 %v807, %v1043
  %v1108 = vsub.f32 %v808, %v1040
  %v1109 = vsub.f32 %v809, %v1041
  %v1110 = vsub.f32 %v810, %v1042
  %v1111 = vsub.f32 %v811, %v1043
  %v1112 = vsub.f32 %v812, %v1040
  %v1113 = vsub.f32 %v813, %v1041
  %v1114 = vsub.f32 %v814, %v1042
  %v1115 = vsub.f32 %v815, %v1043
  %v1116 = vsub.f32 %v816, %v1040
  %v1117 = vsub.f32 %v817, %v1041
  %v1118 = vsub.f32 %v818, %v1042
  %v1119 = vsub.f32 %v819, %v1043
  %v1120 = vsub.f32 %v820, %v1040
  %v1121 = vsub.f32 %v821, %v1041
  %v1122 = vsub.f32 %v822, %v1042
  %v1123 = vsub.f32 %v823, %v1043
  %v1124 = vsub.f32 %v824, %v1040
  %v1125 = vsub.f32 %v825, %v1041
  %v1126 = vsub.f32 %v826, %v1042
  %v1127 = vsub.f32 %v827, %v1043
  %v1128 = vsub.f32 %v828, %v1040
  %v1129 = vsub.f32 %v829, %v1041
  %v1130 = vsub.f32 %v830, %v1042
  %v1131 = vsub.f32 %v831, %v1043
  %v1132 = vsub.f32 %v832, %v1040
  %v1133 = vsub.f32 %v833, %v1041
  %v1134 = vsub.f32 %v834, %v1042
  %v1135 = vsub.f32 %v835, %v1043
  %v1136 = vsub.f32 %v836, %v1040
  %v1137 = vsub.f32 %v837, %v1041
  %v1138 = vsub.f32 %v838, %v1042
  %v1139 = vsub.f32 %v839, %v1043
  %v1140 = vsub.f32 %v840, %v1040
  %v1141 = vsub.f32 %v841, %v1041
  %v1142 = vsub.f32 %v842, %v1042
  %v1143 = vsub.f32 %v843, %v1043
  %v1144 = vmul.f32 %v1044, %v1044
  %v1145 = vmul.f32 %v1045, %v1045
  %v1146 = vmul.f32 %v1046, %v1046
  %v1147 = vmul.f32 %v1047, %v1047
  %v1148 = vmul.f32 %v1048, %v1048
  %v1149 = vmul.f32 %v1049, %v1049
  %v1150 = vmul.f32 %v1050, %v1050
  %v1151 = vmul.f32 %v1051, %v1051
  %v1152 = vmul.f32 %v1052, %v1052
  %v1153 = vmul.f32 %v1053, %v1053
  %v1154 = vmul.f32 %v1054, %v1054
  %v1155 = vmul.f32 %v1055, %v1055
  %v1156 = vmul.f32 %v1056, %v1056
  %v1157 = vmul.f32 %v1057, %v1057
  %v1158 = vmul.f32 %v1058, %v1058
  %v1159 = vmul.f32 %v1059, %v1059
  %v1160 = vmul.f32 %v1060, %v1060
  %v1161 = vmul.f32 %v1061, %v1061
  %v1162 = vmul.f32 %v1062, %v1062
  %v1163 = vmul.f32 %v1063, %v1063
  %v1164 = vmul.f32 %v1064, %v1064
  %v1165 = vmul.f32 %v1065, %v1065
  %v1166 = vmul.f32 %v1066, %v1066
  %v1167 = vmul.f32 %v1067, %v1067
  %v1168 = vmul.f32 %v1068, %v1068
  %v1169 = vmul.f32 %v1069, %v1069
  %v1170 = vmul.f32 %v1070, %v1070
  %v1171 = vmul.f32 %v1071, %v1071
  %v1172 = vmul.f32 %v1072, %v1072
  %v1173 = vmul.f32 %v1073, %v1073
  %v1174 = vmul.f32 %v1074, %v1074
  %v1175 = vmul.f32 %v1075, %v1075
  %v1176 = vmul.f32 %v1076, %v1076
  %v1177 = vmul.f32 %v1077, %v1077
  %v1178 = vmul.f32 %v1078, %v1078
  %v1179 = vmul.f32 %v1079, %v1079
  %v1180 = vmul.f32 %v1080, %v1080
  %v1181 = vmul.f32 %v1081, %v1081
  %v1182 = vmul.f32 %v1082, %v1082
  %v1183 = vmul.f32 %v1083, %v1083
  %v1184 = vmul.f32 %v1084, %v1084
  %v1185 = vmul.f32 %v1085, %v1085
  %v1186 = vmul.f32 %v1086, %v1086
  %v1187 = vmul.f32 %v1087, %v1087
  %v1188 = vmul.f32 %v1088, %v1088
  %v1189 = vmul.f32 %v1089, %v1089
  %v1190 = vmul.f32 %v1090, %v1090
  %v1191 = vmul.f32 %v1091, %v1091
  %v1192 = vmul.f32 %v1092, %v1092
  %v1193 = vmul.f32 %v1093, %v1093
  %v1194 = vmul.f32 %v1094, %v1094
  %v1195 = vmul.f32 %v1095, %v1095
  %v1196 = vmul.f32 %v1096, %v1096
  %v1197 = vmul.f32 %v1097, %v1097
  %v1198 = vmul.f32 %v1098, %v1098
  %v1199 = vmul.f32 %v1099, %v1099
  %v1200 = vmul.f32 %v1100, %v1100
  %v1201 = vmul.f32 %v1101, %v1101
  %v1202 = vmul.f32 %v1102, %v1102
  %v1203 = vmul.f32 %v1103, %v1103
  %v1204 = vmul.f32 %v1104, %v1104
  %v1205 = vmul.f32 %v1105, %v1105
  %v1206 = vmul.f32 %v1106, %v1106
  %v1207 = vmul.f32 %v1107, %v1107
  %v1208 = vmul.f32 %v1108, %v1108
  %v1209 = vmul.f32 %v1109, %v1109
  %v1210 = vmul.f32 %v1110, %v1110
  %v1211 = vmul.f32 %v1111, %v1111
  %v1212 = vmul.f32 %v1112, %v1112
  %v1213 = vmul.f32 %v1113, %v1113
  %v1214 = vmul.f32 %v1114, %v1114
  %v1215 = vmul.f32 %v1115, %v1115
  %v1216 = vmul.f32 %v1116, %v1116
  %v1217 = vmul.f32 %v1117, %v1117
  %v1218 = vmul.f32 %v1118, %v1118
  %v1219 = vmul.f32 %v1119, %v1119
  %v1220 = vmul.f32 %v1120, %v1120
  %v1221 = vmul.f32 %v1121, %v1121
  %v1222 = vmul.f32 %v1122, %v1122
  %v1223 = vmul.f32 %v1123, %v1123
  %v1224 = vmul.f32 %v1124, %v1124
  %v1225 = vmul.f32 %v1125, %v1125
  %v1226 = vmul.f32 %v1126, %v1126
  %v1227 = vmul.f32 %v1127, %v1127
  %v1228 = vmul.f32 %v1128, %v1128
  %v1229 = vmul.f32 %v1129, %v1129
  %v1230 = vmul.f32 %v1130, %v1130
  %v1231 = vmul.f32 %v1131, %v1131
  %v1232 = vmul.f32 %v1132, %v1132
  %v1233 = vmul.f32 %v1133, %v1133
  %v1234 = vmul.f32 %v1134, %v1134
  %v1235 = vmul.f32 %v1135, %v1135
  %v1236 = vmul.f32 %v1136, %v1136
  %v1237 = vmul.f32 %v1137, %v1137
  %v1238 = vmul.f32 %v1138, %v1138
  %v1239 = vmul.f32 %v1139, %v1139
  %v1240 = vmul.f32 %v1140, %v1140
  %v1241 = vmul.f32 %v1141, %v1141
  %v1242 = vmul.f32 %v1142, %v1142
  %v1243 = vmul.f32 %v1143, %v1143
  %v1244 = vsel %vm111, %v1144, 0.0
  %v1245 = vsel %vm111, %v1148, 0.0
  %v1246 = vadd.f32 %v1244, %v1245
  %v1247 = vsel %vm111, %v1152, 0.0
  %v1248 = vadd.f32 %v1246, %v1247
  %v1249 = vsel %vm111, %v1156, 0.0
  %v1250 = vadd.f32 %v1248, %v1249
  %v1251 = vsel %vm111, %v1160, 0.0
  %v1252 = vadd.f32 %v1250, %v1251
  %v1253 = vsel %vm111, %v1164, 0.0
  %v1254 = vadd.f32 %v1252, %v1253
  %v1255 = vsel %vm111, %v1168, 0.0
  %v1256 = vadd.f32 %v1254, %v1255
  %v1257 = vsel %vm111, %v1172, 0.0
  %v1258 = vadd.f32 %v1256, %v1257
  %v1259 = vsel %vm111, %v1176, 0.0
  %v1260 = vadd.f32 %v1258, %v1259
  %v1261 = vsel %vm111, %v1180, 0.0
  %v1262 = vadd.f32 %v1260, %v1261
  %v1263 = vsel %vm111, %v1184, 0.0
  %v1264 = vadd.f32 %v1262, %v1263
  %v1265 = vsel %vm111, %v1188, 0.0
  %v1266 = vadd.f32 %v1264, %v1265
  %v1267 = vsel %vm111, %v1192, 0.0
  %v1268 = vadd.f32 %v1266, %v1267
  %v1269 = vsel %vm111, %v1196, 0.0
  %v1270 = vadd.f32 %v1268, %v1269
  %v1271 = vsel %vm111, %v1200, 0.0
  %v1272 = vadd.f32 %v1270, %v1271
  %v1273 = vsel %vm111, %v1204, 0.0
  %v1274 = vadd.f32 %v1272, %v1273
  %v1275 = vsel %vm111, %v1208, 0.0
  %v1276 = vadd.f32 %v1274, %v1275
  %v1277 = vsel %vm111, %v1212, 0.0
  %v1278 = vadd.f32 %v1276, %v1277
  %v1279 = vsel %vm111, %v1216, 0.0
  %v1280 = vadd.f32 %v1278, %v1279
  %v1281 = vsel %vm111, %v1220, 0.0
  %v1282 = vadd.f32 %v1280, %v1281
  %v1283 = vsel %vm111, %v1224, 0.0
  %v1284 = vadd.f32 %v1282, %v1283
  %v1285 = vsel %vm111, %v1228, 0.0
  %v1286 = vadd.f32 %v1284, %v1285
  %v1287 = vsel %vm111, %v1232, 0.0
  %v1288 = vadd.f32 %v1286, %v1287
  %v1289 = vsel %vm111, %v1236, 0.0
  %v1290 = vadd.f32 %v1288, %v1289
  %v1291 = vsel %vm111, %v1240, 0.0
  %v1292 = vadd.f32 %v1290, %v1291
  %v1293 = vsel %vm111, %v1145, 0.0
  %v1294 = vsel %vm111, %v1149, 0.0
  %v1295 = vadd.f32 %v1293, %v1294
  %v1296 = vsel %vm111, %v1153, 0.0
  %v1297 = vadd.f32 %v1295, %v1296
  %v1298 = vsel %vm111, %v1157, 0.0
  %v1299 = vadd.f32 %v1297, %v1298
  %v1300 = vsel %vm111, %v1161, 0.0
  %v1301 = vadd.f32 %v1299, %v1300
  %v1302 = vsel %vm111, %v1165, 0.0
  %v1303 = vadd.f32 %v1301, %v1302
  %v1304 = vsel %vm111, %v1169, 0.0
  %v1305 = vadd.f32 %v1303, %v1304
  %v1306 = vsel %vm111, %v1173, 0.0
  %v1307 = vadd.f32 %v1305, %v1306
  %v1308 = vsel %vm111, %v1177, 0.0
  %v1309 = vadd.f32 %v1307, %v1308
  %v1310 = vsel %vm111, %v1181, 0.0
  %v1311 = vadd.f32 %v1309, %v1310
  %v1312 = vsel %vm111, %v1185, 0.0
  %v1313 = vadd.f32 %v1311, %v1312
  %v1314 = vsel %vm111, %v1189, 0.0
  %v1315 = vadd.f32 %v1313, %v1314
  %v1316 = vsel %vm111, %v1193, 0.0
  %v1317 = vadd.f32 %v1315, %v1316
  %v1318 = vsel %vm111, %v1197, 0.0
  %v1319 = vadd.f32 %v1317, %v1318
  %v1320 = vsel %vm111, %v1201, 0.0
  %v1321 = vadd.f32 %v1319, %v1320
  %v1322 = vsel %vm111, %v1205, 0.0
  %v1323 = vadd.f32 %v1321, %v1322
  %v1324 = vsel %vm111, %v1209, 0.0
  %v1325 = vadd.f32 %v1323, %v1324
  %v1326 = vsel %vm111, %v1213, 0.0
  %v1327 = vadd.f32 %v1325, %v1326
  %v1328 = vsel %vm111, %v1217, 0.0
  %v1329 = vadd.f32 %v1327, %v1328
  %v1330 = vsel %vm111, %v1221, 0.0
  %v1331 = vadd.f32 %v1329, %v1330
  %v1332 = vsel %vm111, %v1225, 0.0
  %v1333 = vadd.f32 %v1331, %v1332
  %v1334 = vsel %vm111, %v1229, 0.0
  %v1335 = vadd.f32 %v1333, %v1334
  %v1336 = vsel %vm111, %v1233, 0.0
  %v1337 = vadd.f32 %v1335, %v1336
  %v1338 = vsel %vm111, %v1237, 0.0
  %v1339 = vadd.f32 %v1337, %v1338
  %v1340 = vsel %vm111, %v1241, 0.0
  %v1341 = vadd.f32 %v1339, %v1340
  %v1342 = vsel %vm111, %v1146, 0.0
  %v1343 = vsel %vm111, %v1150, 0.0
  %v1344 = vadd.f32 %v1342, %v1343
  %v1345 = vsel %vm111, %v1154, 0.0
  %v1346 = vadd.f32 %v1344, %v1345
  %v1347 = vsel %vm111, %v1158, 0.0
  %v1348 = vadd.f32 %v1346, %v1347
  %v1349 = vsel %vm111, %v1162, 0.0
  %v1350 = vadd.f32 %v1348, %v1349
  %v1351 = vsel %vm111, %v1166, 0.0
  %v1352 = vadd.f32 %v1350, %v1351
  %v1353 = vsel %vm111, %v1170, 0.0
  %v1354 = vadd.f32 %v1352, %v1353
  %v1355 = vsel %vm111, %v1174, 0.0
  %v1356 = vadd.f32 %v1354, %v1355
  %v1357 = vsel %vm111, %v1178, 0.0
  %v1358 = vadd.f32 %v1356, %v1357
  %v1359 = vsel %vm111, %v1182, 0.0
  %v1360 = vadd.f32 %v1358, %v1359
  %v1361 = vsel %vm111, %v1186, 0.0
  %v1362 = vadd.f32 %v1360, %v1361
  %v1363 = vsel %vm111, %v1190, 0.0
  %v1364 = vadd.f32 %v1362, %v1363
  %v1365 = vsel %vm111, %v1194, 0.0
  %v1366 = vadd.f32 %v1364, %v1365
  %v1367 = vsel %vm111, %v1198, 0.0
  %v1368 = vadd.f32 %v1366, %v1367
  %v1369 = vsel %vm111, %v1202, 0.0
  %v1370 = vadd.f32 %v1368, %v1369
  %v1371 = vsel %vm111, %v1206, 0.0
  %v1372 = vadd.f32 %v1370, %v1371
  %v1373 = vsel %vm111, %v1210, 0.0
  %v1374 = vadd.f32 %v1372, %v1373
  %v1375 = vsel %vm111, %v1214, 0.0
  %v1376 = vadd.f32 %v1374, %v1375
  %v1377 = vsel %vm111, %v1218, 0.0
  %v1378 = vadd.f32 %v1376, %v1377
  %v1379 = vsel %vm111, %v1222, 0.0
  %v1380 = vadd.f32 %v1378, %v1379
  %v1381 = vsel %vm111, %v1226, 0.0
  %v1382 = vadd.f32 %v1380, %v1381
  %v1383 = vsel %vm111, %v1230, 0.0
  %v1384 = vadd.f32 %v1382, %v1383
  %v1385 = vsel %vm111, %v1234, 0.0
  %v1386 = vadd.f32 %v1384, %v1385
  %v1387 = vsel %vm111, %v1238, 0.0
  %v1388 = vadd.f32 %v1386, %v1387
  %v1389 = vsel %vm111, %v1242, 0.0
  %v1390 = vadd.f32 %v1388, %v1389
  %v1391 = vsel %vm111, %v1147, 0.0
  %v1392 = vsel %vm111, %v1151, 0.0
  %v1393 = vadd.f32 %v1391, %v1392
  %v1394 = vsel %vm111, %v1155, 0.0
  %v1395 = vadd.f32 %v1393, %v1394
  %v1396 = vsel %vm111, %v1159, 0.0
  %v1397 = vadd.f32 %v1395, %v1396
  %v1398 = vsel %vm111, %v1163, 0.0
  %v1399 = vadd.f32 %v1397, %v1398
  %v1400 = vsel %vm111, %v1167, 0.0
  %v1401 = vadd.f32 %v1399, %v1400
  %v1402 = vsel %vm111, %v1171, 0.0
  %v1403 = vadd.f32 %v1401, %v1402
  %v1404 = vsel %vm111, %v1175, 0.0
  %v1405 = vadd.f32 %v1403, %v1404
  %v1406 = vsel %vm111, %v1179, 0.0
  %v1407 = vadd.f32 %v1405, %v1406
  %v1408 = vsel %vm111, %v1183, 0.0
  %v1409 = vadd.f32 %v1407, %v1408
  %v1410 = vsel %vm111, %v1187, 0.0
  %v1411 = vadd.f32 %v1409, %v1410
  %v1412 = vsel %vm111, %v1191, 0.0
  %v1413 = vadd.f32 %v1411, %v1412
  %v1414 = vsel %vm111, %v1195, 0.0
  %v1415 = vadd.f32 %v1413, %v1414
  %v1416 = vsel %vm111, %v1199, 0.0
  %v1417 = vadd.f32 %v1415, %v1416
  %v1418 = vsel %vm111, %v1203, 0.0
  %v1419 = vadd.f32 %v1417, %v1418
  %v1420 = vsel %vm111, %v1207, 0.0
  %v1421 = vadd.f32 %v1419, %v1420
  %v1422 = vsel %vm111, %v1211, 0.0
  %v1423 = vadd.f32 %v1421, %v1422
  %v1424 = vsel %vm111, %v1215, 0.0
  %v1425 = vadd.f32 %v1423, %v1424
  %v1426 = vsel %vm111, %v1219, 0.0
  %v1427 = vadd.f32 %v1425, %v1426
  %v1428 = vsel %vm111, %v1223, 0.0
  %v1429 = vadd.f32 %v1427, %v1428
  %v1430 = vsel %vm111, %v1227, 0.0
  %v1431 = vadd.f32 %v1429, %v1430
  %v1432 = vsel %vm111, %v1231, 0.0
  %v1433 = vadd.f32 %v1431, %v1432
  %v1434 = vsel %vm111, %v1235, 0.0
  %v1435 = vadd.f32 %v1433, %v1434
  %v1436 = vsel %vm111, %v1239, 0.0
  %v1437 = vadd.f32 %v1435, %v1436
  %v1438 = vsel %vm111, %v1243, 0.0
  %v1439 = vadd.f32 %v1437, %v1438
  %v1440 = vmul.f32 %v1292, 0.04
  %v1441 = vmul.f32 %v1341, 0.04
  %v1442 = vmul.f32 %v1390, 0.04
  %v1443 = vmul.f32 %v1439, 0.04
  %v1444 = vadd.f32 %v1440, 1e-09
  %v1445 = vadd.f32 %v1441, 1e-09
  %v1446 = vadd.f32 %v1442, 1e-09
  %v1447 = vadd.f32 %v1443, 1e-09
  %v1448 = vrsqrt.pop %v1444
  %v1449 = vmul.f32 %v1444, %v1448
  %vm1450 = vcmp.eq.f32.partialorder %v1444, inf
  %v1451 = vsel %vm1450, %v1444, %v1449
  %vm1452 = vcmp.eq.f32.partialorder %v1444, 0.0
  %v1453 = vand.u32 %v1444, 2147483648
  %v1454 = vsel %vm1452, %v1453, %v1451
  %v1455 = vrsqrt.pop %v1445
  %v1456 = vmul.f32 %v1445, %v1455
  %vm1457 = vcmp.eq.f32.partialorder %v1445, inf
  %v1458 = vsel %vm1457, %v1445, %v1456
  %vm1459 = vcmp.eq.f32.partialorder %v1445, 0.0
  %v1460 = vand.u32 %v1445, 2147483648
  %v1461 = vsel %vm1459, %v1460, %v1458
  %v1462 = vrsqrt.pop %v1446
  %v1463 = vmul.f32 %v1446, %v1462
  %vm1464 = vcmp.eq.f32.partialorder %v1446, inf
  %v1465 = vsel %vm1464, %v1446, %v1463
  %vm1466 = vcmp.eq.f32.partialorder %v1446, 0.0
  %v1467 = vand.u32 %v1446, 2147483648
  %v1468 = vsel %vm1466, %v1467, %v1465
  %v1469 = vrsqrt.pop %v1447
  %v1470 = vmul.f32 %v1447, %v1469
  %vm1471 = vcmp.eq.f32.partialorder %v1447, inf
  %v1472 = vsel %vm1471, %v1447, %v1470
  %vm1473 = vcmp.eq.f32.partialorder %v1447, 0.0
  %v1474 = vand.u32 %v1447, 2147483648
  %v1475 = vsel %vm1473, %v1474, %v1472
  %v1476 = vmul.f32 %v722, 2.0
  %v1477 = vmul.f32 %v729, 2.0
  %v1478 = vmul.f32 %v736, 2.0
  %v1479 = vmul.f32 %v743, 2.0
  %v1480 = vmul.f32 %v1476, %v1454
  %v1481 = vmul.f32 %v1477, %v1461
  %v1482 = vmul.f32 %v1478, %v1468
  %v1483 = vmul.f32 %v1479, %v1475
  %v1484 = vmul.f32 %v722, %v722
  %v1485 = vmul.f32 %v729, %v729
  %v1486 = vmul.f32 %v736, %v736
  %v1487 = vmul.f32 %v743, %v743
  %v1488 = vmul.f32 %v1454, %v1454
  %v1489 = vmul.f32 %v1461, %v1461
  %v1490 = vmul.f32 %v1468, %v1468
  %v1491 = vmul.f32 %v1475, %v1475
  %v1492 = vadd.f32 %v1484, %v1488
  %v1493 = vadd.f32 %v1485, %v1489
  %v1494 = vadd.f32 %v1486, %v1490
  %v1495 = vadd.f32 %v1487, %v1491
  %v1496 = vadd.f32 %v1492, 1e-05
  %v1497 = vadd.f32 %v1493, 1e-05
  %v1498 = vadd.f32 %v1494, 1e-05
  %v1499 = vadd.f32 %v1495, 1e-05
  %v1500 = vrcp.pop %v1496
  %v1501 = vmul.f32 %v1480, %v1500
  %v1502 = vrcp.pop %v1497
  %v1503 = vmul.f32 %v1481, %v1502
  %v1504 = vrcp.pop %v1498
  %v1505 = vmul.f32 %v1482, %v1504
  %v1506 = vrcp.pop %v1499
  %v1507 = vmul.f32 %v1483, %v1506
  %vm1508 = vcmp.gt.f32.partialorder %v1501, 0.975
  %vm1509 = vcmp.gt.f32.partialorder %v1503, 0.975
  %vm1510 = vcmp.gt.f32.partialorder %v1505, 0.975
  %vm1511 = vcmp.gt.f32.partialorder %v1507, 0.975
  %v1512 = vsel %vm1508, 1.0, 0.0
  %v1513 = vsel %vm1509, 1.0, 0.0
  %v1514 = vsel %vm1510, 1.0, 0.0
  %v1515 = vsel %vm1511, 1.0, 0.0
  %1516 = vst.msk [vmem:[%s2] sm:$0xff] %vm111, %v1512
  %1517 = vst.msk [vmem:[%s2 + $0x8] sm:$0xff] %vm111, %v1513
  %1518 = vst.msk [vmem:[%s2 + $0x10] sm:$0xff] %vm111, %v1514
  %1519 = vst.msk [vmem:[%s2 + $0x18] sm:$0xff] %vm111, %v1515
  // Predicated region
  $region10: #{network_forward.16} parent=0 // pred_check
    _
  $region11: #{network_forward.16} parent=0 // pred_check_branch
    %1521 = sbr.rel (0) target = $region13
  $region12: #{network_forward.16} parent=0 // pred_region
    _
  $region13: #{network_forward.16} parent=0 // pred_fallthru
    _
  // Predicated region
  $region14: #{network_forward.16} parent=0 // pred_check
    _
  $region15: #{network_forward.16} parent=0 // pred_check_branch
    %1523 = sbr.rel (0) target = $region17
  $region16: #{network_forward.16} parent=0 // pred_region
    _
  $region17: #{network_forward.16} parent=0 // pred_fallthru
    _

</llo_original>
